<compile_context>
chip_gen: v6e
topology: v6e:2x2x1
jax: 0.10.0
libtpu: 0.0.40
codegen_flags: <defaults>
</compile_context>

<pallas_src>
import functools
import math

import numpy as np
import jax
import jax.numpy as jnp
from jax import lax
from jax.experimental import pallas as pl
from jax.experimental.pallas import tpu as pltpu


# ----------------------------------------------------------------------------
# Fused Pallas kernel (whole forward pass, single grid step)
# ----------------------------------------------------------------------------
def _fused_kernel(x_ref,
                  w1_ref, s1_ref, a1_ref, b1_ref,
                  w2_ref, s2_ref, a2_ref, b2_ref,
                  w3_ref, s3_ref, a3_ref, b3_ref,
                  wq_ref, wk_ref, wv_ref, wo_ref, mask_ref,
                  w4_ref, s4_ref, a4_ref, b4_ref,
                  w5_ref, s5_ref, a5_ref, b5_ref,
                  o_ref, *, n_head):

    def conv_bn_act(x_bf16, w_ref, s_ref, scale_ref, shift_ref, act):
        # x_bf16: (C_in, M_in) bf16;  w_ref: (9, C_out, C_in) bf16;
        # s_ref: (9, M_in, M_out) bf16 0/1 gather;  scale/shift: (C_out, 1) f32.
        c_out = w_ref.shape[1]
        m_out = s_ref.shape[2]
        y = jnp.zeros((c_out, m_out), jnp.float32)
        for t in range(9):                                   # static unroll: 9 taps
            g = jnp.dot(x_bf16, s_ref[t],
                        preferred_element_type=jnp.float32)  # exact column gather
            y = y + jnp.dot(w_ref[t], g.astype(jnp.bfloat16),
                            preferred_element_type=jnp.float32)
        y = y * scale_ref[...] + shift_ref[...]              # eval-mode BatchNorm
        if act == "leaky":
            y = jnp.where(y >= 0.0, y, 0.2 * y)
        else:                                                # "sigmoid"
            y = jax.nn.sigmoid(y)
        return y

    # ---- self.main --------------------------------------------------------
    x = conv_bn_act(x_ref[...], w1_ref, s1_ref, a1_ref, b1_ref, "leaky")
    x = conv_bn_act(x.astype(jnp.bfloat16), w2_ref, s2_ref, a2_ref, b2_ref, "leaky")
    x = conv_bn_act(x.astype(jnp.bfloat16), w3_ref, s3_ref, a3_ref, b3_ref, "leaky")

    # ---- self.attention: 4-head self-attention over flattened spatial -----
    # x is (C, B*L) f32.  Whole batch = one sequence; cross-batch scores are killed
    # by the additive block-diagonal mask.  Heads are batched on a major axis.
    C, BL = x.shape
    hd = C // n_head
    xb = jnp.broadcast_to(x, (n_head, C, BL))
    dn_proj = (((2,), (1,)), ((0,), (0,)))                   # contract C, batch heads
    qT = lax.dot_general(wq_ref[...], xb, dn_proj, preferred_element_type=jnp.float32)
    kT = lax.dot_general(wk_ref[...], xb, dn_proj, preferred_element_type=jnp.float32)
    vT = lax.dot_general(wv_ref[...], xb, dn_proj, preferred_element_type=jnp.float32)

    s = lax.dot_general(qT, kT, (((1,), (1,)), ((0,), (0,))),
                        preferred_element_type=jnp.float32)  # (H, BL, BL)
    s = s * (1.0 / math.sqrt(hd)) + mask_ref[...]
    s = s - jnp.max(s, axis=-1, keepdims=True)
    p = jnp.exp(s)
    p = p / jnp.sum(p, axis=-1, keepdims=True)               # exact softmax

    oT = lax.dot_general(vT, p, (((2,), (2,)), ((0,), (0,))),
                         preferred_element_type=jnp.float32)   # (H, hd, BL)
    outT = lax.dot_general(wo_ref[...], oT, (((2,), (1,)), ((0,), (0,))),
                           preferred_element_type=jnp.float32)  # (H, C, BL)
    x = jnp.sum(outT, axis=0)                                   # (C, BL) f32

    # ---- self.main2 --------------------------------------------------------
    x = conv_bn_act(x.astype(jnp.bfloat16), w4_ref, s4_ref, a4_ref, b4_ref, "leaky")
    y = conv_bn_act(x.astype(jnp.bfloat16), w5_ref, s5_ref, a5_ref, b5_ref, "sigmoid")
    o_ref[...] = y


# ----------------------------------------------------------------------------
# Host-side packing (done once, outside the per-step jit)
# ----------------------------------------------------------------------------
def _out_hw(n, stride):
    return (n + 2 - 3) // stride + 1


def _selection_matrices(B, H, W, stride):
    """0/1 gather matrices S[t] of shape (B*H*W, B*OH*OW) for a 3x3/pad=1 conv.

    Column m of S[t] has a single 1 at the input position read by tap t=(kh,kw)
    for output position m (all-zero if the tap falls in the zero padding).
    Row / column order is (b, h, w) / (b, oh, ow)."""
    OH, OW = _out_hw(H, stride), _out_hw(W, stride)
    S = np.zeros((9, B * H * W, B * OH * OW), np.float32)
    for kh in range(3):
        for kw in range(3):
            t = kh * 3 + kw
            for b in range(B):
                for oh in range(OH):
                    ih = oh * stride + kh - 1
                    if ih < 0 or ih >= H:
                        continue
                    for ow in range(OW):
                        iw = ow * stride + kw - 1
                        if iw < 0 or iw >= W:
                            continue
                        S[t, (b * H + ih) * W + iw, (b * OH + oh) * OW + ow] = 1.0
    return S, OH, OW


def _bn_scale_shift(gamma, beta, mean, var, eps=1e-5):
    scale = gamma / jnp.sqrt(var + eps)
    shift = beta - mean * scale
    return scale, shift


def pack_params(params, input_shape, n_head=4):
    """Pack weights, conv gather matrices, BN scale/shift and the attention mask
    into the flat operand tuple consumed by the fused kernel."""
    B, _, H, W = input_shape
    assert B * H * W <= 8192, "fused kernel is sized for small occupancy maps"

    def conv_stage(w_oihw, stride, bn, h, w):
        c_out, c_in = int(w_oihw.shape[0]), int(w_oihw.shape[1])
        s_np, oh, ow = _selection_matrices(B, h, w, stride)
        w9 = jnp.transpose(w_oihw, (2, 3, 0, 1)).reshape(9, c_out, c_in)
        if bn is None:
            scale = jnp.ones((c_out,), jnp.float32)
            shift = jnp.zeros((c_out,), jnp.float32)
        else:
            scale, shift = _bn_scale_shift(*bn)
        ops = (w9.astype(jnp.bfloat16),
               jnp.asarray(s_np, jnp.bfloat16),
               scale.reshape(c_out, 1).astype(jnp.float32),
               shift.reshape(c_out, 1).astype(jnp.float32))
        return ops, oh, ow

    ops1, h1, w1 = conv_stage(params["conv1_w"], 2, None, H, W)
    ops2, h2, w2 = conv_stage(params["conv2_w"], 2, params["bn2"], h1, w1)
    ops3, h3, w3 = conv_stage(params["conv3_w"], 2, params["bn3"], h2, w2)
    ops4, h4, w4 = conv_stage(params["conv4_w"], 2, params["bn4"], h3, w3)
    ops5, _, _ = conv_stage(params["conv5_w"], 1, None, h4, w4)

    # Attention weights, pre-split per head and transposed for the (C, B*L) layout:
    #   q_h^T = Wq[:, h*hd:(h+1)*hd]^T @ X      -> wq packed as (H, hd, C)
    #   out^T = sum_h Wo[h*hd:(h+1)*hd, :]^T @ o_h^T -> wo packed as (H, C, hd)
    C = int(params["wq"].shape[0])
    hd = C // n_head
    wqT = jnp.transpose(params["wq"].reshape(C, n_head, hd), (1, 2, 0))
    wkT = jnp.transpose(params["wk"].reshape(C, n_head, hd), (1, 2, 0))
    wvT = jnp.transpose(params["wv"].reshape(C, n_head, hd), (1, 2, 0))
    woT = jnp.transpose(params["wo"].reshape(n_head, hd, C), (0, 2, 1))

    L = h3 * w3
    mask_np = np.full((B * L, B * L), -1e30, np.float32)
    for b in range(B):
        mask_np[b * L:(b + 1) * L, b * L:(b + 1) * L] = 0.0
    mask = jnp.asarray(mask_np)

    packed = (*ops1, *ops2, *ops3,
              wqT.astype(jnp.float32), wkT.astype(jnp.float32),
              wvT.astype(jnp.float32), woT.astype(jnp.float32), mask,
              *ops4, *ops5)
    return packed


# ----------------------------------------------------------------------------
# Jitted forward: one transpose of the input, one pallas_call, one reshape out
# ----------------------------------------------------------------------------
@functools.partial(jax.jit, static_argnames=("n_head",))
def discriminator_attention(x_nchw, packed, n_head=4):
    B, C0, H, W = x_nchw.shape
    # Lane-dense (C, B*H*W) input slab, cast to bf16 once (only per-call XLA glue).
    x0 = jnp.transpose(x_nchw, (1, 0, 2, 3)).reshape(C0, B * H * W).astype(jnp.bfloat16)

    h1, w1 = _out_hw(H, 2), _out_hw(W, 2)
    h2, w2 = _out_hw(h1, 2), _out_hw(w1, 2)
    h3, w3 = _out_hw(h2, 2), _out_hw(w2, 2)
    h4, w4 = _out_hw(h3, 2), _out_hw(w3, 2)
    h5, w5 = _out_hw(h4, 1), _out_hw(w4, 1)
    m_out = B * h5 * w5

    vmem = pl.BlockSpec(memory_space=pltpu.MemorySpace.VMEM)
    out = pl.pallas_call(
        functools.partial(_fused_kernel, n_head=n_head),
        out_shape=jax.ShapeDtypeStruct((1, m_out), jnp.float32),
        in_specs=[vmem] * (1 + len(packed)),
        out_specs=vmem,
    )(x0, *packed)

    # (1, B*h5*w5) with columns (b, oh, ow)  ->  NCHW (B, 1, H/16, W/16)
    return out.reshape(B, h5, w5)[:, None, :, :]


# ----------------------------------------------------------------------------
# Parameter init (deterministic, synthetic)
# ----------------------------------------------------------------------------
def init_params(key):
    ks = jax.random.split(key, 32)
    it = iter(range(32))

    def conv_w(cout, cin):
        fan_in = cin * 9
        return (jax.random.normal(ks[next(it)], (cout, cin, 3, 3), jnp.float32)
                / math.sqrt(fan_in))

    def bn(c):
        gamma = 1.0 + 0.1 * jax.random.normal(ks[next(it)], (c,), jnp.float32)
        beta = 0.1 * jax.random.normal(ks[next(it)], (c,), jnp.float32)
        mean = 0.1 * jax.random.normal(ks[next(it)], (c,), jnp.float32)
        var = jnp.abs(jax.random.normal(ks[next(it)], (c,), jnp.float32)) + 0.5
        return gamma, beta, mean, var

    def lin(c):
        return jax.random.normal(ks[next(it)], (c, c), jnp.float32) / math.sqrt(c)

    params = {
        "conv1_w": conv_w(8, 3),
        "conv2_w": conv_w(16, 8), "bn2": bn(16),
        "conv3_w": conv_w(32, 16), "bn3": bn(32),
        "wq": lin(32), "wk": lin(32), "wv": lin(32), "wo": lin(32),
        "conv4_w": conv_w(8, 32), "bn4": bn(8),
        "conv5_w": conv_w(1, 8),
    }
    return params


if __name__ == "__main__":
    key = jax.random.PRNGKey(0)
    pkey, xkey = jax.random.split(key)
    params = init_params(pkey)

    # Small occupancy-map-like input: (batch=2, channels=3, 16, 16)
    x = jax.random.normal(xkey, (2, 3, 16, 16), jnp.float32)

    packed = pack_params(params, x.shape)
    out = discriminator_attention(x, packed)
    out = jax.block_until_ready(out)

    assert out.shape == (2, 1, 1, 1), out.shape
    assert bool(jnp.all((out >= 0.0) & (out <= 1.0)))  # sigmoid range
    print("KERNEL_OK")
</pallas_src>

<mosaic_0001>
module attributes {stable_mosaic.version = 11 : i64} {
  func.func @_fused_kernel(%arg0: memref<3x512xbf16, #tpu.memory_space<vmem>>, %arg1: memref<9x8x3xbf16, #tpu.memory_space<vmem>>, %arg2: memref<9x512x128xbf16, #tpu.memory_space<vmem>>, %arg3: memref<8x1xf32, #tpu.memory_space<vmem>>, %arg4: memref<8x1xf32, #tpu.memory_space<vmem>>, %arg5: memref<9x16x8xbf16, #tpu.memory_space<vmem>>, %arg6: memref<9x128x32xbf16, #tpu.memory_space<vmem>>, %arg7: memref<16x1xf32, #tpu.memory_space<vmem>>, %arg8: memref<16x1xf32, #tpu.memory_space<vmem>>, %arg9: memref<9x32x16xbf16, #tpu.memory_space<vmem>>, %arg10: memref<9x32x8xbf16, #tpu.memory_space<vmem>>, %arg11: memref<32x1xf32, #tpu.memory_space<vmem>>, %arg12: memref<32x1xf32, #tpu.memory_space<vmem>>, %arg13: memref<4x8x32xf32, #tpu.memory_space<vmem>>, %arg14: memref<4x8x32xf32, #tpu.memory_space<vmem>>, %arg15: memref<4x8x32xf32, #tpu.memory_space<vmem>>, %arg16: memref<4x32x8xf32, #tpu.memory_space<vmem>>, %arg17: memref<8x8xf32, #tpu.memory_space<vmem>>, %arg18: memref<9x8x32xbf16, #tpu.memory_space<vmem>>, %arg19: memref<9x8x2xbf16, #tpu.memory_space<vmem>>, %arg20: memref<8x1xf32, #tpu.memory_space<vmem>>, %arg21: memref<8x1xf32, #tpu.memory_space<vmem>>, %arg22: memref<9x1x8xbf16, #tpu.memory_space<vmem>>, %arg23: memref<9x2x2xbf16, #tpu.memory_space<vmem>>, %arg24: memref<1x1xf32, #tpu.memory_space<vmem>>, %arg25: memref<1x1xf32, #tpu.memory_space<vmem>>, %arg26: memref<1x2xf32, #tpu.memory_space<vmem>>) attributes {dimension_semantics = [], scalar_prefetch = 0 : i64, scratch_operands = 0 : i64, tpu.core_type = #tpu.core_type<tc>} {
    %c0 = arith.constant 0 : index
    %c0_0 = arith.constant 0 : index
    %0 = vector.load %arg0[%c0, %c0_0] : memref<3x512xbf16, #tpu.memory_space<vmem>>, vector<3x512xbf16>
    %cst = arith.constant 0.000000e+00 : f32
    %1 = vector.broadcast %cst : f32 to vector<8x128xf32>
    %c0_1 = arith.constant 0 : index
    %c0_2 = arith.constant 0 : index
    %c0_3 = arith.constant 0 : index
    %2 = vector.load %arg2[%c0_1, %c0_2, %c0_3] : memref<9x512x128xbf16, #tpu.memory_space<vmem>>, vector<1x512x128xbf16>
    %3 = vector.shape_cast %2 : vector<1x512x128xbf16> to vector<512x128xbf16>
    %cst_4 = arith.constant dense<0.000000e+00> : vector<3x128xf32>
    %4 = tpu.matmul %0, %3, %cst_4 {dimension_numbers = #tpu.dot_dimension_numbers<[1], [0], [0], [1], [0, 0, 1, 1], [], []>} : vector<3x512xbf16>, vector<512x128xbf16>, vector<3x128xf32> -> vector<3x128xf32>
    %c0_5 = arith.constant 0 : index
    %c0_6 = arith.constant 0 : index
    %c0_7 = arith.constant 0 : index
    %5 = vector.load %arg1[%c0_5, %c0_6, %c0_7] : memref<9x8x3xbf16, #tpu.memory_space<vmem>>, vector<1x8x3xbf16>
    %6 = vector.shape_cast %5 : vector<1x8x3xbf16> to vector<8x3xbf16>
    %7 = arith.truncf %4 : vector<3x128xf32> to vector<3x128xbf16>
    %cst_8 = arith.constant dense<0.000000e+00> : vector<8x128xf32>
    %8 = tpu.matmul %6, %7, %cst_8 {dimension_numbers = #tpu.dot_dimension_numbers<[1], [0], [0], [1], [0, 0, 1, 1], [], []>} : vector<8x3xbf16>, vector<3x128xbf16>, vector<8x128xf32> -> vector<8x128xf32>
    %9 = arith.addf %1, %8 : vector<8x128xf32>
    %c1 = arith.constant 1 : index
    %c0_9 = arith.constant 0 : index
    %c0_10 = arith.constant 0 : index
    %10 = vector.load %arg2[%c1, %c0_9, %c0_10] : memref<9x512x128xbf16, #tpu.memory_space<vmem>>, vector<1x512x128xbf16>
    %11 = vector.shape_cast %10 : vector<1x512x128xbf16> to vector<512x128xbf16>
    %cst_11 = arith.constant dense<0.000000e+00> : vector<3x128xf32>
    %12 = tpu.matmul %0, %11, %cst_11 {dimension_numbers = #tpu.dot_dimension_numbers<[1], [0], [0], [1], [0, 0, 1, 1], [], []>} : vector<3x512xbf16>, vector<512x128xbf16>, vector<3x128xf32> -> vector<3x128xf32>
    %c1_12 = arith.constant 1 : index
    %c0_13 = arith.constant 0 : index
    %c0_14 = arith.constant 0 : index
    %13 = vector.load %arg1[%c1_12, %c0_13, %c0_14] : memref<9x8x3xbf16, #tpu.memory_space<vmem>>, vector<1x8x3xbf16>
    %14 = vector.shape_cast %13 : vector<1x8x3xbf16> to vector<8x3xbf16>
    %15 = arith.truncf %12 : vector<3x128xf32> to vector<3x128xbf16>
    %cst_15 = arith.constant dense<0.000000e+00> : vector<8x128xf32>
    %16 = tpu.matmul %14, %15, %cst_15 {dimension_numbers = #tpu.dot_dimension_numbers<[1], [0], [0], [1], [0, 0, 1, 1], [], []>} : vector<8x3xbf16>, vector<3x128xbf16>, vector<8x128xf32> -> vector<8x128xf32>
    %17 = arith.addf %9, %16 : vector<8x128xf32>
    %c2 = arith.constant 2 : index
    %c0_16 = arith.constant 0 : index
    %c0_17 = arith.constant 0 : index
    %18 = vector.load %arg2[%c2, %c0_16, %c0_17] : memref<9x512x128xbf16, #tpu.memory_space<vmem>>, vector<1x512x128xbf16>
    %19 = vector.shape_cast %18 : vector<1x512x128xbf16> to vector<512x128xbf16>
    %cst_18 = arith.constant dense<0.000000e+00> : vector<3x128xf32>
    %20 = tpu.matmul %0, %19, %cst_18 {dimension_numbers = #tpu.dot_dimension_numbers<[1], [0], [0], [1], [0, 0, 1, 1], [], []>} : vector<3x512xbf16>, vector<512x128xbf16>, vector<3x128xf32> -> vector<3x128xf32>
    %c2_19 = arith.constant 2 : index
    %c0_20 = arith.constant 0 : index
    %c0_21 = arith.constant 0 : index
    %21 = vector.load %arg1[%c2_19, %c0_20, %c0_21] : memref<9x8x3xbf16, #tpu.memory_space<vmem>>, vector<1x8x3xbf16>
    %22 = vector.shape_cast %21 : vector<1x8x3xbf16> to vector<8x3xbf16>
    %23 = arith.truncf %20 : vector<3x128xf32> to vector<3x128xbf16>
    %cst_22 = arith.constant dense<0.000000e+00> : vector<8x128xf32>
    %24 = tpu.matmul %22, %23, %cst_22 {dimension_numbers = #tpu.dot_dimension_numbers<[1], [0], [0], [1], [0, 0, 1, 1], [], []>} : vector<8x3xbf16>, vector<3x128xbf16>, vector<8x128xf32> -> vector<8x128xf32>
    %25 = arith.addf %17, %24 : vector<8x128xf32>
    %c3 = arith.constant 3 : index
    %c0_23 = arith.constant 0 : index
    %c0_24 = arith.constant 0 : index
    %26 = vector.load %arg2[%c3, %c0_23, %c0_24] : memref<9x512x128xbf16, #tpu.memory_space<vmem>>, vector<1x512x128xbf16>
    %27 = vector.shape_cast %26 : vector<1x512x128xbf16> to vector<512x128xbf16>
    %cst_25 = arith.constant dense<0.000000e+00> : vector<3x128xf32>
    %28 = tpu.matmul %0, %27, %cst_25 {dimension_numbers = #tpu.dot_dimension_numbers<[1], [0], [0], [1], [0, 0, 1, 1], [], []>} : vector<3x512xbf16>, vector<512x128xbf16>, vector<3x128xf32> -> vector<3x128xf32>
    %c3_26 = arith.constant 3 : index
    %c0_27 = arith.constant 0 : index
    %c0_28 = arith.constant 0 : index
    %29 = vector.load %arg1[%c3_26, %c0_27, %c0_28] : memref<9x8x3xbf16, #tpu.memory_space<vmem>>, vector<1x8x3xbf16>
    %30 = vector.shape_cast %29 : vector<1x8x3xbf16> to vector<8x3xbf16>
    %31 = arith.truncf %28 : vector<3x128xf32> to vector<3x128xbf16>
    %cst_29 = arith.constant dense<0.000000e+00> : vector<8x128xf32>
    %32 = tpu.matmul %30, %31, %cst_29 {dimension_numbers = #tpu.dot_dimension_numbers<[1], [0], [0], [1], [0, 0, 1, 1], [], []>} : vector<8x3xbf16>, vector<3x128xbf16>, vector<8x128xf32> -> vector<8x128xf32>
    %33 = arith.addf %25, %32 : vector<8x128xf32>
    %c4 = arith.constant 4 : index
    %c0_30 = arith.constant 0 : index
    %c0_31 = arith.constant 0 : index
    %34 = vector.load %arg2[%c4, %c0_30, %c0_31] : memref<9x512x128xbf16, #tpu.memory_space<vmem>>, vector<1x512x128xbf16>
    %35 = vector.shape_cast %34 : vector<1x512x128xbf16> to vector<512x128xbf16>
    %cst_32 = arith.constant dense<0.000000e+00> : vector<3x128xf32>
    %36 = tpu.matmul %0, %35, %cst_32 {dimension_numbers = #tpu.dot_dimension_numbers<[1], [0], [0], [1], [0, 0, 1, 1], [], []>} : vector<3x512xbf16>, vector<512x128xbf16>, vector<3x128xf32> -> vector<3x128xf32>
    %c4_33 = arith.constant 4 : index
    %c0_34 = arith.constant 0 : index
    %c0_35 = arith.constant 0 : index
    %37 = vector.load %arg1[%c4_33, %c0_34, %c0_35] : memref<9x8x3xbf16, #tpu.memory_space<vmem>>, vector<1x8x3xbf16>
    %38 = vector.shape_cast %37 : vector<1x8x3xbf16> to vector<8x3xbf16>
    %39 = arith.truncf %36 : vector<3x128xf32> to vector<3x128xbf16>
    %cst_36 = arith.constant dense<0.000000e+00> : vector<8x128xf32>
    %40 = tpu.matmul %38, %39, %cst_36 {dimension_numbers = #tpu.dot_dimension_numbers<[1], [0], [0], [1], [0, 0, 1, 1], [], []>} : vector<8x3xbf16>, vector<3x128xbf16>, vector<8x128xf32> -> vector<8x128xf32>
    %41 = arith.addf %33, %40 : vector<8x128xf32>
    %c5 = arith.constant 5 : index
    %c0_37 = arith.constant 0 : index
    %c0_38 = arith.constant 0 : index
    %42 = vector.load %arg2[%c5, %c0_37, %c0_38] : memref<9x512x128xbf16, #tpu.memory_space<vmem>>, vector<1x512x128xbf16>
    %43 = vector.shape_cast %42 : vector<1x512x128xbf16> to vector<512x128xbf16>
    %cst_39 = arith.constant dense<0.000000e+00> : vector<3x128xf32>
    %44 = tpu.matmul %0, %43, %cst_39 {dimension_numbers = #tpu.dot_dimension_numbers<[1], [0], [0], [1], [0, 0, 1, 1], [], []>} : vector<3x512xbf16>, vector<512x128xbf16>, vector<3x128xf32> -> vector<3x128xf32>
    %c5_40 = arith.constant 5 : index
    %c0_41 = arith.constant 0 : index
    %c0_42 = arith.constant 0 : index
    %45 = vector.load %arg1[%c5_40, %c0_41, %c0_42] : memref<9x8x3xbf16, #tpu.memory_space<vmem>>, vector<1x8x3xbf16>
    %46 = vector.shape_cast %45 : vector<1x8x3xbf16> to vector<8x3xbf16>
    %47 = arith.truncf %44 : vector<3x128xf32> to vector<3x128xbf16>
    %cst_43 = arith.constant dense<0.000000e+00> : vector<8x128xf32>
    %48 = tpu.matmul %46, %47, %cst_43 {dimension_numbers = #tpu.dot_dimension_numbers<[1], [0], [0], [1], [0, 0, 1, 1], [], []>} : vector<8x3xbf16>, vector<3x128xbf16>, vector<8x128xf32> -> vector<8x128xf32>
    %49 = arith.addf %41, %48 : vector<8x128xf32>
    %c6 = arith.constant 6 : index
    %c0_44 = arith.constant 0 : index
    %c0_45 = arith.constant 0 : index
    %50 = vector.load %arg2[%c6, %c0_44, %c0_45] : memref<9x512x128xbf16, #tpu.memory_space<vmem>>, vector<1x512x128xbf16>
    %51 = vector.shape_cast %50 : vector<1x512x128xbf16> to vector<512x128xbf16>
    %cst_46 = arith.constant dense<0.000000e+00> : vector<3x128xf32>
    %52 = tpu.matmul %0, %51, %cst_46 {dimension_numbers = #tpu.dot_dimension_numbers<[1], [0], [0], [1], [0, 0, 1, 1], [], []>} : vector<3x512xbf16>, vector<512x128xbf16>, vector<3x128xf32> -> vector<3x128xf32>
    %c6_47 = arith.constant 6 : index
    %c0_48 = arith.constant 0 : index
    %c0_49 = arith.constant 0 : index
    %53 = vector.load %arg1[%c6_47, %c0_48, %c0_49] : memref<9x8x3xbf16, #tpu.memory_space<vmem>>, vector<1x8x3xbf16>
    %54 = vector.shape_cast %53 : vector<1x8x3xbf16> to vector<8x3xbf16>
    %55 = arith.truncf %52 : vector<3x128xf32> to vector<3x128xbf16>
    %cst_50 = arith.constant dense<0.000000e+00> : vector<8x128xf32>
    %56 = tpu.matmul %54, %55, %cst_50 {dimension_numbers = #tpu.dot_dimension_numbers<[1], [0], [0], [1], [0, 0, 1, 1], [], []>} : vector<8x3xbf16>, vector<3x128xbf16>, vector<8x128xf32> -> vector<8x128xf32>
    %57 = arith.addf %49, %56 : vector<8x128xf32>
    %c7 = arith.constant 7 : index
    %c0_51 = arith.constant 0 : index
    %c0_52 = arith.constant 0 : index
    %58 = vector.load %arg2[%c7, %c0_51, %c0_52] : memref<9x512x128xbf16, #tpu.memory_space<vmem>>, vector<1x512x128xbf16>
    %59 = vector.shape_cast %58 : vector<1x512x128xbf16> to vector<512x128xbf16>
    %cst_53 = arith.constant dense<0.000000e+00> : vector<3x128xf32>
    %60 = tpu.matmul %0, %59, %cst_53 {dimension_numbers = #tpu.dot_dimension_numbers<[1], [0], [0], [1], [0, 0, 1, 1], [], []>} : vector<3x512xbf16>, vector<512x128xbf16>, vector<3x128xf32> -> vector<3x128xf32>
    %c7_54 = arith.constant 7 : index
    %c0_55 = arith.constant 0 : index
    %c0_56 = arith.constant 0 : index
    %61 = vector.load %arg1[%c7_54, %c0_55, %c0_56] : memref<9x8x3xbf16, #tpu.memory_space<vmem>>, vector<1x8x3xbf16>
    %62 = vector.shape_cast %61 : vector<1x8x3xbf16> to vector<8x3xbf16>
    %63 = arith.truncf %60 : vector<3x128xf32> to vector<3x128xbf16>
    %cst_57 = arith.constant dense<0.000000e+00> : vector<8x128xf32>
    %64 = tpu.matmul %62, %63, %cst_57 {dimension_numbers = #tpu.dot_dimension_numbers<[1], [0], [0], [1], [0, 0, 1, 1], [], []>} : vector<8x3xbf16>, vector<3x128xbf16>, vector<8x128xf32> -> vector<8x128xf32>
    %65 = arith.addf %57, %64 : vector<8x128xf32>
    %c8 = arith.constant 8 : index
    %c0_58 = arith.constant 0 : index
    %c0_59 = arith.constant 0 : index
    %66 = vector.load %arg2[%c8, %c0_58, %c0_59] : memref<9x512x128xbf16, #tpu.memory_space<vmem>>, vector<1x512x128xbf16>
    %67 = vector.shape_cast %66 : vector<1x512x128xbf16> to vector<512x128xbf16>
    %cst_60 = arith.constant dense<0.000000e+00> : vector<3x128xf32>
    %68 = tpu.matmul %0, %67, %cst_60 {dimension_numbers = #tpu.dot_dimension_numbers<[1], [0], [0], [1], [0, 0, 1, 1], [], []>} : vector<3x512xbf16>, vector<512x128xbf16>, vector<3x128xf32> -> vector<3x128xf32>
    %c8_61 = arith.constant 8 : index
    %c0_62 = arith.constant 0 : index
    %c0_63 = arith.constant 0 : index
    %69 = vector.load %arg1[%c8_61, %c0_62, %c0_63] : memref<9x8x3xbf16, #tpu.memory_space<vmem>>, vector<1x8x3xbf16>
    %70 = vector.shape_cast %69 : vector<1x8x3xbf16> to vector<8x3xbf16>
    %71 = arith.truncf %68 : vector<3x128xf32> to vector<3x128xbf16>
    %cst_64 = arith.constant dense<0.000000e+00> : vector<8x128xf32>
    %72 = tpu.matmul %70, %71, %cst_64 {dimension_numbers = #tpu.dot_dimension_numbers<[1], [0], [0], [1], [0, 0, 1, 1], [], []>} : vector<8x3xbf16>, vector<3x128xbf16>, vector<8x128xf32> -> vector<8x128xf32>
    %73 = arith.addf %65, %72 : vector<8x128xf32>
    %c0_65 = arith.constant 0 : index
    %c0_66 = arith.constant 0 : index
    %74 = vector.load %arg3[%c0_65, %c0_66] : memref<8x1xf32, #tpu.memory_space<vmem>>, vector<8x1xf32>
    %75 = vector.broadcast %74 : vector<8x1xf32> to vector<8x128xf32>
    %76 = arith.mulf %73, %75 : vector<8x128xf32>
    %c0_67 = arith.constant 0 : index
    %c0_68 = arith.constant 0 : index
    %77 = vector.load %arg4[%c0_67, %c0_68] : memref<8x1xf32, #tpu.memory_space<vmem>>, vector<8x1xf32>
    %78 = vector.broadcast %77 : vector<8x1xf32> to vector<8x128xf32>
    %79 = arith.addf %76, %78 : vector<8x128xf32>
    %cst_69 = arith.constant 0.000000e+00 : f32
    %80 = vector.broadcast %cst_69 : f32 to vector<8x128xf32>
    %81 = arith.cmpf oge, %79, %80 : vector<8x128xf32>
    %cst_70 = arith.constant 2.000000e-01 : f32
    %82 = vector.broadcast %cst_70 : f32 to vector<8x128xf32>
    %83 = arith.mulf %82, %79 : vector<8x128xf32>
    %84 = arith.select %81, %79, %83 : vector<8x128xi1>, vector<8x128xf32>
    %85 = arith.truncf %84 : vector<8x128xf32> to vector<8x128xbf16>
    %cst_71 = arith.constant 0.000000e+00 : f32
    %86 = vector.broadcast %cst_71 : f32 to vector<16x32xf32>
    %c0_72 = arith.constant 0 : index
    %c0_73 = arith.constant 0 : index
    %c0_74 = arith.constant 0 : index
    %87 = vector.load %arg6[%c0_72, %c0_73, %c0_74] : memref<9x128x32xbf16, #tpu.memory_space<vmem>>, vector<1x128x32xbf16>
    %88 = vector.shape_cast %87 : vector<1x128x32xbf16> to vector<128x32xbf16>
    %cst_75 = arith.constant dense<0.000000e+00> : vector<8x32xf32>
    %89 = tpu.matmul %85, %88, %cst_75 {dimension_numbers = #tpu.dot_dimension_numbers<[1], [0], [0], [1], [0, 0, 1, 1], [], []>} : vector<8x128xbf16>, vector<128x32xbf16>, vector<8x32xf32> -> vector<8x32xf32>
    %c0_76 = arith.constant 0 : index
    %c0_77 = arith.constant 0 : index
    %c0_78 = arith.constant 0 : index
    %90 = vector.load %arg5[%c0_76, %c0_77, %c0_78] : memref<9x16x8xbf16, #tpu.memory_space<vmem>>, vector<1x16x8xbf16>
    %91 = vector.shape_cast %90 : vector<1x16x8xbf16> to vector<16x8xbf16>
    %92 = arith.truncf %89 : vector<8x32xf32> to vector<8x32xbf16>
    %cst_79 = arith.constant dense<0.000000e+00> : vector<16x32xf32>
    %93 = tpu.matmul %91, %92, %cst_79 {dimension_numbers = #tpu.dot_dimension_numbers<[1], [0], [0], [1], [0, 0, 1, 1], [], []>} : vector<16x8xbf16>, vector<8x32xbf16>, vector<16x32xf32> -> vector<16x32xf32>
    %94 = arith.addf %86, %93 : vector<16x32xf32>
    %c1_80 = arith.constant 1 : index
    %c0_81 = arith.constant 0 : index
    %c0_82 = arith.constant 0 : index
    %95 = vector.load %arg6[%c1_80, %c0_81, %c0_82] : memref<9x128x32xbf16, #tpu.memory_space<vmem>>, vector<1x128x32xbf16>
    %96 = vector.shape_cast %95 : vector<1x128x32xbf16> to vector<128x32xbf16>
    %cst_83 = arith.constant dense<0.000000e+00> : vector<8x32xf32>
    %97 = tpu.matmul %85, %96, %cst_83 {dimension_numbers = #tpu.dot_dimension_numbers<[1], [0], [0], [1], [0, 0, 1, 1], [], []>} : vector<8x128xbf16>, vector<128x32xbf16>, vector<8x32xf32> -> vector<8x32xf32>
    %c1_84 = arith.constant 1 : index
    %c0_85 = arith.constant 0 : index
    %c0_86 = arith.constant 0 : index
    %98 = vector.load %arg5[%c1_84, %c0_85, %c0_86] : memref<9x16x8xbf16, #tpu.memory_space<vmem>>, vector<1x16x8xbf16>
    %99 = vector.shape_cast %98 : vector<1x16x8xbf16> to vector<16x8xbf16>
    %100 = arith.truncf %97 : vector<8x32xf32> to vector<8x32xbf16>
    %cst_87 = arith.constant dense<0.000000e+00> : vector<16x32xf32>
    %101 = tpu.matmul %99, %100, %cst_87 {dimension_numbers = #tpu.dot_dimension_numbers<[1], [0], [0], [1], [0, 0, 1, 1], [], []>} : vector<16x8xbf16>, vector<8x32xbf16>, vector<16x32xf32> -> vector<16x32xf32>
    %102 = arith.addf %94, %101 : vector<16x32xf32>
    %c2_88 = arith.constant 2 : index
    %c0_89 = arith.constant 0 : index
    %c0_90 = arith.constant 0 : index
    %103 = vector.load %arg6[%c2_88, %c0_89, %c0_90] : memref<9x128x32xbf16, #tpu.memory_space<vmem>>, vector<1x128x32xbf16>
    %104 = vector.shape_cast %103 : vector<1x128x32xbf16> to vector<128x32xbf16>
    %cst_91 = arith.constant dense<0.000000e+00> : vector<8x32xf32>
    %105 = tpu.matmul %85, %104, %cst_91 {dimension_numbers = #tpu.dot_dimension_numbers<[1], [0], [0], [1], [0, 0, 1, 1], [], []>} : vector<8x128xbf16>, vector<128x32xbf16>, vector<8x32xf32> -> vector<8x32xf32>
    %c2_92 = arith.constant 2 : index
    %c0_93 = arith.constant 0 : index
    %c0_94 = arith.constant 0 : index
    %106 = vector.load %arg5[%c2_92, %c0_93, %c0_94] : memref<9x16x8xbf16, #tpu.memory_space<vmem>>, vector<1x16x8xbf16>
    %107 = vector.shape_cast %106 : vector<1x16x8xbf16> to vector<16x8xbf16>
    %108 = arith.truncf %105 : vector<8x32xf32> to vector<8x32xbf16>
    %cst_95 = arith.constant dense<0.000000e+00> : vector<16x32xf32>
    %109 = tpu.matmul %107, %108, %cst_95 {dimension_numbers = #tpu.dot_dimension_numbers<[1], [0], [0], [1], [0, 0, 1, 1], [], []>} : vector<16x8xbf16>, vector<8x32xbf16>, vector<16x32xf32> -> vector<16x32xf32>
    %110 = arith.addf %102, %109 : vector<16x32xf32>
    %c3_96 = arith.constant 3 : index
    %c0_97 = arith.constant 0 : index
    %c0_98 = arith.constant 0 : index
    %111 = vector.load %arg6[%c3_96, %c0_97, %c0_98] : memref<9x128x32xbf16, #tpu.memory_space<vmem>>, vector<1x128x32xbf16>
    %112 = vector.shape_cast %111 : vector<1x128x32xbf16> to vector<128x32xbf16>
    %cst_99 = arith.constant dense<0.000000e+00> : vector<8x32xf32>
    %113 = tpu.matmul %85, %112, %cst_99 {dimension_numbers = #tpu.dot_dimension_numbers<[1], [0], [0], [1], [0, 0, 1, 1], [], []>} : vector<8x128xbf16>, vector<128x32xbf16>, vector<8x32xf32> -> vector<8x32xf32>
    %c3_100 = arith.constant 3 : index
    %c0_101 = arith.constant 0 : index
    %c0_102 = arith.constant 0 : index
    %114 = vector.load %arg5[%c3_100, %c0_101, %c0_102] : memref<9x16x8xbf16, #tpu.memory_space<vmem>>, vector<1x16x8xbf16>
    %115 = vector.shape_cast %114 : vector<1x16x8xbf16> to vector<16x8xbf16>
    %116 = arith.truncf %113 : vector<8x32xf32> to vector<8x32xbf16>
    %cst_103 = arith.constant dense<0.000000e+00> : vector<16x32xf32>
    %117 = tpu.matmul %115, %116, %cst_103 {dimension_numbers = #tpu.dot_dimension_numbers<[1], [0], [0], [1], [0, 0, 1, 1], [], []>} : vector<16x8xbf16>, vector<8x32xbf16>, vector<16x32xf32> -> vector<16x32xf32>
    %118 = arith.addf %110, %117 : vector<16x32xf32>
    %c4_104 = arith.constant 4 : index
    %c0_105 = arith.constant 0 : index
    %c0_106 = arith.constant 0 : index
    %119 = vector.load %arg6[%c4_104, %c0_105, %c0_106] : memref<9x128x32xbf16, #tpu.memory_space<vmem>>, vector<1x128x32xbf16>
    %120 = vector.shape_cast %119 : vector<1x128x32xbf16> to vector<128x32xbf16>
    %cst_107 = arith.constant dense<0.000000e+00> : vector<8x32xf32>
    %121 = tpu.matmul %85, %120, %cst_107 {dimension_numbers = #tpu.dot_dimension_numbers<[1], [0], [0], [1], [0, 0, 1, 1], [], []>} : vector<8x128xbf16>, vector<128x32xbf16>, vector<8x32xf32> -> vector<8x32xf32>
    %c4_108 = arith.constant 4 : index
    %c0_109 = arith.constant 0 : index
    %c0_110 = arith.constant 0 : index
    %122 = vector.load %arg5[%c4_108, %c0_109, %c0_110] : memref<9x16x8xbf16, #tpu.memory_space<vmem>>, vector<1x16x8xbf16>
    %123 = vector.shape_cast %122 : vector<1x16x8xbf16> to vector<16x8xbf16>
    %124 = arith.truncf %121 : vector<8x32xf32> to vector<8x32xbf16>
    %cst_111 = arith.constant dense<0.000000e+00> : vector<16x32xf32>
    %125 = tpu.matmul %123, %124, %cst_111 {dimension_numbers = #tpu.dot_dimension_numbers<[1], [0], [0], [1], [0, 0, 1, 1], [], []>} : vector<16x8xbf16>, vector<8x32xbf16>, vector<16x32xf32> -> vector<16x32xf32>
    %126 = arith.addf %118, %125 : vector<16x32xf32>
    %c5_112 = arith.constant 5 : index
    %c0_113 = arith.constant 0 : index
    %c0_114 = arith.constant 0 : index
    %127 = vector.load %arg6[%c5_112, %c0_113, %c0_114] : memref<9x128x32xbf16, #tpu.memory_space<vmem>>, vector<1x128x32xbf16>
    %128 = vector.shape_cast %127 : vector<1x128x32xbf16> to vector<128x32xbf16>
    %cst_115 = arith.constant dense<0.000000e+00> : vector<8x32xf32>
    %129 = tpu.matmul %85, %128, %cst_115 {dimension_numbers = #tpu.dot_dimension_numbers<[1], [0], [0], [1], [0, 0, 1, 1], [], []>} : vector<8x128xbf16>, vector<128x32xbf16>, vector<8x32xf32> -> vector<8x32xf32>
    %c5_116 = arith.constant 5 : index
    %c0_117 = arith.constant 0 : index
    %c0_118 = arith.constant 0 : index
    %130 = vector.load %arg5[%c5_116, %c0_117, %c0_118] : memref<9x16x8xbf16, #tpu.memory_space<vmem>>, vector<1x16x8xbf16>
    %131 = vector.shape_cast %130 : vector<1x16x8xbf16> to vector<16x8xbf16>
    %132 = arith.truncf %129 : vector<8x32xf32> to vector<8x32xbf16>
    %cst_119 = arith.constant dense<0.000000e+00> : vector<16x32xf32>
    %133 = tpu.matmul %131, %132, %cst_119 {dimension_numbers = #tpu.dot_dimension_numbers<[1], [0], [0], [1], [0, 0, 1, 1], [], []>} : vector<16x8xbf16>, vector<8x32xbf16>, vector<16x32xf32> -> vector<16x32xf32>
    %134 = arith.addf %126, %133 : vector<16x32xf32>
    %c6_120 = arith.constant 6 : index
    %c0_121 = arith.constant 0 : index
    %c0_122 = arith.constant 0 : index
    %135 = vector.load %arg6[%c6_120, %c0_121, %c0_122] : memref<9x128x32xbf16, #tpu.memory_space<vmem>>, vector<1x128x32xbf16>
    %136 = vector.shape_cast %135 : vector<1x128x32xbf16> to vector<128x32xbf16>
    %cst_123 = arith.constant dense<0.000000e+00> : vector<8x32xf32>
    %137 = tpu.matmul %85, %136, %cst_123 {dimension_numbers = #tpu.dot_dimension_numbers<[1], [0], [0], [1], [0, 0, 1, 1], [], []>} : vector<8x128xbf16>, vector<128x32xbf16>, vector<8x32xf32> -> vector<8x32xf32>
    %c6_124 = arith.constant 6 : index
    %c0_125 = arith.constant 0 : index
    %c0_126 = arith.constant 0 : index
    %138 = vector.load %arg5[%c6_124, %c0_125, %c0_126] : memref<9x16x8xbf16, #tpu.memory_space<vmem>>, vector<1x16x8xbf16>
    %139 = vector.shape_cast %138 : vector<1x16x8xbf16> to vector<16x8xbf16>
    %140 = arith.truncf %137 : vector<8x32xf32> to vector<8x32xbf16>
    %cst_127 = arith.constant dense<0.000000e+00> : vector<16x32xf32>
    %141 = tpu.matmul %139, %140, %cst_127 {dimension_numbers = #tpu.dot_dimension_numbers<[1], [0], [0], [1], [0, 0, 1, 1], [], []>} : vector<16x8xbf16>, vector<8x32xbf16>, vector<16x32xf32> -> vector<16x32xf32>
    %142 = arith.addf %134, %141 : vector<16x32xf32>
    %c7_128 = arith.constant 7 : index
    %c0_129 = arith.constant 0 : index
    %c0_130 = arith.constant 0 : index
    %143 = vector.load %arg6[%c7_128, %c0_129, %c0_130] : memref<9x128x32xbf16, #tpu.memory_space<vmem>>, vector<1x128x32xbf16>
    %144 = vector.shape_cast %143 : vector<1x128x32xbf16> to vector<128x32xbf16>
    %cst_131 = arith.constant dense<0.000000e+00> : vector<8x32xf32>
    %145 = tpu.matmul %85, %144, %cst_131 {dimension_numbers = #tpu.dot_dimension_numbers<[1], [0], [0], [1], [0, 0, 1, 1], [], []>} : vector<8x128xbf16>, vector<128x32xbf16>, vector<8x32xf32> -> vector<8x32xf32>
    %c7_132 = arith.constant 7 : index
    %c0_133 = arith.constant 0 : index
    %c0_134 = arith.constant 0 : index
    %146 = vector.load %arg5[%c7_132, %c0_133, %c0_134] : memref<9x16x8xbf16, #tpu.memory_space<vmem>>, vector<1x16x8xbf16>
    %147 = vector.shape_cast %146 : vector<1x16x8xbf16> to vector<16x8xbf16>
    %148 = arith.truncf %145 : vector<8x32xf32> to vector<8x32xbf16>
    %cst_135 = arith.constant dense<0.000000e+00> : vector<16x32xf32>
    %149 = tpu.matmul %147, %148, %cst_135 {dimension_numbers = #tpu.dot_dimension_numbers<[1], [0], [0], [1], [0, 0, 1, 1], [], []>} : vector<16x8xbf16>, vector<8x32xbf16>, vector<16x32xf32> -> vector<16x32xf32>
    %150 = arith.addf %142, %149 : vector<16x32xf32>
    %c8_136 = arith.constant 8 : index
    %c0_137 = arith.constant 0 : index
    %c0_138 = arith.constant 0 : index
    %151 = vector.load %arg6[%c8_136, %c0_137, %c0_138] : memref<9x128x32xbf16, #tpu.memory_space<vmem>>, vector<1x128x32xbf16>
    %152 = vector.shape_cast %151 : vector<1x128x32xbf16> to vector<128x32xbf16>
    %cst_139 = arith.constant dense<0.000000e+00> : vector<8x32xf32>
    %153 = tpu.matmul %85, %152, %cst_139 {dimension_numbers = #tpu.dot_dimension_numbers<[1], [0], [0], [1], [0, 0, 1, 1], [], []>} : vector<8x128xbf16>, vector<128x32xbf16>, vector<8x32xf32> -> vector<8x32xf32>
    %c8_140 = arith.constant 8 : index
    %c0_141 = arith.constant 0 : index
    %c0_142 = arith.constant 0 : index
    %154 = vector.load %arg5[%c8_140, %c0_141, %c0_142] : memref<9x16x8xbf16, #tpu.memory_space<vmem>>, vector<1x16x8xbf16>
    %155 = vector.shape_cast %154 : vector<1x16x8xbf16> to vector<16x8xbf16>
    %156 = arith.truncf %153 : vector<8x32xf32> to vector<8x32xbf16>
    %cst_143 = arith.constant dense<0.000000e+00> : vector<16x32xf32>
    %157 = tpu.matmul %155, %156, %cst_143 {dimension_numbers = #tpu.dot_dimension_numbers<[1], [0], [0], [1], [0, 0, 1, 1], [], []>} : vector<16x8xbf16>, vector<8x32xbf16>, vector<16x32xf32> -> vector<16x32xf32>
    %158 = arith.addf %150, %157 : vector<16x32xf32>
    %c0_144 = arith.constant 0 : index
    %c0_145 = arith.constant 0 : index
    %159 = vector.load %arg7[%c0_144, %c0_145] : memref<16x1xf32, #tpu.memory_space<vmem>>, vector<16x1xf32>
    %160 = vector.broadcast %159 : vector<16x1xf32> to vector<16x32xf32>
    %161 = arith.mulf %158, %160 : vector<16x32xf32>
    %c0_146 = arith.constant 0 : index
    %c0_147 = arith.constant 0 : index
    %162 = vector.load %arg8[%c0_146, %c0_147] : memref<16x1xf32, #tpu.memory_space<vmem>>, vector<16x1xf32>
    %163 = vector.broadcast %162 : vector<16x1xf32> to vector<16x32xf32>
    %164 = arith.addf %161, %163 : vector<16x32xf32>
    %cst_148 = arith.constant 0.000000e+00 : f32
    %165 = vector.broadcast %cst_148 : f32 to vector<16x32xf32>
    %166 = arith.cmpf oge, %164, %165 : vector<16x32xf32>
    %cst_149 = arith.constant 2.000000e-01 : f32
    %167 = vector.broadcast %cst_149 : f32 to vector<16x32xf32>
    %168 = arith.mulf %167, %164 : vector<16x32xf32>
    %169 = arith.select %166, %164, %168 : vector<16x32xi1>, vector<16x32xf32>
    %170 = arith.truncf %169 : vector<16x32xf32> to vector<16x32xbf16>
    %cst_150 = arith.constant 0.000000e+00 : f32
    %171 = vector.broadcast %cst_150 : f32 to vector<32x8xf32>
    %c0_151 = arith.constant 0 : index
    %c0_152 = arith.constant 0 : index
    %c0_153 = arith.constant 0 : index
    %172 = vector.load %arg10[%c0_151, %c0_152, %c0_153] : memref<9x32x8xbf16, #tpu.memory_space<vmem>>, vector<1x32x8xbf16>
    %173 = vector.shape_cast %172 : vector<1x32x8xbf16> to vector<32x8xbf16>
    %cst_154 = arith.constant dense<0.000000e+00> : vector<16x8xf32>
    %174 = tpu.matmul %170, %173, %cst_154 {dimension_numbers = #tpu.dot_dimension_numbers<[1], [0], [0], [1], [0, 0, 1, 1], [], []>} : vector<16x32xbf16>, vector<32x8xbf16>, vector<16x8xf32> -> vector<16x8xf32>
    %c0_155 = arith.constant 0 : index
    %c0_156 = arith.constant 0 : index
    %c0_157 = arith.constant 0 : index
    %175 = vector.load %arg9[%c0_155, %c0_156, %c0_157] : memref<9x32x16xbf16, #tpu.memory_space<vmem>>, vector<1x32x16xbf16>
    %176 = vector.shape_cast %175 : vector<1x32x16xbf16> to vector<32x16xbf16>
    %177 = arith.truncf %174 : vector<16x8xf32> to vector<16x8xbf16>
    %cst_158 = arith.constant dense<0.000000e+00> : vector<32x8xf32>
    %178 = tpu.matmul %176, %177, %cst_158 {dimension_numbers = #tpu.dot_dimension_numbers<[1], [0], [0], [1], [0, 0, 1, 1], [], []>} : vector<32x16xbf16>, vector<16x8xbf16>, vector<32x8xf32> -> vector<32x8xf32>
    %179 = arith.addf %171, %178 : vector<32x8xf32>
    %c1_159 = arith.constant 1 : index
    %c0_160 = arith.constant 0 : index
    %c0_161 = arith.constant 0 : index
    %180 = vector.load %arg10[%c1_159, %c0_160, %c0_161] : memref<9x32x8xbf16, #tpu.memory_space<vmem>>, vector<1x32x8xbf16>
    %181 = vector.shape_cast %180 : vector<1x32x8xbf16> to vector<32x8xbf16>
    %cst_162 = arith.constant dense<0.000000e+00> : vector<16x8xf32>
    %182 = tpu.matmul %170, %181, %cst_162 {dimension_numbers = #tpu.dot_dimension_numbers<[1], [0], [0], [1], [0, 0, 1, 1], [], []>} : vector<16x32xbf16>, vector<32x8xbf16>, vector<16x8xf32> -> vector<16x8xf32>
    %c1_163 = arith.constant 1 : index
    %c0_164 = arith.constant 0 : index
    %c0_165 = arith.constant 0 : index
    %183 = vector.load %arg9[%c1_163, %c0_164, %c0_165] : memref<9x32x16xbf16, #tpu.memory_space<vmem>>, vector<1x32x16xbf16>
    %184 = vector.shape_cast %183 : vector<1x32x16xbf16> to vector<32x16xbf16>
    %185 = arith.truncf %182 : vector<16x8xf32> to vector<16x8xbf16>
    %cst_166 = arith.constant dense<0.000000e+00> : vector<32x8xf32>
    %186 = tpu.matmul %184, %185, %cst_166 {dimension_numbers = #tpu.dot_dimension_numbers<[1], [0], [0], [1], [0, 0, 1, 1], [], []>} : vector<32x16xbf16>, vector<16x8xbf16>, vector<32x8xf32> -> vector<32x8xf32>
    %187 = arith.addf %179, %186 : vector<32x8xf32>
    %c2_167 = arith.constant 2 : index
    %c0_168 = arith.constant 0 : index
    %c0_169 = arith.constant 0 : index
    %188 = vector.load %arg10[%c2_167, %c0_168, %c0_169] : memref<9x32x8xbf16, #tpu.memory_space<vmem>>, vector<1x32x8xbf16>
    %189 = vector.shape_cast %188 : vector<1x32x8xbf16> to vector<32x8xbf16>
    %cst_170 = arith.constant dense<0.000000e+00> : vector<16x8xf32>
    %190 = tpu.matmul %170, %189, %cst_170 {dimension_numbers = #tpu.dot_dimension_numbers<[1], [0], [0], [1], [0, 0, 1, 1], [], []>} : vector<16x32xbf16>, vector<32x8xbf16>, vector<16x8xf32> -> vector<16x8xf32>
    %c2_171 = arith.constant 2 : index
    %c0_172 = arith.constant 0 : index
    %c0_173 = arith.constant 0 : index
    %191 = vector.load %arg9[%c2_171, %c0_172, %c0_173] : memref<9x32x16xbf16, #tpu.memory_space<vmem>>, vector<1x32x16xbf16>
    %192 = vector.shape_cast %191 : vector<1x32x16xbf16> to vector<32x16xbf16>
    %193 = arith.truncf %190 : vector<16x8xf32> to vector<16x8xbf16>
    %cst_174 = arith.constant dense<0.000000e+00> : vector<32x8xf32>
    %194 = tpu.matmul %192, %193, %cst_174 {dimension_numbers = #tpu.dot_dimension_numbers<[1], [0], [0], [1], [0, 0, 1, 1], [], []>} : vector<32x16xbf16>, vector<16x8xbf16>, vector<32x8xf32> -> vector<32x8xf32>
    %195 = arith.addf %187, %194 : vector<32x8xf32>
    %c3_175 = arith.constant 3 : index
    %c0_176 = arith.constant 0 : index
    %c0_177 = arith.constant 0 : index
    %196 = vector.load %arg10[%c3_175, %c0_176, %c0_177] : memref<9x32x8xbf16, #tpu.memory_space<vmem>>, vector<1x32x8xbf16>
    %197 = vector.shape_cast %196 : vector<1x32x8xbf16> to vector<32x8xbf16>
    %cst_178 = arith.constant dense<0.000000e+00> : vector<16x8xf32>
    %198 = tpu.matmul %170, %197, %cst_178 {dimension_numbers = #tpu.dot_dimension_numbers<[1], [0], [0], [1], [0, 0, 1, 1], [], []>} : vector<16x32xbf16>, vector<32x8xbf16>, vector<16x8xf32> -> vector<16x8xf32>
    %c3_179 = arith.constant 3 : index
    %c0_180 = arith.constant 0 : index
    %c0_181 = arith.constant 0 : index
    %199 = vector.load %arg9[%c3_179, %c0_180, %c0_181] : memref<9x32x16xbf16, #tpu.memory_space<vmem>>, vector<1x32x16xbf16>
    %200 = vector.shape_cast %199 : vector<1x32x16xbf16> to vector<32x16xbf16>
    %201 = arith.truncf %198 : vector<16x8xf32> to vector<16x8xbf16>
    %cst_182 = arith.constant dense<0.000000e+00> : vector<32x8xf32>
    %202 = tpu.matmul %200, %201, %cst_182 {dimension_numbers = #tpu.dot_dimension_numbers<[1], [0], [0], [1], [0, 0, 1, 1], [], []>} : vector<32x16xbf16>, vector<16x8xbf16>, vector<32x8xf32> -> vector<32x8xf32>
    %203 = arith.addf %195, %202 : vector<32x8xf32>
    %c4_183 = arith.constant 4 : index
    %c0_184 = arith.constant 0 : index
    %c0_185 = arith.constant 0 : index
    %204 = vector.load %arg10[%c4_183, %c0_184, %c0_185] : memref<9x32x8xbf16, #tpu.memory_space<vmem>>, vector<1x32x8xbf16>
    %205 = vector.shape_cast %204 : vector<1x32x8xbf16> to vector<32x8xbf16>
    %cst_186 = arith.constant dense<0.000000e+00> : vector<16x8xf32>
    %206 = tpu.matmul %170, %205, %cst_186 {dimension_numbers = #tpu.dot_dimension_numbers<[1], [0], [0], [1], [0, 0, 1, 1], [], []>} : vector<16x32xbf16>, vector<32x8xbf16>, vector<16x8xf32> -> vector<16x8xf32>
    %c4_187 = arith.constant 4 : index
    %c0_188 = arith.constant 0 : index
    %c0_189 = arith.constant 0 : index
    %207 = vector.load %arg9[%c4_187, %c0_188, %c0_189] : memref<9x32x16xbf16, #tpu.memory_space<vmem>>, vector<1x32x16xbf16>
    %208 = vector.shape_cast %207 : vector<1x32x16xbf16> to vector<32x16xbf16>
    %209 = arith.truncf %206 : vector<16x8xf32> to vector<16x8xbf16>
    %cst_190 = arith.constant dense<0.000000e+00> : vector<32x8xf32>
    %210 = tpu.matmul %208, %209, %cst_190 {dimension_numbers = #tpu.dot_dimension_numbers<[1], [0], [0], [1], [0, 0, 1, 1], [], []>} : vector<32x16xbf16>, vector<16x8xbf16>, vector<32x8xf32> -> vector<32x8xf32>
    %211 = arith.addf %203, %210 : vector<32x8xf32>
    %c5_191 = arith.constant 5 : index
    %c0_192 = arith.constant 0 : index
    %c0_193 = arith.constant 0 : index
    %212 = vector.load %arg10[%c5_191, %c0_192, %c0_193] : memref<9x32x8xbf16, #tpu.memory_space<vmem>>, vector<1x32x8xbf16>
    %213 = vector.shape_cast %212 : vector<1x32x8xbf16> to vector<32x8xbf16>
    %cst_194 = arith.constant dense<0.000000e+00> : vector<16x8xf32>
    %214 = tpu.matmul %170, %213, %cst_194 {dimension_numbers = #tpu.dot_dimension_numbers<[1], [0], [0], [1], [0, 0, 1, 1], [], []>} : vector<16x32xbf16>, vector<32x8xbf16>, vector<16x8xf32> -> vector<16x8xf32>
    %c5_195 = arith.constant 5 : index
    %c0_196 = arith.constant 0 : index
    %c0_197 = arith.constant 0 : index
    %215 = vector.load %arg9[%c5_195, %c0_196, %c0_197] : memref<9x32x16xbf16, #tpu.memory_space<vmem>>, vector<1x32x16xbf16>
    %216 = vector.shape_cast %215 : vector<1x32x16xbf16> to vector<32x16xbf16>
    %217 = arith.truncf %214 : vector<16x8xf32> to vector<16x8xbf16>
    %cst_198 = arith.constant dense<0.000000e+00> : vector<32x8xf32>
    %218 = tpu.matmul %216, %217, %cst_198 {dimension_numbers = #tpu.dot_dimension_numbers<[1], [0], [0], [1], [0, 0, 1, 1], [], []>} : vector<32x16xbf16>, vector<16x8xbf16>, vector<32x8xf32> -> vector<32x8xf32>
    %219 = arith.addf %211, %218 : vector<32x8xf32>
    %c6_199 = arith.constant 6 : index
    %c0_200 = arith.constant 0 : index
    %c0_201 = arith.constant 0 : index
    %220 = vector.load %arg10[%c6_199, %c0_200, %c0_201] : memref<9x32x8xbf16, #tpu.memory_space<vmem>>, vector<1x32x8xbf16>
    %221 = vector.shape_cast %220 : vector<1x32x8xbf16> to vector<32x8xbf16>
    %cst_202 = arith.constant dense<0.000000e+00> : vector<16x8xf32>
    %222 = tpu.matmul %170, %221, %cst_202 {dimension_numbers = #tpu.dot_dimension_numbers<[1], [0], [0], [1], [0, 0, 1, 1], [], []>} : vector<16x32xbf16>, vector<32x8xbf16>, vector<16x8xf32> -> vector<16x8xf32>
    %c6_203 = arith.constant 6 : index
    %c0_204 = arith.constant 0 : index
    %c0_205 = arith.constant 0 : index
    %223 = vector.load %arg9[%c6_203, %c0_204, %c0_205] : memref<9x32x16xbf16, #tpu.memory_space<vmem>>, vector<1x32x16xbf16>
    %224 = vector.shape_cast %223 : vector<1x32x16xbf16> to vector<32x16xbf16>
    %225 = arith.truncf %222 : vector<16x8xf32> to vector<16x8xbf16>
    %cst_206 = arith.constant dense<0.000000e+00> : vector<32x8xf32>
    %226 = tpu.matmul %224, %225, %cst_206 {dimension_numbers = #tpu.dot_dimension_numbers<[1], [0], [0], [1], [0, 0, 1, 1], [], []>} : vector<32x16xbf16>, vector<16x8xbf16>, vector<32x8xf32> -> vector<32x8xf32>
    %227 = arith.addf %219, %226 : vector<32x8xf32>
    %c7_207 = arith.constant 7 : index
    %c0_208 = arith.constant 0 : index
    %c0_209 = arith.constant 0 : index
    %228 = vector.load %arg10[%c7_207, %c0_208, %c0_209] : memref<9x32x8xbf16, #tpu.memory_space<vmem>>, vector<1x32x8xbf16>
    %229 = vector.shape_cast %228 : vector<1x32x8xbf16> to vector<32x8xbf16>
    %cst_210 = arith.constant dense<0.000000e+00> : vector<16x8xf32>
    %230 = tpu.matmul %170, %229, %cst_210 {dimension_numbers = #tpu.dot_dimension_numbers<[1], [0], [0], [1], [0, 0, 1, 1], [], []>} : vector<16x32xbf16>, vector<32x8xbf16>, vector<16x8xf32> -> vector<16x8xf32>
    %c7_211 = arith.constant 7 : index
    %c0_212 = arith.constant 0 : index
    %c0_213 = arith.constant 0 : index
    %231 = vector.load %arg9[%c7_211, %c0_212, %c0_213] : memref<9x32x16xbf16, #tpu.memory_space<vmem>>, vector<1x32x16xbf16>
    %232 = vector.shape_cast %231 : vector<1x32x16xbf16> to vector<32x16xbf16>
    %233 = arith.truncf %230 : vector<16x8xf32> to vector<16x8xbf16>
    %cst_214 = arith.constant dense<0.000000e+00> : vector<32x8xf32>
    %234 = tpu.matmul %232, %233, %cst_214 {dimension_numbers = #tpu.dot_dimension_numbers<[1], [0], [0], [1], [0, 0, 1, 1], [], []>} : vector<32x16xbf16>, vector<16x8xbf16>, vector<32x8xf32> -> vector<32x8xf32>
    %235 = arith.addf %227, %234 : vector<32x8xf32>
    %c8_215 = arith.constant 8 : index
    %c0_216 = arith.constant 0 : index
    %c0_217 = arith.constant 0 : index
    %236 = vector.load %arg10[%c8_215, %c0_216, %c0_217] : memref<9x32x8xbf16, #tpu.memory_space<vmem>>, vector<1x32x8xbf16>
    %237 = vector.shape_cast %236 : vector<1x32x8xbf16> to vector<32x8xbf16>
    %cst_218 = arith.constant dense<0.000000e+00> : vector<16x8xf32>
    %238 = tpu.matmul %170, %237, %cst_218 {dimension_numbers = #tpu.dot_dimension_numbers<[1], [0], [0], [1], [0, 0, 1, 1], [], []>} : vector<16x32xbf16>, vector<32x8xbf16>, vector<16x8xf32> -> vector<16x8xf32>
    %c8_219 = arith.constant 8 : index
    %c0_220 = arith.constant 0 : index
    %c0_221 = arith.constant 0 : index
    %239 = vector.load %arg9[%c8_219, %c0_220, %c0_221] : memref<9x32x16xbf16, #tpu.memory_space<vmem>>, vector<1x32x16xbf16>
    %240 = vector.shape_cast %239 : vector<1x32x16xbf16> to vector<32x16xbf16>
    %241 = arith.truncf %238 : vector<16x8xf32> to vector<16x8xbf16>
    %cst_222 = arith.constant dense<0.000000e+00> : vector<32x8xf32>
    %242 = tpu.matmul %240, %241, %cst_222 {dimension_numbers = #tpu.dot_dimension_numbers<[1], [0], [0], [1], [0, 0, 1, 1], [], []>} : vector<32x16xbf16>, vector<16x8xbf16>, vector<32x8xf32> -> vector<32x8xf32>
    %243 = arith.addf %235, %242 : vector<32x8xf32>
    %c0_223 = arith.constant 0 : index
    %c0_224 = arith.constant 0 : index
    %244 = vector.load %arg11[%c0_223, %c0_224] : memref<32x1xf32, #tpu.memory_space<vmem>>, vector<32x1xf32>
    %245 = vector.broadcast %244 : vector<32x1xf32> to vector<32x8xf32>
    %246 = arith.mulf %243, %245 : vector<32x8xf32>
    %c0_225 = arith.constant 0 : index
    %c0_226 = arith.constant 0 : index
    %247 = vector.load %arg12[%c0_225, %c0_226] : memref<32x1xf32, #tpu.memory_space<vmem>>, vector<32x1xf32>
    %248 = vector.broadcast %247 : vector<32x1xf32> to vector<32x8xf32>
    %249 = arith.addf %246, %248 : vector<32x8xf32>
    %cst_227 = arith.constant 0.000000e+00 : f32
    %250 = vector.broadcast %cst_227 : f32 to vector<32x8xf32>
    %251 = arith.cmpf oge, %249, %250 : vector<32x8xf32>
    %cst_228 = arith.constant 2.000000e-01 : f32
    %252 = vector.broadcast %cst_228 : f32 to vector<32x8xf32>
    %253 = arith.mulf %252, %249 : vector<32x8xf32>
    %254 = arith.select %251, %249, %253 : vector<32x8xi1>, vector<32x8xf32>
    %255 = vector.shape_cast %254 : vector<32x8xf32> to vector<1x32x8xf32>
    %256 = vector.broadcast %255 : vector<1x32x8xf32> to vector<4x32x8xf32>
    %c0_229 = arith.constant 0 : index
    %c0_230 = arith.constant 0 : index
    %c0_231 = arith.constant 0 : index
    %257 = vector.load %arg13[%c0_229, %c0_230, %c0_231] : memref<4x8x32xf32, #tpu.memory_space<vmem>>, vector<4x8x32xf32>
    %cst_232 = arith.constant dense<0.000000e+00> : vector<4x8x8xf32>
    %258 = tpu.matmul %257, %256, %cst_232 {dimension_numbers = #tpu.dot_dimension_numbers<[2], [1], [1], [2], [0, 0, 0, 1, 1, 2], [0], [0]>} : vector<4x8x32xf32>, vector<4x32x8xf32>, vector<4x8x8xf32> -> vector<4x8x8xf32>
    %c0_233 = arith.constant 0 : index
    %c0_234 = arith.constant 0 : index
    %c0_235 = arith.constant 0 : index
    %259 = vector.load %arg14[%c0_233, %c0_234, %c0_235] : memref<4x8x32xf32, #tpu.memory_space<vmem>>, vector<4x8x32xf32>
    %cst_236 = arith.constant dense<0.000000e+00> : vector<4x8x8xf32>
    %260 = tpu.matmul %259, %256, %cst_236 {dimension_numbers = #tpu.dot_dimension_numbers<[2], [1], [1], [2], [0, 0, 0, 1, 1, 2], [0], [0]>} : vector<4x8x32xf32>, vector<4x32x8xf32>, vector<4x8x8xf32> -> vector<4x8x8xf32>
    %c0_237 = arith.constant 0 : index
    %c0_238 = arith.constant 0 : index
    %c0_239 = arith.constant 0 : index
    %261 = vector.load %arg15[%c0_237, %c0_238, %c0_239] : memref<4x8x32xf32, #tpu.memory_space<vmem>>, vector<4x8x32xf32>
    %cst_240 = arith.constant dense<0.000000e+00> : vector<4x8x8xf32>
    %262 = tpu.matmul %261, %256, %cst_240 {dimension_numbers = #tpu.dot_dimension_numbers<[2], [1], [1], [2], [0, 0, 0, 1, 1, 2], [0], [0]>} : vector<4x8x32xf32>, vector<4x32x8xf32>, vector<4x8x8xf32> -> vector<4x8x8xf32>
    %cst_241 = arith.constant dense<0.000000e+00> : vector<4x8x8xf32>
    %263 = tpu.matmul %258, %260, %cst_241 {dimension_numbers = #tpu.dot_dimension_numbers<[1], [1], [2], [2], [0, 0, 0, 2, 1, 2], [0], [0]>} : vector<4x8x8xf32>, vector<4x8x8xf32>, vector<4x8x8xf32> -> vector<4x8x8xf32>
    %cst_242 = arith.constant 0.353553385 : f32
    %264 = vector.broadcast %cst_242 : f32 to vector<4x8x8xf32>
    %265 = arith.mulf %263, %264 : vector<4x8x8xf32>
    %c0_243 = arith.constant 0 : index
    %c0_244 = arith.constant 0 : index
    %266 = vector.load %arg17[%c0_243, %c0_244] : memref<8x8xf32, #tpu.memory_space<vmem>>, vector<8x8xf32>
    %267 = vector.shape_cast %266 : vector<8x8xf32> to vector<1x8x8xf32>
    %268 = vector.broadcast %267 : vector<1x8x8xf32> to vector<4x8x8xf32>
    %269 = arith.addf %265, %268 : vector<4x8x8xf32>
    %cst_245 = arith.constant dense<0xFF800000> : vector<4x8xf32>
    %270 = vector.multi_reduction <maximumf>, %269, %cst_245 [2] : vector<4x8x8xf32> to vector<4x8xf32>
    %271 = vector.shape_cast %270 : vector<4x8xf32> to vector<4x8x1xf32>
    %272 = vector.broadcast %271 : vector<4x8x1xf32> to vector<4x8x8xf32>
    %273 = arith.subf %269, %272 : vector<4x8x8xf32>
    %274 = math.exp %273 : vector<4x8x8xf32>
    %cst_246 = arith.constant dense<0.000000e+00> : vector<4x8xf32>
    %275 = vector.multi_reduction <add>, %274, %cst_246 [2] : vector<4x8x8xf32> to vector<4x8xf32>
    %276 = vector.shape_cast %275 : vector<4x8xf32> to vector<4x8x1xf32>
    %277 = vector.broadcast %276 : vector<4x8x1xf32> to vector<4x8x8xf32>
    %278 = arith.divf %274, %277 : vector<4x8x8xf32>
    %cst_247 = arith.constant dense<0.000000e+00> : vector<4x8x8xf32>
    %279 = tpu.matmul %262, %278, %cst_247 {dimension_numbers = #tpu.dot_dimension_numbers<[2], [2], [1], [1], [0, 0, 0, 1, 1, 1], [0], [0]>} : vector<4x8x8xf32>, vector<4x8x8xf32>, vector<4x8x8xf32> -> vector<4x8x8xf32>
    %c0_248 = arith.constant 0 : index
    %c0_249 = arith.constant 0 : index
    %c0_250 = arith.constant 0 : index
    %280 = vector.load %arg16[%c0_248, %c0_249, %c0_250] : memref<4x32x8xf32, #tpu.memory_space<vmem>>, vector<4x32x8xf32>
    %cst_251 = arith.constant dense<0.000000e+00> : vector<4x32x8xf32>
    %281 = tpu.matmul %280, %279, %cst_251 {dimension_numbers = #tpu.dot_dimension_numbers<[2], [1], [1], [2], [0, 0, 0, 1, 1, 2], [0], [0]>} : vector<4x32x8xf32>, vector<4x8x8xf32>, vector<4x32x8xf32> -> vector<4x32x8xf32>
    %cst_252 = arith.constant dense<0.000000e+00> : vector<32x8xf32>
    %282 = vector.multi_reduction <add>, %281, %cst_252 [0] : vector<4x32x8xf32> to vector<32x8xf32>
    %283 = arith.truncf %282 : vector<32x8xf32> to vector<32x8xbf16>
    %cst_253 = arith.constant 0.000000e+00 : f32
    %284 = vector.broadcast %cst_253 : f32 to vector<8x2xf32>
    %c0_254 = arith.constant 0 : index
    %c0_255 = arith.constant 0 : index
    %c0_256 = arith.constant 0 : index
    %285 = vector.load %arg19[%c0_254, %c0_255, %c0_256] : memref<9x8x2xbf16, #tpu.memory_space<vmem>>, vector<1x8x2xbf16>
    %286 = vector.shape_cast %285 : vector<1x8x2xbf16> to vector<8x2xbf16>
    %cst_257 = arith.constant dense<0.000000e+00> : vector<32x2xf32>
    %287 = tpu.matmul %283, %286, %cst_257 {dimension_numbers = #tpu.dot_dimension_numbers<[1], [0], [0], [1], [0, 0, 1, 1], [], []>} : vector<32x8xbf16>, vector<8x2xbf16>, vector<32x2xf32> -> vector<32x2xf32>
    %c0_258 = arith.constant 0 : index
    %c0_259 = arith.constant 0 : index
    %c0_260 = arith.constant 0 : index
    %288 = vector.load %arg18[%c0_258, %c0_259, %c0_260] : memref<9x8x32xbf16, #tpu.memory_space<vmem>>, vector<1x8x32xbf16>
    %289 = vector.shape_cast %288 : vector<1x8x32xbf16> to vector<8x32xbf16>
    %290 = arith.truncf %287 : vector<32x2xf32> to vector<32x2xbf16>
    %cst_261 = arith.constant dense<0.000000e+00> : vector<8x2xf32>
    %291 = tpu.matmul %289, %290, %cst_261 {dimension_numbers = #tpu.dot_dimension_numbers<[1], [0], [0], [1], [0, 0, 1, 1], [], []>} : vector<8x32xbf16>, vector<32x2xbf16>, vector<8x2xf32> -> vector<8x2xf32>
    %292 = arith.addf %284, %291 : vector<8x2xf32>
    %c1_262 = arith.constant 1 : index
    %c0_263 = arith.constant 0 : index
    %c0_264 = arith.constant 0 : index
    %293 = vector.load %arg19[%c1_262, %c0_263, %c0_264] : memref<9x8x2xbf16, #tpu.memory_space<vmem>>, vector<1x8x2xbf16>
    %294 = vector.shape_cast %293 : vector<1x8x2xbf16> to vector<8x2xbf16>
    %cst_265 = arith.constant dense<0.000000e+00> : vector<32x2xf32>
    %295 = tpu.matmul %283, %294, %cst_265 {dimension_numbers = #tpu.dot_dimension_numbers<[1], [0], [0], [1], [0, 0, 1, 1], [], []>} : vector<32x8xbf16>, vector<8x2xbf16>, vector<32x2xf32> -> vector<32x2xf32>
    %c1_266 = arith.constant 1 : index
    %c0_267 = arith.constant 0 : index
    %c0_268 = arith.constant 0 : index
    %296 = vector.load %arg18[%c1_266, %c0_267, %c0_268] : memref<9x8x32xbf16, #tpu.memory_space<vmem>>, vector<1x8x32xbf16>
    %297 = vector.shape_cast %296 : vector<1x8x32xbf16> to vector<8x32xbf16>
    %298 = arith.truncf %295 : vector<32x2xf32> to vector<32x2xbf16>
    %cst_269 = arith.constant dense<0.000000e+00> : vector<8x2xf32>
    %299 = tpu.matmul %297, %298, %cst_269 {dimension_numbers = #tpu.dot_dimension_numbers<[1], [0], [0], [1], [0, 0, 1, 1], [], []>} : vector<8x32xbf16>, vector<32x2xbf16>, vector<8x2xf32> -> vector<8x2xf32>
    %300 = arith.addf %292, %299 : vector<8x2xf32>
    %c2_270 = arith.constant 2 : index
    %c0_271 = arith.constant 0 : index
    %c0_272 = arith.constant 0 : index
    %301 = vector.load %arg19[%c2_270, %c0_271, %c0_272] : memref<9x8x2xbf16, #tpu.memory_space<vmem>>, vector<1x8x2xbf16>
    %302 = vector.shape_cast %301 : vector<1x8x2xbf16> to vector<8x2xbf16>
    %cst_273 = arith.constant dense<0.000000e+00> : vector<32x2xf32>
    %303 = tpu.matmul %283, %302, %cst_273 {dimension_numbers = #tpu.dot_dimension_numbers<[1], [0], [0], [1], [0, 0, 1, 1], [], []>} : vector<32x8xbf16>, vector<8x2xbf16>, vector<32x2xf32> -> vector<32x2xf32>
    %c2_274 = arith.constant 2 : index
    %c0_275 = arith.constant 0 : index
    %c0_276 = arith.constant 0 : index
    %304 = vector.load %arg18[%c2_274, %c0_275, %c0_276] : memref<9x8x32xbf16, #tpu.memory_space<vmem>>, vector<1x8x32xbf16>
    %305 = vector.shape_cast %304 : vector<1x8x32xbf16> to vector<8x32xbf16>
    %306 = arith.truncf %303 : vector<32x2xf32> to vector<32x2xbf16>
    %cst_277 = arith.constant dense<0.000000e+00> : vector<8x2xf32>
    %307 = tpu.matmul %305, %306, %cst_277 {dimension_numbers = #tpu.dot_dimension_numbers<[1], [0], [0], [1], [0, 0, 1, 1], [], []>} : vector<8x32xbf16>, vector<32x2xbf16>, vector<8x2xf32> -> vector<8x2xf32>
    %308 = arith.addf %300, %307 : vector<8x2xf32>
    %c3_278 = arith.constant 3 : index
    %c0_279 = arith.constant 0 : index
    %c0_280 = arith.constant 0 : index
    %309 = vector.load %arg19[%c3_278, %c0_279, %c0_280] : memref<9x8x2xbf16, #tpu.memory_space<vmem>>, vector<1x8x2xbf16>
    %310 = vector.shape_cast %309 : vector<1x8x2xbf16> to vector<8x2xbf16>
    %cst_281 = arith.constant dense<0.000000e+00> : vector<32x2xf32>
    %311 = tpu.matmul %283, %310, %cst_281 {dimension_numbers = #tpu.dot_dimension_numbers<[1], [0], [0], [1], [0, 0, 1, 1], [], []>} : vector<32x8xbf16>, vector<8x2xbf16>, vector<32x2xf32> -> vector<32x2xf32>
    %c3_282 = arith.constant 3 : index
    %c0_283 = arith.constant 0 : index
    %c0_284 = arith.constant 0 : index
    %312 = vector.load %arg18[%c3_282, %c0_283, %c0_284] : memref<9x8x32xbf16, #tpu.memory_space<vmem>>, vector<1x8x32xbf16>
    %313 = vector.shape_cast %312 : vector<1x8x32xbf16> to vector<8x32xbf16>
    %314 = arith.truncf %311 : vector<32x2xf32> to vector<32x2xbf16>
    %cst_285 = arith.constant dense<0.000000e+00> : vector<8x2xf32>
    %315 = tpu.matmul %313, %314, %cst_285 {dimension_numbers = #tpu.dot_dimension_numbers<[1], [0], [0], [1], [0, 0, 1, 1], [], []>} : vector<8x32xbf16>, vector<32x2xbf16>, vector<8x2xf32> -> vector<8x2xf32>
    %316 = arith.addf %308, %315 : vector<8x2xf32>
    %c4_286 = arith.constant 4 : index
    %c0_287 = arith.constant 0 : index
    %c0_288 = arith.constant 0 : index
    %317 = vector.load %arg19[%c4_286, %c0_287, %c0_288] : memref<9x8x2xbf16, #tpu.memory_space<vmem>>, vector<1x8x2xbf16>
    %318 = vector.shape_cast %317 : vector<1x8x2xbf16> to vector<8x2xbf16>
    %cst_289 = arith.constant dense<0.000000e+00> : vector<32x2xf32>
    %319 = tpu.matmul %283, %318, %cst_289 {dimension_numbers = #tpu.dot_dimension_numbers<[1], [0], [0], [1], [0, 0, 1, 1], [], []>} : vector<32x8xbf16>, vector<8x2xbf16>, vector<32x2xf32> -> vector<32x2xf32>
    %c4_290 = arith.constant 4 : index
    %c0_291 = arith.constant 0 : index
    %c0_292 = arith.constant 0 : index
    %320 = vector.load %arg18[%c4_290, %c0_291, %c0_292] : memref<9x8x32xbf16, #tpu.memory_space<vmem>>, vector<1x8x32xbf16>
    %321 = vector.shape_cast %320 : vector<1x8x32xbf16> to vector<8x32xbf16>
    %322 = arith.truncf %319 : vector<32x2xf32> to vector<32x2xbf16>
    %cst_293 = arith.constant dense<0.000000e+00> : vector<8x2xf32>
    %323 = tpu.matmul %321, %322, %cst_293 {dimension_numbers = #tpu.dot_dimension_numbers<[1], [0], [0], [1], [0, 0, 1, 1], [], []>} : vector<8x32xbf16>, vector<32x2xbf16>, vector<8x2xf32> -> vector<8x2xf32>
    %324 = arith.addf %316, %323 : vector<8x2xf32>
    %c5_294 = arith.constant 5 : index
    %c0_295 = arith.constant 0 : index
    %c0_296 = arith.constant 0 : index
    %325 = vector.load %arg19[%c5_294, %c0_295, %c0_296] : memref<9x8x2xbf16, #tpu.memory_space<vmem>>, vector<1x8x2xbf16>
    %326 = vector.shape_cast %325 : vector<1x8x2xbf16> to vector<8x2xbf16>
    %cst_297 = arith.constant dense<0.000000e+00> : vector<32x2xf32>
    %327 = tpu.matmul %283, %326, %cst_297 {dimension_numbers = #tpu.dot_dimension_numbers<[1], [0], [0], [1], [0, 0, 1, 1], [], []>} : vector<32x8xbf16>, vector<8x2xbf16>, vector<32x2xf32> -> vector<32x2xf32>
    %c5_298 = arith.constant 5 : index
    %c0_299 = arith.constant 0 : index
    %c0_300 = arith.constant 0 : index
    %328 = vector.load %arg18[%c5_298, %c0_299, %c0_300] : memref<9x8x32xbf16, #tpu.memory_space<vmem>>, vector<1x8x32xbf16>
    %329 = vector.shape_cast %328 : vector<1x8x32xbf16> to vector<8x32xbf16>
    %330 = arith.truncf %327 : vector<32x2xf32> to vector<32x2xbf16>
    %cst_301 = arith.constant dense<0.000000e+00> : vector<8x2xf32>
    %331 = tpu.matmul %329, %330, %cst_301 {dimension_numbers = #tpu.dot_dimension_numbers<[1], [0], [0], [1], [0, 0, 1, 1], [], []>} : vector<8x32xbf16>, vector<32x2xbf16>, vector<8x2xf32> -> vector<8x2xf32>
    %332 = arith.addf %324, %331 : vector<8x2xf32>
    %c6_302 = arith.constant 6 : index
    %c0_303 = arith.constant 0 : index
    %c0_304 = arith.constant 0 : index
    %333 = vector.load %arg19[%c6_302, %c0_303, %c0_304] : memref<9x8x2xbf16, #tpu.memory_space<vmem>>, vector<1x8x2xbf16>
    %334 = vector.shape_cast %333 : vector<1x8x2xbf16> to vector<8x2xbf16>
    %cst_305 = arith.constant dense<0.000000e+00> : vector<32x2xf32>
    %335 = tpu.matmul %283, %334, %cst_305 {dimension_numbers = #tpu.dot_dimension_numbers<[1], [0], [0], [1], [0, 0, 1, 1], [], []>} : vector<32x8xbf16>, vector<8x2xbf16>, vector<32x2xf32> -> vector<32x2xf32>
    %c6_306 = arith.constant 6 : index
    %c0_307 = arith.constant 0 : index
    %c0_308 = arith.constant 0 : index
    %336 = vector.load %arg18[%c6_306, %c0_307, %c0_308] : memref<9x8x32xbf16, #tpu.memory_space<vmem>>, vector<1x8x32xbf16>
    %337 = vector.shape_cast %336 : vector<1x8x32xbf16> to vector<8x32xbf16>
    %338 = arith.truncf %335 : vector<32x2xf32> to vector<32x2xbf16>
    %cst_309 = arith.constant dense<0.000000e+00> : vector<8x2xf32>
    %339 = tpu.matmul %337, %338, %cst_309 {dimension_numbers = #tpu.dot_dimension_numbers<[1], [0], [0], [1], [0, 0, 1, 1], [], []>} : vector<8x32xbf16>, vector<32x2xbf16>, vector<8x2xf32> -> vector<8x2xf32>
    %340 = arith.addf %332, %339 : vector<8x2xf32>
    %c7_310 = arith.constant 7 : index
    %c0_311 = arith.constant 0 : index
    %c0_312 = arith.constant 0 : index
    %341 = vector.load %arg19[%c7_310, %c0_311, %c0_312] : memref<9x8x2xbf16, #tpu.memory_space<vmem>>, vector<1x8x2xbf16>
    %342 = vector.shape_cast %341 : vector<1x8x2xbf16> to vector<8x2xbf16>
    %cst_313 = arith.constant dense<0.000000e+00> : vector<32x2xf32>
    %343 = tpu.matmul %283, %342, %cst_313 {dimension_numbers = #tpu.dot_dimension_numbers<[1], [0], [0], [1], [0, 0, 1, 1], [], []>} : vector<32x8xbf16>, vector<8x2xbf16>, vector<32x2xf32> -> vector<32x2xf32>
    %c7_314 = arith.constant 7 : index
    %c0_315 = arith.constant 0 : index
    %c0_316 = arith.constant 0 : index
    %344 = vector.load %arg18[%c7_314, %c0_315, %c0_316] : memref<9x8x32xbf16, #tpu.memory_space<vmem>>, vector<1x8x32xbf16>
    %345 = vector.shape_cast %344 : vector<1x8x32xbf16> to vector<8x32xbf16>
    %346 = arith.truncf %343 : vector<32x2xf32> to vector<32x2xbf16>
    %cst_317 = arith.constant dense<0.000000e+00> : vector<8x2xf32>
    %347 = tpu.matmul %345, %346, %cst_317 {dimension_numbers = #tpu.dot_dimension_numbers<[1], [0], [0], [1], [0, 0, 1, 1], [], []>} : vector<8x32xbf16>, vector<32x2xbf16>, vector<8x2xf32> -> vector<8x2xf32>
    %348 = arith.addf %340, %347 : vector<8x2xf32>
    %c8_318 = arith.constant 8 : index
    %c0_319 = arith.constant 0 : index
    %c0_320 = arith.constant 0 : index
    %349 = vector.load %arg19[%c8_318, %c0_319, %c0_320] : memref<9x8x2xbf16, #tpu.memory_space<vmem>>, vector<1x8x2xbf16>
    %350 = vector.shape_cast %349 : vector<1x8x2xbf16> to vector<8x2xbf16>
    %cst_321 = arith.constant dense<0.000000e+00> : vector<32x2xf32>
    %351 = tpu.matmul %283, %350, %cst_321 {dimension_numbers = #tpu.dot_dimension_numbers<[1], [0], [0], [1], [0, 0, 1, 1], [], []>} : vector<32x8xbf16>, vector<8x2xbf16>, vector<32x2xf32> -> vector<32x2xf32>
    %c8_322 = arith.constant 8 : index
    %c0_323 = arith.constant 0 : index
    %c0_324 = arith.constant 0 : index
    %352 = vector.load %arg18[%c8_322, %c0_323, %c0_324] : memref<9x8x32xbf16, #tpu.memory_space<vmem>>, vector<1x8x32xbf16>
    %353 = vector.shape_cast %352 : vector<1x8x32xbf16> to vector<8x32xbf16>
    %354 = arith.truncf %351 : vector<32x2xf32> to vector<32x2xbf16>
    %cst_325 = arith.constant dense<0.000000e+00> : vector<8x2xf32>
    %355 = tpu.matmul %353, %354, %cst_325 {dimension_numbers = #tpu.dot_dimension_numbers<[1], [0], [0], [1], [0, 0, 1, 1], [], []>} : vector<8x32xbf16>, vector<32x2xbf16>, vector<8x2xf32> -> vector<8x2xf32>
    %356 = arith.addf %348, %355 : vector<8x2xf32>
    %c0_326 = arith.constant 0 : index
    %c0_327 = arith.constant 0 : index
    %357 = vector.load %arg20[%c0_326, %c0_327] : memref<8x1xf32, #tpu.memory_space<vmem>>, vector<8x1xf32>
    %358 = vector.broadcast %357 : vector<8x1xf32> to vector<8x2xf32>
    %359 = arith.mulf %356, %358 : vector<8x2xf32>
    %c0_328 = arith.constant 0 : index
    %c0_329 = arith.constant 0 : index
    %360 = vector.load %arg21[%c0_328, %c0_329] : memref<8x1xf32, #tpu.memory_space<vmem>>, vector<8x1xf32>
    %361 = vector.broadcast %360 : vector<8x1xf32> to vector<8x2xf32>
    %362 = arith.addf %359, %361 : vector<8x2xf32>
    %cst_330 = arith.constant 0.000000e+00 : f32
    %363 = vector.broadcast %cst_330 : f32 to vector<8x2xf32>
    %364 = arith.cmpf oge, %362, %363 : vector<8x2xf32>
    %cst_331 = arith.constant 2.000000e-01 : f32
    %365 = vector.broadcast %cst_331 : f32 to vector<8x2xf32>
    %366 = arith.mulf %365, %362 : vector<8x2xf32>
    %367 = arith.select %364, %362, %366 : vector<8x2xi1>, vector<8x2xf32>
    %368 = arith.truncf %367 : vector<8x2xf32> to vector<8x2xbf16>
    %cst_332 = arith.constant 0.000000e+00 : f32
    %369 = vector.broadcast %cst_332 : f32 to vector<1x2xf32>
    %c0_333 = arith.constant 0 : index
    %c0_334 = arith.constant 0 : index
    %c0_335 = arith.constant 0 : index
    %370 = vector.load %arg23[%c0_333, %c0_334, %c0_335] : memref<9x2x2xbf16, #tpu.memory_space<vmem>>, vector<1x2x2xbf16>
    %371 = vector.shape_cast %370 : vector<1x2x2xbf16> to vector<2x2xbf16>
    %cst_336 = arith.constant dense<0.000000e+00> : vector<8x2xf32>
    %372 = tpu.matmul %368, %371, %cst_336 {dimension_numbers = #tpu.dot_dimension_numbers<[1], [0], [0], [1], [0, 0, 1, 1], [], []>} : vector<8x2xbf16>, vector<2x2xbf16>, vector<8x2xf32> -> vector<8x2xf32>
    %c0_337 = arith.constant 0 : index
    %c0_338 = arith.constant 0 : index
    %c0_339 = arith.constant 0 : index
    %373 = vector.load %arg22[%c0_337, %c0_338, %c0_339] : memref<9x1x8xbf16, #tpu.memory_space<vmem>>, vector<1x1x8xbf16>
    %374 = vector.shape_cast %373 : vector<1x1x8xbf16> to vector<1x8xbf16>
    %375 = arith.truncf %372 : vector<8x2xf32> to vector<8x2xbf16>
    %cst_340 = arith.constant dense<0.000000e+00> : vector<1x2xf32>
    %376 = tpu.matmul %374, %375, %cst_340 {dimension_numbers = #tpu.dot_dimension_numbers<[1], [0], [0], [1], [0, 0, 1, 1], [], []>} : vector<1x8xbf16>, vector<8x2xbf16>, vector<1x2xf32> -> vector<1x2xf32>
    %377 = arith.addf %369, %376 : vector<1x2xf32>
    %c1_341 = arith.constant 1 : index
    %c0_342 = arith.constant 0 : index
    %c0_343 = arith.constant 0 : index
    %378 = vector.load %arg23[%c1_341, %c0_342, %c0_343] : memref<9x2x2xbf16, #tpu.memory_space<vmem>>, vector<1x2x2xbf16>
    %379 = vector.shape_cast %378 : vector<1x2x2xbf16> to vector<2x2xbf16>
    %cst_344 = arith.constant dense<0.000000e+00> : vector<8x2xf32>
    %380 = tpu.matmul %368, %379, %cst_344 {dimension_numbers = #tpu.dot_dimension_numbers<[1], [0], [0], [1], [0, 0, 1, 1], [], []>} : vector<8x2xbf16>, vector<2x2xbf16>, vector<8x2xf32> -> vector<8x2xf32>
    %c1_345 = arith.constant 1 : index
    %c0_346 = arith.constant 0 : index
    %c0_347 = arith.constant 0 : index
    %381 = vector.load %arg22[%c1_345, %c0_346, %c0_347] : memref<9x1x8xbf16, #tpu.memory_space<vmem>>, vector<1x1x8xbf16>
    %382 = vector.shape_cast %381 : vector<1x1x8xbf16> to vector<1x8xbf16>
    %383 = arith.truncf %380 : vector<8x2xf32> to vector<8x2xbf16>
    %cst_348 = arith.constant dense<0.000000e+00> : vector<1x2xf32>
    %384 = tpu.matmul %382, %383, %cst_348 {dimension_numbers = #tpu.dot_dimension_numbers<[1], [0], [0], [1], [0, 0, 1, 1], [], []>} : vector<1x8xbf16>, vector<8x2xbf16>, vector<1x2xf32> -> vector<1x2xf32>
    %385 = arith.addf %377, %384 : vector<1x2xf32>
    %c2_349 = arith.constant 2 : index
    %c0_350 = arith.constant 0 : index
    %c0_351 = arith.constant 0 : index
    %386 = vector.load %arg23[%c2_349, %c0_350, %c0_351] : memref<9x2x2xbf16, #tpu.memory_space<vmem>>, vector<1x2x2xbf16>
    %387 = vector.shape_cast %386 : vector<1x2x2xbf16> to vector<2x2xbf16>
    %cst_352 = arith.constant dense<0.000000e+00> : vector<8x2xf32>
    %388 = tpu.matmul %368, %387, %cst_352 {dimension_numbers = #tpu.dot_dimension_numbers<[1], [0], [0], [1], [0, 0, 1, 1], [], []>} : vector<8x2xbf16>, vector<2x2xbf16>, vector<8x2xf32> -> vector<8x2xf32>
    %c2_353 = arith.constant 2 : index
    %c0_354 = arith.constant 0 : index
    %c0_355 = arith.constant 0 : index
    %389 = vector.load %arg22[%c2_353, %c0_354, %c0_355] : memref<9x1x8xbf16, #tpu.memory_space<vmem>>, vector<1x1x8xbf16>
    %390 = vector.shape_cast %389 : vector<1x1x8xbf16> to vector<1x8xbf16>
    %391 = arith.truncf %388 : vector<8x2xf32> to vector<8x2xbf16>
    %cst_356 = arith.constant dense<0.000000e+00> : vector<1x2xf32>
    %392 = tpu.matmul %390, %391, %cst_356 {dimension_numbers = #tpu.dot_dimension_numbers<[1], [0], [0], [1], [0, 0, 1, 1], [], []>} : vector<1x8xbf16>, vector<8x2xbf16>, vector<1x2xf32> -> vector<1x2xf32>
    %393 = arith.addf %385, %392 : vector<1x2xf32>
    %c3_357 = arith.constant 3 : index
    %c0_358 = arith.constant 0 : index
    %c0_359 = arith.constant 0 : index
    %394 = vector.load %arg23[%c3_357, %c0_358, %c0_359] : memref<9x2x2xbf16, #tpu.memory_space<vmem>>, vector<1x2x2xbf16>
    %395 = vector.shape_cast %394 : vector<1x2x2xbf16> to vector<2x2xbf16>
    %cst_360 = arith.constant dense<0.000000e+00> : vector<8x2xf32>
    %396 = tpu.matmul %368, %395, %cst_360 {dimension_numbers = #tpu.dot_dimension_numbers<[1], [0], [0], [1], [0, 0, 1, 1], [], []>} : vector<8x2xbf16>, vector<2x2xbf16>, vector<8x2xf32> -> vector<8x2xf32>
    %c3_361 = arith.constant 3 : index
    %c0_362 = arith.constant 0 : index
    %c0_363 = arith.constant 0 : index
    %397 = vector.load %arg22[%c3_361, %c0_362, %c0_363] : memref<9x1x8xbf16, #tpu.memory_space<vmem>>, vector<1x1x8xbf16>
    %398 = vector.shape_cast %397 : vector<1x1x8xbf16> to vector<1x8xbf16>
    %399 = arith.truncf %396 : vector<8x2xf32> to vector<8x2xbf16>
    %cst_364 = arith.constant dense<0.000000e+00> : vector<1x2xf32>
    %400 = tpu.matmul %398, %399, %cst_364 {dimension_numbers = #tpu.dot_dimension_numbers<[1], [0], [0], [1], [0, 0, 1, 1], [], []>} : vector<1x8xbf16>, vector<8x2xbf16>, vector<1x2xf32> -> vector<1x2xf32>
    %401 = arith.addf %393, %400 : vector<1x2xf32>
    %c4_365 = arith.constant 4 : index
    %c0_366 = arith.constant 0 : index
    %c0_367 = arith.constant 0 : index
    %402 = vector.load %arg23[%c4_365, %c0_366, %c0_367] : memref<9x2x2xbf16, #tpu.memory_space<vmem>>, vector<1x2x2xbf16>
    %403 = vector.shape_cast %402 : vector<1x2x2xbf16> to vector<2x2xbf16>
    %cst_368 = arith.constant dense<0.000000e+00> : vector<8x2xf32>
    %404 = tpu.matmul %368, %403, %cst_368 {dimension_numbers = #tpu.dot_dimension_numbers<[1], [0], [0], [1], [0, 0, 1, 1], [], []>} : vector<8x2xbf16>, vector<2x2xbf16>, vector<8x2xf32> -> vector<8x2xf32>
    %c4_369 = arith.constant 4 : index
    %c0_370 = arith.constant 0 : index
    %c0_371 = arith.constant 0 : index
    %405 = vector.load %arg22[%c4_369, %c0_370, %c0_371] : memref<9x1x8xbf16, #tpu.memory_space<vmem>>, vector<1x1x8xbf16>
    %406 = vector.shape_cast %405 : vector<1x1x8xbf16> to vector<1x8xbf16>
    %407 = arith.truncf %404 : vector<8x2xf32> to vector<8x2xbf16>
    %cst_372 = arith.constant dense<0.000000e+00> : vector<1x2xf32>
    %408 = tpu.matmul %406, %407, %cst_372 {dimension_numbers = #tpu.dot_dimension_numbers<[1], [0], [0], [1], [0, 0, 1, 1], [], []>} : vector<1x8xbf16>, vector<8x2xbf16>, vector<1x2xf32> -> vector<1x2xf32>
    %409 = arith.addf %401, %408 : vector<1x2xf32>
    %c5_373 = arith.constant 5 : index
    %c0_374 = arith.constant 0 : index
    %c0_375 = arith.constant 0 : index
    %410 = vector.load %arg23[%c5_373, %c0_374, %c0_375] : memref<9x2x2xbf16, #tpu.memory_space<vmem>>, vector<1x2x2xbf16>
    %411 = vector.shape_cast %410 : vector<1x2x2xbf16> to vector<2x2xbf16>
    %cst_376 = arith.constant dense<0.000000e+00> : vector<8x2xf32>
    %412 = tpu.matmul %368, %411, %cst_376 {dimension_numbers = #tpu.dot_dimension_numbers<[1], [0], [0], [1], [0, 0, 1, 1], [], []>} : vector<8x2xbf16>, vector<2x2xbf16>, vector<8x2xf32> -> vector<8x2xf32>
    %c5_377 = arith.constant 5 : index
    %c0_378 = arith.constant 0 : index
    %c0_379 = arith.constant 0 : index
    %413 = vector.load %arg22[%c5_377, %c0_378, %c0_379] : memref<9x1x8xbf16, #tpu.memory_space<vmem>>, vector<1x1x8xbf16>
    %414 = vector.shape_cast %413 : vector<1x1x8xbf16> to vector<1x8xbf16>
    %415 = arith.truncf %412 : vector<8x2xf32> to vector<8x2xbf16>
    %cst_380 = arith.constant dense<0.000000e+00> : vector<1x2xf32>
    %416 = tpu.matmul %414, %415, %cst_380 {dimension_numbers = #tpu.dot_dimension_numbers<[1], [0], [0], [1], [0, 0, 1, 1], [], []>} : vector<1x8xbf16>, vector<8x2xbf16>, vector<1x2xf32> -> vector<1x2xf32>
    %417 = arith.addf %409, %416 : vector<1x2xf32>
    %c6_381 = arith.constant 6 : index
    %c0_382 = arith.constant 0 : index
    %c0_383 = arith.constant 0 : index
    %418 = vector.load %arg23[%c6_381, %c0_382, %c0_383] : memref<9x2x2xbf16, #tpu.memory_space<vmem>>, vector<1x2x2xbf16>
    %419 = vector.shape_cast %418 : vector<1x2x2xbf16> to vector<2x2xbf16>
    %cst_384 = arith.constant dense<0.000000e+00> : vector<8x2xf32>
    %420 = tpu.matmul %368, %419, %cst_384 {dimension_numbers = #tpu.dot_dimension_numbers<[1], [0], [0], [1], [0, 0, 1, 1], [], []>} : vector<8x2xbf16>, vector<2x2xbf16>, vector<8x2xf32> -> vector<8x2xf32>
    %c6_385 = arith.constant 6 : index
    %c0_386 = arith.constant 0 : index
    %c0_387 = arith.constant 0 : index
    %421 = vector.load %arg22[%c6_385, %c0_386, %c0_387] : memref<9x1x8xbf16, #tpu.memory_space<vmem>>, vector<1x1x8xbf16>
    %422 = vector.shape_cast %421 : vector<1x1x8xbf16> to vector<1x8xbf16>
    %423 = arith.truncf %420 : vector<8x2xf32> to vector<8x2xbf16>
    %cst_388 = arith.constant dense<0.000000e+00> : vector<1x2xf32>
    %424 = tpu.matmul %422, %423, %cst_388 {dimension_numbers = #tpu.dot_dimension_numbers<[1], [0], [0], [1], [0, 0, 1, 1], [], []>} : vector<1x8xbf16>, vector<8x2xbf16>, vector<1x2xf32> -> vector<1x2xf32>
    %425 = arith.addf %417, %424 : vector<1x2xf32>
    %c7_389 = arith.constant 7 : index
    %c0_390 = arith.constant 0 : index
    %c0_391 = arith.constant 0 : index
    %426 = vector.load %arg23[%c7_389, %c0_390, %c0_391] : memref<9x2x2xbf16, #tpu.memory_space<vmem>>, vector<1x2x2xbf16>
    %427 = vector.shape_cast %426 : vector<1x2x2xbf16> to vector<2x2xbf16>
    %cst_392 = arith.constant dense<0.000000e+00> : vector<8x2xf32>
    %428 = tpu.matmul %368, %427, %cst_392 {dimension_numbers = #tpu.dot_dimension_numbers<[1], [0], [0], [1], [0, 0, 1, 1], [], []>} : vector<8x2xbf16>, vector<2x2xbf16>, vector<8x2xf32> -> vector<8x2xf32>
    %c7_393 = arith.constant 7 : index
    %c0_394 = arith.constant 0 : index
    %c0_395 = arith.constant 0 : index
    %429 = vector.load %arg22[%c7_393, %c0_394, %c0_395] : memref<9x1x8xbf16, #tpu.memory_space<vmem>>, vector<1x1x8xbf16>
    %430 = vector.shape_cast %429 : vector<1x1x8xbf16> to vector<1x8xbf16>
    %431 = arith.truncf %428 : vector<8x2xf32> to vector<8x2xbf16>
    %cst_396 = arith.constant dense<0.000000e+00> : vector<1x2xf32>
    %432 = tpu.matmul %430, %431, %cst_396 {dimension_numbers = #tpu.dot_dimension_numbers<[1], [0], [0], [1], [0, 0, 1, 1], [], []>} : vector<1x8xbf16>, vector<8x2xbf16>, vector<1x2xf32> -> vector<1x2xf32>
    %433 = arith.addf %425, %432 : vector<1x2xf32>
    %c8_397 = arith.constant 8 : index
    %c0_398 = arith.constant 0 : index
    %c0_399 = arith.constant 0 : index
    %434 = vector.load %arg23[%c8_397, %c0_398, %c0_399] : memref<9x2x2xbf16, #tpu.memory_space<vmem>>, vector<1x2x2xbf16>
    %435 = vector.shape_cast %434 : vector<1x2x2xbf16> to vector<2x2xbf16>
    %cst_400 = arith.constant dense<0.000000e+00> : vector<8x2xf32>
    %436 = tpu.matmul %368, %435, %cst_400 {dimension_numbers = #tpu.dot_dimension_numbers<[1], [0], [0], [1], [0, 0, 1, 1], [], []>} : vector<8x2xbf16>, vector<2x2xbf16>, vector<8x2xf32> -> vector<8x2xf32>
    %c8_401 = arith.constant 8 : index
    %c0_402 = arith.constant 0 : index
    %c0_403 = arith.constant 0 : index
    %437 = vector.load %arg22[%c8_401, %c0_402, %c0_403] : memref<9x1x8xbf16, #tpu.memory_space<vmem>>, vector<1x1x8xbf16>
    %438 = vector.shape_cast %437 : vector<1x1x8xbf16> to vector<1x8xbf16>
    %439 = arith.truncf %436 : vector<8x2xf32> to vector<8x2xbf16>
    %cst_404 = arith.constant dense<0.000000e+00> : vector<1x2xf32>
    %440 = tpu.matmul %438, %439, %cst_404 {dimension_numbers = #tpu.dot_dimension_numbers<[1], [0], [0], [1], [0, 0, 1, 1], [], []>} : vector<1x8xbf16>, vector<8x2xbf16>, vector<1x2xf32> -> vector<1x2xf32>
    %441 = arith.addf %433, %440 : vector<1x2xf32>
    %c0_405 = arith.constant 0 : index
    %c0_406 = arith.constant 0 : index
    %442 = vector.load %arg24[%c0_405, %c0_406] : memref<1x1xf32, #tpu.memory_space<vmem>>, vector<1x1xf32>
    %443 = vector.broadcast %442 : vector<1x1xf32> to vector<1x2xf32>
    %444 = arith.mulf %441, %443 : vector<1x2xf32>
    %c0_407 = arith.constant 0 : index
    %c0_408 = arith.constant 0 : index
    %445 = vector.load %arg25[%c0_407, %c0_408] : memref<1x1xf32, #tpu.memory_space<vmem>>, vector<1x1xf32>
    %446 = vector.broadcast %445 : vector<1x1xf32> to vector<1x2xf32>
    %447 = arith.addf %444, %446 : vector<1x2xf32>
    %448 = arith.negf %447 : vector<1x2xf32>
    %449 = math.exp %448 : vector<1x2xf32>
    %cst_409 = arith.constant 1.000000e+00 : f32
    %450 = vector.broadcast %cst_409 : f32 to vector<1x2xf32>
    %451 = arith.addf %450, %449 : vector<1x2xf32>
    %452 = arith.divf %450, %451 : vector<1x2xf32>
    %c0_410 = arith.constant 0 : index
    %c0_411 = arith.constant 0 : index
    %453 = vector.load %arg26[%c0_410, %c0_411] : memref<1x2xf32, #tpu.memory_space<vmem>>, vector<1x2xf32>
    tpu.vector_store %arg26[%c0_410, %c0_411], %452 {strides = array<i32>} : memref<1x2xf32, #tpu.memory_space<vmem>>, vector<1x2xf32>,
    return
  }
}

</mosaic_0001>

<llo_original>
// kernel: discriminator_attention.1
$region0: #{discriminator_attention.1}
  #allocation0 [shape = 'u32[]', space=smem, size = 0x4, offset = 0x4, fixed_abs, tag = 'smem constant byte address 0x4 - core index']
  #allocation1 [shape = 'u32[144,128]{1,0:T(1,128)}', space=vmem, size = 0x12000, scoped, tag = 'internal scratch']
  #allocation2 [shape = 'f32[1,1]{1,0:T(1,128)S(1)}', space=vmem, size = 0x200, scoped, tag = 'scoped memory for discriminator_attention.1']
  #allocation3 [shape = 'f32[1,1]{1,0:T(1,128)S(1)}', space=vmem, size = 0x200, scoped, tag = 'scoped memory for discriminator_attention.1']
  %s0 = inlined_call_operand.vmem [shape: bf16[3,512], index: 0, kind: input, shape index: {}]
  %s1 = inlined_call_operand.vmem [shape: bf16[9,8,3], index: 1, kind: input, shape index: {}]
  %s2 = inlined_call_operand.hbm [shape: bf16[9,512,128], index: 2, kind: input, shape index: {}]
  %s3 = inlined_call_operand.vmem [shape: f32[8,1], index: 3, kind: input, shape index: {}]
  %s4 = inlined_call_operand.vmem [shape: f32[8,1], index: 4, kind: input, shape index: {}]
  %s5 = inlined_call_operand.vmem [shape: bf16[9,16,8], index: 5, kind: input, shape index: {}]
  %s6 = inlined_call_operand.vmem [shape: bf16[9,128,32], index: 6, kind: input, shape index: {}]
  %s7 = inlined_call_operand.vmem [shape: f32[16,1], index: 7, kind: input, shape index: {}]
  %s8 = inlined_call_operand.vmem [shape: f32[16,1], index: 8, kind: input, shape index: {}]
  %s9 = inlined_call_operand.vmem [shape: bf16[9,32,16], index: 9, kind: input, shape index: {}]
  %s10 = inlined_call_operand.vmem [shape: bf16[9,32,8], index: 10, kind: input, shape index: {}]
  %s11 = inlined_call_operand.vmem [shape: f32[32,1], index: 11, kind: input, shape index: {}]
  %s12 = inlined_call_operand.vmem [shape: f32[32,1], index: 12, kind: input, shape index: {}]
  %s13 = inlined_call_operand.hbm [shape: f32[4,8,32], index: 13, kind: input, shape index: {}]
  %s14 = inlined_call_operand.hbm [shape: f32[4,8,32], index: 14, kind: input, shape index: {}]
  %s15 = inlined_call_operand.hbm [shape: f32[4,8,32], index: 15, kind: input, shape index: {}]
  %s16 = inlined_call_operand.vmem [shape: f32[4,32,8], index: 16, kind: input, shape index: {}]
  %s17 = inlined_call_operand.hbm [shape: f32[8,8], index: 17, kind: input, shape index: {}]
  %s18 = inlined_call_operand.hbm [shape: bf16[9,8,32], index: 18, kind: input, shape index: {}]
  %s19 = inlined_call_operand.vmem [shape: bf16[9,8,2], index: 19, kind: input, shape index: {}]
  %s20 = inlined_call_operand.vmem [shape: f32[8,1], index: 20, kind: input, shape index: {}]
  %s21 = inlined_call_operand.vmem [shape: f32[8,1], index: 21, kind: input, shape index: {}]
  %s22 = inlined_call_operand.vmem [shape: bf16[9,1,8], index: 22, kind: input, shape index: {}]
  %s23 = inlined_call_operand.vmem [shape: bf16[9,2,2], index: 23, kind: input, shape index: {}]
  %s24 = inlined_call_operand.<no memory space> [shape: f32[1,1], index: 24, kind: input, shape index: {}]
  %s25 = inlined_call_operand.<no memory space> [shape: f32[1,1], index: 25, kind: input, shape index: {}]
  %s26 = inlined_call_operand.hbm [shape: f32[1,2], index: 26, kind: output, shape index: {}]
  %s27 = sld [smem:[#allocation0]]
  $region138: #{discriminator_attention.1} parent=0
    _
  %s29 = ssub.s32 1, %s27
  %s30 = scalar_select 0, %s29, %s27
  %v31 = vstv %s24
  %32 = vst [vmem:[#allocation2] sm:$0x1] %v31
  %v33 = vstv %s25
  %34 = vst [vmem:[#allocation3] sm:$0x1] %v33
  $region1: #{discriminator_attention.1} parent=0
    #allocation4 [shape = 'u8[1179648]{0}', space=vmem, size = 0x120000, scoped, tag = 'input window, operand 2, single buffered']
    #allocation5 [shape = 's32[1]{0}', space=sflag, size = 0x4, scoped, tag = 'scoped memory for discriminator_attention.1']
    #allocation6 [shape = 's32[1]{0}', space=sflag, size = 0x4, scoped, tag = 'scoped memory for discriminator_attention.1']
    #allocation7 [shape = 'u8[16384]{0}', space=vmem, size = 0x4000, scoped, tag = 'input window, operand 13, single buffered']
    #allocation8 [shape = 's32[1]{0}', space=sflag, size = 0x4, scoped, tag = 'scoped memory for discriminator_attention.1']
    #allocation9 [shape = 'u8[16384]{0}', space=vmem, size = 0x4000, scoped, tag = 'input window, operand 14, single buffered']
    #allocation10 [shape = 'u8[16384]{0}', space=vmem, size = 0x4000, scoped, tag = 'input window, operand 15, single buffered']
    #allocation11 [shape = 's32[1]{0}', space=sflag, size = 0x4, scoped, tag = 'scoped memory for discriminator_attention.1']
    #allocation12 [shape = 'u8[4096]{0}', space=vmem, size = 0x1000, scoped, tag = 'input window, operand 17, single buffered']
    #allocation13 [shape = 'u8[18432]{0}', space=vmem, size = 0x4800, scoped, tag = 'input window, operand 18, single buffered']
    #allocation14 [shape = 's32[1]{0}', space=sflag, size = 0x4, scoped, tag = 'scoped memory for discriminator_attention.1']
    #allocation15 [shape = 'u8[512]{0}', space=vmem, size = 0x400, scoped, tag = 'output window, operand 0, single buffered']
    %35 = vsyncpa [#allocation5], 0
    %36 = vsyncpa [#allocation8], 0
    %37 = vsyncpa [#allocation11], 0
    %38 = vsyncpa [#allocation14], 0
    %39 = vsyncpa [#allocation6], 0
    // Predicated region
    $region2: #{discriminator_attention.1} parent=1 // pred_check
      _
    $region3: #{discriminator_attention.1} parent=1 // pred_check_branch
      %41 = sbr.rel (0) target = $region5
    $region4: #{discriminator_attention.1} parent=1 // pred_region
      _
    $region5: #{discriminator_attention.1} parent=1 // pred_fallthru
      _
    // Predicated region
    $region6: #{discriminator_attention.1} parent=1 // pred_check
      _
    $region7: #{discriminator_attention.1} parent=1 // pred_check_branch
      %43 = sbr.rel (0) target = $region9
    $region8: #{discriminator_attention.1} parent=1 // pred_region
      _
    $region9: #{discriminator_attention.1} parent=1 // pred_fallthru
      _
    // Predicated region
    $region10: #{discriminator_attention.1} parent=1 // pred_check
      _
    $region11: #{discriminator_attention.1} parent=1 // pred_check_branch
      %45 = sbr.rel (0) target = $region13
    $region12: #{discriminator_attention.1} parent=1 // pred_region
      %s47 = ssub.s32 36864, 36864
      %48 = vsyncadd [#allocation5], %s47
      %s49 = sshll.u32 [#allocation4], 4
      %s50 = int_to_ptr.vmem [resolvable:$true] %s49
      %55 = dma.hbm_to_vmem [thread:$0]  %s2, 36864, %s50, [#allocation5], 64, 64, 4
    $region13: #{discriminator_attention.1} parent=1 // pred_fallthru
      _
    // Predicated region
    $region14: #{discriminator_attention.1} parent=1 // pred_check
      _
    $region15: #{discriminator_attention.1} parent=1 // pred_check_branch
      %57 = sbr.rel (0) target = $region17
    $region16: #{discriminator_attention.1} parent=1 // pred_region
      _
    $region17: #{discriminator_attention.1} parent=1 // pred_fallthru
      _
    // Predicated region
    $region18: #{discriminator_attention.1} parent=1 // pred_check
      _
    $region19: #{discriminator_attention.1} parent=1 // pred_check_branch
      %59 = sbr.rel (0) target = $region21
    $region20: #{discriminator_attention.1} parent=1 // pred_region
      _
    $region21: #{discriminator_attention.1} parent=1 // pred_fallthru
      _
    // Predicated region
    $region22: #{discriminator_attention.1} parent=1 // pred_check
      _
    $region23: #{discriminator_attention.1} parent=1 // pred_check_branch
      %61 = sbr.rel (0) target = $region25
    $region24: #{discriminator_attention.1} parent=1 // pred_region
      _
    $region25: #{discriminator_attention.1} parent=1 // pred_fallthru
      _
    // Predicated region
    $region26: #{discriminator_attention.1} parent=1 // pred_check
      _
    $region27: #{discriminator_attention.1} parent=1 // pred_check_branch
      %63 = sbr.rel (0) target = $region29
    $region28: #{discriminator_attention.1} parent=1 // pred_region
      _
    $region29: #{discriminator_attention.1} parent=1 // pred_fallthru
      _
    // Predicated region
    $region30: #{discriminator_attention.1} parent=1 // pred_check
      _
    $region31: #{discriminator_attention.1} parent=1 // pred_check_branch
      %65 = sbr.rel (0) target = $region33
    $region32: #{discriminator_attention.1} parent=1 // pred_region
      _
    $region33: #{discriminator_attention.1} parent=1 // pred_fallthru
      _
    // Predicated region
    $region34: #{discriminator_attention.1} parent=1 // pred_check
      _
    $region35: #{discriminator_attention.1} parent=1 // pred_check_branch
      %67 = sbr.rel (0) target = $region37
    $region36: #{discriminator_attention.1} parent=1 // pred_region
      _
    $region37: #{discriminator_attention.1} parent=1 // pred_fallthru
      _
    // Predicated region
    $region38: #{discriminator_attention.1} parent=1 // pred_check
      _
    $region39: #{discriminator_attention.1} parent=1 // pred_check_branch
      %69 = sbr.rel (0) target = $region41
    $region40: #{discriminator_attention.1} parent=1 // pred_region
      _
    $region41: #{discriminator_attention.1} parent=1 // pred_fallthru
      _
    // Predicated region
    $region42: #{discriminator_attention.1} parent=1 // pred_check
      _
    $region43: #{discriminator_attention.1} parent=1 // pred_check_branch
      %71 = sbr.rel (0) target = $region45
    $region44: #{discriminator_attention.1} parent=1 // pred_region
      _
    $region45: #{discriminator_attention.1} parent=1 // pred_fallthru
      _
    // Predicated region
    $region46: #{discriminator_attention.1} parent=1 // pred_check
      _
    $region47: #{discriminator_attention.1} parent=1 // pred_check_branch
      %73 = sbr.rel (0) target = $region49
    $region48: #{discriminator_attention.1} parent=1 // pred_region
      _
    $region49: #{discriminator_attention.1} parent=1 // pred_fallthru
      _
    // Predicated region
    $region50: #{discriminator_attention.1} parent=1 // pred_check
      _
    $region51: #{discriminator_attention.1} parent=1 // pred_check_branch
      %75 = sbr.rel (0) target = $region53
    $region52: #{discriminator_attention.1} parent=1 // pred_region
      _
    $region53: #{discriminator_attention.1} parent=1 // pred_fallthru
      _
    // Predicated region
    $region54: #{discriminator_attention.1} parent=1 // pred_check
      _
    $region55: #{discriminator_attention.1} parent=1 // pred_check_branch
      %77 = sbr.rel (0) target = $region57
    $region56: #{discriminator_attention.1} parent=1 // pred_region
      %s79 = ssub.s32 512, 512
      %80 = vsyncadd [#allocation8], %s79
      %s81 = sshll.u32 [#allocation7], 4
      %s82 = int_to_ptr.vmem [resolvable:$true] %s81
      %87 = dma.hbm_to_vmem [thread:$0]  %s13, 512, %s82, [#allocation8], 128, 128, 8
    $region57: #{discriminator_attention.1} parent=1 // pred_fallthru
      _
    // Predicated region
    $region58: #{discriminator_attention.1} parent=1 // pred_check
      _
    $region59: #{discriminator_attention.1} parent=1 // pred_check_branch
      %89 = sbr.rel (0) target = $region61
    $region60: #{discriminator_attention.1} parent=1 // pred_region
      %s91 = ssub.s32 512, 512
      %92 = vsyncadd [#allocation8], %s91
      %s93 = sshll.u32 [#allocation9], 4
      %s94 = int_to_ptr.vmem [resolvable:$true] %s93
      %99 = dma.hbm_to_vmem [thread:$0]  %s14, 512, %s94, [#allocation8], 128, 128, 8
    $region61: #{discriminator_attention.1} parent=1 // pred_fallthru
      _
    // Predicated region
    $region62: #{discriminator_attention.1} parent=1 // pred_check
      _
    $region63: #{discriminator_attention.1} parent=1 // pred_check_branch
      %101 = sbr.rel (0) target = $region65
    $region64: #{discriminator_attention.1} parent=1 // pred_region
      %s103 = ssub.s32 512, 512
      %104 = vsyncadd [#allocation11], %s103
      %s105 = sshll.u32 [#allocation10], 4
      %s106 = int_to_ptr.vmem [resolvable:$true] %s105
      %111 = dma.hbm_to_vmem [thread:$0]  %s15, 512, %s106, [#allocation11], 128, 128, 8
    $region65: #{discriminator_attention.1} parent=1 // pred_fallthru
      _
    // Predicated region
    $region66: #{discriminator_attention.1} parent=1 // pred_check
      _
    $region67: #{discriminator_attention.1} parent=1 // pred_check_branch
      %113 = sbr.rel (0) target = $region69
    $region68: #{discriminator_attention.1} parent=1 // pred_region
      _
    $region69: #{discriminator_attention.1} parent=1 // pred_fallthru
      _
    // Predicated region
    $region70: #{discriminator_attention.1} parent=1 // pred_check
      _
    $region71: #{discriminator_attention.1} parent=1 // pred_check_branch
      %115 = sbr.rel (0) target = $region73
    $region72: #{discriminator_attention.1} parent=1 // pred_region
      %s117 = ssub.s32 128, 128
      %118 = vsyncadd [#allocation11], %s117
      %s120 = sshll.u32 [#allocation12], 4
      %s121 = int_to_ptr.vmem [resolvable:$true] %s120
      %123 = dma.hbm_to_vmem [thread:$0]  %s17, 128, %s121, [#allocation11]
    $region73: #{discriminator_attention.1} parent=1 // pred_fallthru
      _
    // Predicated region
    $region74: #{discriminator_attention.1} parent=1 // pred_check
      _
    $region75: #{discriminator_attention.1} parent=1 // pred_check_branch
      %125 = sbr.rel (0) target = $region77
    $region76: #{discriminator_attention.1} parent=1 // pred_region
      %s127 = ssub.s32 576, 576
      %128 = vsyncadd [#allocation14], %s127
      %s129 = sshll.u32 [#allocation13], 4
      %s130 = int_to_ptr.vmem [resolvable:$true] %s129
      %135 = dma.hbm_to_vmem [thread:$0]  %s18, 576, %s130, [#allocation14], 64, 64, 4
    $region77: #{discriminator_attention.1} parent=1 // pred_fallthru
      _
    // Predicated region
    $region78: #{discriminator_attention.1} parent=1 // pred_check
      _
    $region79: #{discriminator_attention.1} parent=1 // pred_check_branch
      %137 = sbr.rel (0) target = $region81
    $region80: #{discriminator_attention.1} parent=1 // pred_region
      _
    $region81: #{discriminator_attention.1} parent=1 // pred_fallthru
      _
    // Predicated region
    $region82: #{discriminator_attention.1} parent=1 // pred_check
      _
    $region83: #{discriminator_attention.1} parent=1 // pred_check_branch
      %139 = sbr.rel (0) target = $region85
    $region84: #{discriminator_attention.1} parent=1 // pred_region
      _
    $region85: #{discriminator_attention.1} parent=1 // pred_fallthru
      _
    // Predicated region
    $region86: #{discriminator_attention.1} parent=1 // pred_check
      _
    $region87: #{discriminator_attention.1} parent=1 // pred_check_branch
      %141 = sbr.rel (0) target = $region89
    $region88: #{discriminator_attention.1} parent=1 // pred_region
      _
    $region89: #{discriminator_attention.1} parent=1 // pred_fallthru
      _
    // Predicated region
    $region90: #{discriminator_attention.1} parent=1 // pred_check
      _
    $region91: #{discriminator_attention.1} parent=1 // pred_check_branch
      %143 = sbr.rel (0) target = $region93
    $region92: #{discriminator_attention.1} parent=1 // pred_region
      _
    $region93: #{discriminator_attention.1} parent=1 // pred_fallthru
      _
    // Predicated region
    $region94: #{discriminator_attention.1} parent=1 // pred_check
      _
    $region95: #{discriminator_attention.1} parent=1 // pred_check_branch
      %145 = sbr.rel (0) target = $region97
    $region96: #{discriminator_attention.1} parent=1 // pred_region
      _
    $region97: #{discriminator_attention.1} parent=1 // pred_fallthru
      _
    // Predicated region
    $region98: #{discriminator_attention.1} parent=1 // pred_check
      _
    $region99: #{discriminator_attention.1} parent=1 // pred_check_branch
      %147 = sbr.rel (0) target = $region101
    $region100: #{discriminator_attention.1} parent=1 // pred_region
      _
    $region101: #{discriminator_attention.1} parent=1 // pred_fallthru
      _
    // Predicated region
    $region102: #{discriminator_attention.1} parent=1 // pred_check
      _
    $region103: #{discriminator_attention.1} parent=1 // pred_check_branch
      %149 = sbr.rel (0) target = $region105
    $region104: #{discriminator_attention.1} parent=1 // pred_region
      _
    $region105: #{discriminator_attention.1} parent=1 // pred_fallthru
      _
    // Predicated region
    $region106: #{discriminator_attention.1} parent=1 // pred_check
      _
    $region107: #{discriminator_attention.1} parent=1 // pred_check_branch
      %151 = sbr.rel (0) target = $region109
    $region108: #{discriminator_attention.1} parent=1 // pred_region
      %152 = dma.done [#allocation5], 36864
    $region109: #{discriminator_attention.1} parent=1 // pred_fallthru
      _
    // Predicated region
    $region110: #{discriminator_attention.1} parent=1 // pred_check
      _
    $region111: #{discriminator_attention.1} parent=1 // pred_check_branch
      %154 = sbr.rel (0) target = $region113
    $region112: #{discriminator_attention.1} parent=1 // pred_region
      %155 = dma.done [#allocation8], 512
    $region113: #{discriminator_attention.1} parent=1 // pred_fallthru
      _
    // Predicated region
    $region114: #{discriminator_attention.1} parent=1 // pred_check
      _
    $region115: #{discriminator_attention.1} parent=1 // pred_check_branch
      %157 = sbr.rel (0) target = $region117
    $region116: #{discriminator_attention.1} parent=1 // pred_region
      %158 = dma.done [#allocation8], 512
    $region117: #{discriminator_attention.1} parent=1 // pred_fallthru
      _
    // Predicated region
    $region118: #{discriminator_attention.1} parent=1 // pred_check
      _
    $region119: #{discriminator_attention.1} parent=1 // pred_check_branch
      %160 = sbr.rel (0) target = $region121
    $region120: #{discriminator_attention.1} parent=1 // pred_region
      %161 = dma.done [#allocation11], 512
    $region121: #{discriminator_attention.1} parent=1 // pred_fallthru
      _
    // Predicated region
    $region122: #{discriminator_attention.1} parent=1 // pred_check
      _
    $region123: #{discriminator_attention.1} parent=1 // pred_check_branch
      %163 = sbr.rel (0) target = $region125
    $region124: #{discriminator_attention.1} parent=1 // pred_region
      %164 = dma.done [#allocation11], 128
    $region125: #{discriminator_attention.1} parent=1 // pred_fallthru
      _
    // Predicated region
    $region126: #{discriminator_attention.1} parent=1 // pred_check
      _
    $region127: #{discriminator_attention.1} parent=1 // pred_check_branch
      %166 = sbr.rel (0) target = $region129
    $region128: #{discriminator_attention.1} parent=1 // pred_region
      %167 = dma.done [#allocation14], 576
    $region129: #{discriminator_attention.1} parent=1 // pred_fallthru
      _
    %v169 = vld [vmem:[%s0] sm:$0xff]
    %v170 = vld [vmem:[#allocation4] sm:$0xf]
    %v171 = vld [vmem:[#allocation4 + $0x4] sm:$0xf]
    %v172 = vld [vmem:[#allocation4 + $0x8] sm:$0xf]
    %v173 = vld [vmem:[#allocation4 + $0xc] sm:$0xf]
    %v174 = vld [vmem:[#allocation4 + $0x10] sm:$0xf]
    %v175 = vld [vmem:[#allocation4 + $0x14] sm:$0xf]
    %v176 = vld [vmem:[#allocation4 + $0x18] sm:$0xf]
    %v177 = vld [vmem:[#allocation4 + $0x1c] sm:$0xf]
    %v178 = vld [vmem:[#allocation4 + $0x20] sm:$0xf]
    %v179 = vld [vmem:[#allocation4 + $0x24] sm:$0xf]
    %v180 = vld [vmem:[#allocation4 + $0x28] sm:$0xf]
    %v181 = vld [vmem:[#allocation4 + $0x2c] sm:$0xf]
    %v182 = vld [vmem:[#allocation4 + $0x30] sm:$0xf]
    %v183 = vld [vmem:[#allocation4 + $0x34] sm:$0xf]
    %v184 = vld [vmem:[#allocation4 + $0x38] sm:$0xf]
    %v185 = vld [vmem:[#allocation4 + $0x3c] sm:$0xf]
    %v186 = vld [vmem:[#allocation4 + $0x40] sm:$0xf]
    %v187 = vld [vmem:[#allocation4 + $0x44] sm:$0xf]
    %v188 = vld [vmem:[#allocation4 + $0x48] sm:$0xf]
    %v189 = vld [vmem:[#allocation4 + $0x4c] sm:$0xf]
    %v190 = vld [vmem:[#allocation4 + $0x50] sm:$0xf]
    %v191 = vld [vmem:[#allocation4 + $0x54] sm:$0xf]
    %v192 = vld [vmem:[#allocation4 + $0x58] sm:$0xf]
    %v193 = vld [vmem:[#allocation4 + $0x5c] sm:$0xf]
    %v194 = vld [vmem:[#allocation4 + $0x60] sm:$0xf]
    %v195 = vld [vmem:[#allocation4 + $0x64] sm:$0xf]
    %v196 = vld [vmem:[#allocation4 + $0x68] sm:$0xf]
    %v197 = vld [vmem:[#allocation4 + $0x6c] sm:$0xf]
    %v198 = vld [vmem:[#allocation4 + $0x70] sm:$0xf]
    %v199 = vld [vmem:[#allocation4 + $0x74] sm:$0xf]
    %v200 = vld [vmem:[#allocation4 + $0x78] sm:$0xf]
    %v201 = vld [vmem:[#allocation4 + $0x7c] sm:$0xf]
    %v202 = vld [vmem:[#allocation4 + $0x80] sm:$0xf]
    %v203 = vld [vmem:[#allocation4 + $0x84] sm:$0xf]
    %v204 = vld [vmem:[#allocation4 + $0x88] sm:$0xf]
    %v205 = vld [vmem:[#allocation4 + $0x8c] sm:$0xf]
    %v206 = vld [vmem:[#allocation4 + $0x90] sm:$0xf]
    %v207 = vld [vmem:[#allocation4 + $0x94] sm:$0xf]
    %v208 = vld [vmem:[#allocation4 + $0x98] sm:$0xf]
    %v209 = vld [vmem:[#allocation4 + $0x9c] sm:$0xf]
    %v210 = vld [vmem:[#allocation4 + $0xa0] sm:$0xf]
    %v211 = vld [vmem:[#allocation4 + $0xa4] sm:$0xf]
    %v212 = vld [vmem:[#allocation4 + $0xa8] sm:$0xf]
    %v213 = vld [vmem:[#allocation4 + $0xac] sm:$0xf]
    %v214 = vld [vmem:[#allocation4 + $0xb0] sm:$0xf]
    %v215 = vld [vmem:[#allocation4 + $0xb4] sm:$0xf]
    %v216 = vld [vmem:[#allocation4 + $0xb8] sm:$0xf]
    %v217 = vld [vmem:[#allocation4 + $0xbc] sm:$0xf]
    %v218 = vld [vmem:[#allocation4 + $0xc0] sm:$0xf]
    %v219 = vld [vmem:[#allocation4 + $0xc4] sm:$0xf]
    %v220 = vld [vmem:[#allocation4 + $0xc8] sm:$0xf]
    %v221 = vld [vmem:[#allocation4 + $0xcc] sm:$0xf]
    %v222 = vld [vmem:[#allocation4 + $0xd0] sm:$0xf]
    %v223 = vld [vmem:[#allocation4 + $0xd4] sm:$0xf]
    %v224 = vld [vmem:[#allocation4 + $0xd8] sm:$0xf]
    %v225 = vld [vmem:[#allocation4 + $0xdc] sm:$0xf]
    %v226 = vld [vmem:[#allocation4 + $0xe0] sm:$0xf]
    %v227 = vld [vmem:[#allocation4 + $0xe4] sm:$0xf]
    %v228 = vld [vmem:[#allocation4 + $0xe8] sm:$0xf]
    %v229 = vld [vmem:[#allocation4 + $0xec] sm:$0xf]
    %v230 = vld [vmem:[#allocation4 + $0xf0] sm:$0xf]
    %v231 = vld [vmem:[#allocation4 + $0xf4] sm:$0xf]
    %v232 = vld [vmem:[#allocation4 + $0xf8] sm:$0xf]
    %v233 = vld [vmem:[#allocation4 + $0xfc] sm:$0xf]
    %v235 = vcombine.high %v169, %v169
    %v237 = vunpack.c.l.s4 1983009808
    %v238 = vunpack.c.0.s8 %v237
    %v239 = vlaneseq
    %v240 = vshrl.u32 %v239, 7
    %v241 = vsub.s32 %v238, %v240
    %v242 = vrot.slane %v169, %v241
    %v244 = vunpack.c.l.s4 1983009808
    %v245 = vunpack.c.0.s8 %v244
    %v246 = vlaneseq
    %v247 = vshrl.u32 %v246, 7
    %v248 = vsub.s32 %v245, %v247
    %v249 = vrot.slane %v235, %v248
    %v250 = vcombine.high %v242, %v242
    %v251 = vcombine.high %v249, %v249
    %v320 = vunpack.c.l.b16 %v170
    %v321 = vunpack.c.l.b16 %v171
    %v322 = vunpack.c.l.b16 %v172
    %v323 = vunpack.c.l.b16 %v173
    %v324 = vunpack.c.l.b16 %v174
    %v325 = vunpack.c.l.b16 %v175
    %v326 = vunpack.c.l.b16 %v176
    %v327 = vunpack.c.l.b16 %v177
    %v328 = vunpack.c.l.b16 %v178
    %v329 = vunpack.c.l.b16 %v179
    %v330 = vunpack.c.l.b16 %v180
    %v331 = vunpack.c.l.b16 %v181
    %v332 = vunpack.c.l.b16 %v182
    %v333 = vunpack.c.l.b16 %v183
    %v334 = vunpack.c.l.b16 %v184
    %v335 = vunpack.c.l.b16 %v185
    %v336 = vunpack.c.l.b16 %v186
    %v337 = vunpack.c.l.b16 %v187
    %v338 = vunpack.c.l.b16 %v188
    %v339 = vunpack.c.l.b16 %v189
    %v340 = vunpack.c.l.b16 %v190
    %v341 = vunpack.c.l.b16 %v191
    %v342 = vunpack.c.l.b16 %v192
    %v343 = vunpack.c.l.b16 %v193
    %v344 = vunpack.c.l.b16 %v194
    %v345 = vunpack.c.l.b16 %v195
    %v346 = vunpack.c.l.b16 %v196
    %v347 = vunpack.c.l.b16 %v197
    %v348 = vunpack.c.l.b16 %v198
    %v349 = vunpack.c.l.b16 %v199
    %v350 = vunpack.c.l.b16 %v200
    %v351 = vunpack.c.l.b16 %v201
    %v352 = vunpack.c.l.b16 %v202
    %v353 = vunpack.c.l.b16 %v203
    %v354 = vunpack.c.l.b16 %v204
    %v355 = vunpack.c.l.b16 %v205
    %v356 = vunpack.c.l.b16 %v206
    %v357 = vunpack.c.l.b16 %v207
    %v358 = vunpack.c.l.b16 %v208
    %v359 = vunpack.c.l.b16 %v209
    %v360 = vunpack.c.l.b16 %v210
    %v361 = vunpack.c.l.b16 %v211
    %v362 = vunpack.c.l.b16 %v212
    %v363 = vunpack.c.l.b16 %v213
    %v364 = vunpack.c.l.b16 %v214
    %v365 = vunpack.c.l.b16 %v215
    %v366 = vunpack.c.l.b16 %v216
    %v367 = vunpack.c.l.b16 %v217
    %v368 = vunpack.c.l.b16 %v218
    %v369 = vunpack.c.l.b16 %v219
    %v370 = vunpack.c.l.b16 %v220
    %v371 = vunpack.c.l.b16 %v221
    %v372 = vunpack.c.l.b16 %v222
    %v373 = vunpack.c.l.b16 %v223
    %v374 = vunpack.c.l.b16 %v224
    %v375 = vunpack.c.l.b16 %v225
    %v376 = vunpack.c.l.b16 %v226
    %v377 = vunpack.c.l.b16 %v227
    %v378 = vunpack.c.l.b16 %v228
    %v379 = vunpack.c.l.b16 %v229
    %v380 = vunpack.c.l.b16 %v230
    %v381 = vunpack.c.l.b16 %v231
    %v382 = vunpack.c.l.b16 %v232
    %v383 = vunpack.c.l.b16 %v233
    %v384 = vpack.c.b16 %v321, %v320
    %v385 = vpack.c.b16 %v323, %v322
    %v386 = vpack.c.b16 %v325, %v324
    %v387 = vpack.c.b16 %v327, %v326
    %v388 = vpack.c.b16 %v329, %v328
    %v389 = vpack.c.b16 %v331, %v330
    %v390 = vpack.c.b16 %v333, %v332
    %v391 = vpack.c.b16 %v335, %v334
    %v392 = vpack.c.b16 %v337, %v336
    %v393 = vpack.c.b16 %v339, %v338
    %v394 = vpack.c.b16 %v341, %v340
    %v395 = vpack.c.b16 %v343, %v342
    %v396 = vpack.c.b16 %v345, %v344
    %v397 = vpack.c.b16 %v347, %v346
    %v398 = vpack.c.b16 %v349, %v348
    %v399 = vpack.c.b16 %v351, %v350
    %v400 = vpack.c.b16 %v353, %v352
    %v401 = vpack.c.b16 %v355, %v354
    %v402 = vpack.c.b16 %v357, %v356
    %v403 = vpack.c.b16 %v359, %v358
    %v404 = vpack.c.b16 %v361, %v360
    %v405 = vpack.c.b16 %v363, %v362
    %v406 = vpack.c.b16 %v365, %v364
    %v407 = vpack.c.b16 %v367, %v366
    %v408 = vpack.c.b16 %v369, %v368
    %v409 = vpack.c.b16 %v371, %v370
    %v410 = vpack.c.b16 %v373, %v372
    %v411 = vpack.c.b16 %v375, %v374
    %v412 = vpack.c.b16 %v377, %v376
    %v413 = vpack.c.b16 %v379, %v378
    %v414 = vpack.c.b16 %v381, %v380
    %v415 = vpack.c.b16 %v383, %v382
    %448 = vmatprep.subr.bf16.mxu0 0
    %449 = vmatpush1.bf16.msra.mxu0 %v391
    %450 = vmatprep.subr.bf16.mxu0 0
    %451 = vmatpush1.bf16.msra.mxu0 %v390
    %452 = vmatprep.subr.bf16.mxu0 0
    %453 = vmatpush1.bf16.msra.mxu0 %v389
    %454 = vmatprep.subr.bf16.mxu0 0
    %455 = vmatpush1.bf16.msra.mxu0 %v388
    %456 = vmatprep.subr.bf16.mxu0 0
    %457 = vmatpush1.bf16.msra.mxu0 %v387
    %458 = vmatprep.subr.bf16.mxu0 0
    %459 = vmatpush1.bf16.msra.mxu0 %v386
    %460 = vmatprep.subr.bf16.mxu0 0
    %461 = vmatpush1.bf16.msra.mxu0 %v385
    %462 = vmatprep.subr.bf16.mxu0 0
    %463 = vmatpush1.bf16.msra.mxu0 %v384
    %464 = vmatprep.subr.bf16.mxu0 0
    %465 = vmatpush2.bf16.msra.mxu0 %v399
    %466 = vmatprep.subr.bf16.mxu0 0
    %467 = vmatpush2.bf16.msra.mxu0 %v398
    %468 = vmatprep.subr.bf16.mxu0 0
    %469 = vmatpush2.bf16.msra.mxu0 %v397
    %470 = vmatprep.subr.bf16.mxu0 0
    %471 = vmatpush2.bf16.msra.mxu0 %v396
    %472 = vmatprep.subr.bf16.mxu0 0
    %473 = vmatpush2.bf16.msra.mxu0 %v395
    %474 = vmatprep.subr.bf16.mxu0 0
    %475 = vmatpush2.bf16.msra.mxu0 %v394
    %476 = vmatprep.subr.bf16.mxu0 0
    %477 = vmatpush2.bf16.msra.mxu0 %v393
    %478 = vmatprep.subr.bf16.mxu0 0
    %479 = vmatpush2.bf16.msra.mxu0 %v392
    %480 = vmatprep.mubr.bf16.mxu0 %v250
    %481 = vmatmul.mubr.bf16.gmra.mxu0 %v242
    %v482 = vpop.f32.mrf.mxu0
    %v483 = vadd.f32 0.0, %v482
    %v484 = vpop.f32.mrf.mxu0
    %v485 = vpop.f32.mrf.mxu0
    %v486 = vpop.f32.mrf.mxu0
    %487 = vdwg.mxu0
    %488 = vmatprep.subr.bf16.mxu0 0
    %489 = vmatpush1.bf16.msra.mxu0 %v407
    %490 = vmatprep.subr.bf16.mxu0 0
    %491 = vmatpush1.bf16.msra.mxu0 %v406
    %492 = vmatprep.subr.bf16.mxu0 0
    %493 = vmatpush1.bf16.msra.mxu0 %v405
    %494 = vmatprep.subr.bf16.mxu0 0
    %495 = vmatpush1.bf16.msra.mxu0 %v404
    %496 = vmatprep.subr.bf16.mxu0 0
    %497 = vmatpush1.bf16.msra.mxu0 %v403
    %498 = vmatprep.subr.bf16.mxu0 0
    %499 = vmatpush1.bf16.msra.mxu0 %v402
    %500 = vmatprep.subr.bf16.mxu0 0
    %501 = vmatpush1.bf16.msra.mxu0 %v401
    %502 = vmatprep.subr.bf16.mxu0 0
    %503 = vmatpush1.bf16.msra.mxu0 %v400
    %504 = vmatprep.subr.bf16.mxu0 0
    %505 = vmatpush2.bf16.msra.mxu0 %v415
    %506 = vmatprep.subr.bf16.mxu0 0
    %507 = vmatpush2.bf16.msra.mxu0 %v414
    %508 = vmatprep.subr.bf16.mxu0 0
    %509 = vmatpush2.bf16.msra.mxu0 %v413
    %510 = vmatprep.subr.bf16.mxu0 0
    %511 = vmatpush2.bf16.msra.mxu0 %v412
    %512 = vmatprep.subr.bf16.mxu0 0
    %513 = vmatpush2.bf16.msra.mxu0 %v411
    %514 = vmatprep.subr.bf16.mxu0 0
    %515 = vmatpush2.bf16.msra.mxu0 %v410
    %516 = vmatprep.subr.bf16.mxu0 0
    %517 = vmatpush2.bf16.msra.mxu0 %v409
    %518 = vmatprep.subr.bf16.mxu0 0
    %519 = vmatpush2.bf16.msra.mxu0 %v408
    %520 = vmatprep.mubr.bf16.mxu0 %v251
    %521 = vmatmul.mubr.bf16.gmra.mxu0 %v249
    %v522 = vpop.f32.mrf.mxu0
    %v523 = vadd.f32 %v483, %v522
    %v524 = vpop.f32.mrf.mxu0
    %v525 = vpop.f32.mrf.mxu0
    %v526 = vpop.f32.mrf.mxu0
    %527 = vdwg.mxu0
    %v528 = vld [vmem:[%s1] sm:$0xf]
    %v529 = vpack.c.bf16 %v523, %v523
    %s530 = scalar_lea.vmem [#allocation4], 256
    %v531 = vld [vmem:[%s530] sm:$0xf]
    %v532 = vld [vmem:[%s530 + $0x4] sm:$0xf]
    %v533 = vld [vmem:[%s530 + $0x8] sm:$0xf]
    %v534 = vld [vmem:[%s530 + $0xc] sm:$0xf]
    %v535 = vld [vmem:[%s530 + $0x10] sm:$0xf]
    %v536 = vld [vmem:[%s530 + $0x14] sm:$0xf]
    %v537 = vld [vmem:[%s530 + $0x18] sm:$0xf]
    %v538 = vld [vmem:[%s530 + $0x1c] sm:$0xf]
    %v539 = vld [vmem:[%s530 + $0x20] sm:$0xf]
    %v540 = vld [vmem:[%s530 + $0x24] sm:$0xf]
    %v541 = vld [vmem:[%s530 + $0x28] sm:$0xf]
    %v542 = vld [vmem:[%s530 + $0x2c] sm:$0xf]
    %v543 = vld [vmem:[%s530 + $0x30] sm:$0xf]
    %v544 = vld [vmem:[%s530 + $0x34] sm:$0xf]
    %v545 = vld [vmem:[%s530 + $0x38] sm:$0xf]
    %v546 = vld [vmem:[%s530 + $0x3c] sm:$0xf]
    %v547 = vld [vmem:[%s530 + $0x40] sm:$0xf]
    %v548 = vld [vmem:[%s530 + $0x44] sm:$0xf]
    %v549 = vld [vmem:[%s530 + $0x48] sm:$0xf]
    %v550 = vld [vmem:[%s530 + $0x4c] sm:$0xf]
    %v551 = vld [vmem:[%s530 + $0x50] sm:$0xf]
    %v552 = vld [vmem:[%s530 + $0x54] sm:$0xf]
    %v553 = vld [vmem:[%s530 + $0x58] sm:$0xf]
    %v554 = vld [vmem:[%s530 + $0x5c] sm:$0xf]
    %v555 = vld [vmem:[%s530 + $0x60] sm:$0xf]
    %v556 = vld [vmem:[%s530 + $0x64] sm:$0xf]
    %v557 = vld [vmem:[%s530 + $0x68] sm:$0xf]
    %v558 = vld [vmem:[%s530 + $0x6c] sm:$0xf]
    %v559 = vld [vmem:[%s530 + $0x70] sm:$0xf]
    %v560 = vld [vmem:[%s530 + $0x74] sm:$0xf]
    %v561 = vld [vmem:[%s530 + $0x78] sm:$0xf]
    %v562 = vld [vmem:[%s530 + $0x7c] sm:$0xf]
    %v563 = vld [vmem:[%s530 + $0x80] sm:$0xf]
    %v564 = vld [vmem:[%s530 + $0x84] sm:$0xf]
    %v565 = vld [vmem:[%s530 + $0x88] sm:$0xf]
    %v566 = vld [vmem:[%s530 + $0x8c] sm:$0xf]
    %v567 = vld [vmem:[%s530 + $0x90] sm:$0xf]
    %v568 = vld [vmem:[%s530 + $0x94] sm:$0xf]
    %v569 = vld [vmem:[%s530 + $0x98] sm:$0xf]
    %v570 = vld [vmem:[%s530 + $0x9c] sm:$0xf]
    %v571 = vld [vmem:[%s530 + $0xa0] sm:$0xf]
    %v572 = vld [vmem:[%s530 + $0xa4] sm:$0xf]
    %v573 = vld [vmem:[%s530 + $0xa8] sm:$0xf]
    %v574 = vld [vmem:[%s530 + $0xac] sm:$0xf]
    %v575 = vld [vmem:[%s530 + $0xb0] sm:$0xf]
    %v576 = vld [vmem:[%s530 + $0xb4] sm:$0xf]
    %v577 = vld [vmem:[%s530 + $0xb8] sm:$0xf]
    %v578 = vld [vmem:[%s530 + $0xbc] sm:$0xf]
    %v579 = vld [vmem:[%s530 + $0xc0] sm:$0xf]
    %v580 = vld [vmem:[%s530 + $0xc4] sm:$0xf]
    %v581 = vld [vmem:[%s530 + $0xc8] sm:$0xf]
    %v582 = vld [vmem:[%s530 + $0xcc] sm:$0xf]
    %v583 = vld [vmem:[%s530 + $0xd0] sm:$0xf]
    %v584 = vld [vmem:[%s530 + $0xd4] sm:$0xf]
    %v585 = vld [vmem:[%s530 + $0xd8] sm:$0xf]
    %v586 = vld [vmem:[%s530 + $0xdc] sm:$0xf]
    %v587 = vld [vmem:[%s530 + $0xe0] sm:$0xf]
    %v588 = vld [vmem:[%s530 + $0xe4] sm:$0xf]
    %v589 = vld [vmem:[%s530 + $0xe8] sm:$0xf]
    %v590 = vld [vmem:[%s530 + $0xec] sm:$0xf]
    %v591 = vld [vmem:[%s530 + $0xf0] sm:$0xf]
    %v592 = vld [vmem:[%s530 + $0xf4] sm:$0xf]
    %v593 = vld [vmem:[%s530 + $0xf8] sm:$0xf]
    %v594 = vld [vmem:[%s530 + $0xfc] sm:$0xf]
    %v659 = vunpack.c.l.b16 %v531
    %v660 = vunpack.c.l.b16 %v532
    %v661 = vunpack.c.l.b16 %v533
    %v662 = vunpack.c.l.b16 %v534
    %v663 = vunpack.c.l.b16 %v535
    %v664 = vunpack.c.l.b16 %v536
    %v665 = vunpack.c.l.b16 %v537
    %v666 = vunpack.c.l.b16 %v538
    %v667 = vunpack.c.l.b16 %v539
    %v668 = vunpack.c.l.b16 %v540
    %v669 = vunpack.c.l.b16 %v541
    %v670 = vunpack.c.l.b16 %v542
    %v671 = vunpack.c.l.b16 %v543
    %v672 = vunpack.c.l.b16 %v544
    %v673 = vunpack.c.l.b16 %v545
    %v674 = vunpack.c.l.b16 %v546
    %v675 = vunpack.c.l.b16 %v547
    %v676 = vunpack.c.l.b16 %v548
    %v677 = vunpack.c.l.b16 %v549
    %v678 = vunpack.c.l.b16 %v550
    %v679 = vunpack.c.l.b16 %v551
    %v680 = vunpack.c.l.b16 %v552
    %v681 = vunpack.c.l.b16 %v553
    %v682 = vunpack.c.l.b16 %v554
    %v683 = vunpack.c.l.b16 %v555
    %v684 = vunpack.c.l.b16 %v556
    %v685 = vunpack.c.l.b16 %v557
    %v686 = vunpack.c.l.b16 %v558
    %v687 = vunpack.c.l.b16 %v559
    %v688 = vunpack.c.l.b16 %v560
    %v689 = vunpack.c.l.b16 %v561
    %v690 = vunpack.c.l.b16 %v562
    %v691 = vunpack.c.l.b16 %v563
    %v692 = vunpack.c.l.b16 %v564
    %v693 = vunpack.c.l.b16 %v565
    %v694 = vunpack.c.l.b16 %v566
    %v695 = vunpack.c.l.b16 %v567
    %v696 = vunpack.c.l.b16 %v568
    %v697 = vunpack.c.l.b16 %v569
    %v698 = vunpack.c.l.b16 %v570
    %v699 = vunpack.c.l.b16 %v571
    %v700 = vunpack.c.l.b16 %v572
    %v701 = vunpack.c.l.b16 %v573
    %v702 = vunpack.c.l.b16 %v574
    %v703 = vunpack.c.l.b16 %v575
    %v704 = vunpack.c.l.b16 %v576
    %v705 = vunpack.c.l.b16 %v577
    %v706 = vunpack.c.l.b16 %v578
    %v707 = vunpack.c.l.b16 %v579
    %v708 = vunpack.c.l.b16 %v580
    %v709 = vunpack.c.l.b16 %v581
    %v710 = vunpack.c.l.b16 %v582
    %v711 = vunpack.c.l.b16 %v583
    %v712 = vunpack.c.l.b16 %v584
    %v713 = vunpack.c.l.b16 %v585
    %v714 = vunpack.c.l.b16 %v586
    %v715 = vunpack.c.l.b16 %v587
    %v716 = vunpack.c.l.b16 %v588
    %v717 = vunpack.c.l.b16 %v589
    %v718 = vunpack.c.l.b16 %v590
    %v719 = vunpack.c.l.b16 %v591
    %v720 = vunpack.c.l.b16 %v592
    %v721 = vunpack.c.l.b16 %v593
    %v722 = vunpack.c.l.b16 %v594
    %v723 = vpack.c.b16 %v660, %v659
    %v724 = vpack.c.b16 %v662, %v661
    %v725 = vpack.c.b16 %v664, %v663
    %v726 = vpack.c.b16 %v666, %v665
    %v727 = vpack.c.b16 %v668, %v667
    %v728 = vpack.c.b16 %v670, %v669
    %v729 = vpack.c.b16 %v672, %v671
    %v730 = vpack.c.b16 %v674, %v673
    %v731 = vpack.c.b16 %v676, %v675
    %v732 = vpack.c.b16 %v678, %v677
    %v733 = vpack.c.b16 %v680, %v679
    %v734 = vpack.c.b16 %v682, %v681
    %v735 = vpack.c.b16 %v684, %v683
    %v736 = vpack.c.b16 %v686, %v685
    %v737 = vpack.c.b16 %v688, %v687
    %v738 = vpack.c.b16 %v690, %v689
    %v739 = vpack.c.b16 %v692, %v691
    %v740 = vpack.c.b16 %v694, %v693
    %v741 = vpack.c.b16 %v696, %v695
    %v742 = vpack.c.b16 %v698, %v697
    %v743 = vpack.c.b16 %v700, %v699
    %v744 = vpack.c.b16 %v702, %v701
    %v745 = vpack.c.b16 %v704, %v703
    %v746 = vpack.c.b16 %v706, %v705
    %v747 = vpack.c.b16 %v708, %v707
    %v748 = vpack.c.b16 %v710, %v709
    %v749 = vpack.c.b16 %v712, %v711
    %v750 = vpack.c.b16 %v714, %v713
    %v751 = vpack.c.b16 %v716, %v715
    %v752 = vpack.c.b16 %v718, %v717
    %v753 = vpack.c.b16 %v720, %v719
    %v754 = vpack.c.b16 %v722, %v721
    %787 = vmatprep.subr.bf16.mxu0 0
    %788 = vmatpush1.bf16.msra.mxu0 %v730
    %789 = vmatprep.subr.bf16.mxu0 0
    %790 = vmatpush1.bf16.msra.mxu0 %v729
    %791 = vmatprep.subr.bf16.mxu0 0
    %792 = vmatpush1.bf16.msra.mxu0 %v728
    %793 = vmatprep.subr.bf16.mxu0 0
    %794 = vmatpush1.bf16.msra.mxu0 %v727
    %795 = vmatprep.subr.bf16.mxu0 0
    %796 = vmatpush1.bf16.msra.mxu0 %v726
    %797 = vmatprep.subr.bf16.mxu0 0
    %798 = vmatpush1.bf16.msra.mxu0 %v725
    %799 = vmatprep.subr.bf16.mxu0 0
    %800 = vmatpush1.bf16.msra.mxu0 %v724
    %801 = vmatprep.subr.bf16.mxu0 0
    %802 = vmatpush1.bf16.msra.mxu0 %v723
    %803 = vmatprep.subr.bf16.mxu0 0
    %804 = vmatpush2.bf16.msra.mxu0 %v738
    %805 = vmatprep.subr.bf16.mxu0 0
    %806 = vmatpush2.bf16.msra.mxu0 %v737
    %807 = vmatprep.subr.bf16.mxu0 0
    %808 = vmatpush2.bf16.msra.mxu0 %v736
    %809 = vmatprep.subr.bf16.mxu0 0
    %810 = vmatpush2.bf16.msra.mxu0 %v735
    %811 = vmatprep.subr.bf16.mxu0 0
    %812 = vmatpush2.bf16.msra.mxu0 %v734
    %813 = vmatprep.subr.bf16.mxu0 0
    %814 = vmatpush2.bf16.msra.mxu0 %v733
    %815 = vmatprep.subr.bf16.mxu0 0
    %816 = vmatpush2.bf16.msra.mxu0 %v732
    %817 = vmatprep.subr.bf16.mxu0 0
    %818 = vmatpush2.bf16.msra.mxu0 %v731
    %819 = vmatprep.mubr.bf16.mxu0 %v250
    %820 = vmatmul.mubr.bf16.gmra.mxu0 %v242
    %v821 = vpop.f32.mrf.mxu0
    %v822 = vadd.f32 0.0, %v821
    %v823 = vpop.f32.mrf.mxu0
    %v824 = vpop.f32.mrf.mxu0
    %v825 = vpop.f32.mrf.mxu0
    %826 = vdwg.mxu0
    %827 = vmatprep.subr.bf16.mxu0 0
    %828 = vmatpush1.bf16.msra.mxu0 %v746
    %829 = vmatprep.subr.bf16.mxu0 0
    %830 = vmatpush1.bf16.msra.mxu0 %v745
    %831 = vmatprep.subr.bf16.mxu0 0
    %832 = vmatpush1.bf16.msra.mxu0 %v744
    %833 = vmatprep.subr.bf16.mxu0 0
    %834 = vmatpush1.bf16.msra.mxu0 %v743
    %835 = vmatprep.subr.bf16.mxu0 0
    %836 = vmatpush1.bf16.msra.mxu0 %v742
    %837 = vmatprep.subr.bf16.mxu0 0
    %838 = vmatpush1.bf16.msra.mxu0 %v741
    %839 = vmatprep.subr.bf16.mxu0 0
    %840 = vmatpush1.bf16.msra.mxu0 %v740
    %841 = vmatprep.subr.bf16.mxu0 0
    %842 = vmatpush1.bf16.msra.mxu0 %v739
    %843 = vmatprep.subr.bf16.mxu0 0
    %844 = vmatpush2.bf16.msra.mxu0 %v754
    %845 = vmatprep.subr.bf16.mxu0 0
    %846 = vmatpush2.bf16.msra.mxu0 %v753
    %847 = vmatprep.subr.bf16.mxu0 0
    %848 = vmatpush2.bf16.msra.mxu0 %v752
    %849 = vmatprep.subr.bf16.mxu0 0
    %850 = vmatpush2.bf16.msra.mxu0 %v751
    %851 = vmatprep.subr.bf16.mxu0 0
    %852 = vmatpush2.bf16.msra.mxu0 %v750
    %853 = vmatprep.subr.bf16.mxu0 0
    %854 = vmatpush2.bf16.msra.mxu0 %v749
    %855 = vmatprep.subr.bf16.mxu0 0
    %856 = vmatpush2.bf16.msra.mxu0 %v748
    %857 = vmatprep.subr.bf16.mxu0 0
    %858 = vmatpush2.bf16.msra.mxu0 %v747
    %859 = vmatprep.mubr.bf16.mxu0 %v251
    %860 = vmatmul.mubr.bf16.gmra.mxu0 %v249
    %v861 = vpop.f32.mrf.mxu0
    %v862 = vadd.f32 %v822, %v861
    %v863 = vpop.f32.mrf.mxu0
    %v864 = vpop.f32.mrf.mxu0
    %v865 = vpop.f32.mrf.mxu0
    %866 = vdwg.mxu0
    %s867 = scalar_lea.vmem %s1, 4
    %v868 = vld [vmem:[%s867] sm:$0xf]
    %v869 = vpack.c.bf16 %v862, %v862
    %vm870 = vcmask 23552
    %v872 = vsel %vm870, %v868, 0
    %vm874 = vcmask 1040384
    %vm875 = vcmask 1041408
    %v876 = vsel %vm874, 4294967295, 65535
    %v877 = vsel %vm875, %v876, 0
    %v879 = vand.u32 %v869, %v877
    %881 = vmatprep.subr.bf16.mxu0 0
    %882 = vmatpush1.bf16.msra.mxu0 0
    %883 = vmatprep.subr.bf16.mxu0 0
    %884 = vmatpush1.bf16.msra.mxu0 0
    %885 = vmatprep.subr.bf16.mxu0 0
    %886 = vmatpush1.bf16.msra.mxu0 0
    %887 = vmatprep.subr.bf16.mxu0 0
    %888 = vmatpush1.bf16.msra.mxu0 0
    %889 = vmatprep.subr.bf16.mxu0 0
    %890 = vmatpush1.bf16.msra.mxu0 0
    %891 = vmatprep.subr.bf16.mxu0 0
    %892 = vmatpush1.bf16.msra.mxu0 0
    %893 = vmatprep.subr.bf16.mxu0 0
    %894 = vmatpush1.bf16.msra.mxu0 0
    %895 = vmatprep.subr.bf16.mxu0 0
    %896 = vmatpush1.bf16.msra.mxu0 %v879
    %897 = vmatprep.subr.bf16.mxu0 0
    %898 = vmatpush2.bf16.msra.mxu0 0
    %899 = vmatprep.subr.bf16.mxu0 0
    %900 = vmatpush2.bf16.msra.mxu0 0
    %901 = vmatprep.subr.bf16.mxu0 0
    %902 = vmatpush2.bf16.msra.mxu0 0
    %903 = vmatprep.subr.bf16.mxu0 0
    %904 = vmatpush2.bf16.msra.mxu0 0
    %905 = vmatprep.subr.bf16.mxu0 0
    %906 = vmatpush2.bf16.msra.mxu0 0
    %907 = vmatprep.subr.bf16.mxu0 0
    %908 = vmatpush2.bf16.msra.mxu0 0
    %909 = vmatprep.subr.bf16.mxu0 0
    %910 = vmatpush2.bf16.msra.mxu0 0
    %911 = vmatprep.subr.bf16.mxu0 0
    %912 = vmatpush2.bf16.msra.mxu0 0
    %913 = vmatprep.mubr.bf16.mxu0 0
    %914 = vmatmul.mubr.bf16.gmra.mxu0 %v872
    %v915 = vpop.f32.mrf.mxu0
    %v916 = vadd.f32 0.0, %v915
    %v917 = vpop.f32.mrf.mxu0
    %v918 = vpop.f32.mrf.mxu0
    %v919 = vpop.f32.mrf.mxu0
    %920 = vdwg.mxu0
    %v922 = vsel %vm870, %v528, 0
    %v925 = vand.u32 %v529, %v877
    %927 = vmatprep.subr.bf16.mxu0 0
    %928 = vmatpush1.bf16.msra.mxu0 0
    %929 = vmatprep.subr.bf16.mxu0 0
    %930 = vmatpush1.bf16.msra.mxu0 0
    %931 = vmatprep.subr.bf16.mxu0 0
    %932 = vmatpush1.bf16.msra.mxu0 0
    %933 = vmatprep.subr.bf16.mxu0 0
    %934 = vmatpush1.bf16.msra.mxu0 0
    %935 = vmatprep.subr.bf16.mxu0 0
    %936 = vmatpush1.bf16.msra.mxu0 0
    %937 = vmatprep.subr.bf16.mxu0 0
    %938 = vmatpush1.bf16.msra.mxu0 0
    %939 = vmatprep.subr.bf16.mxu0 0
    %940 = vmatpush1.bf16.msra.mxu0 0
    %941 = vmatprep.subr.bf16.mxu0 0
    %942 = vmatpush1.bf16.msra.mxu0 %v925
    %943 = vmatprep.subr.bf16.mxu0 0
    %944 = vmatpush2.bf16.msra.mxu0 0
    %945 = vmatprep.subr.bf16.mxu0 0
    %946 = vmatpush2.bf16.msra.mxu0 0
    %947 = vmatprep.subr.bf16.mxu0 0
    %948 = vmatpush2.bf16.msra.mxu0 0
    %949 = vmatprep.subr.bf16.mxu0 0
    %950 = vmatpush2.bf16.msra.mxu0 0
    %951 = vmatprep.subr.bf16.mxu0 0
    %952 = vmatpush2.bf16.msra.mxu0 0
    %953 = vmatprep.subr.bf16.mxu0 0
    %954 = vmatpush2.bf16.msra.mxu0 0
    %955 = vmatprep.subr.bf16.mxu0 0
    %956 = vmatpush2.bf16.msra.mxu0 0
    %957 = vmatprep.subr.bf16.mxu0 0
    %958 = vmatpush2.bf16.msra.mxu0 0
    %959 = vmatprep.mubr.bf16.mxu0 0
    %960 = vmatmul.mubr.bf16.gmra.mxu0 %v922
    %v961 = vpop.f32.mrf.mxu0
    %v962 = vadd.f32 %v916, %v961
    %v963 = vpop.f32.mrf.mxu0
    %v964 = vpop.f32.mrf.mxu0
    %v965 = vpop.f32.mrf.mxu0
    %966 = vdwg.mxu0
    %s967 = scalar_lea.vmem [#allocation4], 512
    %v968 = vld [vmem:[%s967] sm:$0xf]
    %v969 = vld [vmem:[%s967 + $0x4] sm:$0xf]
    %v970 = vld [vmem:[%s967 + $0x8] sm:$0xf]
    %v971 = vld [vmem:[%s967 + $0xc] sm:$0xf]
    %v972 = vld [vmem:[%s967 + $0x10] sm:$0xf]
    %v973 = vld [vmem:[%s967 + $0x14] sm:$0xf]
    %v974 = vld [vmem:[%s967 + $0x18] sm:$0xf]
    %v975 = vld [vmem:[%s967 + $0x1c] sm:$0xf]
    %v976 = vld [vmem:[%s967 + $0x20] sm:$0xf]
    %v977 = vld [vmem:[%s967 + $0x24] sm:$0xf]
    %v978 = vld [vmem:[%s967 + $0x28] sm:$0xf]
    %v979 = vld [vmem:[%s967 + $0x2c] sm:$0xf]
    %v980 = vld [vmem:[%s967 + $0x30] sm:$0xf]
    %v981 = vld [vmem:[%s967 + $0x34] sm:$0xf]
    %v982 = vld [vmem:[%s967 + $0x38] sm:$0xf]
    %v983 = vld [vmem:[%s967 + $0x3c] sm:$0xf]
    %v984 = vld [vmem:[%s967 + $0x40] sm:$0xf]
    %v985 = vld [vmem:[%s967 + $0x44] sm:$0xf]
    %v986 = vld [vmem:[%s967 + $0x48] sm:$0xf]
    %v987 = vld [vmem:[%s967 + $0x4c] sm:$0xf]
    %v988 = vld [vmem:[%s967 + $0x50] sm:$0xf]
    %v989 = vld [vmem:[%s967 + $0x54] sm:$0xf]
    %v990 = vld [vmem:[%s967 + $0x58] sm:$0xf]
    %v991 = vld [vmem:[%s967 + $0x5c] sm:$0xf]
    %v992 = vld [vmem:[%s967 + $0x60] sm:$0xf]
    %v993 = vld [vmem:[%s967 + $0x64] sm:$0xf]
    %v994 = vld [vmem:[%s967 + $0x68] sm:$0xf]
    %v995 = vld [vmem:[%s967 + $0x6c] sm:$0xf]
    %v996 = vld [vmem:[%s967 + $0x70] sm:$0xf]
    %v997 = vld [vmem:[%s967 + $0x74] sm:$0xf]
    %v998 = vld [vmem:[%s967 + $0x78] sm:$0xf]
    %v999 = vld [vmem:[%s967 + $0x7c] sm:$0xf]
    %v1000 = vld [vmem:[%s967 + $0x80] sm:$0xf]
    %v1001 = vld [vmem:[%s967 + $0x84] sm:$0xf]
    %v1002 = vld [vmem:[%s967 + $0x88] sm:$0xf]
    %v1003 = vld [vmem:[%s967 + $0x8c] sm:$0xf]
    %v1004 = vld [vmem:[%s967 + $0x90] sm:$0xf]
    %v1005 = vld [vmem:[%s967 + $0x94] sm:$0xf]
    %v1006 = vld [vmem:[%s967 + $0x98] sm:$0xf]
    %v1007 = vld [vmem:[%s967 + $0x9c] sm:$0xf]
    %v1008 = vld [vmem:[%s967 + $0xa0] sm:$0xf]
    %v1009 = vld [vmem:[%s967 + $0xa4] sm:$0xf]
    %v1010 = vld [vmem:[%s967 + $0xa8] sm:$0xf]
    %v1011 = vld [vmem:[%s967 + $0xac] sm:$0xf]
    %v1012 = vld [vmem:[%s967 + $0xb0] sm:$0xf]
    %v1013 = vld [vmem:[%s967 + $0xb4] sm:$0xf]
    %v1014 = vld [vmem:[%s967 + $0xb8] sm:$0xf]
    %v1015 = vld [vmem:[%s967 + $0xbc] sm:$0xf]
    %v1016 = vld [vmem:[%s967 + $0xc0] sm:$0xf]
    %v1017 = vld [vmem:[%s967 + $0xc4] sm:$0xf]
    %v1018 = vld [vmem:[%s967 + $0xc8] sm:$0xf]
    %v1019 = vld [vmem:[%s967 + $0xcc] sm:$0xf]
    %v1020 = vld [vmem:[%s967 + $0xd0] sm:$0xf]
    %v1021 = vld [vmem:[%s967 + $0xd4] sm:$0xf]
    %v1022 = vld [vmem:[%s967 + $0xd8] sm:$0xf]
    %v1023 = vld [vmem:[%s967 + $0xdc] sm:$0xf]
    %v1024 = vld [vmem:[%s967 + $0xe0] sm:$0xf]
    %v1025 = vld [vmem:[%s967 + $0xe4] sm:$0xf]
    %v1026 = vld [vmem:[%s967 + $0xe8] sm:$0xf]
    %v1027 = vld [vmem:[%s967 + $0xec] sm:$0xf]
    %v1028 = vld [vmem:[%s967 + $0xf0] sm:$0xf]
    %v1029 = vld [vmem:[%s967 + $0xf4] sm:$0xf]
    %v1030 = vld [vmem:[%s967 + $0xf8] sm:$0xf]
    %v1031 = vld [vmem:[%s967 + $0xfc] sm:$0xf]
    %v1096 = vunpack.c.l.b16 %v968
    %v1097 = vunpack.c.l.b16 %v969
    %v1098 = vunpack.c.l.b16 %v970
    %v1099 = vunpack.c.l.b16 %v971
    %v1100 = vunpack.c.l.b16 %v972
    %v1101 = vunpack.c.l.b16 %v973
    %v1102 = vunpack.c.l.b16 %v974
    %v1103 = vunpack.c.l.b16 %v975
    %v1104 = vunpack.c.l.b16 %v976
    %v1105 = vunpack.c.l.b16 %v977
    %v1106 = vunpack.c.l.b16 %v978
    %v1107 = vunpack.c.l.b16 %v979
    %v1108 = vunpack.c.l.b16 %v980
    %v1109 = vunpack.c.l.b16 %v981
    %v1110 = vunpack.c.l.b16 %v982
    %v1111 = vunpack.c.l.b16 %v983
    %v1112 = vunpack.c.l.b16 %v984
    %v1113 = vunpack.c.l.b16 %v985
    %v1114 = vunpack.c.l.b16 %v986
    %v1115 = vunpack.c.l.b16 %v987
    %v1116 = vunpack.c.l.b16 %v988
    %v1117 = vunpack.c.l.b16 %v989
    %v1118 = vunpack.c.l.b16 %v990
    %v1119 = vunpack.c.l.b16 %v991
    %v1120 = vunpack.c.l.b16 %v992
    %v1121 = vunpack.c.l.b16 %v993
    %v1122 = vunpack.c.l.b16 %v994
    %v1123 = vunpack.c.l.b16 %v995
    %v1124 = vunpack.c.l.b16 %v996
    %v1125 = vunpack.c.l.b16 %v997
    %v1126 = vunpack.c.l.b16 %v998
    %v1127 = vunpack.c.l.b16 %v999
    %v1128 = vunpack.c.l.b16 %v1000
    %v1129 = vunpack.c.l.b16 %v1001
    %v1130 = vunpack.c.l.b16 %v1002
    %v1131 = vunpack.c.l.b16 %v1003
    %v1132 = vunpack.c.l.b16 %v1004
    %v1133 = vunpack.c.l.b16 %v1005
    %v1134 = vunpack.c.l.b16 %v1006
    %v1135 = vunpack.c.l.b16 %v1007
    %v1136 = vunpack.c.l.b16 %v1008
    %v1137 = vunpack.c.l.b16 %v1009
    %v1138 = vunpack.c.l.b16 %v1010
    %v1139 = vunpack.c.l.b16 %v1011
    %v1140 = vunpack.c.l.b16 %v1012
    %v1141 = vunpack.c.l.b16 %v1013
    %v1142 = vunpack.c.l.b16 %v1014
    %v1143 = vunpack.c.l.b16 %v1015
    %v1144 = vunpack.c.l.b16 %v1016
    %v1145 = vunpack.c.l.b16 %v1017
    %v1146 = vunpack.c.l.b16 %v1018
    %v1147 = vunpack.c.l.b16 %v1019
    %v1148 = vunpack.c.l.b16 %v1020
    %v1149 = vunpack.c.l.b16 %v1021
    %v1150 = vunpack.c.l.b16 %v1022
    %v1151 = vunpack.c.l.b16 %v1023
    %v1152 = vunpack.c.l.b16 %v1024
    %v1153 = vunpack.c.l.b16 %v1025
    %v1154 = vunpack.c.l.b16 %v1026
    %v1155 = vunpack.c.l.b16 %v1027
    %v1156 = vunpack.c.l.b16 %v1028
    %v1157 = vunpack.c.l.b16 %v1029
    %v1158 = vunpack.c.l.b16 %v1030
    %v1159 = vunpack.c.l.b16 %v1031
    %v1160 = vpack.c.b16 %v1097, %v1096
    %v1161 = vpack.c.b16 %v1099, %v1098
    %v1162 = vpack.c.b16 %v1101, %v1100
    %v1163 = vpack.c.b16 %v1103, %v1102
    %v1164 = vpack.c.b16 %v1105, %v1104
    %v1165 = vpack.c.b16 %v1107, %v1106
    %v1166 = vpack.c.b16 %v1109, %v1108
    %v1167 = vpack.c.b16 %v1111, %v1110
    %v1168 = vpack.c.b16 %v1113, %v1112
    %v1169 = vpack.c.b16 %v1115, %v1114
    %v1170 = vpack.c.b16 %v1117, %v1116
    %v1171 = vpack.c.b16 %v1119, %v1118
    %v1172 = vpack.c.b16 %v1121, %v1120
    %v1173 = vpack.c.b16 %v1123, %v1122
    %v1174 = vpack.c.b16 %v1125, %v1124
    %v1175 = vpack.c.b16 %v1127, %v1126
    %v1176 = vpack.c.b16 %v1129, %v1128
    %v1177 = vpack.c.b16 %v1131, %v1130
    %v1178 = vpack.c.b16 %v1133, %v1132
    %v1179 = vpack.c.b16 %v1135, %v1134
    %v1180 = vpack.c.b16 %v1137, %v1136
    %v1181 = vpack.c.b16 %v1139, %v1138
    %v1182 = vpack.c.b16 %v1141, %v1140
    %v1183 = vpack.c.b16 %v1143, %v1142
    %v1184 = vpack.c.b16 %v1145, %v1144
    %v1185 = vpack.c.b16 %v1147, %v1146
    %v1186 = vpack.c.b16 %v1149, %v1148
    %v1187 = vpack.c.b16 %v1151, %v1150
    %v1188 = vpack.c.b16 %v1153, %v1152
    %v1189 = vpack.c.b16 %v1155, %v1154
    %v1190 = vpack.c.b16 %v1157, %v1156
    %v1191 = vpack.c.b16 %v1159, %v1158
    %1224 = vmatprep.subr.bf16.mxu0 0
    %1225 = vmatpush1.bf16.msra.mxu0 %v1167
    %1226 = vmatprep.subr.bf16.mxu0 0
    %1227 = vmatpush1.bf16.msra.mxu0 %v1166
    %1228 = vmatprep.subr.bf16.mxu0 0
    %1229 = vmatpush1.bf16.msra.mxu0 %v1165
    %1230 = vmatprep.subr.bf16.mxu0 0
    %1231 = vmatpush1.bf16.msra.mxu0 %v1164
    %1232 = vmatprep.subr.bf16.mxu0 0
    %1233 = vmatpush1.bf16.msra.mxu0 %v1163
    %1234 = vmatprep.subr.bf16.mxu0 0
    %1235 = vmatpush1.bf16.msra.mxu0 %v1162
    %1236 = vmatprep.subr.bf16.mxu0 0
    %1237 = vmatpush1.bf16.msra.mxu0 %v1161
    %1238 = vmatprep.subr.bf16.mxu0 0
    %1239 = vmatpush1.bf16.msra.mxu0 %v1160
    %1240 = vmatprep.subr.bf16.mxu0 0
    %1241 = vmatpush2.bf16.msra.mxu0 %v1175
    %1242 = vmatprep.subr.bf16.mxu0 0
    %1243 = vmatpush2.bf16.msra.mxu0 %v1174
    %1244 = vmatprep.subr.bf16.mxu0 0
    %1245 = vmatpush2.bf16.msra.mxu0 %v1173
    %1246 = vmatprep.subr.bf16.mxu0 0
    %1247 = vmatpush2.bf16.msra.mxu0 %v1172
    %1248 = vmatprep.subr.bf16.mxu0 0
    %1249 = vmatpush2.bf16.msra.mxu0 %v1171
    %1250 = vmatprep.subr.bf16.mxu0 0
    %1251 = vmatpush2.bf16.msra.mxu0 %v1170
    %1252 = vmatprep.subr.bf16.mxu0 0
    %1253 = vmatpush2.bf16.msra.mxu0 %v1169
    %1254 = vmatprep.subr.bf16.mxu0 0
    %1255 = vmatpush2.bf16.msra.mxu0 %v1168
    %1256 = vmatprep.mubr.bf16.mxu0 %v250
    %1257 = vmatmul.mubr.bf16.gmra.mxu0 %v242
    %v1258 = vpop.f32.mrf.mxu0
    %v1259 = vadd.f32 0.0, %v1258
    %v1260 = vpop.f32.mrf.mxu0
    %v1261 = vpop.f32.mrf.mxu0
    %v1262 = vpop.f32.mrf.mxu0
    %1263 = vdwg.mxu0
    %1264 = vmatprep.subr.bf16.mxu0 0
    %1265 = vmatpush1.bf16.msra.mxu0 %v1183
    %1266 = vmatprep.subr.bf16.mxu0 0
    %1267 = vmatpush1.bf16.msra.mxu0 %v1182
    %1268 = vmatprep.subr.bf16.mxu0 0
    %1269 = vmatpush1.bf16.msra.mxu0 %v1181
    %1270 = vmatprep.subr.bf16.mxu0 0
    %1271 = vmatpush1.bf16.msra.mxu0 %v1180
    %1272 = vmatprep.subr.bf16.mxu0 0
    %1273 = vmatpush1.bf16.msra.mxu0 %v1179
    %1274 = vmatprep.subr.bf16.mxu0 0
    %1275 = vmatpush1.bf16.msra.mxu0 %v1178
    %1276 = vmatprep.subr.bf16.mxu0 0
    %1277 = vmatpush1.bf16.msra.mxu0 %v1177
    %1278 = vmatprep.subr.bf16.mxu0 0
    %1279 = vmatpush1.bf16.msra.mxu0 %v1176
    %1280 = vmatprep.subr.bf16.mxu0 0
    %1281 = vmatpush2.bf16.msra.mxu0 %v1191
    %1282 = vmatprep.subr.bf16.mxu0 0
    %1283 = vmatpush2.bf16.msra.mxu0 %v1190
    %1284 = vmatprep.subr.bf16.mxu0 0
    %1285 = vmatpush2.bf16.msra.mxu0 %v1189
    %1286 = vmatprep.subr.bf16.mxu0 0
    %1287 = vmatpush2.bf16.msra.mxu0 %v1188
    %1288 = vmatprep.subr.bf16.mxu0 0
    %1289 = vmatpush2.bf16.msra.mxu0 %v1187
    %1290 = vmatprep.subr.bf16.mxu0 0
    %1291 = vmatpush2.bf16.msra.mxu0 %v1186
    %1292 = vmatprep.subr.bf16.mxu0 0
    %1293 = vmatpush2.bf16.msra.mxu0 %v1185
    %1294 = vmatprep.subr.bf16.mxu0 0
    %1295 = vmatpush2.bf16.msra.mxu0 %v1184
    %1296 = vmatprep.mubr.bf16.mxu0 %v251
    %1297 = vmatmul.mubr.bf16.gmra.mxu0 %v249
    %v1298 = vpop.f32.mrf.mxu0
    %v1299 = vadd.f32 %v1259, %v1298
    %v1300 = vpop.f32.mrf.mxu0
    %v1301 = vpop.f32.mrf.mxu0
    %v1302 = vpop.f32.mrf.mxu0
    %1303 = vdwg.mxu0
    %s1304 = scalar_lea.vmem %s1, 8
    %v1305 = vld [vmem:[%s1304] sm:$0xf]
    %v1306 = vpack.c.bf16 %v1299, %v1299
    %v1308 = vsel %vm870, %v1305, 0
    %v1311 = vand.u32 %v1306, %v877
    %1313 = vmatprep.subr.bf16.mxu0 0
    %1314 = vmatpush1.bf16.msra.mxu0 0
    %1315 = vmatprep.subr.bf16.mxu0 0
    %1316 = vmatpush1.bf16.msra.mxu0 0
    %1317 = vmatprep.subr.bf16.mxu0 0
    %1318 = vmatpush1.bf16.msra.mxu0 0
    %1319 = vmatprep.subr.bf16.mxu0 0
    %1320 = vmatpush1.bf16.msra.mxu0 0
    %1321 = vmatprep.subr.bf16.mxu0 0
    %1322 = vmatpush1.bf16.msra.mxu0 0
    %1323 = vmatprep.subr.bf16.mxu0 0
    %1324 = vmatpush1.bf16.msra.mxu0 0
    %1325 = vmatprep.subr.bf16.mxu0 0
    %1326 = vmatpush1.bf16.msra.mxu0 0
    %1327 = vmatprep.subr.bf16.mxu0 0
    %1328 = vmatpush1.bf16.msra.mxu0 %v1311
    %1329 = vmatprep.subr.bf16.mxu0 0
    %1330 = vmatpush2.bf16.msra.mxu0 0
    %1331 = vmatprep.subr.bf16.mxu0 0
    %1332 = vmatpush2.bf16.msra.mxu0 0
    %1333 = vmatprep.subr.bf16.mxu0 0
    %1334 = vmatpush2.bf16.msra.mxu0 0
    %1335 = vmatprep.subr.bf16.mxu0 0
    %1336 = vmatpush2.bf16.msra.mxu0 0
    %1337 = vmatprep.subr.bf16.mxu0 0
    %1338 = vmatpush2.bf16.msra.mxu0 0
    %1339 = vmatprep.subr.bf16.mxu0 0
    %1340 = vmatpush2.bf16.msra.mxu0 0
    %1341 = vmatprep.subr.bf16.mxu0 0
    %1342 = vmatpush2.bf16.msra.mxu0 0
    %1343 = vmatprep.subr.bf16.mxu0 0
    %1344 = vmatpush2.bf16.msra.mxu0 0
    %1345 = vmatprep.mubr.bf16.mxu0 0
    %1346 = vmatmul.mubr.bf16.gmra.mxu0 %v1308
    %v1347 = vpop.f32.mrf.mxu0
    %v1348 = vadd.f32 0.0, %v1347
    %v1349 = vpop.f32.mrf.mxu0
    %v1350 = vpop.f32.mrf.mxu0
    %v1351 = vpop.f32.mrf.mxu0
    %1352 = vdwg.mxu0
    %v1353 = vadd.f32 %v962, %v1348
    %s1354 = scalar_lea.vmem [#allocation4], 768
    %v1355 = vld [vmem:[%s1354] sm:$0xf]
    %v1356 = vld [vmem:[%s1354 + $0x4] sm:$0xf]
    %v1357 = vld [vmem:[%s1354 + $0x8] sm:$0xf]
    %v1358 = vld [vmem:[%s1354 + $0xc] sm:$0xf]
    %v1359 = vld [vmem:[%s1354 + $0x10] sm:$0xf]
    %v1360 = vld [vmem:[%s1354 + $0x14] sm:$0xf]
    %v1361 = vld [vmem:[%s1354 + $0x18] sm:$0xf]
    %v1362 = vld [vmem:[%s1354 + $0x1c] sm:$0xf]
    %v1363 = vld [vmem:[%s1354 + $0x20] sm:$0xf]
    %v1364 = vld [vmem:[%s1354 + $0x24] sm:$0xf]
    %v1365 = vld [vmem:[%s1354 + $0x28] sm:$0xf]
    %v1366 = vld [vmem:[%s1354 + $0x2c] sm:$0xf]
    %v1367 = vld [vmem:[%s1354 + $0x30] sm:$0xf]
    %v1368 = vld [vmem:[%s1354 + $0x34] sm:$0xf]
    %v1369 = vld [vmem:[%s1354 + $0x38] sm:$0xf]
    %v1370 = vld [vmem:[%s1354 + $0x3c] sm:$0xf]
    %v1371 = vld [vmem:[%s1354 + $0x40] sm:$0xf]
    %v1372 = vld [vmem:[%s1354 + $0x44] sm:$0xf]
    %v1373 = vld [vmem:[%s1354 + $0x48] sm:$0xf]
    %v1374 = vld [vmem:[%s1354 + $0x4c] sm:$0xf]
    %v1375 = vld [vmem:[%s1354 + $0x50] sm:$0xf]
    %v1376 = vld [vmem:[%s1354 + $0x54] sm:$0xf]
    %v1377 = vld [vmem:[%s1354 + $0x58] sm:$0xf]
    %v1378 = vld [vmem:[%s1354 + $0x5c] sm:$0xf]
    %v1379 = vld [vmem:[%s1354 + $0x60] sm:$0xf]
    %v1380 = vld [vmem:[%s1354 + $0x64] sm:$0xf]
    %v1381 = vld [vmem:[%s1354 + $0x68] sm:$0xf]
    %v1382 = vld [vmem:[%s1354 + $0x6c] sm:$0xf]
    %v1383 = vld [vmem:[%s1354 + $0x70] sm:$0xf]
    %v1384 = vld [vmem:[%s1354 + $0x74] sm:$0xf]
    %v1385 = vld [vmem:[%s1354 + $0x78] sm:$0xf]
    %v1386 = vld [vmem:[%s1354 + $0x7c] sm:$0xf]
    %v1387 = vld [vmem:[%s1354 + $0x80] sm:$0xf]
    %v1388 = vld [vmem:[%s1354 + $0x84] sm:$0xf]
    %v1389 = vld [vmem:[%s1354 + $0x88] sm:$0xf]
    %v1390 = vld [vmem:[%s1354 + $0x8c] sm:$0xf]
    %v1391 = vld [vmem:[%s1354 + $0x90] sm:$0xf]
    %v1392 = vld [vmem:[%s1354 + $0x94] sm:$0xf]
    %v1393 = vld [vmem:[%s1354 + $0x98] sm:$0xf]
    %v1394 = vld [vmem:[%s1354 + $0x9c] sm:$0xf]
    %v1395 = vld [vmem:[%s1354 + $0xa0] sm:$0xf]
    %v1396 = vld [vmem:[%s1354 + $0xa4] sm:$0xf]
    %v1397 = vld [vmem:[%s1354 + $0xa8] sm:$0xf]
    %v1398 = vld [vmem:[%s1354 + $0xac] sm:$0xf]
    %v1399 = vld [vmem:[%s1354 + $0xb0] sm:$0xf]
    %v1400 = vld [vmem:[%s1354 + $0xb4] sm:$0xf]
    %v1401 = vld [vmem:[%s1354 + $0xb8] sm:$0xf]
    %v1402 = vld [vmem:[%s1354 + $0xbc] sm:$0xf]
    %v1403 = vld [vmem:[%s1354 + $0xc0] sm:$0xf]
    %v1404 = vld [vmem:[%s1354 + $0xc4] sm:$0xf]
    %v1405 = vld [vmem:[%s1354 + $0xc8] sm:$0xf]
    %v1406 = vld [vmem:[%s1354 + $0xcc] sm:$0xf]
    %v1407 = vld [vmem:[%s1354 + $0xd0] sm:$0xf]
    %v1408 = vld [vmem:[%s1354 + $0xd4] sm:$0xf]
    %v1409 = vld [vmem:[%s1354 + $0xd8] sm:$0xf]
    %v1410 = vld [vmem:[%s1354 + $0xdc] sm:$0xf]
    %v1411 = vld [vmem:[%s1354 + $0xe0] sm:$0xf]
    %v1412 = vld [vmem:[%s1354 + $0xe4] sm:$0xf]
    %v1413 = vld [vmem:[%s1354 + $0xe8] sm:$0xf]
    %v1414 = vld [vmem:[%s1354 + $0xec] sm:$0xf]
    %v1415 = vld [vmem:[%s1354 + $0xf0] sm:$0xf]
    %v1416 = vld [vmem:[%s1354 + $0xf4] sm:$0xf]
    %v1417 = vld [vmem:[%s1354 + $0xf8] sm:$0xf]
    %v1418 = vld [vmem:[%s1354 + $0xfc] sm:$0xf]
    %v1483 = vunpack.c.l.b16 %v1355
    %v1484 = vunpack.c.l.b16 %v1356
    %v1485 = vunpack.c.l.b16 %v1357
    %v1486 = vunpack.c.l.b16 %v1358
    %v1487 = vunpack.c.l.b16 %v1359
    %v1488 = vunpack.c.l.b16 %v1360
    %v1489 = vunpack.c.l.b16 %v1361
    %v1490 = vunpack.c.l.b16 %v1362
    %v1491 = vunpack.c.l.b16 %v1363
    %v1492 = vunpack.c.l.b16 %v1364
    %v1493 = vunpack.c.l.b16 %v1365
    %v1494 = vunpack.c.l.b16 %v1366
    %v1495 = vunpack.c.l.b16 %v1367
    %v1496 = vunpack.c.l.b16 %v1368
    %v1497 = vunpack.c.l.b16 %v1369
    %v1498 = vunpack.c.l.b16 %v1370
    %v1499 = vunpack.c.l.b16 %v1371
    %v1500 = vunpack.c.l.b16 %v1372
    %v1501 = vunpack.c.l.b16 %v1373
    %v1502 = vunpack.c.l.b16 %v1374
    %v1503 = vunpack.c.l.b16 %v1375
    %v1504 = vunpack.c.l.b16 %v1376
    %v1505 = vunpack.c.l.b16 %v1377
    %v1506 = vunpack.c.l.b16 %v1378
    %v1507 = vunpack.c.l.b16 %v1379
    %v1508 = vunpack.c.l.b16 %v1380
    %v1509 = vunpack.c.l.b16 %v1381
    %v1510 = vunpack.c.l.b16 %v1382
    %v1511 = vunpack.c.l.b16 %v1383
    %v1512 = vunpack.c.l.b16 %v1384
    %v1513 = vunpack.c.l.b16 %v1385
    %v1514 = vunpack.c.l.b16 %v1386
    %v1515 = vunpack.c.l.b16 %v1387
    %v1516 = vunpack.c.l.b16 %v1388
    %v1517 = vunpack.c.l.b16 %v1389
    %v1518 = vunpack.c.l.b16 %v1390
    %v1519 = vunpack.c.l.b16 %v1391
    %v1520 = vunpack.c.l.b16 %v1392
    %v1521 = vunpack.c.l.b16 %v1393
    %v1522 = vunpack.c.l.b16 %v1394
    %v1523 = vunpack.c.l.b16 %v1395
    %v1524 = vunpack.c.l.b16 %v1396
    %v1525 = vunpack.c.l.b16 %v1397
    %v1526 = vunpack.c.l.b16 %v1398
    %v1527 = vunpack.c.l.b16 %v1399
    %v1528 = vunpack.c.l.b16 %v1400
    %v1529 = vunpack.c.l.b16 %v1401
    %v1530 = vunpack.c.l.b16 %v1402
    %v1531 = vunpack.c.l.b16 %v1403
    %v1532 = vunpack.c.l.b16 %v1404
    %v1533 = vunpack.c.l.b16 %v1405
    %v1534 = vunpack.c.l.b16 %v1406
    %v1535 = vunpack.c.l.b16 %v1407
    %v1536 = vunpack.c.l.b16 %v1408
    %v1537 = vunpack.c.l.b16 %v1409
    %v1538 = vunpack.c.l.b16 %v1410
    %v1539 = vunpack.c.l.b16 %v1411
    %v1540 = vunpack.c.l.b16 %v1412
    %v1541 = vunpack.c.l.b16 %v1413
    %v1542 = vunpack.c.l.b16 %v1414
    %v1543 = vunpack.c.l.b16 %v1415
    %v1544 = vunpack.c.l.b16 %v1416
    %v1545 = vunpack.c.l.b16 %v1417
    %v1546 = vunpack.c.l.b16 %v1418
    %v1547 = vpack.c.b16 %v1484, %v1483
    %v1548 = vpack.c.b16 %v1486, %v1485
    %v1549 = vpack.c.b16 %v1488, %v1487
    %v1550 = vpack.c.b16 %v1490, %v1489
    %v1551 = vpack.c.b16 %v1492, %v1491
    %v1552 = vpack.c.b16 %v1494, %v1493
    %v1553 = vpack.c.b16 %v1496, %v1495
    %v1554 = vpack.c.b16 %v1498, %v1497
    %v1555 = vpack.c.b16 %v1500, %v1499
    %v1556 = vpack.c.b16 %v1502, %v1501
    %v1557 = vpack.c.b16 %v1504, %v1503
    %v1558 = vpack.c.b16 %v1506, %v1505
    %v1559 = vpack.c.b16 %v1508, %v1507
    %v1560 = vpack.c.b16 %v1510, %v1509
    %v1561 = vpack.c.b16 %v1512, %v1511
    %v1562 = vpack.c.b16 %v1514, %v1513
    %v1563 = vpack.c.b16 %v1516, %v1515
    %v1564 = vpack.c.b16 %v1518, %v1517
    %v1565 = vpack.c.b16 %v1520, %v1519
    %v1566 = vpack.c.b16 %v1522, %v1521
    %v1567 = vpack.c.b16 %v1524, %v1523
    %v1568 = vpack.c.b16 %v1526, %v1525
    %v1569 = vpack.c.b16 %v1528, %v1527
    %v1570 = vpack.c.b16 %v1530, %v1529
    %v1571 = vpack.c.b16 %v1532, %v1531
    %v1572 = vpack.c.b16 %v1534, %v1533
    %v1573 = vpack.c.b16 %v1536, %v1535
    %v1574 = vpack.c.b16 %v1538, %v1537
    %v1575 = vpack.c.b16 %v1540, %v1539
    %v1576 = vpack.c.b16 %v1542, %v1541
    %v1577 = vpack.c.b16 %v1544, %v1543
    %v1578 = vpack.c.b16 %v1546, %v1545
    %1611 = vmatprep.subr.bf16.mxu0 0
    %1612 = vmatpush1.bf16.msra.mxu0 %v1554
    %1613 = vmatprep.subr.bf16.mxu0 0
    %1614 = vmatpush1.bf16.msra.mxu0 %v1553
    %1615 = vmatprep.subr.bf16.mxu0 0
    %1616 = vmatpush1.bf16.msra.mxu0 %v1552
    %1617 = vmatprep.subr.bf16.mxu0 0
    %1618 = vmatpush1.bf16.msra.mxu0 %v1551
    %1619 = vmatprep.subr.bf16.mxu0 0
    %1620 = vmatpush1.bf16.msra.mxu0 %v1550
    %1621 = vmatprep.subr.bf16.mxu0 0
    %1622 = vmatpush1.bf16.msra.mxu0 %v1549
    %1623 = vmatprep.subr.bf16.mxu0 0
    %1624 = vmatpush1.bf16.msra.mxu0 %v1548
    %1625 = vmatprep.subr.bf16.mxu0 0
    %1626 = vmatpush1.bf16.msra.mxu0 %v1547
    %1627 = vmatprep.subr.bf16.mxu0 0
    %1628 = vmatpush2.bf16.msra.mxu0 %v1562
    %1629 = vmatprep.subr.bf16.mxu0 0
    %1630 = vmatpush2.bf16.msra.mxu0 %v1561
    %1631 = vmatprep.subr.bf16.mxu0 0
    %1632 = vmatpush2.bf16.msra.mxu0 %v1560
    %1633 = vmatprep.subr.bf16.mxu0 0
    %1634 = vmatpush2.bf16.msra.mxu0 %v1559
    %1635 = vmatprep.subr.bf16.mxu0 0
    %1636 = vmatpush2.bf16.msra.mxu0 %v1558
    %1637 = vmatprep.subr.bf16.mxu0 0
    %1638 = vmatpush2.bf16.msra.mxu0 %v1557
    %1639 = vmatprep.subr.bf16.mxu0 0
    %1640 = vmatpush2.bf16.msra.mxu0 %v1556
    %1641 = vmatprep.subr.bf16.mxu0 0
    %1642 = vmatpush2.bf16.msra.mxu0 %v1555
    %1643 = vmatprep.mubr.bf16.mxu0 %v250
    %1644 = vmatmul.mubr.bf16.gmra.mxu0 %v242
    %v1645 = vpop.f32.mrf.mxu0
    %v1646 = vadd.f32 0.0, %v1645
    %v1647 = vpop.f32.mrf.mxu0
    %v1648 = vpop.f32.mrf.mxu0
    %v1649 = vpop.f32.mrf.mxu0
    %1650 = vdwg.mxu0
    %1651 = vmatprep.subr.bf16.mxu0 0
    %1652 = vmatpush1.bf16.msra.mxu0 %v1570
    %1653 = vmatprep.subr.bf16.mxu0 0
    %1654 = vmatpush1.bf16.msra.mxu0 %v1569
    %1655 = vmatprep.subr.bf16.mxu0 0
    %1656 = vmatpush1.bf16.msra.mxu0 %v1568
    %1657 = vmatprep.subr.bf16.mxu0 0
    %1658 = vmatpush1.bf16.msra.mxu0 %v1567
    %1659 = vmatprep.subr.bf16.mxu0 0
    %1660 = vmatpush1.bf16.msra.mxu0 %v1566
    %1661 = vmatprep.subr.bf16.mxu0 0
    %1662 = vmatpush1.bf16.msra.mxu0 %v1565
    %1663 = vmatprep.subr.bf16.mxu0 0
    %1664 = vmatpush1.bf16.msra.mxu0 %v1564
    %1665 = vmatprep.subr.bf16.mxu0 0
    %1666 = vmatpush1.bf16.msra.mxu0 %v1563
    %1667 = vmatprep.subr.bf16.mxu0 0
    %1668 = vmatpush2.bf16.msra.mxu0 %v1578
    %1669 = vmatprep.subr.bf16.mxu0 0
    %1670 = vmatpush2.bf16.msra.mxu0 %v1577
    %1671 = vmatprep.subr.bf16.mxu0 0
    %1672 = vmatpush2.bf16.msra.mxu0 %v1576
    %1673 = vmatprep.subr.bf16.mxu0 0
    %1674 = vmatpush2.bf16.msra.mxu0 %v1575
    %1675 = vmatprep.subr.bf16.mxu0 0
    %1676 = vmatpush2.bf16.msra.mxu0 %v1574
    %1677 = vmatprep.subr.bf16.mxu0 0
    %1678 = vmatpush2.bf16.msra.mxu0 %v1573
    %1679 = vmatprep.subr.bf16.mxu0 0
    %1680 = vmatpush2.bf16.msra.mxu0 %v1572
    %1681 = vmatprep.subr.bf16.mxu0 0
    %1682 = vmatpush2.bf16.msra.mxu0 %v1571
    %1683 = vmatprep.mubr.bf16.mxu0 %v251
    %1684 = vmatmul.mubr.bf16.gmra.mxu0 %v249
    %v1685 = vpop.f32.mrf.mxu0
    %v1686 = vadd.f32 %v1646, %v1685
    %v1687 = vpop.f32.mrf.mxu0
    %v1688 = vpop.f32.mrf.mxu0
    %v1689 = vpop.f32.mrf.mxu0
    %1690 = vdwg.mxu0
    %s1691 = scalar_lea.vmem %s1, 12
    %v1692 = vld [vmem:[%s1691] sm:$0xf]
    %v1693 = vpack.c.bf16 %v1686, %v1686
    %v1695 = vsel %vm870, %v1692, 0
    %v1698 = vand.u32 %v1693, %v877
    %1700 = vmatprep.subr.bf16.mxu0 0
    %1701 = vmatpush1.bf16.msra.mxu0 0
    %1702 = vmatprep.subr.bf16.mxu0 0
    %1703 = vmatpush1.bf16.msra.mxu0 0
    %1704 = vmatprep.subr.bf16.mxu0 0
    %1705 = vmatpush1.bf16.msra.mxu0 0
    %1706 = vmatprep.subr.bf16.mxu0 0
    %1707 = vmatpush1.bf16.msra.mxu0 0
    %1708 = vmatprep.subr.bf16.mxu0 0
    %1709 = vmatpush1.bf16.msra.mxu0 0
    %1710 = vmatprep.subr.bf16.mxu0 0
    %1711 = vmatpush1.bf16.msra.mxu0 0
    %1712 = vmatprep.subr.bf16.mxu0 0
    %1713 = vmatpush1.bf16.msra.mxu0 0
    %1714 = vmatprep.subr.bf16.mxu0 0
    %1715 = vmatpush1.bf16.msra.mxu0 %v1698
    %1716 = vmatprep.subr.bf16.mxu0 0
    %1717 = vmatpush2.bf16.msra.mxu0 0
    %1718 = vmatprep.subr.bf16.mxu0 0
    %1719 = vmatpush2.bf16.msra.mxu0 0
    %1720 = vmatprep.subr.bf16.mxu0 0
    %1721 = vmatpush2.bf16.msra.mxu0 0
    %1722 = vmatprep.subr.bf16.mxu0 0
    %1723 = vmatpush2.bf16.msra.mxu0 0
    %1724 = vmatprep.subr.bf16.mxu0 0
    %1725 = vmatpush2.bf16.msra.mxu0 0
    %1726 = vmatprep.subr.bf16.mxu0 0
    %1727 = vmatpush2.bf16.msra.mxu0 0
    %1728 = vmatprep.subr.bf16.mxu0 0
    %1729 = vmatpush2.bf16.msra.mxu0 0
    %1730 = vmatprep.subr.bf16.mxu0 0
    %1731 = vmatpush2.bf16.msra.mxu0 0
    %1732 = vmatprep.mubr.bf16.mxu0 0
    %1733 = vmatmul.mubr.bf16.gmra.mxu0 %v1695
    %v1734 = vpop.f32.mrf.mxu0
    %v1735 = vadd.f32 0.0, %v1734
    %v1736 = vpop.f32.mrf.mxu0
    %v1737 = vpop.f32.mrf.mxu0
    %v1738 = vpop.f32.mrf.mxu0
    %1739 = vdwg.mxu0
    %v1740 = vadd.f32 %v1353, %v1735
    %s1741 = scalar_lea.vmem [#allocation4], 1024
    %v1742 = vld [vmem:[%s1741] sm:$0xf]
    %v1743 = vld [vmem:[%s1741 + $0x4] sm:$0xf]
    %v1744 = vld [vmem:[%s1741 + $0x8] sm:$0xf]
    %v1745 = vld [vmem:[%s1741 + $0xc] sm:$0xf]
    %v1746 = vld [vmem:[%s1741 + $0x10] sm:$0xf]
    %v1747 = vld [vmem:[%s1741 + $0x14] sm:$0xf]
    %v1748 = vld [vmem:[%s1741 + $0x18] sm:$0xf]
    %v1749 = vld [vmem:[%s1741 + $0x1c] sm:$0xf]
    %v1750 = vld [vmem:[%s1741 + $0x20] sm:$0xf]
    %v1751 = vld [vmem:[%s1741 + $0x24] sm:$0xf]
    %v1752 = vld [vmem:[%s1741 + $0x28] sm:$0xf]
    %v1753 = vld [vmem:[%s1741 + $0x2c] sm:$0xf]
    %v1754 = vld [vmem:[%s1741 + $0x30] sm:$0xf]
    %v1755 = vld [vmem:[%s1741 + $0x34] sm:$0xf]
    %v1756 = vld [vmem:[%s1741 + $0x38] sm:$0xf]
    %v1757 = vld [vmem:[%s1741 + $0x3c] sm:$0xf]
    %v1758 = vld [vmem:[%s1741 + $0x40] sm:$0xf]
    %v1759 = vld [vmem:[%s1741 + $0x44] sm:$0xf]
    %v1760 = vld [vmem:[%s1741 + $0x48] sm:$0xf]
    %v1761 = vld [vmem:[%s1741 + $0x4c] sm:$0xf]
    %v1762 = vld [vmem:[%s1741 + $0x50] sm:$0xf]
    %v1763 = vld [vmem:[%s1741 + $0x54] sm:$0xf]
    %v1764 = vld [vmem:[%s1741 + $0x58] sm:$0xf]
    %v1765 = vld [vmem:[%s1741 + $0x5c] sm:$0xf]
    %v1766 = vld [vmem:[%s1741 + $0x60] sm:$0xf]
    %v1767 = vld [vmem:[%s1741 + $0x64] sm:$0xf]
    %v1768 = vld [vmem:[%s1741 + $0x68] sm:$0xf]
    %v1769 = vld [vmem:[%s1741 + $0x6c] sm:$0xf]
    %v1770 = vld [vmem:[%s1741 + $0x70] sm:$0xf]
    %v1771 = vld [vmem:[%s1741 + $0x74] sm:$0xf]
    %v1772 = vld [vmem:[%s1741 + $0x78] sm:$0xf]
    %v1773 = vld [vmem:[%s1741 + $0x7c] sm:$0xf]
    %v1774 = vld [vmem:[%s1741 + $0x80] sm:$0xf]
    %v1775 = vld [vmem:[%s1741 + $0x84] sm:$0xf]
    %v1776 = vld [vmem:[%s1741 + $0x88] sm:$0xf]
    %v1777 = vld [vmem:[%s1741 + $0x8c] sm:$0xf]
    %v1778 = vld [vmem:[%s1741 + $0x90] sm:$0xf]
    %v1779 = vld [vmem:[%s1741 + $0x94] sm:$0xf]
    %v1780 = vld [vmem:[%s1741 + $0x98] sm:$0xf]
    %v1781 = vld [vmem:[%s1741 + $0x9c] sm:$0xf]
    %v1782 = vld [vmem:[%s1741 + $0xa0] sm:$0xf]
    %v1783 = vld [vmem:[%s1741 + $0xa4] sm:$0xf]
    %v1784 = vld [vmem:[%s1741 + $0xa8] sm:$0xf]
    %v1785 = vld [vmem:[%s1741 + $0xac] sm:$0xf]
    %v1786 = vld [vmem:[%s1741 + $0xb0] sm:$0xf]
    %v1787 = vld [vmem:[%s1741 + $0xb4] sm:$0xf]
    %v1788 = vld [vmem:[%s1741 + $0xb8] sm:$0xf]
    %v1789 = vld [vmem:[%s1741 + $0xbc] sm:$0xf]
    %v1790 = vld [vmem:[%s1741 + $0xc0] sm:$0xf]
    %v1791 = vld [vmem:[%s1741 + $0xc4] sm:$0xf]
    %v1792 = vld [vmem:[%s1741 + $0xc8] sm:$0xf]
    %v1793 = vld [vmem:[%s1741 + $0xcc] sm:$0xf]
    %v1794 = vld [vmem:[%s1741 + $0xd0] sm:$0xf]
    %v1795 = vld [vmem:[%s1741 + $0xd4] sm:$0xf]
    %v1796 = vld [vmem:[%s1741 + $0xd8] sm:$0xf]
    %v1797 = vld [vmem:[%s1741 + $0xdc] sm:$0xf]
    %v1798 = vld [vmem:[%s1741 + $0xe0] sm:$0xf]
    %v1799 = vld [vmem:[%s1741 + $0xe4] sm:$0xf]
    %v1800 = vld [vmem:[%s1741 + $0xe8] sm:$0xf]
    %v1801 = vld [vmem:[%s1741 + $0xec] sm:$0xf]
    %v1802 = vld [vmem:[%s1741 + $0xf0] sm:$0xf]
    %v1803 = vld [vmem:[%s1741 + $0xf4] sm:$0xf]
    %v1804 = vld [vmem:[%s1741 + $0xf8] sm:$0xf]
    %v1805 = vld [vmem:[%s1741 + $0xfc] sm:$0xf]
    %v1870 = vunpack.c.l.b16 %v1742
    %v1871 = vunpack.c.l.b16 %v1743
    %v1872 = vunpack.c.l.b16 %v1744
    %v1873 = vunpack.c.l.b16 %v1745
    %v1874 = vunpack.c.l.b16 %v1746
    %v1875 = vunpack.c.l.b16 %v1747
    %v1876 = vunpack.c.l.b16 %v1748
    %v1877 = vunpack.c.l.b16 %v1749
    %v1878 = vunpack.c.l.b16 %v1750
    %v1879 = vunpack.c.l.b16 %v1751
    %v1880 = vunpack.c.l.b16 %v1752
    %v1881 = vunpack.c.l.b16 %v1753
    %v1882 = vunpack.c.l.b16 %v1754
    %v1883 = vunpack.c.l.b16 %v1755
    %v1884 = vunpack.c.l.b16 %v1756
    %v1885 = vunpack.c.l.b16 %v1757
    %v1886 = vunpack.c.l.b16 %v1758
    %v1887 = vunpack.c.l.b16 %v1759
    %v1888 = vunpack.c.l.b16 %v1760
    %v1889 = vunpack.c.l.b16 %v1761
    %v1890 = vunpack.c.l.b16 %v1762
    %v1891 = vunpack.c.l.b16 %v1763
    %v1892 = vunpack.c.l.b16 %v1764
    %v1893 = vunpack.c.l.b16 %v1765
    %v1894 = vunpack.c.l.b16 %v1766
    %v1895 = vunpack.c.l.b16 %v1767
    %v1896 = vunpack.c.l.b16 %v1768
    %v1897 = vunpack.c.l.b16 %v1769
    %v1898 = vunpack.c.l.b16 %v1770
    %v1899 = vunpack.c.l.b16 %v1771
    %v1900 = vunpack.c.l.b16 %v1772
    %v1901 = vunpack.c.l.b16 %v1773
    %v1902 = vunpack.c.l.b16 %v1774
    %v1903 = vunpack.c.l.b16 %v1775
    %v1904 = vunpack.c.l.b16 %v1776
    %v1905 = vunpack.c.l.b16 %v1777
    %v1906 = vunpack.c.l.b16 %v1778
    %v1907 = vunpack.c.l.b16 %v1779
    %v1908 = vunpack.c.l.b16 %v1780
    %v1909 = vunpack.c.l.b16 %v1781
    %v1910 = vunpack.c.l.b16 %v1782
    %v1911 = vunpack.c.l.b16 %v1783
    %v1912 = vunpack.c.l.b16 %v1784
    %v1913 = vunpack.c.l.b16 %v1785
    %v1914 = vunpack.c.l.b16 %v1786
    %v1915 = vunpack.c.l.b16 %v1787
    %v1916 = vunpack.c.l.b16 %v1788
    %v1917 = vunpack.c.l.b16 %v1789
    %v1918 = vunpack.c.l.b16 %v1790
    %v1919 = vunpack.c.l.b16 %v1791
    %v1920 = vunpack.c.l.b16 %v1792
    %v1921 = vunpack.c.l.b16 %v1793
    %v1922 = vunpack.c.l.b16 %v1794
    %v1923 = vunpack.c.l.b16 %v1795
    %v1924 = vunpack.c.l.b16 %v1796
    %v1925 = vunpack.c.l.b16 %v1797
    %v1926 = vunpack.c.l.b16 %v1798
    %v1927 = vunpack.c.l.b16 %v1799
    %v1928 = vunpack.c.l.b16 %v1800
    %v1929 = vunpack.c.l.b16 %v1801
    %v1930 = vunpack.c.l.b16 %v1802
    %v1931 = vunpack.c.l.b16 %v1803
    %v1932 = vunpack.c.l.b16 %v1804
    %v1933 = vunpack.c.l.b16 %v1805
    %v1934 = vpack.c.b16 %v1871, %v1870
    %v1935 = vpack.c.b16 %v1873, %v1872
    %v1936 = vpack.c.b16 %v1875, %v1874
    %v1937 = vpack.c.b16 %v1877, %v1876
    %v1938 = vpack.c.b16 %v1879, %v1878
    %v1939 = vpack.c.b16 %v1881, %v1880
    %v1940 = vpack.c.b16 %v1883, %v1882
    %v1941 = vpack.c.b16 %v1885, %v1884
    %v1942 = vpack.c.b16 %v1887, %v1886
    %v1943 = vpack.c.b16 %v1889, %v1888
    %v1944 = vpack.c.b16 %v1891, %v1890
    %v1945 = vpack.c.b16 %v1893, %v1892
    %v1946 = vpack.c.b16 %v1895, %v1894
    %v1947 = vpack.c.b16 %v1897, %v1896
    %v1948 = vpack.c.b16 %v1899, %v1898
    %v1949 = vpack.c.b16 %v1901, %v1900
    %v1950 = vpack.c.b16 %v1903, %v1902
    %v1951 = vpack.c.b16 %v1905, %v1904
    %v1952 = vpack.c.b16 %v1907, %v1906
    %v1953 = vpack.c.b16 %v1909, %v1908
    %v1954 = vpack.c.b16 %v1911, %v1910
    %v1955 = vpack.c.b16 %v1913, %v1912
    %v1956 = vpack.c.b16 %v1915, %v1914
    %v1957 = vpack.c.b16 %v1917, %v1916
    %v1958 = vpack.c.b16 %v1919, %v1918
    %v1959 = vpack.c.b16 %v1921, %v1920
    %v1960 = vpack.c.b16 %v1923, %v1922
    %v1961 = vpack.c.b16 %v1925, %v1924
    %v1962 = vpack.c.b16 %v1927, %v1926
    %v1963 = vpack.c.b16 %v1929, %v1928
    %v1964 = vpack.c.b16 %v1931, %v1930
    %v1965 = vpack.c.b16 %v1933, %v1932
    %1998 = vmatprep.subr.bf16.mxu0 0
    %1999 = vmatpush1.bf16.msra.mxu0 %v1941
    %2000 = vmatprep.subr.bf16.mxu0 0
    %2001 = vmatpush1.bf16.msra.mxu0 %v1940
    %2002 = vmatprep.subr.bf16.mxu0 0
    %2003 = vmatpush1.bf16.msra.mxu0 %v1939
    %2004 = vmatprep.subr.bf16.mxu0 0
    %2005 = vmatpush1.bf16.msra.mxu0 %v1938
    %2006 = vmatprep.subr.bf16.mxu0 0
    %2007 = vmatpush1.bf16.msra.mxu0 %v1937
    %2008 = vmatprep.subr.bf16.mxu0 0
    %2009 = vmatpush1.bf16.msra.mxu0 %v1936
    %2010 = vmatprep.subr.bf16.mxu0 0
    %2011 = vmatpush1.bf16.msra.mxu0 %v1935
    %2012 = vmatprep.subr.bf16.mxu0 0
    %2013 = vmatpush1.bf16.msra.mxu0 %v1934
    %2014 = vmatprep.subr.bf16.mxu0 0
    %2015 = vmatpush2.bf16.msra.mxu0 %v1949
    %2016 = vmatprep.subr.bf16.mxu0 0
    %2017 = vmatpush2.bf16.msra.mxu0 %v1948
    %2018 = vmatprep.subr.bf16.mxu0 0
    %2019 = vmatpush2.bf16.msra.mxu0 %v1947
    %2020 = vmatprep.subr.bf16.mxu0 0
    %2021 = vmatpush2.bf16.msra.mxu0 %v1946
    %2022 = vmatprep.subr.bf16.mxu0 0
    %2023 = vmatpush2.bf16.msra.mxu0 %v1945
    %2024 = vmatprep.subr.bf16.mxu0 0
    %2025 = vmatpush2.bf16.msra.mxu0 %v1944
    %2026 = vmatprep.subr.bf16.mxu0 0
    %2027 = vmatpush2.bf16.msra.mxu0 %v1943
    %2028 = vmatprep.subr.bf16.mxu0 0
    %2029 = vmatpush2.bf16.msra.mxu0 %v1942
    %2030 = vmatprep.mubr.bf16.mxu0 %v250
    %2031 = vmatmul.mubr.bf16.gmra.mxu0 %v242
    %v2032 = vpop.f32.mrf.mxu0
    %v2033 = vadd.f32 0.0, %v2032
    %v2034 = vpop.f32.mrf.mxu0
    %v2035 = vpop.f32.mrf.mxu0
    %v2036 = vpop.f32.mrf.mxu0
    %2037 = vdwg.mxu0
    %2038 = vmatprep.subr.bf16.mxu0 0
    %2039 = vmatpush1.bf16.msra.mxu0 %v1957
    %2040 = vmatprep.subr.bf16.mxu0 0
    %2041 = vmatpush1.bf16.msra.mxu0 %v1956
    %2042 = vmatprep.subr.bf16.mxu0 0
    %2043 = vmatpush1.bf16.msra.mxu0 %v1955
    %2044 = vmatprep.subr.bf16.mxu0 0
    %2045 = vmatpush1.bf16.msra.mxu0 %v1954
    %2046 = vmatprep.subr.bf16.mxu0 0
    %2047 = vmatpush1.bf16.msra.mxu0 %v1953
    %2048 = vmatprep.subr.bf16.mxu0 0
    %2049 = vmatpush1.bf16.msra.mxu0 %v1952
    %2050 = vmatprep.subr.bf16.mxu0 0
    %2051 = vmatpush1.bf16.msra.mxu0 %v1951
    %2052 = vmatprep.subr.bf16.mxu0 0
    %2053 = vmatpush1.bf16.msra.mxu0 %v1950
    %2054 = vmatprep.subr.bf16.mxu0 0
    %2055 = vmatpush2.bf16.msra.mxu0 %v1965
    %2056 = vmatprep.subr.bf16.mxu0 0
    %2057 = vmatpush2.bf16.msra.mxu0 %v1964
    %2058 = vmatprep.subr.bf16.mxu0 0
    %2059 = vmatpush2.bf16.msra.mxu0 %v1963
    %2060 = vmatprep.subr.bf16.mxu0 0
    %2061 = vmatpush2.bf16.msra.mxu0 %v1962
    %2062 = vmatprep.subr.bf16.mxu0 0
    %2063 = vmatpush2.bf16.msra.mxu0 %v1961
    %2064 = vmatprep.subr.bf16.mxu0 0
    %2065 = vmatpush2.bf16.msra.mxu0 %v1960
    %2066 = vmatprep.subr.bf16.mxu0 0
    %2067 = vmatpush2.bf16.msra.mxu0 %v1959
    %2068 = vmatprep.subr.bf16.mxu0 0
    %2069 = vmatpush2.bf16.msra.mxu0 %v1958
    %2070 = vmatprep.mubr.bf16.mxu0 %v251
    %2071 = vmatmul.mubr.bf16.gmra.mxu0 %v249
    %v2072 = vpop.f32.mrf.mxu0
    %v2073 = vadd.f32 %v2033, %v2072
    %v2074 = vpop.f32.mrf.mxu0
    %v2075 = vpop.f32.mrf.mxu0
    %v2076 = vpop.f32.mrf.mxu0
    %2077 = vdwg.mxu0
    %s2078 = scalar_lea.vmem %s1, 16
    %v2079 = vld [vmem:[%s2078] sm:$0xf]
    %v2080 = vpack.c.bf16 %v2073, %v2073
    %v2082 = vsel %vm870, %v2079, 0
    %v2085 = vand.u32 %v2080, %v877
    %2087 = vmatprep.subr.bf16.mxu0 0
    %2088 = vmatpush1.bf16.msra.mxu0 0
    %2089 = vmatprep.subr.bf16.mxu0 0
    %2090 = vmatpush1.bf16.msra.mxu0 0
    %2091 = vmatprep.subr.bf16.mxu0 0
    %2092 = vmatpush1.bf16.msra.mxu0 0
    %2093 = vmatprep.subr.bf16.mxu0 0
    %2094 = vmatpush1.bf16.msra.mxu0 0
    %2095 = vmatprep.subr.bf16.mxu0 0
    %2096 = vmatpush1.bf16.msra.mxu0 0
    %2097 = vmatprep.subr.bf16.mxu0 0
    %2098 = vmatpush1.bf16.msra.mxu0 0
    %2099 = vmatprep.subr.bf16.mxu0 0
    %2100 = vmatpush1.bf16.msra.mxu0 0
    %2101 = vmatprep.subr.bf16.mxu0 0
    %2102 = vmatpush1.bf16.msra.mxu0 %v2085
    %2103 = vmatprep.subr.bf16.mxu0 0
    %2104 = vmatpush2.bf16.msra.mxu0 0
    %2105 = vmatprep.subr.bf16.mxu0 0
    %2106 = vmatpush2.bf16.msra.mxu0 0
    %2107 = vmatprep.subr.bf16.mxu0 0
    %2108 = vmatpush2.bf16.msra.mxu0 0
    %2109 = vmatprep.subr.bf16.mxu0 0
    %2110 = vmatpush2.bf16.msra.mxu0 0
    %2111 = vmatprep.subr.bf16.mxu0 0
    %2112 = vmatpush2.bf16.msra.mxu0 0
    %2113 = vmatprep.subr.bf16.mxu0 0
    %2114 = vmatpush2.bf16.msra.mxu0 0
    %2115 = vmatprep.subr.bf16.mxu0 0
    %2116 = vmatpush2.bf16.msra.mxu0 0
    %2117 = vmatprep.subr.bf16.mxu0 0
    %2118 = vmatpush2.bf16.msra.mxu0 0
    %2119 = vmatprep.mubr.bf16.mxu0 0
    %2120 = vmatmul.mubr.bf16.gmra.mxu0 %v2082
    %v2121 = vpop.f32.mrf.mxu0
    %v2122 = vadd.f32 0.0, %v2121
    %v2123 = vpop.f32.mrf.mxu0
    %v2124 = vpop.f32.mrf.mxu0
    %v2125 = vpop.f32.mrf.mxu0
    %2126 = vdwg.mxu0
    %v2127 = vadd.f32 %v1740, %v2122
    %s2128 = scalar_lea.vmem [#allocation4], 1280
    %v2129 = vld [vmem:[%s2128] sm:$0xf]
    %v2130 = vld [vmem:[%s2128 + $0x4] sm:$0xf]
    %v2131 = vld [vmem:[%s2128 + $0x8] sm:$0xf]
    %v2132 = vld [vmem:[%s2128 + $0xc] sm:$0xf]
    %v2133 = vld [vmem:[%s2128 + $0x10] sm:$0xf]
    %v2134 = vld [vmem:[%s2128 + $0x14] sm:$0xf]
    %v2135 = vld [vmem:[%s2128 + $0x18] sm:$0xf]
    %v2136 = vld [vmem:[%s2128 + $0x1c] sm:$0xf]
    %v2137 = vld [vmem:[%s2128 + $0x20] sm:$0xf]
    %v2138 = vld [vmem:[%s2128 + $0x24] sm:$0xf]
    %v2139 = vld [vmem:[%s2128 + $0x28] sm:$0xf]
    %v2140 = vld [vmem:[%s2128 + $0x2c] sm:$0xf]
    %v2141 = vld [vmem:[%s2128 + $0x30] sm:$0xf]
    %v2142 = vld [vmem:[%s2128 + $0x34] sm:$0xf]
    %v2143 = vld [vmem:[%s2128 + $0x38] sm:$0xf]
    %v2144 = vld [vmem:[%s2128 + $0x3c] sm:$0xf]
    %v2145 = vld [vmem:[%s2128 + $0x40] sm:$0xf]
    %v2146 = vld [vmem:[%s2128 + $0x44] sm:$0xf]
    %v2147 = vld [vmem:[%s2128 + $0x48] sm:$0xf]
    %v2148 = vld [vmem:[%s2128 + $0x4c] sm:$0xf]
    %v2149 = vld [vmem:[%s2128 + $0x50] sm:$0xf]
    %v2150 = vld [vmem:[%s2128 + $0x54] sm:$0xf]
    %v2151 = vld [vmem:[%s2128 + $0x58] sm:$0xf]
    %v2152 = vld [vmem:[%s2128 + $0x5c] sm:$0xf]
    %v2153 = vld [vmem:[%s2128 + $0x60] sm:$0xf]
    %v2154 = vld [vmem:[%s2128 + $0x64] sm:$0xf]
    %v2155 = vld [vmem:[%s2128 + $0x68] sm:$0xf]
    %v2156 = vld [vmem:[%s2128 + $0x6c] sm:$0xf]
    %v2157 = vld [vmem:[%s2128 + $0x70] sm:$0xf]
    %v2158 = vld [vmem:[%s2128 + $0x74] sm:$0xf]
    %v2159 = vld [vmem:[%s2128 + $0x78] sm:$0xf]
    %v2160 = vld [vmem:[%s2128 + $0x7c] sm:$0xf]
    %v2161 = vld [vmem:[%s2128 + $0x80] sm:$0xf]
    %v2162 = vld [vmem:[%s2128 + $0x84] sm:$0xf]
    %v2163 = vld [vmem:[%s2128 + $0x88] sm:$0xf]
    %v2164 = vld [vmem:[%s2128 + $0x8c] sm:$0xf]
    %v2165 = vld [vmem:[%s2128 + $0x90] sm:$0xf]
    %v2166 = vld [vmem:[%s2128 + $0x94] sm:$0xf]
    %v2167 = vld [vmem:[%s2128 + $0x98] sm:$0xf]
    %v2168 = vld [vmem:[%s2128 + $0x9c] sm:$0xf]
    %v2169 = vld [vmem:[%s2128 + $0xa0] sm:$0xf]
    %v2170 = vld [vmem:[%s2128 + $0xa4] sm:$0xf]
    %v2171 = vld [vmem:[%s2128 + $0xa8] sm:$0xf]
    %v2172 = vld [vmem:[%s2128 + $0xac] sm:$0xf]
    %v2173 = vld [vmem:[%s2128 + $0xb0] sm:$0xf]
    %v2174 = vld [vmem:[%s2128 + $0xb4] sm:$0xf]
    %v2175 = vld [vmem:[%s2128 + $0xb8] sm:$0xf]
    %v2176 = vld [vmem:[%s2128 + $0xbc] sm:$0xf]
    %v2177 = vld [vmem:[%s2128 + $0xc0] sm:$0xf]
    %v2178 = vld [vmem:[%s2128 + $0xc4] sm:$0xf]
    %v2179 = vld [vmem:[%s2128 + $0xc8] sm:$0xf]
    %v2180 = vld [vmem:[%s2128 + $0xcc] sm:$0xf]
    %v2181 = vld [vmem:[%s2128 + $0xd0] sm:$0xf]
    %v2182 = vld [vmem:[%s2128 + $0xd4] sm:$0xf]
    %v2183 = vld [vmem:[%s2128 + $0xd8] sm:$0xf]
    %v2184 = vld [vmem:[%s2128 + $0xdc] sm:$0xf]
    %v2185 = vld [vmem:[%s2128 + $0xe0] sm:$0xf]
    %v2186 = vld [vmem:[%s2128 + $0xe4] sm:$0xf]
    %v2187 = vld [vmem:[%s2128 + $0xe8] sm:$0xf]
    %v2188 = vld [vmem:[%s2128 + $0xec] sm:$0xf]
    %v2189 = vld [vmem:[%s2128 + $0xf0] sm:$0xf]
    %v2190 = vld [vmem:[%s2128 + $0xf4] sm:$0xf]
    %v2191 = vld [vmem:[%s2128 + $0xf8] sm:$0xf]
    %v2192 = vld [vmem:[%s2128 + $0xfc] sm:$0xf]
    %v2257 = vunpack.c.l.b16 %v2129
    %v2258 = vunpack.c.l.b16 %v2130
    %v2259 = vunpack.c.l.b16 %v2131
    %v2260 = vunpack.c.l.b16 %v2132
    %v2261 = vunpack.c.l.b16 %v2133
    %v2262 = vunpack.c.l.b16 %v2134
    %v2263 = vunpack.c.l.b16 %v2135
    %v2264 = vunpack.c.l.b16 %v2136
    %v2265 = vunpack.c.l.b16 %v2137
    %v2266 = vunpack.c.l.b16 %v2138
    %v2267 = vunpack.c.l.b16 %v2139
    %v2268 = vunpack.c.l.b16 %v2140
    %v2269 = vunpack.c.l.b16 %v2141
    %v2270 = vunpack.c.l.b16 %v2142
    %v2271 = vunpack.c.l.b16 %v2143
    %v2272 = vunpack.c.l.b16 %v2144
    %v2273 = vunpack.c.l.b16 %v2145
    %v2274 = vunpack.c.l.b16 %v2146
    %v2275 = vunpack.c.l.b16 %v2147
    %v2276 = vunpack.c.l.b16 %v2148
    %v2277 = vunpack.c.l.b16 %v2149
    %v2278 = vunpack.c.l.b16 %v2150
    %v2279 = vunpack.c.l.b16 %v2151
    %v2280 = vunpack.c.l.b16 %v2152
    %v2281 = vunpack.c.l.b16 %v2153
    %v2282 = vunpack.c.l.b16 %v2154
    %v2283 = vunpack.c.l.b16 %v2155
    %v2284 = vunpack.c.l.b16 %v2156
    %v2285 = vunpack.c.l.b16 %v2157
    %v2286 = vunpack.c.l.b16 %v2158
    %v2287 = vunpack.c.l.b16 %v2159
    %v2288 = vunpack.c.l.b16 %v2160
    %v2289 = vunpack.c.l.b16 %v2161
    %v2290 = vunpack.c.l.b16 %v2162
    %v2291 = vunpack.c.l.b16 %v2163
    %v2292 = vunpack.c.l.b16 %v2164
    %v2293 = vunpack.c.l.b16 %v2165
    %v2294 = vunpack.c.l.b16 %v2166
    %v2295 = vunpack.c.l.b16 %v2167
    %v2296 = vunpack.c.l.b16 %v2168
    %v2297 = vunpack.c.l.b16 %v2169
    %v2298 = vunpack.c.l.b16 %v2170
    %v2299 = vunpack.c.l.b16 %v2171
    %v2300 = vunpack.c.l.b16 %v2172
    %v2301 = vunpack.c.l.b16 %v2173
    %v2302 = vunpack.c.l.b16 %v2174
    %v2303 = vunpack.c.l.b16 %v2175
    %v2304 = vunpack.c.l.b16 %v2176
    %v2305 = vunpack.c.l.b16 %v2177
    %v2306 = vunpack.c.l.b16 %v2178
    %v2307 = vunpack.c.l.b16 %v2179
    %v2308 = vunpack.c.l.b16 %v2180
    %v2309 = vunpack.c.l.b16 %v2181
    %v2310 = vunpack.c.l.b16 %v2182
    %v2311 = vunpack.c.l.b16 %v2183
    %v2312 = vunpack.c.l.b16 %v2184
    %v2313 = vunpack.c.l.b16 %v2185
    %v2314 = vunpack.c.l.b16 %v2186
    %v2315 = vunpack.c.l.b16 %v2187
    %v2316 = vunpack.c.l.b16 %v2188
    %v2317 = vunpack.c.l.b16 %v2189
    %v2318 = vunpack.c.l.b16 %v2190
    %v2319 = vunpack.c.l.b16 %v2191
    %v2320 = vunpack.c.l.b16 %v2192
    %v2321 = vpack.c.b16 %v2258, %v2257
    %v2322 = vpack.c.b16 %v2260, %v2259
    %v2323 = vpack.c.b16 %v2262, %v2261
    %v2324 = vpack.c.b16 %v2264, %v2263
    %v2325 = vpack.c.b16 %v2266, %v2265
    %v2326 = vpack.c.b16 %v2268, %v2267
    %v2327 = vpack.c.b16 %v2270, %v2269
    %v2328 = vpack.c.b16 %v2272, %v2271
    %v2329 = vpack.c.b16 %v2274, %v2273
    %v2330 = vpack.c.b16 %v2276, %v2275
    %v2331 = vpack.c.b16 %v2278, %v2277
    %v2332 = vpack.c.b16 %v2280, %v2279
    %v2333 = vpack.c.b16 %v2282, %v2281
    %v2334 = vpack.c.b16 %v2284, %v2283
    %v2335 = vpack.c.b16 %v2286, %v2285
    %v2336 = vpack.c.b16 %v2288, %v2287
    %v2337 = vpack.c.b16 %v2290, %v2289
    %v2338 = vpack.c.b16 %v2292, %v2291
    %v2339 = vpack.c.b16 %v2294, %v2293
    %v2340 = vpack.c.b16 %v2296, %v2295
    %v2341 = vpack.c.b16 %v2298, %v2297
    %v2342 = vpack.c.b16 %v2300, %v2299
    %v2343 = vpack.c.b16 %v2302, %v2301
    %v2344 = vpack.c.b16 %v2304, %v2303
    %v2345 = vpack.c.b16 %v2306, %v2305
    %v2346 = vpack.c.b16 %v2308, %v2307
    %v2347 = vpack.c.b16 %v2310, %v2309
    %v2348 = vpack.c.b16 %v2312, %v2311
    %v2349 = vpack.c.b16 %v2314, %v2313
    %v2350 = vpack.c.b16 %v2316, %v2315
    %v2351 = vpack.c.b16 %v2318, %v2317
    %v2352 = vpack.c.b16 %v2320, %v2319
    %2385 = vmatprep.subr.bf16.mxu0 0
    %2386 = vmatpush1.bf16.msra.mxu0 %v2328
    %2387 = vmatprep.subr.bf16.mxu0 0
    %2388 = vmatpush1.bf16.msra.mxu0 %v2327
    %2389 = vmatprep.subr.bf16.mxu0 0
    %2390 = vmatpush1.bf16.msra.mxu0 %v2326
    %2391 = vmatprep.subr.bf16.mxu0 0
    %2392 = vmatpush1.bf16.msra.mxu0 %v2325
    %2393 = vmatprep.subr.bf16.mxu0 0
    %2394 = vmatpush1.bf16.msra.mxu0 %v2324
    %2395 = vmatprep.subr.bf16.mxu0 0
    %2396 = vmatpush1.bf16.msra.mxu0 %v2323
    %2397 = vmatprep.subr.bf16.mxu0 0
    %2398 = vmatpush1.bf16.msra.mxu0 %v2322
    %2399 = vmatprep.subr.bf16.mxu0 0
    %2400 = vmatpush1.bf16.msra.mxu0 %v2321
    %2401 = vmatprep.subr.bf16.mxu0 0
    %2402 = vmatpush2.bf16.msra.mxu0 %v2336
    %2403 = vmatprep.subr.bf16.mxu0 0
    %2404 = vmatpush2.bf16.msra.mxu0 %v2335
    %2405 = vmatprep.subr.bf16.mxu0 0
    %2406 = vmatpush2.bf16.msra.mxu0 %v2334
    %2407 = vmatprep.subr.bf16.mxu0 0
    %2408 = vmatpush2.bf16.msra.mxu0 %v2333
    %2409 = vmatprep.subr.bf16.mxu0 0
    %2410 = vmatpush2.bf16.msra.mxu0 %v2332
    %2411 = vmatprep.subr.bf16.mxu0 0
    %2412 = vmatpush2.bf16.msra.mxu0 %v2331
    %2413 = vmatprep.subr.bf16.mxu0 0
    %2414 = vmatpush2.bf16.msra.mxu0 %v2330
    %2415 = vmatprep.subr.bf16.mxu0 0
    %2416 = vmatpush2.bf16.msra.mxu0 %v2329
    %2417 = vmatprep.mubr.bf16.mxu0 %v250
    %2418 = vmatmul.mubr.bf16.gmra.mxu0 %v242
    %v2419 = vpop.f32.mrf.mxu0
    %v2420 = vadd.f32 0.0, %v2419
    %v2421 = vpop.f32.mrf.mxu0
    %v2422 = vpop.f32.mrf.mxu0
    %v2423 = vpop.f32.mrf.mxu0
    %2424 = vdwg.mxu0
    %2425 = vmatprep.subr.bf16.mxu0 0
    %2426 = vmatpush1.bf16.msra.mxu0 %v2344
    %2427 = vmatprep.subr.bf16.mxu0 0
    %2428 = vmatpush1.bf16.msra.mxu0 %v2343
    %2429 = vmatprep.subr.bf16.mxu0 0
    %2430 = vmatpush1.bf16.msra.mxu0 %v2342
    %2431 = vmatprep.subr.bf16.mxu0 0
    %2432 = vmatpush1.bf16.msra.mxu0 %v2341
    %2433 = vmatprep.subr.bf16.mxu0 0
    %2434 = vmatpush1.bf16.msra.mxu0 %v2340
    %2435 = vmatprep.subr.bf16.mxu0 0
    %2436 = vmatpush1.bf16.msra.mxu0 %v2339
    %2437 = vmatprep.subr.bf16.mxu0 0
    %2438 = vmatpush1.bf16.msra.mxu0 %v2338
    %2439 = vmatprep.subr.bf16.mxu0 0
    %2440 = vmatpush1.bf16.msra.mxu0 %v2337
    %2441 = vmatprep.subr.bf16.mxu0 0
    %2442 = vmatpush2.bf16.msra.mxu0 %v2352
    %2443 = vmatprep.subr.bf16.mxu0 0
    %2444 = vmatpush2.bf16.msra.mxu0 %v2351
    %2445 = vmatprep.subr.bf16.mxu0 0
    %2446 = vmatpush2.bf16.msra.mxu0 %v2350
    %2447 = vmatprep.subr.bf16.mxu0 0
    %2448 = vmatpush2.bf16.msra.mxu0 %v2349
    %2449 = vmatprep.subr.bf16.mxu0 0
    %2450 = vmatpush2.bf16.msra.mxu0 %v2348
    %2451 = vmatprep.subr.bf16.mxu0 0
    %2452 = vmatpush2.bf16.msra.mxu0 %v2347
    %2453 = vmatprep.subr.bf16.mxu0 0
    %2454 = vmatpush2.bf16.msra.mxu0 %v2346
    %2455 = vmatprep.subr.bf16.mxu0 0
    %2456 = vmatpush2.bf16.msra.mxu0 %v2345
    %2457 = vmatprep.mubr.bf16.mxu0 %v251
    %2458 = vmatmul.mubr.bf16.gmra.mxu0 %v249
    %v2459 = vpop.f32.mrf.mxu0
    %v2460 = vadd.f32 %v2420, %v2459
    %v2461 = vpop.f32.mrf.mxu0
    %v2462 = vpop.f32.mrf.mxu0
    %v2463 = vpop.f32.mrf.mxu0
    %2464 = vdwg.mxu0
    %s2465 = scalar_lea.vmem %s1, 20
    %v2466 = vld [vmem:[%s2465] sm:$0xf]
    %v2467 = vpack.c.bf16 %v2460, %v2460
    %v2469 = vsel %vm870, %v2466, 0
    %v2472 = vand.u32 %v2467, %v877
    %2474 = vmatprep.subr.bf16.mxu0 0
    %2475 = vmatpush1.bf16.msra.mxu0 0
    %2476 = vmatprep.subr.bf16.mxu0 0
    %2477 = vmatpush1.bf16.msra.mxu0 0
    %2478 = vmatprep.subr.bf16.mxu0 0
    %2479 = vmatpush1.bf16.msra.mxu0 0
    %2480 = vmatprep.subr.bf16.mxu0 0
    %2481 = vmatpush1.bf16.msra.mxu0 0
    %2482 = vmatprep.subr.bf16.mxu0 0
    %2483 = vmatpush1.bf16.msra.mxu0 0
    %2484 = vmatprep.subr.bf16.mxu0 0
    %2485 = vmatpush1.bf16.msra.mxu0 0
    %2486 = vmatprep.subr.bf16.mxu0 0
    %2487 = vmatpush1.bf16.msra.mxu0 0
    %2488 = vmatprep.subr.bf16.mxu0 0
    %2489 = vmatpush1.bf16.msra.mxu0 %v2472
    %2490 = vmatprep.subr.bf16.mxu0 0
    %2491 = vmatpush2.bf16.msra.mxu0 0
    %2492 = vmatprep.subr.bf16.mxu0 0
    %2493 = vmatpush2.bf16.msra.mxu0 0
    %2494 = vmatprep.subr.bf16.mxu0 0
    %2495 = vmatpush2.bf16.msra.mxu0 0
    %2496 = vmatprep.subr.bf16.mxu0 0
    %2497 = vmatpush2.bf16.msra.mxu0 0
    %2498 = vmatprep.subr.bf16.mxu0 0
    %2499 = vmatpush2.bf16.msra.mxu0 0
    %2500 = vmatprep.subr.bf16.mxu0 0
    %2501 = vmatpush2.bf16.msra.mxu0 0
    %2502 = vmatprep.subr.bf16.mxu0 0
    %2503 = vmatpush2.bf16.msra.mxu0 0
    %2504 = vmatprep.subr.bf16.mxu0 0
    %2505 = vmatpush2.bf16.msra.mxu0 0
    %2506 = vmatprep.mubr.bf16.mxu0 0
    %2507 = vmatmul.mubr.bf16.gmra.mxu0 %v2469
    %v2508 = vpop.f32.mrf.mxu0
    %v2509 = vadd.f32 0.0, %v2508
    %v2510 = vpop.f32.mrf.mxu0
    %v2511 = vpop.f32.mrf.mxu0
    %v2512 = vpop.f32.mrf.mxu0
    %2513 = vdwg.mxu0
    %v2514 = vadd.f32 %v2127, %v2509
    %s2515 = scalar_lea.vmem [#allocation4], 1536
    %v2516 = vld [vmem:[%s2515] sm:$0xf]
    %v2517 = vld [vmem:[%s2515 + $0x4] sm:$0xf]
    %v2518 = vld [vmem:[%s2515 + $0x8] sm:$0xf]
    %v2519 = vld [vmem:[%s2515 + $0xc] sm:$0xf]
    %v2520 = vld [vmem:[%s2515 + $0x10] sm:$0xf]
    %v2521 = vld [vmem:[%s2515 + $0x14] sm:$0xf]
    %v2522 = vld [vmem:[%s2515 + $0x18] sm:$0xf]
    %v2523 = vld [vmem:[%s2515 + $0x1c] sm:$0xf]
    %v2524 = vld [vmem:[%s2515 + $0x20] sm:$0xf]
    %v2525 = vld [vmem:[%s2515 + $0x24] sm:$0xf]
    %v2526 = vld [vmem:[%s2515 + $0x28] sm:$0xf]
    %v2527 = vld [vmem:[%s2515 + $0x2c] sm:$0xf]
    %v2528 = vld [vmem:[%s2515 + $0x30] sm:$0xf]
    %v2529 = vld [vmem:[%s2515 + $0x34] sm:$0xf]
    %v2530 = vld [vmem:[%s2515 + $0x38] sm:$0xf]
    %v2531 = vld [vmem:[%s2515 + $0x3c] sm:$0xf]
    %v2532 = vld [vmem:[%s2515 + $0x40] sm:$0xf]
    %v2533 = vld [vmem:[%s2515 + $0x44] sm:$0xf]
    %v2534 = vld [vmem:[%s2515 + $0x48] sm:$0xf]
    %v2535 = vld [vmem:[%s2515 + $0x4c] sm:$0xf]
    %v2536 = vld [vmem:[%s2515 + $0x50] sm:$0xf]
    %v2537 = vld [vmem:[%s2515 + $0x54] sm:$0xf]
    %v2538 = vld [vmem:[%s2515 + $0x58] sm:$0xf]
    %v2539 = vld [vmem:[%s2515 + $0x5c] sm:$0xf]
    %v2540 = vld [vmem:[%s2515 + $0x60] sm:$0xf]
    %v2541 = vld [vmem:[%s2515 + $0x64] sm:$0xf]
    %v2542 = vld [vmem:[%s2515 + $0x68] sm:$0xf]
    %v2543 = vld [vmem:[%s2515 + $0x6c] sm:$0xf]
    %v2544 = vld [vmem:[%s2515 + $0x70] sm:$0xf]
    %v2545 = vld [vmem:[%s2515 + $0x74] sm:$0xf]
    %v2546 = vld [vmem:[%s2515 + $0x78] sm:$0xf]
    %v2547 = vld [vmem:[%s2515 + $0x7c] sm:$0xf]
    %v2548 = vld [vmem:[%s2515 + $0x80] sm:$0xf]
    %v2549 = vld [vmem:[%s2515 + $0x84] sm:$0xf]
    %v2550 = vld [vmem:[%s2515 + $0x88] sm:$0xf]
    %v2551 = vld [vmem:[%s2515 + $0x8c] sm:$0xf]
    %v2552 = vld [vmem:[%s2515 + $0x90] sm:$0xf]
    %v2553 = vld [vmem:[%s2515 + $0x94] sm:$0xf]
    %v2554 = vld [vmem:[%s2515 + $0x98] sm:$0xf]
    %v2555 = vld [vmem:[%s2515 + $0x9c] sm:$0xf]
    %v2556 = vld [vmem:[%s2515 + $0xa0] sm:$0xf]
    %v2557 = vld [vmem:[%s2515 + $0xa4] sm:$0xf]
    %v2558 = vld [vmem:[%s2515 + $0xa8] sm:$0xf]
    %v2559 = vld [vmem:[%s2515 + $0xac] sm:$0xf]
    %v2560 = vld [vmem:[%s2515 + $0xb0] sm:$0xf]
    %v2561 = vld [vmem:[%s2515 + $0xb4] sm:$0xf]
    %v2562 = vld [vmem:[%s2515 + $0xb8] sm:$0xf]
    %v2563 = vld [vmem:[%s2515 + $0xbc] sm:$0xf]
    %v2564 = vld [vmem:[%s2515 + $0xc0] sm:$0xf]
    %v2565 = vld [vmem:[%s2515 + $0xc4] sm:$0xf]
    %v2566 = vld [vmem:[%s2515 + $0xc8] sm:$0xf]
    %v2567 = vld [vmem:[%s2515 + $0xcc] sm:$0xf]
    %v2568 = vld [vmem:[%s2515 + $0xd0] sm:$0xf]
    %v2569 = vld [vmem:[%s2515 + $0xd4] sm:$0xf]
    %v2570 = vld [vmem:[%s2515 + $0xd8] sm:$0xf]
    %v2571 = vld [vmem:[%s2515 + $0xdc] sm:$0xf]
    %v2572 = vld [vmem:[%s2515 + $0xe0] sm:$0xf]
    %v2573 = vld [vmem:[%s2515 + $0xe4] sm:$0xf]
    %v2574 = vld [vmem:[%s2515 + $0xe8] sm:$0xf]
    %v2575 = vld [vmem:[%s2515 + $0xec] sm:$0xf]
    %v2576 = vld [vmem:[%s2515 + $0xf0] sm:$0xf]
    %v2577 = vld [vmem:[%s2515 + $0xf4] sm:$0xf]
    %v2578 = vld [vmem:[%s2515 + $0xf8] sm:$0xf]
    %v2579 = vld [vmem:[%s2515 + $0xfc] sm:$0xf]
    %v2644 = vunpack.c.l.b16 %v2516
    %v2645 = vunpack.c.l.b16 %v2517
    %v2646 = vunpack.c.l.b16 %v2518
    %v2647 = vunpack.c.l.b16 %v2519
    %v2648 = vunpack.c.l.b16 %v2520
    %v2649 = vunpack.c.l.b16 %v2521
    %v2650 = vunpack.c.l.b16 %v2522
    %v2651 = vunpack.c.l.b16 %v2523
    %v2652 = vunpack.c.l.b16 %v2524
    %v2653 = vunpack.c.l.b16 %v2525
    %v2654 = vunpack.c.l.b16 %v2526
    %v2655 = vunpack.c.l.b16 %v2527
    %v2656 = vunpack.c.l.b16 %v2528
    %v2657 = vunpack.c.l.b16 %v2529
    %v2658 = vunpack.c.l.b16 %v2530
    %v2659 = vunpack.c.l.b16 %v2531
    %v2660 = vunpack.c.l.b16 %v2532
    %v2661 = vunpack.c.l.b16 %v2533
    %v2662 = vunpack.c.l.b16 %v2534
    %v2663 = vunpack.c.l.b16 %v2535
    %v2664 = vunpack.c.l.b16 %v2536
    %v2665 = vunpack.c.l.b16 %v2537
    %v2666 = vunpack.c.l.b16 %v2538
    %v2667 = vunpack.c.l.b16 %v2539
    %v2668 = vunpack.c.l.b16 %v2540
    %v2669 = vunpack.c.l.b16 %v2541
    %v2670 = vunpack.c.l.b16 %v2542
    %v2671 = vunpack.c.l.b16 %v2543
    %v2672 = vunpack.c.l.b16 %v2544
    %v2673 = vunpack.c.l.b16 %v2545
    %v2674 = vunpack.c.l.b16 %v2546
    %v2675 = vunpack.c.l.b16 %v2547
    %v2676 = vunpack.c.l.b16 %v2548
    %v2677 = vunpack.c.l.b16 %v2549
    %v2678 = vunpack.c.l.b16 %v2550
    %v2679 = vunpack.c.l.b16 %v2551
    %v2680 = vunpack.c.l.b16 %v2552
    %v2681 = vunpack.c.l.b16 %v2553
    %v2682 = vunpack.c.l.b16 %v2554
    %v2683 = vunpack.c.l.b16 %v2555
    %v2684 = vunpack.c.l.b16 %v2556
    %v2685 = vunpack.c.l.b16 %v2557
    %v2686 = vunpack.c.l.b16 %v2558
    %v2687 = vunpack.c.l.b16 %v2559
    %v2688 = vunpack.c.l.b16 %v2560
    %v2689 = vunpack.c.l.b16 %v2561
    %v2690 = vunpack.c.l.b16 %v2562
    %v2691 = vunpack.c.l.b16 %v2563
    %v2692 = vunpack.c.l.b16 %v2564
    %v2693 = vunpack.c.l.b16 %v2565
    %v2694 = vunpack.c.l.b16 %v2566
    %v2695 = vunpack.c.l.b16 %v2567
    %v2696 = vunpack.c.l.b16 %v2568
    %v2697 = vunpack.c.l.b16 %v2569
    %v2698 = vunpack.c.l.b16 %v2570
    %v2699 = vunpack.c.l.b16 %v2571
    %v2700 = vunpack.c.l.b16 %v2572
    %v2701 = vunpack.c.l.b16 %v2573
    %v2702 = vunpack.c.l.b16 %v2574
    %v2703 = vunpack.c.l.b16 %v2575
    %v2704 = vunpack.c.l.b16 %v2576
    %v2705 = vunpack.c.l.b16 %v2577
    %v2706 = vunpack.c.l.b16 %v2578
    %v2707 = vunpack.c.l.b16 %v2579
    %v2708 = vpack.c.b16 %v2645, %v2644
    %v2709 = vpack.c.b16 %v2647, %v2646
    %v2710 = vpack.c.b16 %v2649, %v2648
    %v2711 = vpack.c.b16 %v2651, %v2650
    %v2712 = vpack.c.b16 %v2653, %v2652
    %v2713 = vpack.c.b16 %v2655, %v2654
    %v2714 = vpack.c.b16 %v2657, %v2656
    %v2715 = vpack.c.b16 %v2659, %v2658
    %v2716 = vpack.c.b16 %v2661, %v2660
    %v2717 = vpack.c.b16 %v2663, %v2662
    %v2718 = vpack.c.b16 %v2665, %v2664
    %v2719 = vpack.c.b16 %v2667, %v2666
    %v2720 = vpack.c.b16 %v2669, %v2668
    %v2721 = vpack.c.b16 %v2671, %v2670
    %v2722 = vpack.c.b16 %v2673, %v2672
    %v2723 = vpack.c.b16 %v2675, %v2674
    %v2724 = vpack.c.b16 %v2677, %v2676
    %v2725 = vpack.c.b16 %v2679, %v2678
    %v2726 = vpack.c.b16 %v2681, %v2680
    %v2727 = vpack.c.b16 %v2683, %v2682
    %v2728 = vpack.c.b16 %v2685, %v2684
    %v2729 = vpack.c.b16 %v2687, %v2686
    %v2730 = vpack.c.b16 %v2689, %v2688
    %v2731 = vpack.c.b16 %v2691, %v2690
    %v2732 = vpack.c.b16 %v2693, %v2692
    %v2733 = vpack.c.b16 %v2695, %v2694
    %v2734 = vpack.c.b16 %v2697, %v2696
    %v2735 = vpack.c.b16 %v2699, %v2698
    %v2736 = vpack.c.b16 %v2701, %v2700
    %v2737 = vpack.c.b16 %v2703, %v2702
    %v2738 = vpack.c.b16 %v2705, %v2704
    %v2739 = vpack.c.b16 %v2707, %v2706
    %2772 = vmatprep.subr.bf16.mxu0 0
    %2773 = vmatpush1.bf16.msra.mxu0 %v2715
    %2774 = vmatprep.subr.bf16.mxu0 0
    %2775 = vmatpush1.bf16.msra.mxu0 %v2714
    %2776 = vmatprep.subr.bf16.mxu0 0
    %2777 = vmatpush1.bf16.msra.mxu0 %v2713
    %2778 = vmatprep.subr.bf16.mxu0 0
    %2779 = vmatpush1.bf16.msra.mxu0 %v2712
    %2780 = vmatprep.subr.bf16.mxu0 0
    %2781 = vmatpush1.bf16.msra.mxu0 %v2711
    %2782 = vmatprep.subr.bf16.mxu0 0
    %2783 = vmatpush1.bf16.msra.mxu0 %v2710
    %2784 = vmatprep.subr.bf16.mxu0 0
    %2785 = vmatpush1.bf16.msra.mxu0 %v2709
    %2786 = vmatprep.subr.bf16.mxu0 0
    %2787 = vmatpush1.bf16.msra.mxu0 %v2708
    %2788 = vmatprep.subr.bf16.mxu0 0
    %2789 = vmatpush2.bf16.msra.mxu0 %v2723
    %2790 = vmatprep.subr.bf16.mxu0 0
    %2791 = vmatpush2.bf16.msra.mxu0 %v2722
    %2792 = vmatprep.subr.bf16.mxu0 0
    %2793 = vmatpush2.bf16.msra.mxu0 %v2721
    %2794 = vmatprep.subr.bf16.mxu0 0
    %2795 = vmatpush2.bf16.msra.mxu0 %v2720
    %2796 = vmatprep.subr.bf16.mxu0 0
    %2797 = vmatpush2.bf16.msra.mxu0 %v2719
    %2798 = vmatprep.subr.bf16.mxu0 0
    %2799 = vmatpush2.bf16.msra.mxu0 %v2718
    %2800 = vmatprep.subr.bf16.mxu0 0
    %2801 = vmatpush2.bf16.msra.mxu0 %v2717
    %2802 = vmatprep.subr.bf16.mxu0 0
    %2803 = vmatpush2.bf16.msra.mxu0 %v2716
    %2804 = vmatprep.mubr.bf16.mxu0 %v250
    %2805 = vmatmul.mubr.bf16.gmra.mxu0 %v242
    %v2806 = vpop.f32.mrf.mxu0
    %v2807 = vadd.f32 0.0, %v2806
    %v2808 = vpop.f32.mrf.mxu0
    %v2809 = vpop.f32.mrf.mxu0
    %v2810 = vpop.f32.mrf.mxu0
    %2811 = vdwg.mxu0
    %2812 = vmatprep.subr.bf16.mxu0 0
    %2813 = vmatpush1.bf16.msra.mxu0 %v2731
    %2814 = vmatprep.subr.bf16.mxu0 0
    %2815 = vmatpush1.bf16.msra.mxu0 %v2730
    %2816 = vmatprep.subr.bf16.mxu0 0
    %2817 = vmatpush1.bf16.msra.mxu0 %v2729
    %2818 = vmatprep.subr.bf16.mxu0 0
    %2819 = vmatpush1.bf16.msra.mxu0 %v2728
    %2820 = vmatprep.subr.bf16.mxu0 0
    %2821 = vmatpush1.bf16.msra.mxu0 %v2727
    %2822 = vmatprep.subr.bf16.mxu0 0
    %2823 = vmatpush1.bf16.msra.mxu0 %v2726
    %2824 = vmatprep.subr.bf16.mxu0 0
    %2825 = vmatpush1.bf16.msra.mxu0 %v2725
    %2826 = vmatprep.subr.bf16.mxu0 0
    %2827 = vmatpush1.bf16.msra.mxu0 %v2724
    %2828 = vmatprep.subr.bf16.mxu0 0
    %2829 = vmatpush2.bf16.msra.mxu0 %v2739
    %2830 = vmatprep.subr.bf16.mxu0 0
    %2831 = vmatpush2.bf16.msra.mxu0 %v2738
    %2832 = vmatprep.subr.bf16.mxu0 0
    %2833 = vmatpush2.bf16.msra.mxu0 %v2737
    %2834 = vmatprep.subr.bf16.mxu0 0
    %2835 = vmatpush2.bf16.msra.mxu0 %v2736
    %2836 = vmatprep.subr.bf16.mxu0 0
    %2837 = vmatpush2.bf16.msra.mxu0 %v2735
    %2838 = vmatprep.subr.bf16.mxu0 0
    %2839 = vmatpush2.bf16.msra.mxu0 %v2734
    %2840 = vmatprep.subr.bf16.mxu0 0
    %2841 = vmatpush2.bf16.msra.mxu0 %v2733
    %2842 = vmatprep.subr.bf16.mxu0 0
    %2843 = vmatpush2.bf16.msra.mxu0 %v2732
    %2844 = vmatprep.mubr.bf16.mxu0 %v251
    %2845 = vmatmul.mubr.bf16.gmra.mxu0 %v249
    %v2846 = vpop.f32.mrf.mxu0
    %v2847 = vadd.f32 %v2807, %v2846
    %v2848 = vpop.f32.mrf.mxu0
    %v2849 = vpop.f32.mrf.mxu0
    %v2850 = vpop.f32.mrf.mxu0
    %2851 = vdwg.mxu0
    %s2852 = scalar_lea.vmem %s1, 24
    %v2853 = vld [vmem:[%s2852] sm:$0xf]
    %v2854 = vpack.c.bf16 %v2847, %v2847
    %v2856 = vsel %vm870, %v2853, 0
    %v2859 = vand.u32 %v2854, %v877
    %2861 = vmatprep.subr.bf16.mxu0 0
    %2862 = vmatpush1.bf16.msra.mxu0 0
    %2863 = vmatprep.subr.bf16.mxu0 0
    %2864 = vmatpush1.bf16.msra.mxu0 0
    %2865 = vmatprep.subr.bf16.mxu0 0
    %2866 = vmatpush1.bf16.msra.mxu0 0
    %2867 = vmatprep.subr.bf16.mxu0 0
    %2868 = vmatpush1.bf16.msra.mxu0 0
    %2869 = vmatprep.subr.bf16.mxu0 0
    %2870 = vmatpush1.bf16.msra.mxu0 0
    %2871 = vmatprep.subr.bf16.mxu0 0
    %2872 = vmatpush1.bf16.msra.mxu0 0
    %2873 = vmatprep.subr.bf16.mxu0 0
    %2874 = vmatpush1.bf16.msra.mxu0 0
    %2875 = vmatprep.subr.bf16.mxu0 0
    %2876 = vmatpush1.bf16.msra.mxu0 %v2859
    %2877 = vmatprep.subr.bf16.mxu0 0
    %2878 = vmatpush2.bf16.msra.mxu0 0
    %2879 = vmatprep.subr.bf16.mxu0 0
    %2880 = vmatpush2.bf16.msra.mxu0 0
    %2881 = vmatprep.subr.bf16.mxu0 0
    %2882 = vmatpush2.bf16.msra.mxu0 0
    %2883 = vmatprep.subr.bf16.mxu0 0
    %2884 = vmatpush2.bf16.msra.mxu0 0
    %2885 = vmatprep.subr.bf16.mxu0 0
    %2886 = vmatpush2.bf16.msra.mxu0 0
    %2887 = vmatprep.subr.bf16.mxu0 0
    %2888 = vmatpush2.bf16.msra.mxu0 0
    %2889 = vmatprep.subr.bf16.mxu0 0
    %2890 = vmatpush2.bf16.msra.mxu0 0
    %2891 = vmatprep.subr.bf16.mxu0 0
    %2892 = vmatpush2.bf16.msra.mxu0 0
    %2893 = vmatprep.mubr.bf16.mxu0 0
    %2894 = vmatmul.mubr.bf16.gmra.mxu0 %v2856
    %v2895 = vpop.f32.mrf.mxu0
    %v2896 = vadd.f32 0.0, %v2895
    %v2897 = vpop.f32.mrf.mxu0
    %v2898 = vpop.f32.mrf.mxu0
    %v2899 = vpop.f32.mrf.mxu0
    %2900 = vdwg.mxu0
    %v2901 = vadd.f32 %v2514, %v2896
    %s2902 = scalar_lea.vmem [#allocation4], 1792
    %v2903 = vld [vmem:[%s2902] sm:$0xf]
    %v2904 = vld [vmem:[%s2902 + $0x4] sm:$0xf]
    %v2905 = vld [vmem:[%s2902 + $0x8] sm:$0xf]
    %v2906 = vld [vmem:[%s2902 + $0xc] sm:$0xf]
    %v2907 = vld [vmem:[%s2902 + $0x10] sm:$0xf]
    %v2908 = vld [vmem:[%s2902 + $0x14] sm:$0xf]
    %v2909 = vld [vmem:[%s2902 + $0x18] sm:$0xf]
    %v2910 = vld [vmem:[%s2902 + $0x1c] sm:$0xf]
    %v2911 = vld [vmem:[%s2902 + $0x20] sm:$0xf]
    %v2912 = vld [vmem:[%s2902 + $0x24] sm:$0xf]
    %v2913 = vld [vmem:[%s2902 + $0x28] sm:$0xf]
    %v2914 = vld [vmem:[%s2902 + $0x2c] sm:$0xf]
    %v2915 = vld [vmem:[%s2902 + $0x30] sm:$0xf]
    %v2916 = vld [vmem:[%s2902 + $0x34] sm:$0xf]
    %v2917 = vld [vmem:[%s2902 + $0x38] sm:$0xf]
    %v2918 = vld [vmem:[%s2902 + $0x3c] sm:$0xf]
    %v2919 = vld [vmem:[%s2902 + $0x40] sm:$0xf]
    %v2920 = vld [vmem:[%s2902 + $0x44] sm:$0xf]
    %v2921 = vld [vmem:[%s2902 + $0x48] sm:$0xf]
    %v2922 = vld [vmem:[%s2902 + $0x4c] sm:$0xf]
    %v2923 = vld [vmem:[%s2902 + $0x50] sm:$0xf]
    %v2924 = vld [vmem:[%s2902 + $0x54] sm:$0xf]
    %v2925 = vld [vmem:[%s2902 + $0x58] sm:$0xf]
    %v2926 = vld [vmem:[%s2902 + $0x5c] sm:$0xf]
    %v2927 = vld [vmem:[%s2902 + $0x60] sm:$0xf]
    %v2928 = vld [vmem:[%s2902 + $0x64] sm:$0xf]
    %v2929 = vld [vmem:[%s2902 + $0x68] sm:$0xf]
    %v2930 = vld [vmem:[%s2902 + $0x6c] sm:$0xf]
    %v2931 = vld [vmem:[%s2902 + $0x70] sm:$0xf]
    %v2932 = vld [vmem:[%s2902 + $0x74] sm:$0xf]
    %v2933 = vld [vmem:[%s2902 + $0x78] sm:$0xf]
    %v2934 = vld [vmem:[%s2902 + $0x7c] sm:$0xf]
    %v2935 = vld [vmem:[%s2902 + $0x80] sm:$0xf]
    %v2936 = vld [vmem:[%s2902 + $0x84] sm:$0xf]
    %v2937 = vld [vmem:[%s2902 + $0x88] sm:$0xf]
    %v2938 = vld [vmem:[%s2902 + $0x8c] sm:$0xf]
    %v2939 = vld [vmem:[%s2902 + $0x90] sm:$0xf]
    %v2940 = vld [vmem:[%s2902 + $0x94] sm:$0xf]
    %v2941 = vld [vmem:[%s2902 + $0x98] sm:$0xf]
    %v2942 = vld [vmem:[%s2902 + $0x9c] sm:$0xf]
    %v2943 = vld [vmem:[%s2902 + $0xa0] sm:$0xf]
    %v2944 = vld [vmem:[%s2902 + $0xa4] sm:$0xf]
    %v2945 = vld [vmem:[%s2902 + $0xa8] sm:$0xf]
    %v2946 = vld [vmem:[%s2902 + $0xac] sm:$0xf]
    %v2947 = vld [vmem:[%s2902 + $0xb0] sm:$0xf]
    %v2948 = vld [vmem:[%s2902 + $0xb4] sm:$0xf]
    %v2949 = vld [vmem:[%s2902 + $0xb8] sm:$0xf]
    %v2950 = vld [vmem:[%s2902 + $0xbc] sm:$0xf]
    %v2951 = vld [vmem:[%s2902 + $0xc0] sm:$0xf]
    %v2952 = vld [vmem:[%s2902 + $0xc4] sm:$0xf]
    %v2953 = vld [vmem:[%s2902 + $0xc8] sm:$0xf]
    %v2954 = vld [vmem:[%s2902 + $0xcc] sm:$0xf]
    %v2955 = vld [vmem:[%s2902 + $0xd0] sm:$0xf]
    %v2956 = vld [vmem:[%s2902 + $0xd4] sm:$0xf]
    %v2957 = vld [vmem:[%s2902 + $0xd8] sm:$0xf]
    %v2958 = vld [vmem:[%s2902 + $0xdc] sm:$0xf]
    %v2959 = vld [vmem:[%s2902 + $0xe0] sm:$0xf]
    %v2960 = vld [vmem:[%s2902 + $0xe4] sm:$0xf]
    %v2961 = vld [vmem:[%s2902 + $0xe8] sm:$0xf]
    %v2962 = vld [vmem:[%s2902 + $0xec] sm:$0xf]
    %v2963 = vld [vmem:[%s2902 + $0xf0] sm:$0xf]
    %v2964 = vld [vmem:[%s2902 + $0xf4] sm:$0xf]
    %v2965 = vld [vmem:[%s2902 + $0xf8] sm:$0xf]
    %v2966 = vld [vmem:[%s2902 + $0xfc] sm:$0xf]
    %v3031 = vunpack.c.l.b16 %v2903
    %v3032 = vunpack.c.l.b16 %v2904
    %v3033 = vunpack.c.l.b16 %v2905
    %v3034 = vunpack.c.l.b16 %v2906
    %v3035 = vunpack.c.l.b16 %v2907
    %v3036 = vunpack.c.l.b16 %v2908
    %v3037 = vunpack.c.l.b16 %v2909
    %v3038 = vunpack.c.l.b16 %v2910
    %v3039 = vunpack.c.l.b16 %v2911
    %v3040 = vunpack.c.l.b16 %v2912
    %v3041 = vunpack.c.l.b16 %v2913
    %v3042 = vunpack.c.l.b16 %v2914
    %v3043 = vunpack.c.l.b16 %v2915
    %v3044 = vunpack.c.l.b16 %v2916
    %v3045 = vunpack.c.l.b16 %v2917
    %v3046 = vunpack.c.l.b16 %v2918
    %v3047 = vunpack.c.l.b16 %v2919
    %v3048 = vunpack.c.l.b16 %v2920
    %v3049 = vunpack.c.l.b16 %v2921
    %v3050 = vunpack.c.l.b16 %v2922
    %v3051 = vunpack.c.l.b16 %v2923
    %v3052 = vunpack.c.l.b16 %v2924
    %v3053 = vunpack.c.l.b16 %v2925
    %v3054 = vunpack.c.l.b16 %v2926
    %v3055 = vunpack.c.l.b16 %v2927
    %v3056 = vunpack.c.l.b16 %v2928
    %v3057 = vunpack.c.l.b16 %v2929
    %v3058 = vunpack.c.l.b16 %v2930
    %v3059 = vunpack.c.l.b16 %v2931
    %v3060 = vunpack.c.l.b16 %v2932
    %v3061 = vunpack.c.l.b16 %v2933
    %v3062 = vunpack.c.l.b16 %v2934
    %v3063 = vunpack.c.l.b16 %v2935
    %v3064 = vunpack.c.l.b16 %v2936
    %v3065 = vunpack.c.l.b16 %v2937
    %v3066 = vunpack.c.l.b16 %v2938
    %v3067 = vunpack.c.l.b16 %v2939
    %v3068 = vunpack.c.l.b16 %v2940
    %v3069 = vunpack.c.l.b16 %v2941
    %v3070 = vunpack.c.l.b16 %v2942
    %v3071 = vunpack.c.l.b16 %v2943
    %v3072 = vunpack.c.l.b16 %v2944
    %v3073 = vunpack.c.l.b16 %v2945
    %v3074 = vunpack.c.l.b16 %v2946
    %v3075 = vunpack.c.l.b16 %v2947
    %v3076 = vunpack.c.l.b16 %v2948
    %v3077 = vunpack.c.l.b16 %v2949
    %v3078 = vunpack.c.l.b16 %v2950
    %v3079 = vunpack.c.l.b16 %v2951
    %v3080 = vunpack.c.l.b16 %v2952
    %v3081 = vunpack.c.l.b16 %v2953
    %v3082 = vunpack.c.l.b16 %v2954
    %v3083 = vunpack.c.l.b16 %v2955
    %v3084 = vunpack.c.l.b16 %v2956
    %v3085 = vunpack.c.l.b16 %v2957
    %v3086 = vunpack.c.l.b16 %v2958
    %v3087 = vunpack.c.l.b16 %v2959
    %v3088 = vunpack.c.l.b16 %v2960
    %v3089 = vunpack.c.l.b16 %v2961
    %v3090 = vunpack.c.l.b16 %v2962
    %v3091 = vunpack.c.l.b16 %v2963
    %v3092 = vunpack.c.l.b16 %v2964
    %v3093 = vunpack.c.l.b16 %v2965
    %v3094 = vunpack.c.l.b16 %v2966
    %v3095 = vpack.c.b16 %v3032, %v3031
    %v3096 = vpack.c.b16 %v3034, %v3033
    %v3097 = vpack.c.b16 %v3036, %v3035
    %v3098 = vpack.c.b16 %v3038, %v3037
    %v3099 = vpack.c.b16 %v3040, %v3039
    %v3100 = vpack.c.b16 %v3042, %v3041
    %v3101 = vpack.c.b16 %v3044, %v3043
    %v3102 = vpack.c.b16 %v3046, %v3045
    %v3103 = vpack.c.b16 %v3048, %v3047
    %v3104 = vpack.c.b16 %v3050, %v3049
    %v3105 = vpack.c.b16 %v3052, %v3051
    %v3106 = vpack.c.b16 %v3054, %v3053
    %v3107 = vpack.c.b16 %v3056, %v3055
    %v3108 = vpack.c.b16 %v3058, %v3057
    %v3109 = vpack.c.b16 %v3060, %v3059
    %v3110 = vpack.c.b16 %v3062, %v3061
    %v3111 = vpack.c.b16 %v3064, %v3063
    %v3112 = vpack.c.b16 %v3066, %v3065
    %v3113 = vpack.c.b16 %v3068, %v3067
    %v3114 = vpack.c.b16 %v3070, %v3069
    %v3115 = vpack.c.b16 %v3072, %v3071
    %v3116 = vpack.c.b16 %v3074, %v3073
    %v3117 = vpack.c.b16 %v3076, %v3075
    %v3118 = vpack.c.b16 %v3078, %v3077
    %v3119 = vpack.c.b16 %v3080, %v3079
    %v3120 = vpack.c.b16 %v3082, %v3081
    %v3121 = vpack.c.b16 %v3084, %v3083
    %v3122 = vpack.c.b16 %v3086, %v3085
    %v3123 = vpack.c.b16 %v3088, %v3087
    %v3124 = vpack.c.b16 %v3090, %v3089
    %v3125 = vpack.c.b16 %v3092, %v3091
    %v3126 = vpack.c.b16 %v3094, %v3093
    %3159 = vmatprep.subr.bf16.mxu0 0
    %3160 = vmatpush1.bf16.msra.mxu0 %v3102
    %3161 = vmatprep.subr.bf16.mxu0 0
    %3162 = vmatpush1.bf16.msra.mxu0 %v3101
    %3163 = vmatprep.subr.bf16.mxu0 0
    %3164 = vmatpush1.bf16.msra.mxu0 %v3100
    %3165 = vmatprep.subr.bf16.mxu0 0
    %3166 = vmatpush1.bf16.msra.mxu0 %v3099
    %3167 = vmatprep.subr.bf16.mxu0 0
    %3168 = vmatpush1.bf16.msra.mxu0 %v3098
    %3169 = vmatprep.subr.bf16.mxu0 0
    %3170 = vmatpush1.bf16.msra.mxu0 %v3097
    %3171 = vmatprep.subr.bf16.mxu0 0
    %3172 = vmatpush1.bf16.msra.mxu0 %v3096
    %3173 = vmatprep.subr.bf16.mxu0 0
    %3174 = vmatpush1.bf16.msra.mxu0 %v3095
    %3175 = vmatprep.subr.bf16.mxu0 0
    %3176 = vmatpush2.bf16.msra.mxu0 %v3110
    %3177 = vmatprep.subr.bf16.mxu0 0
    %3178 = vmatpush2.bf16.msra.mxu0 %v3109
    %3179 = vmatprep.subr.bf16.mxu0 0
    %3180 = vmatpush2.bf16.msra.mxu0 %v3108
    %3181 = vmatprep.subr.bf16.mxu0 0
    %3182 = vmatpush2.bf16.msra.mxu0 %v3107
    %3183 = vmatprep.subr.bf16.mxu0 0
    %3184 = vmatpush2.bf16.msra.mxu0 %v3106
    %3185 = vmatprep.subr.bf16.mxu0 0
    %3186 = vmatpush2.bf16.msra.mxu0 %v3105
    %3187 = vmatprep.subr.bf16.mxu0 0
    %3188 = vmatpush2.bf16.msra.mxu0 %v3104
    %3189 = vmatprep.subr.bf16.mxu0 0
    %3190 = vmatpush2.bf16.msra.mxu0 %v3103
    %3191 = vmatprep.mubr.bf16.mxu0 %v250
    %3192 = vmatmul.mubr.bf16.gmra.mxu0 %v242
    %v3193 = vpop.f32.mrf.mxu0
    %v3194 = vadd.f32 0.0, %v3193
    %v3195 = vpop.f32.mrf.mxu0
    %v3196 = vpop.f32.mrf.mxu0
    %v3197 = vpop.f32.mrf.mxu0
    %3198 = vdwg.mxu0
    %3199 = vmatprep.subr.bf16.mxu0 0
    %3200 = vmatpush1.bf16.msra.mxu0 %v3118
    %3201 = vmatprep.subr.bf16.mxu0 0
    %3202 = vmatpush1.bf16.msra.mxu0 %v3117
    %3203 = vmatprep.subr.bf16.mxu0 0
    %3204 = vmatpush1.bf16.msra.mxu0 %v3116
    %3205 = vmatprep.subr.bf16.mxu0 0
    %3206 = vmatpush1.bf16.msra.mxu0 %v3115
    %3207 = vmatprep.subr.bf16.mxu0 0
    %3208 = vmatpush1.bf16.msra.mxu0 %v3114
    %3209 = vmatprep.subr.bf16.mxu0 0
    %3210 = vmatpush1.bf16.msra.mxu0 %v3113
    %3211 = vmatprep.subr.bf16.mxu0 0
    %3212 = vmatpush1.bf16.msra.mxu0 %v3112
    %3213 = vmatprep.subr.bf16.mxu0 0
    %3214 = vmatpush1.bf16.msra.mxu0 %v3111
    %3215 = vmatprep.subr.bf16.mxu0 0
    %3216 = vmatpush2.bf16.msra.mxu0 %v3126
    %3217 = vmatprep.subr.bf16.mxu0 0
    %3218 = vmatpush2.bf16.msra.mxu0 %v3125
    %3219 = vmatprep.subr.bf16.mxu0 0
    %3220 = vmatpush2.bf16.msra.mxu0 %v3124
    %3221 = vmatprep.subr.bf16.mxu0 0
    %3222 = vmatpush2.bf16.msra.mxu0 %v3123
    %3223 = vmatprep.subr.bf16.mxu0 0
    %3224 = vmatpush2.bf16.msra.mxu0 %v3122
    %3225 = vmatprep.subr.bf16.mxu0 0
    %3226 = vmatpush2.bf16.msra.mxu0 %v3121
    %3227 = vmatprep.subr.bf16.mxu0 0
    %3228 = vmatpush2.bf16.msra.mxu0 %v3120
    %3229 = vmatprep.subr.bf16.mxu0 0
    %3230 = vmatpush2.bf16.msra.mxu0 %v3119
    %3231 = vmatprep.mubr.bf16.mxu0 %v251
    %3232 = vmatmul.mubr.bf16.gmra.mxu0 %v249
    %v3233 = vpop.f32.mrf.mxu0
    %v3234 = vadd.f32 %v3194, %v3233
    %v3235 = vpop.f32.mrf.mxu0
    %v3236 = vpop.f32.mrf.mxu0
    %v3237 = vpop.f32.mrf.mxu0
    %3238 = vdwg.mxu0
    %s3239 = scalar_lea.vmem %s1, 28
    %v3240 = vld [vmem:[%s3239] sm:$0xf]
    %v3241 = vpack.c.bf16 %v3234, %v3234
    %v3243 = vsel %vm870, %v3240, 0
    %v3246 = vand.u32 %v3241, %v877
    %3248 = vmatprep.subr.bf16.mxu0 0
    %3249 = vmatpush1.bf16.msra.mxu0 0
    %3250 = vmatprep.subr.bf16.mxu0 0
    %3251 = vmatpush1.bf16.msra.mxu0 0
    %3252 = vmatprep.subr.bf16.mxu0 0
    %3253 = vmatpush1.bf16.msra.mxu0 0
    %3254 = vmatprep.subr.bf16.mxu0 0
    %3255 = vmatpush1.bf16.msra.mxu0 0
    %3256 = vmatprep.subr.bf16.mxu0 0
    %3257 = vmatpush1.bf16.msra.mxu0 0
    %3258 = vmatprep.subr.bf16.mxu0 0
    %3259 = vmatpush1.bf16.msra.mxu0 0
    %3260 = vmatprep.subr.bf16.mxu0 0
    %3261 = vmatpush1.bf16.msra.mxu0 0
    %3262 = vmatprep.subr.bf16.mxu0 0
    %3263 = vmatpush1.bf16.msra.mxu0 %v3246
    %3264 = vmatprep.subr.bf16.mxu0 0
    %3265 = vmatpush2.bf16.msra.mxu0 0
    %3266 = vmatprep.subr.bf16.mxu0 0
    %3267 = vmatpush2.bf16.msra.mxu0 0
    %3268 = vmatprep.subr.bf16.mxu0 0
    %3269 = vmatpush2.bf16.msra.mxu0 0
    %3270 = vmatprep.subr.bf16.mxu0 0
    %3271 = vmatpush2.bf16.msra.mxu0 0
    %3272 = vmatprep.subr.bf16.mxu0 0
    %3273 = vmatpush2.bf16.msra.mxu0 0
    %3274 = vmatprep.subr.bf16.mxu0 0
    %3275 = vmatpush2.bf16.msra.mxu0 0
    %3276 = vmatprep.subr.bf16.mxu0 0
    %3277 = vmatpush2.bf16.msra.mxu0 0
    %3278 = vmatprep.subr.bf16.mxu0 0
    %3279 = vmatpush2.bf16.msra.mxu0 0
    %3280 = vmatprep.mubr.bf16.mxu0 0
    %3281 = vmatmul.mubr.bf16.gmra.mxu0 %v3243
    %v3282 = vpop.f32.mrf.mxu0
    %v3283 = vadd.f32 0.0, %v3282
    %v3284 = vpop.f32.mrf.mxu0
    %v3285 = vpop.f32.mrf.mxu0
    %v3286 = vpop.f32.mrf.mxu0
    %3287 = vdwg.mxu0
    %v3288 = vadd.f32 %v2901, %v3283
    %s3289 = scalar_lea.vmem [#allocation4], 2048
    %v3290 = vld [vmem:[%s3289] sm:$0xf]
    %v3291 = vld [vmem:[%s3289 + $0x4] sm:$0xf]
    %v3292 = vld [vmem:[%s3289 + $0x8] sm:$0xf]
    %v3293 = vld [vmem:[%s3289 + $0xc] sm:$0xf]
    %v3294 = vld [vmem:[%s3289 + $0x10] sm:$0xf]
    %v3295 = vld [vmem:[%s3289 + $0x14] sm:$0xf]
    %v3296 = vld [vmem:[%s3289 + $0x18] sm:$0xf]
    %v3297 = vld [vmem:[%s3289 + $0x1c] sm:$0xf]
    %v3298 = vld [vmem:[%s3289 + $0x20] sm:$0xf]
    %v3299 = vld [vmem:[%s3289 + $0x24] sm:$0xf]
    %v3300 = vld [vmem:[%s3289 + $0x28] sm:$0xf]
    %v3301 = vld [vmem:[%s3289 + $0x2c] sm:$0xf]
    %v3302 = vld [vmem:[%s3289 + $0x30] sm:$0xf]
    %v3303 = vld [vmem:[%s3289 + $0x34] sm:$0xf]
    %v3304 = vld [vmem:[%s3289 + $0x38] sm:$0xf]
    %v3305 = vld [vmem:[%s3289 + $0x3c] sm:$0xf]
    %v3306 = vld [vmem:[%s3289 + $0x40] sm:$0xf]
    %v3307 = vld [vmem:[%s3289 + $0x44] sm:$0xf]
    %v3308 = vld [vmem:[%s3289 + $0x48] sm:$0xf]
    %v3309 = vld [vmem:[%s3289 + $0x4c] sm:$0xf]
    %v3310 = vld [vmem:[%s3289 + $0x50] sm:$0xf]
    %v3311 = vld [vmem:[%s3289 + $0x54] sm:$0xf]
    %v3312 = vld [vmem:[%s3289 + $0x58] sm:$0xf]
    %v3313 = vld [vmem:[%s3289 + $0x5c] sm:$0xf]
    %v3314 = vld [vmem:[%s3289 + $0x60] sm:$0xf]
    %v3315 = vld [vmem:[%s3289 + $0x64] sm:$0xf]
    %v3316 = vld [vmem:[%s3289 + $0x68] sm:$0xf]
    %v3317 = vld [vmem:[%s3289 + $0x6c] sm:$0xf]
    %v3318 = vld [vmem:[%s3289 + $0x70] sm:$0xf]
    %v3319 = vld [vmem:[%s3289 + $0x74] sm:$0xf]
    %v3320 = vld [vmem:[%s3289 + $0x78] sm:$0xf]
    %v3321 = vld [vmem:[%s3289 + $0x7c] sm:$0xf]
    %v3322 = vld [vmem:[%s3289 + $0x80] sm:$0xf]
    %v3323 = vld [vmem:[%s3289 + $0x84] sm:$0xf]
    %v3324 = vld [vmem:[%s3289 + $0x88] sm:$0xf]
    %v3325 = vld [vmem:[%s3289 + $0x8c] sm:$0xf]
    %v3326 = vld [vmem:[%s3289 + $0x90] sm:$0xf]
    %v3327 = vld [vmem:[%s3289 + $0x94] sm:$0xf]
    %v3328 = vld [vmem:[%s3289 + $0x98] sm:$0xf]
    %v3329 = vld [vmem:[%s3289 + $0x9c] sm:$0xf]
    %v3330 = vld [vmem:[%s3289 + $0xa0] sm:$0xf]
    %v3331 = vld [vmem:[%s3289 + $0xa4] sm:$0xf]
    %v3332 = vld [vmem:[%s3289 + $0xa8] sm:$0xf]
    %v3333 = vld [vmem:[%s3289 + $0xac] sm:$0xf]
    %v3334 = vld [vmem:[%s3289 + $0xb0] sm:$0xf]
    %v3335 = vld [vmem:[%s3289 + $0xb4] sm:$0xf]
    %v3336 = vld [vmem:[%s3289 + $0xb8] sm:$0xf]
    %v3337 = vld [vmem:[%s3289 + $0xbc] sm:$0xf]
    %v3338 = vld [vmem:[%s3289 + $0xc0] sm:$0xf]
    %v3339 = vld [vmem:[%s3289 + $0xc4] sm:$0xf]
    %v3340 = vld [vmem:[%s3289 + $0xc8] sm:$0xf]
    %v3341 = vld [vmem:[%s3289 + $0xcc] sm:$0xf]
    %v3342 = vld [vmem:[%s3289 + $0xd0] sm:$0xf]
    %v3343 = vld [vmem:[%s3289 + $0xd4] sm:$0xf]
    %v3344 = vld [vmem:[%s3289 + $0xd8] sm:$0xf]
    %v3345 = vld [vmem:[%s3289 + $0xdc] sm:$0xf]
    %v3346 = vld [vmem:[%s3289 + $0xe0] sm:$0xf]
    %v3347 = vld [vmem:[%s3289 + $0xe4] sm:$0xf]
    %v3348 = vld [vmem:[%s3289 + $0xe8] sm:$0xf]
    %v3349 = vld [vmem:[%s3289 + $0xec] sm:$0xf]
    %v3350 = vld [vmem:[%s3289 + $0xf0] sm:$0xf]
    %v3351 = vld [vmem:[%s3289 + $0xf4] sm:$0xf]
    %v3352 = vld [vmem:[%s3289 + $0xf8] sm:$0xf]
    %v3353 = vld [vmem:[%s3289 + $0xfc] sm:$0xf]
    %v3418 = vunpack.c.l.b16 %v3290
    %v3419 = vunpack.c.l.b16 %v3291
    %v3420 = vunpack.c.l.b16 %v3292
    %v3421 = vunpack.c.l.b16 %v3293
    %v3422 = vunpack.c.l.b16 %v3294
    %v3423 = vunpack.c.l.b16 %v3295
    %v3424 = vunpack.c.l.b16 %v3296
    %v3425 = vunpack.c.l.b16 %v3297
    %v3426 = vunpack.c.l.b16 %v3298
    %v3427 = vunpack.c.l.b16 %v3299
    %v3428 = vunpack.c.l.b16 %v3300
    %v3429 = vunpack.c.l.b16 %v3301
    %v3430 = vunpack.c.l.b16 %v3302
    %v3431 = vunpack.c.l.b16 %v3303
    %v3432 = vunpack.c.l.b16 %v3304
    %v3433 = vunpack.c.l.b16 %v3305
    %v3434 = vunpack.c.l.b16 %v3306
    %v3435 = vunpack.c.l.b16 %v3307
    %v3436 = vunpack.c.l.b16 %v3308
    %v3437 = vunpack.c.l.b16 %v3309
    %v3438 = vunpack.c.l.b16 %v3310
    %v3439 = vunpack.c.l.b16 %v3311
    %v3440 = vunpack.c.l.b16 %v3312
    %v3441 = vunpack.c.l.b16 %v3313
    %v3442 = vunpack.c.l.b16 %v3314
    %v3443 = vunpack.c.l.b16 %v3315
    %v3444 = vunpack.c.l.b16 %v3316
    %v3445 = vunpack.c.l.b16 %v3317
    %v3446 = vunpack.c.l.b16 %v3318
    %v3447 = vunpack.c.l.b16 %v3319
    %v3448 = vunpack.c.l.b16 %v3320
    %v3449 = vunpack.c.l.b16 %v3321
    %v3450 = vunpack.c.l.b16 %v3322
    %v3451 = vunpack.c.l.b16 %v3323
    %v3452 = vunpack.c.l.b16 %v3324
    %v3453 = vunpack.c.l.b16 %v3325
    %v3454 = vunpack.c.l.b16 %v3326
    %v3455 = vunpack.c.l.b16 %v3327
    %v3456 = vunpack.c.l.b16 %v3328
    %v3457 = vunpack.c.l.b16 %v3329
    %v3458 = vunpack.c.l.b16 %v3330
    %v3459 = vunpack.c.l.b16 %v3331
    %v3460 = vunpack.c.l.b16 %v3332
    %v3461 = vunpack.c.l.b16 %v3333
    %v3462 = vunpack.c.l.b16 %v3334
    %v3463 = vunpack.c.l.b16 %v3335
    %v3464 = vunpack.c.l.b16 %v3336
    %v3465 = vunpack.c.l.b16 %v3337
    %v3466 = vunpack.c.l.b16 %v3338
    %v3467 = vunpack.c.l.b16 %v3339
    %v3468 = vunpack.c.l.b16 %v3340
    %v3469 = vunpack.c.l.b16 %v3341
    %v3470 = vunpack.c.l.b16 %v3342
    %v3471 = vunpack.c.l.b16 %v3343
    %v3472 = vunpack.c.l.b16 %v3344
    %v3473 = vunpack.c.l.b16 %v3345
    %v3474 = vunpack.c.l.b16 %v3346
    %v3475 = vunpack.c.l.b16 %v3347
    %v3476 = vunpack.c.l.b16 %v3348
    %v3477 = vunpack.c.l.b16 %v3349
    %v3478 = vunpack.c.l.b16 %v3350
    %v3479 = vunpack.c.l.b16 %v3351
    %v3480 = vunpack.c.l.b16 %v3352
    %v3481 = vunpack.c.l.b16 %v3353
    %v3482 = vpack.c.b16 %v3419, %v3418
    %v3483 = vpack.c.b16 %v3421, %v3420
    %v3484 = vpack.c.b16 %v3423, %v3422
    %v3485 = vpack.c.b16 %v3425, %v3424
    %v3486 = vpack.c.b16 %v3427, %v3426
    %v3487 = vpack.c.b16 %v3429, %v3428
    %v3488 = vpack.c.b16 %v3431, %v3430
    %v3489 = vpack.c.b16 %v3433, %v3432
    %v3490 = vpack.c.b16 %v3435, %v3434
    %v3491 = vpack.c.b16 %v3437, %v3436
    %v3492 = vpack.c.b16 %v3439, %v3438
    %v3493 = vpack.c.b16 %v3441, %v3440
    %v3494 = vpack.c.b16 %v3443, %v3442
    %v3495 = vpack.c.b16 %v3445, %v3444
    %v3496 = vpack.c.b16 %v3447, %v3446
    %v3497 = vpack.c.b16 %v3449, %v3448
    %v3498 = vpack.c.b16 %v3451, %v3450
    %v3499 = vpack.c.b16 %v3453, %v3452
    %v3500 = vpack.c.b16 %v3455, %v3454
    %v3501 = vpack.c.b16 %v3457, %v3456
    %v3502 = vpack.c.b16 %v3459, %v3458
    %v3503 = vpack.c.b16 %v3461, %v3460
    %v3504 = vpack.c.b16 %v3463, %v3462
    %v3505 = vpack.c.b16 %v3465, %v3464
    %v3506 = vpack.c.b16 %v3467, %v3466
    %v3507 = vpack.c.b16 %v3469, %v3468
    %v3508 = vpack.c.b16 %v3471, %v3470
    %v3509 = vpack.c.b16 %v3473, %v3472
    %v3510 = vpack.c.b16 %v3475, %v3474
    %v3511 = vpack.c.b16 %v3477, %v3476
    %v3512 = vpack.c.b16 %v3479, %v3478
    %v3513 = vpack.c.b16 %v3481, %v3480
    %3546 = vmatprep.subr.bf16.mxu0 0
    %3547 = vmatpush1.bf16.msra.mxu0 %v3489
    %3548 = vmatprep.subr.bf16.mxu0 0
    %3549 = vmatpush1.bf16.msra.mxu0 %v3488
    %3550 = vmatprep.subr.bf16.mxu0 0
    %3551 = vmatpush1.bf16.msra.mxu0 %v3487
    %3552 = vmatprep.subr.bf16.mxu0 0
    %3553 = vmatpush1.bf16.msra.mxu0 %v3486
    %3554 = vmatprep.subr.bf16.mxu0 0
    %3555 = vmatpush1.bf16.msra.mxu0 %v3485
    %3556 = vmatprep.subr.bf16.mxu0 0
    %3557 = vmatpush1.bf16.msra.mxu0 %v3484
    %3558 = vmatprep.subr.bf16.mxu0 0
    %3559 = vmatpush1.bf16.msra.mxu0 %v3483
    %3560 = vmatprep.subr.bf16.mxu0 0
    %3561 = vmatpush1.bf16.msra.mxu0 %v3482
    %3562 = vmatprep.subr.bf16.mxu0 0
    %3563 = vmatpush2.bf16.msra.mxu0 %v3497
    %3564 = vmatprep.subr.bf16.mxu0 0
    %3565 = vmatpush2.bf16.msra.mxu0 %v3496
    %3566 = vmatprep.subr.bf16.mxu0 0
    %3567 = vmatpush2.bf16.msra.mxu0 %v3495
    %3568 = vmatprep.subr.bf16.mxu0 0
    %3569 = vmatpush2.bf16.msra.mxu0 %v3494
    %3570 = vmatprep.subr.bf16.mxu0 0
    %3571 = vmatpush2.bf16.msra.mxu0 %v3493
    %3572 = vmatprep.subr.bf16.mxu0 0
    %3573 = vmatpush2.bf16.msra.mxu0 %v3492
    %3574 = vmatprep.subr.bf16.mxu0 0
    %3575 = vmatpush2.bf16.msra.mxu0 %v3491
    %3576 = vmatprep.subr.bf16.mxu0 0
    %3577 = vmatpush2.bf16.msra.mxu0 %v3490
    %3578 = vmatprep.mubr.bf16.mxu0 %v250
    %3579 = vmatmul.mubr.bf16.gmra.mxu0 %v242
    %v3580 = vpop.f32.mrf.mxu0
    %v3581 = vadd.f32 0.0, %v3580
    %v3582 = vpop.f32.mrf.mxu0
    %v3583 = vpop.f32.mrf.mxu0
    %v3584 = vpop.f32.mrf.mxu0
    %3585 = vdwg.mxu0
    %3586 = vmatprep.subr.bf16.mxu0 0
    %3587 = vmatpush1.bf16.msra.mxu0 %v3505
    %3588 = vmatprep.subr.bf16.mxu0 0
    %3589 = vmatpush1.bf16.msra.mxu0 %v3504
    %3590 = vmatprep.subr.bf16.mxu0 0
    %3591 = vmatpush1.bf16.msra.mxu0 %v3503
    %3592 = vmatprep.subr.bf16.mxu0 0
    %3593 = vmatpush1.bf16.msra.mxu0 %v3502
    %3594 = vmatprep.subr.bf16.mxu0 0
    %3595 = vmatpush1.bf16.msra.mxu0 %v3501
    %3596 = vmatprep.subr.bf16.mxu0 0
    %3597 = vmatpush1.bf16.msra.mxu0 %v3500
    %3598 = vmatprep.subr.bf16.mxu0 0
    %3599 = vmatpush1.bf16.msra.mxu0 %v3499
    %3600 = vmatprep.subr.bf16.mxu0 0
    %3601 = vmatpush1.bf16.msra.mxu0 %v3498
    %3602 = vmatprep.subr.bf16.mxu0 0
    %3603 = vmatpush2.bf16.msra.mxu0 %v3513
    %3604 = vmatprep.subr.bf16.mxu0 0
    %3605 = vmatpush2.bf16.msra.mxu0 %v3512
    %3606 = vmatprep.subr.bf16.mxu0 0
    %3607 = vmatpush2.bf16.msra.mxu0 %v3511
    %3608 = vmatprep.subr.bf16.mxu0 0
    %3609 = vmatpush2.bf16.msra.mxu0 %v3510
    %3610 = vmatprep.subr.bf16.mxu0 0
    %3611 = vmatpush2.bf16.msra.mxu0 %v3509
    %3612 = vmatprep.subr.bf16.mxu0 0
    %3613 = vmatpush2.bf16.msra.mxu0 %v3508
    %3614 = vmatprep.subr.bf16.mxu0 0
    %3615 = vmatpush2.bf16.msra.mxu0 %v3507
    %3616 = vmatprep.subr.bf16.mxu0 0
    %3617 = vmatpush2.bf16.msra.mxu0 %v3506
    %3618 = vmatprep.mubr.bf16.mxu0 %v251
    %3619 = vmatmul.mubr.bf16.gmra.mxu0 %v249
    %v3620 = vpop.f32.mrf.mxu0
    %v3621 = vadd.f32 %v3581, %v3620
    %v3622 = vpop.f32.mrf.mxu0
    %v3623 = vpop.f32.mrf.mxu0
    %v3624 = vpop.f32.mrf.mxu0
    %3625 = vdwg.mxu0
    %s3626 = scalar_lea.vmem %s1, 32
    %v3627 = vld [vmem:[%s3626] sm:$0xf]
    %v3628 = vpack.c.bf16 %v3621, %v3621
    %v3630 = vsel %vm870, %v3627, 0
    %v3633 = vand.u32 %v3628, %v877
    %3635 = vmatprep.subr.bf16.mxu0 0
    %3636 = vmatpush1.bf16.msra.mxu0 0
    %3637 = vmatprep.subr.bf16.mxu0 0
    %3638 = vmatpush1.bf16.msra.mxu0 0
    %3639 = vmatprep.subr.bf16.mxu0 0
    %3640 = vmatpush1.bf16.msra.mxu0 0
    %3641 = vmatprep.subr.bf16.mxu0 0
    %3642 = vmatpush1.bf16.msra.mxu0 0
    %3643 = vmatprep.subr.bf16.mxu0 0
    %3644 = vmatpush1.bf16.msra.mxu0 0
    %3645 = vmatprep.subr.bf16.mxu0 0
    %3646 = vmatpush1.bf16.msra.mxu0 0
    %3647 = vmatprep.subr.bf16.mxu0 0
    %3648 = vmatpush1.bf16.msra.mxu0 0
    %3649 = vmatprep.subr.bf16.mxu0 0
    %3650 = vmatpush1.bf16.msra.mxu0 %v3633
    %3651 = vmatprep.subr.bf16.mxu0 0
    %3652 = vmatpush2.bf16.msra.mxu0 0
    %3653 = vmatprep.subr.bf16.mxu0 0
    %3654 = vmatpush2.bf16.msra.mxu0 0
    %3655 = vmatprep.subr.bf16.mxu0 0
    %3656 = vmatpush2.bf16.msra.mxu0 0
    %3657 = vmatprep.subr.bf16.mxu0 0
    %3658 = vmatpush2.bf16.msra.mxu0 0
    %3659 = vmatprep.subr.bf16.mxu0 0
    %3660 = vmatpush2.bf16.msra.mxu0 0
    %3661 = vmatprep.subr.bf16.mxu0 0
    %3662 = vmatpush2.bf16.msra.mxu0 0
    %3663 = vmatprep.subr.bf16.mxu0 0
    %3664 = vmatpush2.bf16.msra.mxu0 0
    %3665 = vmatprep.subr.bf16.mxu0 0
    %3666 = vmatpush2.bf16.msra.mxu0 0
    %3667 = vmatprep.mubr.bf16.mxu0 0
    %3668 = vmatmul.mubr.bf16.gmra.mxu0 %v3630
    %v3669 = vpop.f32.mrf.mxu0
    %v3670 = vadd.f32 0.0, %v3669
    %v3671 = vpop.f32.mrf.mxu0
    %v3672 = vpop.f32.mrf.mxu0
    %v3673 = vpop.f32.mrf.mxu0
    %3674 = vdwg.mxu0
    %v3675 = vadd.f32 %v3288, %v3670
    %v3676 = vld [vmem:[%s3] sm:$0xff]
    %3678 = vset.pattern.permute.xlu0 0
    %3679 = vperm.xlu0 %3678, %v3676
    %v3680 = vpop.permute.xlu0 %3679
    %v3682 = vmul.f32 %v3675, %v3680
    %v3683 = vld [vmem:[%s4] sm:$0xff]
    %3685 = vset.pattern.permute.xlu0 0
    %3686 = vperm.xlu0 %3685, %v3683
    %v3687 = vpop.permute.xlu0 %3686
    %v3689 = vadd.f32 %v3682, %v3687
    %vm3690 = vcmp.ge.f32.partialorder %v3689, 0.0
    %v3691 = vmul.f32 %v3689, 0.2
    %v3692 = vsel %vm3690, %v3689, %v3691
    %v3693 = vpack.c.bf16 %v3692, %v3692
    %v3694 = vld [vmem:[%s6] sm:$0xf]
    %v3695 = vld [vmem:[%s6 + $0x4] sm:$0xf]
    %v3696 = vld [vmem:[%s6 + $0x8] sm:$0xf]
    %v3697 = vld [vmem:[%s6 + $0xc] sm:$0xf]
    %v3698 = vld [vmem:[%s6 + $0x10] sm:$0xf]
    %v3699 = vld [vmem:[%s6 + $0x14] sm:$0xf]
    %v3700 = vld [vmem:[%s6 + $0x18] sm:$0xf]
    %v3701 = vld [vmem:[%s6 + $0x1c] sm:$0xf]
    %v3702 = vld [vmem:[%s6 + $0x20] sm:$0xf]
    %v3703 = vld [vmem:[%s6 + $0x24] sm:$0xf]
    %v3704 = vld [vmem:[%s6 + $0x28] sm:$0xf]
    %v3705 = vld [vmem:[%s6 + $0x2c] sm:$0xf]
    %v3706 = vld [vmem:[%s6 + $0x30] sm:$0xf]
    %v3707 = vld [vmem:[%s6 + $0x34] sm:$0xf]
    %v3708 = vld [vmem:[%s6 + $0x38] sm:$0xf]
    %v3709 = vld [vmem:[%s6 + $0x3c] sm:$0xf]
    %v3726 = vunpack.c.l.b16 %v3694
    %v3727 = vunpack.c.l.b16 %v3695
    %v3728 = vunpack.c.l.b16 %v3696
    %v3729 = vunpack.c.l.b16 %v3697
    %v3730 = vunpack.c.l.b16 %v3698
    %v3731 = vunpack.c.l.b16 %v3699
    %v3732 = vunpack.c.l.b16 %v3700
    %v3733 = vunpack.c.l.b16 %v3701
    %v3734 = vunpack.c.l.b16 %v3702
    %v3735 = vunpack.c.l.b16 %v3703
    %v3736 = vunpack.c.l.b16 %v3704
    %v3737 = vunpack.c.l.b16 %v3705
    %v3738 = vunpack.c.l.b16 %v3706
    %v3739 = vunpack.c.l.b16 %v3707
    %v3740 = vunpack.c.l.b16 %v3708
    %v3741 = vunpack.c.l.b16 %v3709
    %v3742 = vpack.c.b16 %v3727, %v3726
    %v3743 = vpack.c.b16 %v3729, %v3728
    %v3744 = vpack.c.b16 %v3731, %v3730
    %v3745 = vpack.c.b16 %v3733, %v3732
    %v3746 = vpack.c.b16 %v3735, %v3734
    %v3747 = vpack.c.b16 %v3737, %v3736
    %v3748 = vpack.c.b16 %v3739, %v3738
    %v3749 = vpack.c.b16 %v3741, %v3740
    %3758 = vmatprep.subr.bf16.mxu0 0
    %3759 = vmatpush1.bf16.msra.mxu0 %v3749
    %3760 = vmatprep.subr.bf16.mxu0 0
    %3761 = vmatpush1.bf16.msra.mxu0 %v3748
    %3762 = vmatprep.subr.bf16.mxu0 0
    %3763 = vmatpush1.bf16.msra.mxu0 %v3747
    %3764 = vmatprep.subr.bf16.mxu0 0
    %3765 = vmatpush1.bf16.msra.mxu0 %v3746
    %3766 = vmatprep.subr.bf16.mxu0 0
    %3767 = vmatpush1.bf16.msra.mxu0 %v3745
    %3768 = vmatprep.subr.bf16.mxu0 0
    %3769 = vmatpush1.bf16.msra.mxu0 %v3744
    %3770 = vmatprep.subr.bf16.mxu0 0
    %3771 = vmatpush1.bf16.msra.mxu0 %v3743
    %3772 = vmatprep.subr.bf16.mxu0 0
    %3773 = vmatpush1.bf16.msra.mxu0 %v3742
    %3774 = vmatprep.subr.bf16.mxu0 0
    %3775 = vmatpush2.bf16.msra.mxu0 0
    %3776 = vmatprep.subr.bf16.mxu0 0
    %3777 = vmatpush2.bf16.msra.mxu0 0
    %3778 = vmatprep.subr.bf16.mxu0 0
    %3779 = vmatpush2.bf16.msra.mxu0 0
    %3780 = vmatprep.subr.bf16.mxu0 0
    %3781 = vmatpush2.bf16.msra.mxu0 0
    %3782 = vmatprep.subr.bf16.mxu0 0
    %3783 = vmatpush2.bf16.msra.mxu0 0
    %3784 = vmatprep.subr.bf16.mxu0 0
    %3785 = vmatpush2.bf16.msra.mxu0 0
    %3786 = vmatprep.subr.bf16.mxu0 0
    %3787 = vmatpush2.bf16.msra.mxu0 0
    %3788 = vmatprep.subr.bf16.mxu0 0
    %3789 = vmatpush2.bf16.msra.mxu0 0
    %3790 = vmatprep.mubr.bf16.mxu0 0
    %3791 = vmatmul.mubr.bf16.gmra.mxu0 %v3693
    %v3792 = vpop.f32.mrf.mxu0
    %v3793 = vadd.f32 0.0, %v3792
    %v3794 = vpop.f32.mrf.mxu0
    %v3795 = vpop.f32.mrf.mxu0
    %v3796 = vpop.f32.mrf.mxu0
    %3797 = vdwg.mxu0
    %v3798 = vld [vmem:[%s5] sm:$0xf]
    %v3799 = vld [vmem:[%s5 + $0x4] sm:$0xf]
    %v3800 = vpack.c.bf16 %v3793, %v3793
    %s3801 = scalar_lea.vmem %s6, 64
    %v3802 = vld [vmem:[%s3801] sm:$0xf]
    %v3803 = vld [vmem:[%s3801 + $0x4] sm:$0xf]
    %v3804 = vld [vmem:[%s3801 + $0x8] sm:$0xf]
    %v3805 = vld [vmem:[%s3801 + $0xc] sm:$0xf]
    %v3806 = vld [vmem:[%s3801 + $0x10] sm:$0xf]
    %v3807 = vld [vmem:[%s3801 + $0x14] sm:$0xf]
    %v3808 = vld [vmem:[%s3801 + $0x18] sm:$0xf]
    %v3809 = vld [vmem:[%s3801 + $0x1c] sm:$0xf]
    %v3810 = vld [vmem:[%s3801 + $0x20] sm:$0xf]
    %v3811 = vld [vmem:[%s3801 + $0x24] sm:$0xf]
    %v3812 = vld [vmem:[%s3801 + $0x28] sm:$0xf]
    %v3813 = vld [vmem:[%s3801 + $0x2c] sm:$0xf]
    %v3814 = vld [vmem:[%s3801 + $0x30] sm:$0xf]
    %v3815 = vld [vmem:[%s3801 + $0x34] sm:$0xf]
    %v3816 = vld [vmem:[%s3801 + $0x38] sm:$0xf]
    %v3817 = vld [vmem:[%s3801 + $0x3c] sm:$0xf]
    %v3834 = vunpack.c.l.b16 %v3802
    %v3835 = vunpack.c.l.b16 %v3803
    %v3836 = vunpack.c.l.b16 %v3804
    %v3837 = vunpack.c.l.b16 %v3805
    %v3838 = vunpack.c.l.b16 %v3806
    %v3839 = vunpack.c.l.b16 %v3807
    %v3840 = vunpack.c.l.b16 %v3808
    %v3841 = vunpack.c.l.b16 %v3809
    %v3842 = vunpack.c.l.b16 %v3810
    %v3843 = vunpack.c.l.b16 %v3811
    %v3844 = vunpack.c.l.b16 %v3812
    %v3845 = vunpack.c.l.b16 %v3813
    %v3846 = vunpack.c.l.b16 %v3814
    %v3847 = vunpack.c.l.b16 %v3815
    %v3848 = vunpack.c.l.b16 %v3816
    %v3849 = vunpack.c.l.b16 %v3817
    %v3850 = vpack.c.b16 %v3835, %v3834
    %v3851 = vpack.c.b16 %v3837, %v3836
    %v3852 = vpack.c.b16 %v3839, %v3838
    %v3853 = vpack.c.b16 %v3841, %v3840
    %v3854 = vpack.c.b16 %v3843, %v3842
    %v3855 = vpack.c.b16 %v3845, %v3844
    %v3856 = vpack.c.b16 %v3847, %v3846
    %v3857 = vpack.c.b16 %v3849, %v3848
    %3866 = vmatprep.subr.bf16.mxu0 0
    %3867 = vmatpush1.bf16.msra.mxu0 %v3857
    %3868 = vmatprep.subr.bf16.mxu0 0
    %3869 = vmatpush1.bf16.msra.mxu0 %v3856
    %3870 = vmatprep.subr.bf16.mxu0 0
    %3871 = vmatpush1.bf16.msra.mxu0 %v3855
    %3872 = vmatprep.subr.bf16.mxu0 0
    %3873 = vmatpush1.bf16.msra.mxu0 %v3854
    %3874 = vmatprep.subr.bf16.mxu0 0
    %3875 = vmatpush1.bf16.msra.mxu0 %v3853
    %3876 = vmatprep.subr.bf16.mxu0 0
    %3877 = vmatpush1.bf16.msra.mxu0 %v3852
    %3878 = vmatprep.subr.bf16.mxu0 0
    %3879 = vmatpush1.bf16.msra.mxu0 %v3851
    %3880 = vmatprep.subr.bf16.mxu0 0
    %3881 = vmatpush1.bf16.msra.mxu0 %v3850
    %3882 = vmatprep.subr.bf16.mxu0 0
    %3883 = vmatpush2.bf16.msra.mxu0 0
    %3884 = vmatprep.subr.bf16.mxu0 0
    %3885 = vmatpush2.bf16.msra.mxu0 0
    %3886 = vmatprep.subr.bf16.mxu0 0
    %3887 = vmatpush2.bf16.msra.mxu0 0
    %3888 = vmatprep.subr.bf16.mxu0 0
    %3889 = vmatpush2.bf16.msra.mxu0 0
    %3890 = vmatprep.subr.bf16.mxu0 0
    %3891 = vmatpush2.bf16.msra.mxu0 0
    %3892 = vmatprep.subr.bf16.mxu0 0
    %3893 = vmatpush2.bf16.msra.mxu0 0
    %3894 = vmatprep.subr.bf16.mxu0 0
    %3895 = vmatpush2.bf16.msra.mxu0 0
    %3896 = vmatprep.subr.bf16.mxu0 0
    %3897 = vmatpush2.bf16.msra.mxu0 0
    %3898 = vmatprep.mubr.bf16.mxu0 0
    %3899 = vmatmul.mubr.bf16.gmra.mxu0 %v3693
    %v3900 = vpop.f32.mrf.mxu0
    %v3901 = vadd.f32 0.0, %v3900
    %v3902 = vpop.f32.mrf.mxu0
    %v3903 = vpop.f32.mrf.mxu0
    %v3904 = vpop.f32.mrf.mxu0
    %3905 = vdwg.mxu0
    %s3906 = scalar_lea.vmem %s5, 8
    %v3907 = vld [vmem:[%s3906] sm:$0xf]
    %v3908 = vld [vmem:[%s3906 + $0x4] sm:$0xf]
    %v3909 = vpack.c.bf16 %v3901, %v3901
    %v3912 = vunpack.c.l.b16 %v3907
    %v3913 = vunpack.c.l.b16 %v3908
    %v3914 = vpack.c.b16 %v3913, %v3912
    %vm3915 = vcmask 64512
    %v3917 = vsel %vm3915, %v3914, 0
    %vm3919 = vcmask 1043456
    %v3921 = vsel %vm3919, %v3909, 0
    %3923 = vmatprep.subr.bf16.mxu0 0
    %3924 = vmatpush1.bf16.msra.mxu0 0
    %3925 = vmatprep.subr.bf16.mxu0 0
    %3926 = vmatpush1.bf16.msra.mxu0 0
    %3927 = vmatprep.subr.bf16.mxu0 0
    %3928 = vmatpush1.bf16.msra.mxu0 0
    %3929 = vmatprep.subr.bf16.mxu0 0
    %3930 = vmatpush1.bf16.msra.mxu0 0
    %3931 = vmatprep.subr.bf16.mxu0 0
    %3932 = vmatpush1.bf16.msra.mxu0 0
    %3933 = vmatprep.subr.bf16.mxu0 0
    %3934 = vmatpush1.bf16.msra.mxu0 0
    %3935 = vmatprep.subr.bf16.mxu0 0
    %3936 = vmatpush1.bf16.msra.mxu0 0
    %3937 = vmatprep.subr.bf16.mxu0 0
    %3938 = vmatpush1.bf16.msra.mxu0 %v3921
    %3939 = vmatprep.subr.bf16.mxu0 0
    %3940 = vmatpush2.bf16.msra.mxu0 0
    %3941 = vmatprep.subr.bf16.mxu0 0
    %3942 = vmatpush2.bf16.msra.mxu0 0
    %3943 = vmatprep.subr.bf16.mxu0 0
    %3944 = vmatpush2.bf16.msra.mxu0 0
    %3945 = vmatprep.subr.bf16.mxu0 0
    %3946 = vmatpush2.bf16.msra.mxu0 0
    %3947 = vmatprep.subr.bf16.mxu0 0
    %3948 = vmatpush2.bf16.msra.mxu0 0
    %3949 = vmatprep.subr.bf16.mxu0 0
    %3950 = vmatpush2.bf16.msra.mxu0 0
    %3951 = vmatprep.subr.bf16.mxu0 0
    %3952 = vmatpush2.bf16.msra.mxu0 0
    %3953 = vmatprep.subr.bf16.mxu0 0
    %3954 = vmatpush2.bf16.msra.mxu0 0
    %3955 = vmatprep.mubr.bf16.mxu0 0
    %3956 = vmatmul.mubr.bf16.gmra.mxu0 %v3917
    %v3957 = vpop.f32.mrf.mxu0
    %v3958 = vadd.f32 0.0, %v3957
    %v3959 = vpop.f32.mrf.mxu0
    %v3960 = vpop.f32.mrf.mxu0
    %v3961 = vadd.f32 0.0, %v3960
    %v3962 = vpop.f32.mrf.mxu0
    %3963 = vdwg.mxu0
    %v3966 = vunpack.c.l.b16 %v3798
    %v3967 = vunpack.c.l.b16 %v3799
    %v3968 = vpack.c.b16 %v3967, %v3966
    %v3970 = vsel %vm3915, %v3968, 0
    %v3973 = vsel %vm3919, %v3800, 0
    %3975 = vmatprep.subr.bf16.mxu0 0
    %3976 = vmatpush1.bf16.msra.mxu0 0
    %3977 = vmatprep.subr.bf16.mxu0 0
    %3978 = vmatpush1.bf16.msra.mxu0 0
    %3979 = vmatprep.subr.bf16.mxu0 0
    %3980 = vmatpush1.bf16.msra.mxu0 0
    %3981 = vmatprep.subr.bf16.mxu0 0
    %3982 = vmatpush1.bf16.msra.mxu0 0
    %3983 = vmatprep.subr.bf16.mxu0 0
    %3984 = vmatpush1.bf16.msra.mxu0 0
    %3985 = vmatprep.subr.bf16.mxu0 0
    %3986 = vmatpush1.bf16.msra.mxu0 0
    %3987 = vmatprep.subr.bf16.mxu0 0
    %3988 = vmatpush1.bf16.msra.mxu0 0
    %3989 = vmatprep.subr.bf16.mxu0 0
    %3990 = vmatpush1.bf16.msra.mxu0 %v3973
    %3991 = vmatprep.subr.bf16.mxu0 0
    %3992 = vmatpush2.bf16.msra.mxu0 0
    %3993 = vmatprep.subr.bf16.mxu0 0
    %3994 = vmatpush2.bf16.msra.mxu0 0
    %3995 = vmatprep.subr.bf16.mxu0 0
    %3996 = vmatpush2.bf16.msra.mxu0 0
    %3997 = vmatprep.subr.bf16.mxu0 0
    %3998 = vmatpush2.bf16.msra.mxu0 0
    %3999 = vmatprep.subr.bf16.mxu0 0
    %4000 = vmatpush2.bf16.msra.mxu0 0
    %4001 = vmatprep.subr.bf16.mxu0 0
    %4002 = vmatpush2.bf16.msra.mxu0 0
    %4003 = vmatprep.subr.bf16.mxu0 0
    %4004 = vmatpush2.bf16.msra.mxu0 0
    %4005 = vmatprep.subr.bf16.mxu0 0
    %4006 = vmatpush2.bf16.msra.mxu0 0
    %4007 = vmatprep.mubr.bf16.mxu0 0
    %4008 = vmatmul.mubr.bf16.gmra.mxu0 %v3970
    %v4009 = vpop.f32.mrf.mxu0
    %v4010 = vadd.f32 %v3958, %v4009
    %v4011 = vpop.f32.mrf.mxu0
    %v4012 = vpop.f32.mrf.mxu0
    %v4013 = vadd.f32 %v3961, %v4012
    %v4014 = vpop.f32.mrf.mxu0
    %4015 = vdwg.mxu0
    %s4016 = scalar_lea.vmem %s6, 128
    %v4017 = vld [vmem:[%s4016] sm:$0xf]
    %v4018 = vld [vmem:[%s4016 + $0x4] sm:$0xf]
    %v4019 = vld [vmem:[%s4016 + $0x8] sm:$0xf]
    %v4020 = vld [vmem:[%s4016 + $0xc] sm:$0xf]
    %v4021 = vld [vmem:[%s4016 + $0x10] sm:$0xf]
    %v4022 = vld [vmem:[%s4016 + $0x14] sm:$0xf]
    %v4023 = vld [vmem:[%s4016 + $0x18] sm:$0xf]
    %v4024 = vld [vmem:[%s4016 + $0x1c] sm:$0xf]
    %v4025 = vld [vmem:[%s4016 + $0x20] sm:$0xf]
    %v4026 = vld [vmem:[%s4016 + $0x24] sm:$0xf]
    %v4027 = vld [vmem:[%s4016 + $0x28] sm:$0xf]
    %v4028 = vld [vmem:[%s4016 + $0x2c] sm:$0xf]
    %v4029 = vld [vmem:[%s4016 + $0x30] sm:$0xf]
    %v4030 = vld [vmem:[%s4016 + $0x34] sm:$0xf]
    %v4031 = vld [vmem:[%s4016 + $0x38] sm:$0xf]
    %v4032 = vld [vmem:[%s4016 + $0x3c] sm:$0xf]
    %v4049 = vunpack.c.l.b16 %v4017
    %v4050 = vunpack.c.l.b16 %v4018
    %v4051 = vunpack.c.l.b16 %v4019
    %v4052 = vunpack.c.l.b16 %v4020
    %v4053 = vunpack.c.l.b16 %v4021
    %v4054 = vunpack.c.l.b16 %v4022
    %v4055 = vunpack.c.l.b16 %v4023
    %v4056 = vunpack.c.l.b16 %v4024
    %v4057 = vunpack.c.l.b16 %v4025
    %v4058 = vunpack.c.l.b16 %v4026
    %v4059 = vunpack.c.l.b16 %v4027
    %v4060 = vunpack.c.l.b16 %v4028
    %v4061 = vunpack.c.l.b16 %v4029
    %v4062 = vunpack.c.l.b16 %v4030
    %v4063 = vunpack.c.l.b16 %v4031
    %v4064 = vunpack.c.l.b16 %v4032
    %v4065 = vpack.c.b16 %v4050, %v4049
    %v4066 = vpack.c.b16 %v4052, %v4051
    %v4067 = vpack.c.b16 %v4054, %v4053
    %v4068 = vpack.c.b16 %v4056, %v4055
    %v4069 = vpack.c.b16 %v4058, %v4057
    %v4070 = vpack.c.b16 %v4060, %v4059
    %v4071 = vpack.c.b16 %v4062, %v4061
    %v4072 = vpack.c.b16 %v4064, %v4063
    %4081 = vmatprep.subr.bf16.mxu0 0
    %4082 = vmatpush1.bf16.msra.mxu0 %v4072
    %4083 = vmatprep.subr.bf16.mxu0 0
    %4084 = vmatpush1.bf16.msra.mxu0 %v4071
    %4085 = vmatprep.subr.bf16.mxu0 0
    %4086 = vmatpush1.bf16.msra.mxu0 %v4070
    %4087 = vmatprep.subr.bf16.mxu0 0
    %4088 = vmatpush1.bf16.msra.mxu0 %v4069
    %4089 = vmatprep.subr.bf16.mxu0 0
    %4090 = vmatpush1.bf16.msra.mxu0 %v4068
    %4091 = vmatprep.subr.bf16.mxu0 0
    %4092 = vmatpush1.bf16.msra.mxu0 %v4067
    %4093 = vmatprep.subr.bf16.mxu0 0
    %4094 = vmatpush1.bf16.msra.mxu0 %v4066
    %4095 = vmatprep.subr.bf16.mxu0 0
    %4096 = vmatpush1.bf16.msra.mxu0 %v4065
    %4097 = vmatprep.subr.bf16.mxu0 0
    %4098 = vmatpush2.bf16.msra.mxu0 0
    %4099 = vmatprep.subr.bf16.mxu0 0
    %4100 = vmatpush2.bf16.msra.mxu0 0
    %4101 = vmatprep.subr.bf16.mxu0 0
    %4102 = vmatpush2.bf16.msra.mxu0 0
    %4103 = vmatprep.subr.bf16.mxu0 0
    %4104 = vmatpush2.bf16.msra.mxu0 0
    %4105 = vmatprep.subr.bf16.mxu0 0
    %4106 = vmatpush2.bf16.msra.mxu0 0
    %4107 = vmatprep.subr.bf16.mxu0 0
    %4108 = vmatpush2.bf16.msra.mxu0 0
    %4109 = vmatprep.subr.bf16.mxu0 0
    %4110 = vmatpush2.bf16.msra.mxu0 0
    %4111 = vmatprep.subr.bf16.mxu0 0
    %4112 = vmatpush2.bf16.msra.mxu0 0
    %4113 = vmatprep.mubr.bf16.mxu0 0
    %4114 = vmatmul.mubr.bf16.gmra.mxu0 %v3693
    %v4115 = vpop.f32.mrf.mxu0
    %v4116 = vadd.f32 0.0, %v4115
    %v4117 = vpop.f32.mrf.mxu0
    %v4118 = vpop.f32.mrf.mxu0
    %v4119 = vpop.f32.mrf.mxu0
    %4120 = vdwg.mxu0
    %s4121 = scalar_lea.vmem %s5, 16
    %v4122 = vld [vmem:[%s4121] sm:$0xf]
    %v4123 = vld [vmem:[%s4121 + $0x4] sm:$0xf]
    %v4124 = vpack.c.bf16 %v4116, %v4116
    %v4127 = vunpack.c.l.b16 %v4122
    %v4128 = vunpack.c.l.b16 %v4123
    %v4129 = vpack.c.b16 %v4128, %v4127
    %v4131 = vsel %vm3915, %v4129, 0
    %v4134 = vsel %vm3919, %v4124, 0
    %4136 = vmatprep.subr.bf16.mxu0 0
    %4137 = vmatpush1.bf16.msra.mxu0 0
    %4138 = vmatprep.subr.bf16.mxu0 0
    %4139 = vmatpush1.bf16.msra.mxu0 0
    %4140 = vmatprep.subr.bf16.mxu0 0
    %4141 = vmatpush1.bf16.msra.mxu0 0
    %4142 = vmatprep.subr.bf16.mxu0 0
    %4143 = vmatpush1.bf16.msra.mxu0 0
    %4144 = vmatprep.subr.bf16.mxu0 0
    %4145 = vmatpush1.bf16.msra.mxu0 0
    %4146 = vmatprep.subr.bf16.mxu0 0
    %4147 = vmatpush1.bf16.msra.mxu0 0
    %4148 = vmatprep.subr.bf16.mxu0 0
    %4149 = vmatpush1.bf16.msra.mxu0 0
    %4150 = vmatprep.subr.bf16.mxu0 0
    %4151 = vmatpush1.bf16.msra.mxu0 %v4134
    %4152 = vmatprep.subr.bf16.mxu0 0
    %4153 = vmatpush2.bf16.msra.mxu0 0
    %4154 = vmatprep.subr.bf16.mxu0 0
    %4155 = vmatpush2.bf16.msra.mxu0 0
    %4156 = vmatprep.subr.bf16.mxu0 0
    %4157 = vmatpush2.bf16.msra.mxu0 0
    %4158 = vmatprep.subr.bf16.mxu0 0
    %4159 = vmatpush2.bf16.msra.mxu0 0
    %4160 = vmatprep.subr.bf16.mxu0 0
    %4161 = vmatpush2.bf16.msra.mxu0 0
    %4162 = vmatprep.subr.bf16.mxu0 0
    %4163 = vmatpush2.bf16.msra.mxu0 0
    %4164 = vmatprep.subr.bf16.mxu0 0
    %4165 = vmatpush2.bf16.msra.mxu0 0
    %4166 = vmatprep.subr.bf16.mxu0 0
    %4167 = vmatpush2.bf16.msra.mxu0 0
    %4168 = vmatprep.mubr.bf16.mxu0 0
    %4169 = vmatmul.mubr.bf16.gmra.mxu0 %v4131
    %v4170 = vpop.f32.mrf.mxu0
    %v4171 = vadd.f32 0.0, %v4170
    %v4172 = vpop.f32.mrf.mxu0
    %v4173 = vpop.f32.mrf.mxu0
    %v4174 = vadd.f32 0.0, %v4173
    %v4175 = vpop.f32.mrf.mxu0
    %4176 = vdwg.mxu0
    %v4177 = vadd.f32 %v4010, %v4171
    %v4178 = vadd.f32 %v4013, %v4174
    %s4179 = scalar_lea.vmem %s6, 192
    %v4180 = vld [vmem:[%s4179] sm:$0xf]
    %v4181 = vld [vmem:[%s4179 + $0x4] sm:$0xf]
    %v4182 = vld [vmem:[%s4179 + $0x8] sm:$0xf]
    %v4183 = vld [vmem:[%s4179 + $0xc] sm:$0xf]
    %v4184 = vld [vmem:[%s4179 + $0x10] sm:$0xf]
    %v4185 = vld [vmem:[%s4179 + $0x14] sm:$0xf]
    %v4186 = vld [vmem:[%s4179 + $0x18] sm:$0xf]
    %v4187 = vld [vmem:[%s4179 + $0x1c] sm:$0xf]
    %v4188 = vld [vmem:[%s4179 + $0x20] sm:$0xf]
    %v4189 = vld [vmem:[%s4179 + $0x24] sm:$0xf]
    %v4190 = vld [vmem:[%s4179 + $0x28] sm:$0xf]
    %v4191 = vld [vmem:[%s4179 + $0x2c] sm:$0xf]
    %v4192 = vld [vmem:[%s4179 + $0x30] sm:$0xf]
    %v4193 = vld [vmem:[%s4179 + $0x34] sm:$0xf]
    %v4194 = vld [vmem:[%s4179 + $0x38] sm:$0xf]
    %v4195 = vld [vmem:[%s4179 + $0x3c] sm:$0xf]
    %v4212 = vunpack.c.l.b16 %v4180
    %v4213 = vunpack.c.l.b16 %v4181
    %v4214 = vunpack.c.l.b16 %v4182
    %v4215 = vunpack.c.l.b16 %v4183
    %v4216 = vunpack.c.l.b16 %v4184
    %v4217 = vunpack.c.l.b16 %v4185
    %v4218 = vunpack.c.l.b16 %v4186
    %v4219 = vunpack.c.l.b16 %v4187
    %v4220 = vunpack.c.l.b16 %v4188
    %v4221 = vunpack.c.l.b16 %v4189
    %v4222 = vunpack.c.l.b16 %v4190
    %v4223 = vunpack.c.l.b16 %v4191
    %v4224 = vunpack.c.l.b16 %v4192
    %v4225 = vunpack.c.l.b16 %v4193
    %v4226 = vunpack.c.l.b16 %v4194
    %v4227 = vunpack.c.l.b16 %v4195
    %v4228 = vpack.c.b16 %v4213, %v4212
    %v4229 = vpack.c.b16 %v4215, %v4214
    %v4230 = vpack.c.b16 %v4217, %v4216
    %v4231 = vpack.c.b16 %v4219, %v4218
    %v4232 = vpack.c.b16 %v4221, %v4220
    %v4233 = vpack.c.b16 %v4223, %v4222
    %v4234 = vpack.c.b16 %v4225, %v4224
    %v4235 = vpack.c.b16 %v4227, %v4226
    %4244 = vmatprep.subr.bf16.mxu0 0
    %4245 = vmatpush1.bf16.msra.mxu0 %v4235
    %4246 = vmatprep.subr.bf16.mxu0 0
    %4247 = vmatpush1.bf16.msra.mxu0 %v4234
    %4248 = vmatprep.subr.bf16.mxu0 0
    %4249 = vmatpush1.bf16.msra.mxu0 %v4233
    %4250 = vmatprep.subr.bf16.mxu0 0
    %4251 = vmatpush1.bf16.msra.mxu0 %v4232
    %4252 = vmatprep.subr.bf16.mxu0 0
    %4253 = vmatpush1.bf16.msra.mxu0 %v4231
    %4254 = vmatprep.subr.bf16.mxu0 0
    %4255 = vmatpush1.bf16.msra.mxu0 %v4230
    %4256 = vmatprep.subr.bf16.mxu0 0
    %4257 = vmatpush1.bf16.msra.mxu0 %v4229
    %4258 = vmatprep.subr.bf16.mxu0 0
    %4259 = vmatpush1.bf16.msra.mxu0 %v4228
    %4260 = vmatprep.subr.bf16.mxu0 0
    %4261 = vmatpush2.bf16.msra.mxu0 0
    %4262 = vmatprep.subr.bf16.mxu0 0
    %4263 = vmatpush2.bf16.msra.mxu0 0
    %4264 = vmatprep.subr.bf16.mxu0 0
    %4265 = vmatpush2.bf16.msra.mxu0 0
    %4266 = vmatprep.subr.bf16.mxu0 0
    %4267 = vmatpush2.bf16.msra.mxu0 0
    %4268 = vmatprep.subr.bf16.mxu0 0
    %4269 = vmatpush2.bf16.msra.mxu0 0
    %4270 = vmatprep.subr.bf16.mxu0 0
    %4271 = vmatpush2.bf16.msra.mxu0 0
    %4272 = vmatprep.subr.bf16.mxu0 0
    %4273 = vmatpush2.bf16.msra.mxu0 0
    %4274 = vmatprep.subr.bf16.mxu0 0
    %4275 = vmatpush2.bf16.msra.mxu0 0
    %4276 = vmatprep.mubr.bf16.mxu0 0
    %4277 = vmatmul.mubr.bf16.gmra.mxu0 %v3693
    %v4278 = vpop.f32.mrf.mxu0
    %v4279 = vadd.f32 0.0, %v4278
    %v4280 = vpop.f32.mrf.mxu0
    %v4281 = vpop.f32.mrf.mxu0
    %v4282 = vpop.f32.mrf.mxu0
    %4283 = vdwg.mxu0
    %s4284 = scalar_lea.vmem %s5, 24
    %v4285 = vld [vmem:[%s4284] sm:$0xf]
    %v4286 = vld [vmem:[%s4284 + $0x4] sm:$0xf]
    %v4287 = vpack.c.bf16 %v4279, %v4279
    %v4290 = vunpack.c.l.b16 %v4285
    %v4291 = vunpack.c.l.b16 %v4286
    %v4292 = vpack.c.b16 %v4291, %v4290
    %v4294 = vsel %vm3915, %v4292, 0
    %v4297 = vsel %vm3919, %v4287, 0
    %4299 = vmatprep.subr.bf16.mxu0 0
    %4300 = vmatpush1.bf16.msra.mxu0 0
    %4301 = vmatprep.subr.bf16.mxu0 0
    %4302 = vmatpush1.bf16.msra.mxu0 0
    %4303 = vmatprep.subr.bf16.mxu0 0
    %4304 = vmatpush1.bf16.msra.mxu0 0
    %4305 = vmatprep.subr.bf16.mxu0 0
    %4306 = vmatpush1.bf16.msra.mxu0 0
    %4307 = vmatprep.subr.bf16.mxu0 0
    %4308 = vmatpush1.bf16.msra.mxu0 0
    %4309 = vmatprep.subr.bf16.mxu0 0
    %4310 = vmatpush1.bf16.msra.mxu0 0
    %4311 = vmatprep.subr.bf16.mxu0 0
    %4312 = vmatpush1.bf16.msra.mxu0 0
    %4313 = vmatprep.subr.bf16.mxu0 0
    %4314 = vmatpush1.bf16.msra.mxu0 %v4297
    %4315 = vmatprep.subr.bf16.mxu0 0
    %4316 = vmatpush2.bf16.msra.mxu0 0
    %4317 = vmatprep.subr.bf16.mxu0 0
    %4318 = vmatpush2.bf16.msra.mxu0 0
    %4319 = vmatprep.subr.bf16.mxu0 0
    %4320 = vmatpush2.bf16.msra.mxu0 0
    %4321 = vmatprep.subr.bf16.mxu0 0
    %4322 = vmatpush2.bf16.msra.mxu0 0
    %4323 = vmatprep.subr.bf16.mxu0 0
    %4324 = vmatpush2.bf16.msra.mxu0 0
    %4325 = vmatprep.subr.bf16.mxu0 0
    %4326 = vmatpush2.bf16.msra.mxu0 0
    %4327 = vmatprep.subr.bf16.mxu0 0
    %4328 = vmatpush2.bf16.msra.mxu0 0
    %4329 = vmatprep.subr.bf16.mxu0 0
    %4330 = vmatpush2.bf16.msra.mxu0 0
    %4331 = vmatprep.mubr.bf16.mxu0 0
    %4332 = vmatmul.mubr.bf16.gmra.mxu0 %v4294
    %v4333 = vpop.f32.mrf.mxu0
    %v4334 = vadd.f32 0.0, %v4333
    %v4335 = vpop.f32.mrf.mxu0
    %v4336 = vpop.f32.mrf.mxu0
    %v4337 = vadd.f32 0.0, %v4336
    %v4338 = vpop.f32.mrf.mxu0
    %4339 = vdwg.mxu0
    %v4340 = vadd.f32 %v4177, %v4334
    %v4341 = vadd.f32 %v4178, %v4337
    %s4342 = scalar_lea.vmem %s6, 256
    %v4343 = vld [vmem:[%s4342] sm:$0xf]
    %v4344 = vld [vmem:[%s4342 + $0x4] sm:$0xf]
    %v4345 = vld [vmem:[%s4342 + $0x8] sm:$0xf]
    %v4346 = vld [vmem:[%s4342 + $0xc] sm:$0xf]
    %v4347 = vld [vmem:[%s4342 + $0x10] sm:$0xf]
    %v4348 = vld [vmem:[%s4342 + $0x14] sm:$0xf]
    %v4349 = vld [vmem:[%s4342 + $0x18] sm:$0xf]
    %v4350 = vld [vmem:[%s4342 + $0x1c] sm:$0xf]
    %v4351 = vld [vmem:[%s4342 + $0x20] sm:$0xf]
    %v4352 = vld [vmem:[%s4342 + $0x24] sm:$0xf]
    %v4353 = vld [vmem:[%s4342 + $0x28] sm:$0xf]
    %v4354 = vld [vmem:[%s4342 + $0x2c] sm:$0xf]
    %v4355 = vld [vmem:[%s4342 + $0x30] sm:$0xf]
    %v4356 = vld [vmem:[%s4342 + $0x34] sm:$0xf]
    %v4357 = vld [vmem:[%s4342 + $0x38] sm:$0xf]
    %v4358 = vld [vmem:[%s4342 + $0x3c] sm:$0xf]
    %v4375 = vunpack.c.l.b16 %v4343
    %v4376 = vunpack.c.l.b16 %v4344
    %v4377 = vunpack.c.l.b16 %v4345
    %v4378 = vunpack.c.l.b16 %v4346
    %v4379 = vunpack.c.l.b16 %v4347
    %v4380 = vunpack.c.l.b16 %v4348
    %v4381 = vunpack.c.l.b16 %v4349
    %v4382 = vunpack.c.l.b16 %v4350
    %v4383 = vunpack.c.l.b16 %v4351
    %v4384 = vunpack.c.l.b16 %v4352
    %v4385 = vunpack.c.l.b16 %v4353
    %v4386 = vunpack.c.l.b16 %v4354
    %v4387 = vunpack.c.l.b16 %v4355
    %v4388 = vunpack.c.l.b16 %v4356
    %v4389 = vunpack.c.l.b16 %v4357
    %v4390 = vunpack.c.l.b16 %v4358
    %v4391 = vpack.c.b16 %v4376, %v4375
    %v4392 = vpack.c.b16 %v4378, %v4377
    %v4393 = vpack.c.b16 %v4380, %v4379
    %v4394 = vpack.c.b16 %v4382, %v4381
    %v4395 = vpack.c.b16 %v4384, %v4383
    %v4396 = vpack.c.b16 %v4386, %v4385
    %v4397 = vpack.c.b16 %v4388, %v4387
    %v4398 = vpack.c.b16 %v4390, %v4389
    %4407 = vmatprep.subr.bf16.mxu0 0
    %4408 = vmatpush1.bf16.msra.mxu0 %v4398
    %4409 = vmatprep.subr.bf16.mxu0 0
    %4410 = vmatpush1.bf16.msra.mxu0 %v4397
    %4411 = vmatprep.subr.bf16.mxu0 0
    %4412 = vmatpush1.bf16.msra.mxu0 %v4396
    %4413 = vmatprep.subr.bf16.mxu0 0
    %4414 = vmatpush1.bf16.msra.mxu0 %v4395
    %4415 = vmatprep.subr.bf16.mxu0 0
    %4416 = vmatpush1.bf16.msra.mxu0 %v4394
    %4417 = vmatprep.subr.bf16.mxu0 0
    %4418 = vmatpush1.bf16.msra.mxu0 %v4393
    %4419 = vmatprep.subr.bf16.mxu0 0
    %4420 = vmatpush1.bf16.msra.mxu0 %v4392
    %4421 = vmatprep.subr.bf16.mxu0 0
    %4422 = vmatpush1.bf16.msra.mxu0 %v4391
    %4423 = vmatprep.subr.bf16.mxu0 0
    %4424 = vmatpush2.bf16.msra.mxu0 0
    %4425 = vmatprep.subr.bf16.mxu0 0
    %4426 = vmatpush2.bf16.msra.mxu0 0
    %4427 = vmatprep.subr.bf16.mxu0 0
    %4428 = vmatpush2.bf16.msra.mxu0 0
    %4429 = vmatprep.subr.bf16.mxu0 0
    %4430 = vmatpush2.bf16.msra.mxu0 0
    %4431 = vmatprep.subr.bf16.mxu0 0
    %4432 = vmatpush2.bf16.msra.mxu0 0
    %4433 = vmatprep.subr.bf16.mxu0 0
    %4434 = vmatpush2.bf16.msra.mxu0 0
    %4435 = vmatprep.subr.bf16.mxu0 0
    %4436 = vmatpush2.bf16.msra.mxu0 0
    %4437 = vmatprep.subr.bf16.mxu0 0
    %4438 = vmatpush2.bf16.msra.mxu0 0
    %4439 = vmatprep.mubr.bf16.mxu0 0
    %4440 = vmatmul.mubr.bf16.gmra.mxu0 %v3693
    %v4441 = vpop.f32.mrf.mxu0
    %v4442 = vadd.f32 0.0, %v4441
    %v4443 = vpop.f32.mrf.mxu0
    %v4444 = vpop.f32.mrf.mxu0
    %v4445 = vpop.f32.mrf.mxu0
    %4446 = vdwg.mxu0
    %s4447 = scalar_lea.vmem %s5, 32
    %v4448 = vld [vmem:[%s4447] sm:$0xf]
    %v4449 = vld [vmem:[%s4447 + $0x4] sm:$0xf]
    %v4450 = vpack.c.bf16 %v4442, %v4442
    %v4453 = vunpack.c.l.b16 %v4448
    %v4454 = vunpack.c.l.b16 %v4449
    %v4455 = vpack.c.b16 %v4454, %v4453
    %v4457 = vsel %vm3915, %v4455, 0
    %v4460 = vsel %vm3919, %v4450, 0
    %4462 = vmatprep.subr.bf16.mxu0 0
    %4463 = vmatpush1.bf16.msra.mxu0 0
    %4464 = vmatprep.subr.bf16.mxu0 0
    %4465 = vmatpush1.bf16.msra.mxu0 0
    %4466 = vmatprep.subr.bf16.mxu0 0
    %4467 = vmatpush1.bf16.msra.mxu0 0
    %4468 = vmatprep.subr.bf16.mxu0 0
    %4469 = vmatpush1.bf16.msra.mxu0 0
    %4470 = vmatprep.subr.bf16.mxu0 0
    %4471 = vmatpush1.bf16.msra.mxu0 0
    %4472 = vmatprep.subr.bf16.mxu0 0
    %4473 = vmatpush1.bf16.msra.mxu0 0
    %4474 = vmatprep.subr.bf16.mxu0 0
    %4475 = vmatpush1.bf16.msra.mxu0 0
    %4476 = vmatprep.subr.bf16.mxu0 0
    %4477 = vmatpush1.bf16.msra.mxu0 %v4460
    %4478 = vmatprep.subr.bf16.mxu0 0
    %4479 = vmatpush2.bf16.msra.mxu0 0
    %4480 = vmatprep.subr.bf16.mxu0 0
    %4481 = vmatpush2.bf16.msra.mxu0 0
    %4482 = vmatprep.subr.bf16.mxu0 0
    %4483 = vmatpush2.bf16.msra.mxu0 0
    %4484 = vmatprep.subr.bf16.mxu0 0
    %4485 = vmatpush2.bf16.msra.mxu0 0
    %4486 = vmatprep.subr.bf16.mxu0 0
    %4487 = vmatpush2.bf16.msra.mxu0 0
    %4488 = vmatprep.subr.bf16.mxu0 0
    %4489 = vmatpush2.bf16.msra.mxu0 0
    %4490 = vmatprep.subr.bf16.mxu0 0
    %4491 = vmatpush2.bf16.msra.mxu0 0
    %4492 = vmatprep.subr.bf16.mxu0 0
    %4493 = vmatpush2.bf16.msra.mxu0 0
    %4494 = vmatprep.mubr.bf16.mxu0 0
    %4495 = vmatmul.mubr.bf16.gmra.mxu0 %v4457
    %v4496 = vpop.f32.mrf.mxu0
    %v4497 = vadd.f32 0.0, %v4496
    %v4498 = vpop.f32.mrf.mxu0
    %v4499 = vpop.f32.mrf.mxu0
    %v4500 = vadd.f32 0.0, %v4499
    %v4501 = vpop.f32.mrf.mxu0
    %4502 = vdwg.mxu0
    %v4503 = vadd.f32 %v4340, %v4497
    %v4504 = vadd.f32 %v4341, %v4500
    %s4505 = scalar_lea.vmem %s6, 320
    %v4506 = vld [vmem:[%s4505] sm:$0xf]
    %v4507 = vld [vmem:[%s4505 + $0x4] sm:$0xf]
    %v4508 = vld [vmem:[%s4505 + $0x8] sm:$0xf]
    %v4509 = vld [vmem:[%s4505 + $0xc] sm:$0xf]
    %v4510 = vld [vmem:[%s4505 + $0x10] sm:$0xf]
    %v4511 = vld [vmem:[%s4505 + $0x14] sm:$0xf]
    %v4512 = vld [vmem:[%s4505 + $0x18] sm:$0xf]
    %v4513 = vld [vmem:[%s4505 + $0x1c] sm:$0xf]
    %v4514 = vld [vmem:[%s4505 + $0x20] sm:$0xf]
    %v4515 = vld [vmem:[%s4505 + $0x24] sm:$0xf]
    %v4516 = vld [vmem:[%s4505 + $0x28] sm:$0xf]
    %v4517 = vld [vmem:[%s4505 + $0x2c] sm:$0xf]
    %v4518 = vld [vmem:[%s4505 + $0x30] sm:$0xf]
    %v4519 = vld [vmem:[%s4505 + $0x34] sm:$0xf]
    %v4520 = vld [vmem:[%s4505 + $0x38] sm:$0xf]
    %v4521 = vld [vmem:[%s4505 + $0x3c] sm:$0xf]
    %v4538 = vunpack.c.l.b16 %v4506
    %v4539 = vunpack.c.l.b16 %v4507
    %v4540 = vunpack.c.l.b16 %v4508
    %v4541 = vunpack.c.l.b16 %v4509
    %v4542 = vunpack.c.l.b16 %v4510
    %v4543 = vunpack.c.l.b16 %v4511
    %v4544 = vunpack.c.l.b16 %v4512
    %v4545 = vunpack.c.l.b16 %v4513
    %v4546 = vunpack.c.l.b16 %v4514
    %v4547 = vunpack.c.l.b16 %v4515
    %v4548 = vunpack.c.l.b16 %v4516
    %v4549 = vunpack.c.l.b16 %v4517
    %v4550 = vunpack.c.l.b16 %v4518
    %v4551 = vunpack.c.l.b16 %v4519
    %v4552 = vunpack.c.l.b16 %v4520
    %v4553 = vunpack.c.l.b16 %v4521
    %v4554 = vpack.c.b16 %v4539, %v4538
    %v4555 = vpack.c.b16 %v4541, %v4540
    %v4556 = vpack.c.b16 %v4543, %v4542
    %v4557 = vpack.c.b16 %v4545, %v4544
    %v4558 = vpack.c.b16 %v4547, %v4546
    %v4559 = vpack.c.b16 %v4549, %v4548
    %v4560 = vpack.c.b16 %v4551, %v4550
    %v4561 = vpack.c.b16 %v4553, %v4552
    %4570 = vmatprep.subr.bf16.mxu0 0
    %4571 = vmatpush1.bf16.msra.mxu0 %v4561
    %4572 = vmatprep.subr.bf16.mxu0 0
    %4573 = vmatpush1.bf16.msra.mxu0 %v4560
    %4574 = vmatprep.subr.bf16.mxu0 0
    %4575 = vmatpush1.bf16.msra.mxu0 %v4559
    %4576 = vmatprep.subr.bf16.mxu0 0
    %4577 = vmatpush1.bf16.msra.mxu0 %v4558
    %4578 = vmatprep.subr.bf16.mxu0 0
    %4579 = vmatpush1.bf16.msra.mxu0 %v4557
    %4580 = vmatprep.subr.bf16.mxu0 0
    %4581 = vmatpush1.bf16.msra.mxu0 %v4556
    %4582 = vmatprep.subr.bf16.mxu0 0
    %4583 = vmatpush1.bf16.msra.mxu0 %v4555
    %4584 = vmatprep.subr.bf16.mxu0 0
    %4585 = vmatpush1.bf16.msra.mxu0 %v4554
    %4586 = vmatprep.subr.bf16.mxu0 0
    %4587 = vmatpush2.bf16.msra.mxu0 0
    %4588 = vmatprep.subr.bf16.mxu0 0
    %4589 = vmatpush2.bf16.msra.mxu0 0
    %4590 = vmatprep.subr.bf16.mxu0 0
    %4591 = vmatpush2.bf16.msra.mxu0 0
    %4592 = vmatprep.subr.bf16.mxu0 0
    %4593 = vmatpush2.bf16.msra.mxu0 0
    %4594 = vmatprep.subr.bf16.mxu0 0
    %4595 = vmatpush2.bf16.msra.mxu0 0
    %4596 = vmatprep.subr.bf16.mxu0 0
    %4597 = vmatpush2.bf16.msra.mxu0 0
    %4598 = vmatprep.subr.bf16.mxu0 0
    %4599 = vmatpush2.bf16.msra.mxu0 0
    %4600 = vmatprep.subr.bf16.mxu0 0
    %4601 = vmatpush2.bf16.msra.mxu0 0
    %4602 = vmatprep.mubr.bf16.mxu0 0
    %4603 = vmatmul.mubr.bf16.gmra.mxu0 %v3693
    %v4604 = vpop.f32.mrf.mxu0
    %v4605 = vadd.f32 0.0, %v4604
    %v4606 = vpop.f32.mrf.mxu0
    %v4607 = vpop.f32.mrf.mxu0
    %v4608 = vpop.f32.mrf.mxu0
    %4609 = vdwg.mxu0
    %s4610 = scalar_lea.vmem %s5, 40
    %v4611 = vld [vmem:[%s4610] sm:$0xf]
    %v4612 = vld [vmem:[%s4610 + $0x4] sm:$0xf]
    %v4613 = vpack.c.bf16 %v4605, %v4605
    %v4616 = vunpack.c.l.b16 %v4611
    %v4617 = vunpack.c.l.b16 %v4612
    %v4618 = vpack.c.b16 %v4617, %v4616
    %v4620 = vsel %vm3915, %v4618, 0
    %v4623 = vsel %vm3919, %v4613, 0
    %4625 = vmatprep.subr.bf16.mxu0 0
    %4626 = vmatpush1.bf16.msra.mxu0 0
    %4627 = vmatprep.subr.bf16.mxu0 0
    %4628 = vmatpush1.bf16.msra.mxu0 0
    %4629 = vmatprep.subr.bf16.mxu0 0
    %4630 = vmatpush1.bf16.msra.mxu0 0
    %4631 = vmatprep.subr.bf16.mxu0 0
    %4632 = vmatpush1.bf16.msra.mxu0 0
    %4633 = vmatprep.subr.bf16.mxu0 0
    %4634 = vmatpush1.bf16.msra.mxu0 0
    %4635 = vmatprep.subr.bf16.mxu0 0
    %4636 = vmatpush1.bf16.msra.mxu0 0
    %4637 = vmatprep.subr.bf16.mxu0 0
    %4638 = vmatpush1.bf16.msra.mxu0 0
    %4639 = vmatprep.subr.bf16.mxu0 0
    %4640 = vmatpush1.bf16.msra.mxu0 %v4623
    %4641 = vmatprep.subr.bf16.mxu0 0
    %4642 = vmatpush2.bf16.msra.mxu0 0
    %4643 = vmatprep.subr.bf16.mxu0 0
    %4644 = vmatpush2.bf16.msra.mxu0 0
    %4645 = vmatprep.subr.bf16.mxu0 0
    %4646 = vmatpush2.bf16.msra.mxu0 0
    %4647 = vmatprep.subr.bf16.mxu0 0
    %4648 = vmatpush2.bf16.msra.mxu0 0
    %4649 = vmatprep.subr.bf16.mxu0 0
    %4650 = vmatpush2.bf16.msra.mxu0 0
    %4651 = vmatprep.subr.bf16.mxu0 0
    %4652 = vmatpush2.bf16.msra.mxu0 0
    %4653 = vmatprep.subr.bf16.mxu0 0
    %4654 = vmatpush2.bf16.msra.mxu0 0
    %4655 = vmatprep.subr.bf16.mxu0 0
    %4656 = vmatpush2.bf16.msra.mxu0 0
    %4657 = vmatprep.mubr.bf16.mxu0 0
    %4658 = vmatmul.mubr.bf16.gmra.mxu0 %v4620
    %v4659 = vpop.f32.mrf.mxu0
    %v4660 = vadd.f32 0.0, %v4659
    %v4661 = vpop.f32.mrf.mxu0
    %v4662 = vpop.f32.mrf.mxu0
    %v4663 = vadd.f32 0.0, %v4662
    %v4664 = vpop.f32.mrf.mxu0
    %4665 = vdwg.mxu0
    %v4666 = vadd.f32 %v4503, %v4660
    %v4667 = vadd.f32 %v4504, %v4663
    %s4668 = scalar_lea.vmem %s6, 384
    %v4669 = vld [vmem:[%s4668] sm:$0xf]
    %v4670 = vld [vmem:[%s4668 + $0x4] sm:$0xf]
    %v4671 = vld [vmem:[%s4668 + $0x8] sm:$0xf]
    %v4672 = vld [vmem:[%s4668 + $0xc] sm:$0xf]
    %v4673 = vld [vmem:[%s4668 + $0x10] sm:$0xf]
    %v4674 = vld [vmem:[%s4668 + $0x14] sm:$0xf]
    %v4675 = vld [vmem:[%s4668 + $0x18] sm:$0xf]
    %v4676 = vld [vmem:[%s4668 + $0x1c] sm:$0xf]
    %v4677 = vld [vmem:[%s4668 + $0x20] sm:$0xf]
    %v4678 = vld [vmem:[%s4668 + $0x24] sm:$0xf]
    %v4679 = vld [vmem:[%s4668 + $0x28] sm:$0xf]
    %v4680 = vld [vmem:[%s4668 + $0x2c] sm:$0xf]
    %v4681 = vld [vmem:[%s4668 + $0x30] sm:$0xf]
    %v4682 = vld [vmem:[%s4668 + $0x34] sm:$0xf]
    %v4683 = vld [vmem:[%s4668 + $0x38] sm:$0xf]
    %v4684 = vld [vmem:[%s4668 + $0x3c] sm:$0xf]
    %v4701 = vunpack.c.l.b16 %v4669
    %v4702 = vunpack.c.l.b16 %v4670
    %v4703 = vunpack.c.l.b16 %v4671
    %v4704 = vunpack.c.l.b16 %v4672
    %v4705 = vunpack.c.l.b16 %v4673
    %v4706 = vunpack.c.l.b16 %v4674
    %v4707 = vunpack.c.l.b16 %v4675
    %v4708 = vunpack.c.l.b16 %v4676
    %v4709 = vunpack.c.l.b16 %v4677
    %v4710 = vunpack.c.l.b16 %v4678
    %v4711 = vunpack.c.l.b16 %v4679
    %v4712 = vunpack.c.l.b16 %v4680
    %v4713 = vunpack.c.l.b16 %v4681
    %v4714 = vunpack.c.l.b16 %v4682
    %v4715 = vunpack.c.l.b16 %v4683
    %v4716 = vunpack.c.l.b16 %v4684
    %v4717 = vpack.c.b16 %v4702, %v4701
    %v4718 = vpack.c.b16 %v4704, %v4703
    %v4719 = vpack.c.b16 %v4706, %v4705
    %v4720 = vpack.c.b16 %v4708, %v4707
    %v4721 = vpack.c.b16 %v4710, %v4709
    %v4722 = vpack.c.b16 %v4712, %v4711
    %v4723 = vpack.c.b16 %v4714, %v4713
    %v4724 = vpack.c.b16 %v4716, %v4715
    %4733 = vmatprep.subr.bf16.mxu0 0
    %4734 = vmatpush1.bf16.msra.mxu0 %v4724
    %4735 = vmatprep.subr.bf16.mxu0 0
    %4736 = vmatpush1.bf16.msra.mxu0 %v4723
    %4737 = vmatprep.subr.bf16.mxu0 0
    %4738 = vmatpush1.bf16.msra.mxu0 %v4722
    %4739 = vmatprep.subr.bf16.mxu0 0
    %4740 = vmatpush1.bf16.msra.mxu0 %v4721
    %4741 = vmatprep.subr.bf16.mxu0 0
    %4742 = vmatpush1.bf16.msra.mxu0 %v4720
    %4743 = vmatprep.subr.bf16.mxu0 0
    %4744 = vmatpush1.bf16.msra.mxu0 %v4719
    %4745 = vmatprep.subr.bf16.mxu0 0
    %4746 = vmatpush1.bf16.msra.mxu0 %v4718
    %4747 = vmatprep.subr.bf16.mxu0 0
    %4748 = vmatpush1.bf16.msra.mxu0 %v4717
    %4749 = vmatprep.subr.bf16.mxu0 0
    %4750 = vmatpush2.bf16.msra.mxu0 0
    %4751 = vmatprep.subr.bf16.mxu0 0
    %4752 = vmatpush2.bf16.msra.mxu0 0
    %4753 = vmatprep.subr.bf16.mxu0 0
    %4754 = vmatpush2.bf16.msra.mxu0 0
    %4755 = vmatprep.subr.bf16.mxu0 0
    %4756 = vmatpush2.bf16.msra.mxu0 0
    %4757 = vmatprep.subr.bf16.mxu0 0
    %4758 = vmatpush2.bf16.msra.mxu0 0
    %4759 = vmatprep.subr.bf16.mxu0 0
    %4760 = vmatpush2.bf16.msra.mxu0 0
    %4761 = vmatprep.subr.bf16.mxu0 0
    %4762 = vmatpush2.bf16.msra.mxu0 0
    %4763 = vmatprep.subr.bf16.mxu0 0
    %4764 = vmatpush2.bf16.msra.mxu0 0
    %4765 = vmatprep.mubr.bf16.mxu0 0
    %4766 = vmatmul.mubr.bf16.gmra.mxu0 %v3693
    %v4767 = vpop.f32.mrf.mxu0
    %v4768 = vadd.f32 0.0, %v4767
    %v4769 = vpop.f32.mrf.mxu0
    %v4770 = vpop.f32.mrf.mxu0
    %v4771 = vpop.f32.mrf.mxu0
    %4772 = vdwg.mxu0
    %s4773 = scalar_lea.vmem %s5, 48
    %v4774 = vld [vmem:[%s4773] sm:$0xf]
    %v4775 = vld [vmem:[%s4773 + $0x4] sm:$0xf]
    %v4776 = vpack.c.bf16 %v4768, %v4768
    %v4779 = vunpack.c.l.b16 %v4774
    %v4780 = vunpack.c.l.b16 %v4775
    %v4781 = vpack.c.b16 %v4780, %v4779
    %v4783 = vsel %vm3915, %v4781, 0
    %v4786 = vsel %vm3919, %v4776, 0
    %4788 = vmatprep.subr.bf16.mxu0 0
    %4789 = vmatpush1.bf16.msra.mxu0 0
    %4790 = vmatprep.subr.bf16.mxu0 0
    %4791 = vmatpush1.bf16.msra.mxu0 0
    %4792 = vmatprep.subr.bf16.mxu0 0
    %4793 = vmatpush1.bf16.msra.mxu0 0
    %4794 = vmatprep.subr.bf16.mxu0 0
    %4795 = vmatpush1.bf16.msra.mxu0 0
    %4796 = vmatprep.subr.bf16.mxu0 0
    %4797 = vmatpush1.bf16.msra.mxu0 0
    %4798 = vmatprep.subr.bf16.mxu0 0
    %4799 = vmatpush1.bf16.msra.mxu0 0
    %4800 = vmatprep.subr.bf16.mxu0 0
    %4801 = vmatpush1.bf16.msra.mxu0 0
    %4802 = vmatprep.subr.bf16.mxu0 0
    %4803 = vmatpush1.bf16.msra.mxu0 %v4786
    %4804 = vmatprep.subr.bf16.mxu0 0
    %4805 = vmatpush2.bf16.msra.mxu0 0
    %4806 = vmatprep.subr.bf16.mxu0 0
    %4807 = vmatpush2.bf16.msra.mxu0 0
    %4808 = vmatprep.subr.bf16.mxu0 0
    %4809 = vmatpush2.bf16.msra.mxu0 0
    %4810 = vmatprep.subr.bf16.mxu0 0
    %4811 = vmatpush2.bf16.msra.mxu0 0
    %4812 = vmatprep.subr.bf16.mxu0 0
    %4813 = vmatpush2.bf16.msra.mxu0 0
    %4814 = vmatprep.subr.bf16.mxu0 0
    %4815 = vmatpush2.bf16.msra.mxu0 0
    %4816 = vmatprep.subr.bf16.mxu0 0
    %4817 = vmatpush2.bf16.msra.mxu0 0
    %4818 = vmatprep.subr.bf16.mxu0 0
    %4819 = vmatpush2.bf16.msra.mxu0 0
    %4820 = vmatprep.mubr.bf16.mxu0 0
    %4821 = vmatmul.mubr.bf16.gmra.mxu0 %v4783
    %v4822 = vpop.f32.mrf.mxu0
    %v4823 = vadd.f32 0.0, %v4822
    %v4824 = vpop.f32.mrf.mxu0
    %v4825 = vpop.f32.mrf.mxu0
    %v4826 = vadd.f32 0.0, %v4825
    %v4827 = vpop.f32.mrf.mxu0
    %4828 = vdwg.mxu0
    %v4829 = vadd.f32 %v4666, %v4823
    %v4830 = vadd.f32 %v4667, %v4826
    %s4831 = scalar_lea.vmem %s6, 448
    %v4832 = vld [vmem:[%s4831] sm:$0xf]
    %v4833 = vld [vmem:[%s4831 + $0x4] sm:$0xf]
    %v4834 = vld [vmem:[%s4831 + $0x8] sm:$0xf]
    %v4835 = vld [vmem:[%s4831 + $0xc] sm:$0xf]
    %v4836 = vld [vmem:[%s4831 + $0x10] sm:$0xf]
    %v4837 = vld [vmem:[%s4831 + $0x14] sm:$0xf]
    %v4838 = vld [vmem:[%s4831 + $0x18] sm:$0xf]
    %v4839 = vld [vmem:[%s4831 + $0x1c] sm:$0xf]
    %v4840 = vld [vmem:[%s4831 + $0x20] sm:$0xf]
    %v4841 = vld [vmem:[%s4831 + $0x24] sm:$0xf]
    %v4842 = vld [vmem:[%s4831 + $0x28] sm:$0xf]
    %v4843 = vld [vmem:[%s4831 + $0x2c] sm:$0xf]
    %v4844 = vld [vmem:[%s4831 + $0x30] sm:$0xf]
    %v4845 = vld [vmem:[%s4831 + $0x34] sm:$0xf]
    %v4846 = vld [vmem:[%s4831 + $0x38] sm:$0xf]
    %v4847 = vld [vmem:[%s4831 + $0x3c] sm:$0xf]
    %v4864 = vunpack.c.l.b16 %v4832
    %v4865 = vunpack.c.l.b16 %v4833
    %v4866 = vunpack.c.l.b16 %v4834
    %v4867 = vunpack.c.l.b16 %v4835
    %v4868 = vunpack.c.l.b16 %v4836
    %v4869 = vunpack.c.l.b16 %v4837
    %v4870 = vunpack.c.l.b16 %v4838
    %v4871 = vunpack.c.l.b16 %v4839
    %v4872 = vunpack.c.l.b16 %v4840
    %v4873 = vunpack.c.l.b16 %v4841
    %v4874 = vunpack.c.l.b16 %v4842
    %v4875 = vunpack.c.l.b16 %v4843
    %v4876 = vunpack.c.l.b16 %v4844
    %v4877 = vunpack.c.l.b16 %v4845
    %v4878 = vunpack.c.l.b16 %v4846
    %v4879 = vunpack.c.l.b16 %v4847
    %v4880 = vpack.c.b16 %v4865, %v4864
    %v4881 = vpack.c.b16 %v4867, %v4866
    %v4882 = vpack.c.b16 %v4869, %v4868
    %v4883 = vpack.c.b16 %v4871, %v4870
    %v4884 = vpack.c.b16 %v4873, %v4872
    %v4885 = vpack.c.b16 %v4875, %v4874
    %v4886 = vpack.c.b16 %v4877, %v4876
    %v4887 = vpack.c.b16 %v4879, %v4878
    %4896 = vmatprep.subr.bf16.mxu0 0
    %4897 = vmatpush1.bf16.msra.mxu0 %v4887
    %4898 = vmatprep.subr.bf16.mxu0 0
    %4899 = vmatpush1.bf16.msra.mxu0 %v4886
    %4900 = vmatprep.subr.bf16.mxu0 0
    %4901 = vmatpush1.bf16.msra.mxu0 %v4885
    %4902 = vmatprep.subr.bf16.mxu0 0
    %4903 = vmatpush1.bf16.msra.mxu0 %v4884
    %4904 = vmatprep.subr.bf16.mxu0 0
    %4905 = vmatpush1.bf16.msra.mxu0 %v4883
    %4906 = vmatprep.subr.bf16.mxu0 0
    %4907 = vmatpush1.bf16.msra.mxu0 %v4882
    %4908 = vmatprep.subr.bf16.mxu0 0
    %4909 = vmatpush1.bf16.msra.mxu0 %v4881
    %4910 = vmatprep.subr.bf16.mxu0 0
    %4911 = vmatpush1.bf16.msra.mxu0 %v4880
    %4912 = vmatprep.subr.bf16.mxu0 0
    %4913 = vmatpush2.bf16.msra.mxu0 0
    %4914 = vmatprep.subr.bf16.mxu0 0
    %4915 = vmatpush2.bf16.msra.mxu0 0
    %4916 = vmatprep.subr.bf16.mxu0 0
    %4917 = vmatpush2.bf16.msra.mxu0 0
    %4918 = vmatprep.subr.bf16.mxu0 0
    %4919 = vmatpush2.bf16.msra.mxu0 0
    %4920 = vmatprep.subr.bf16.mxu0 0
    %4921 = vmatpush2.bf16.msra.mxu0 0
    %4922 = vmatprep.subr.bf16.mxu0 0
    %4923 = vmatpush2.bf16.msra.mxu0 0
    %4924 = vmatprep.subr.bf16.mxu0 0
    %4925 = vmatpush2.bf16.msra.mxu0 0
    %4926 = vmatprep.subr.bf16.mxu0 0
    %4927 = vmatpush2.bf16.msra.mxu0 0
    %4928 = vmatprep.mubr.bf16.mxu0 0
    %4929 = vmatmul.mubr.bf16.gmra.mxu0 %v3693
    %v4930 = vpop.f32.mrf.mxu0
    %v4931 = vadd.f32 0.0, %v4930
    %v4932 = vpop.f32.mrf.mxu0
    %v4933 = vpop.f32.mrf.mxu0
    %v4934 = vpop.f32.mrf.mxu0
    %4935 = vdwg.mxu0
    %s4936 = scalar_lea.vmem %s5, 56
    %v4937 = vld [vmem:[%s4936] sm:$0xf]
    %v4938 = vld [vmem:[%s4936 + $0x4] sm:$0xf]
    %v4939 = vpack.c.bf16 %v4931, %v4931
    %v4942 = vunpack.c.l.b16 %v4937
    %v4943 = vunpack.c.l.b16 %v4938
    %v4944 = vpack.c.b16 %v4943, %v4942
    %v4946 = vsel %vm3915, %v4944, 0
    %v4949 = vsel %vm3919, %v4939, 0
    %4951 = vmatprep.subr.bf16.mxu0 0
    %4952 = vmatpush1.bf16.msra.mxu0 0
    %4953 = vmatprep.subr.bf16.mxu0 0
    %4954 = vmatpush1.bf16.msra.mxu0 0
    %4955 = vmatprep.subr.bf16.mxu0 0
    %4956 = vmatpush1.bf16.msra.mxu0 0
    %4957 = vmatprep.subr.bf16.mxu0 0
    %4958 = vmatpush1.bf16.msra.mxu0 0
    %4959 = vmatprep.subr.bf16.mxu0 0
    %4960 = vmatpush1.bf16.msra.mxu0 0
    %4961 = vmatprep.subr.bf16.mxu0 0
    %4962 = vmatpush1.bf16.msra.mxu0 0
    %4963 = vmatprep.subr.bf16.mxu0 0
    %4964 = vmatpush1.bf16.msra.mxu0 0
    %4965 = vmatprep.subr.bf16.mxu0 0
    %4966 = vmatpush1.bf16.msra.mxu0 %v4949
    %4967 = vmatprep.subr.bf16.mxu0 0
    %4968 = vmatpush2.bf16.msra.mxu0 0
    %4969 = vmatprep.subr.bf16.mxu0 0
    %4970 = vmatpush2.bf16.msra.mxu0 0
    %4971 = vmatprep.subr.bf16.mxu0 0
    %4972 = vmatpush2.bf16.msra.mxu0 0
    %4973 = vmatprep.subr.bf16.mxu0 0
    %4974 = vmatpush2.bf16.msra.mxu0 0
    %4975 = vmatprep.subr.bf16.mxu0 0
    %4976 = vmatpush2.bf16.msra.mxu0 0
    %4977 = vmatprep.subr.bf16.mxu0 0
    %4978 = vmatpush2.bf16.msra.mxu0 0
    %4979 = vmatprep.subr.bf16.mxu0 0
    %4980 = vmatpush2.bf16.msra.mxu0 0
    %4981 = vmatprep.subr.bf16.mxu0 0
    %4982 = vmatpush2.bf16.msra.mxu0 0
    %4983 = vmatprep.mubr.bf16.mxu0 0
    %4984 = vmatmul.mubr.bf16.gmra.mxu0 %v4946
    %v4985 = vpop.f32.mrf.mxu0
    %v4986 = vadd.f32 0.0, %v4985
    %v4987 = vpop.f32.mrf.mxu0
    %v4988 = vpop.f32.mrf.mxu0
    %v4989 = vadd.f32 0.0, %v4988
    %v4990 = vpop.f32.mrf.mxu0
    %4991 = vdwg.mxu0
    %v4992 = vadd.f32 %v4829, %v4986
    %v4993 = vadd.f32 %v4830, %v4989
    %s4994 = scalar_lea.vmem %s6, 512
    %v4995 = vld [vmem:[%s4994] sm:$0xf]
    %v4996 = vld [vmem:[%s4994 + $0x4] sm:$0xf]
    %v4997 = vld [vmem:[%s4994 + $0x8] sm:$0xf]
    %v4998 = vld [vmem:[%s4994 + $0xc] sm:$0xf]
    %v4999 = vld [vmem:[%s4994 + $0x10] sm:$0xf]
    %v5000 = vld [vmem:[%s4994 + $0x14] sm:$0xf]
    %v5001 = vld [vmem:[%s4994 + $0x18] sm:$0xf]
    %v5002 = vld [vmem:[%s4994 + $0x1c] sm:$0xf]
    %v5003 = vld [vmem:[%s4994 + $0x20] sm:$0xf]
    %v5004 = vld [vmem:[%s4994 + $0x24] sm:$0xf]
    %v5005 = vld [vmem:[%s4994 + $0x28] sm:$0xf]
    %v5006 = vld [vmem:[%s4994 + $0x2c] sm:$0xf]
    %v5007 = vld [vmem:[%s4994 + $0x30] sm:$0xf]
    %v5008 = vld [vmem:[%s4994 + $0x34] sm:$0xf]
    %v5009 = vld [vmem:[%s4994 + $0x38] sm:$0xf]
    %v5010 = vld [vmem:[%s4994 + $0x3c] sm:$0xf]
    %v5027 = vunpack.c.l.b16 %v4995
    %v5028 = vunpack.c.l.b16 %v4996
    %v5029 = vunpack.c.l.b16 %v4997
    %v5030 = vunpack.c.l.b16 %v4998
    %v5031 = vunpack.c.l.b16 %v4999
    %v5032 = vunpack.c.l.b16 %v5000
    %v5033 = vunpack.c.l.b16 %v5001
    %v5034 = vunpack.c.l.b16 %v5002
    %v5035 = vunpack.c.l.b16 %v5003
    %v5036 = vunpack.c.l.b16 %v5004
    %v5037 = vunpack.c.l.b16 %v5005
    %v5038 = vunpack.c.l.b16 %v5006
    %v5039 = vunpack.c.l.b16 %v5007
    %v5040 = vunpack.c.l.b16 %v5008
    %v5041 = vunpack.c.l.b16 %v5009
    %v5042 = vunpack.c.l.b16 %v5010
    %v5043 = vpack.c.b16 %v5028, %v5027
    %v5044 = vpack.c.b16 %v5030, %v5029
    %v5045 = vpack.c.b16 %v5032, %v5031
    %v5046 = vpack.c.b16 %v5034, %v5033
    %v5047 = vpack.c.b16 %v5036, %v5035
    %v5048 = vpack.c.b16 %v5038, %v5037
    %v5049 = vpack.c.b16 %v5040, %v5039
    %v5050 = vpack.c.b16 %v5042, %v5041
    %5059 = vmatprep.subr.bf16.mxu0 0
    %5060 = vmatpush1.bf16.msra.mxu0 %v5050
    %5061 = vmatprep.subr.bf16.mxu0 0
    %5062 = vmatpush1.bf16.msra.mxu0 %v5049
    %5063 = vmatprep.subr.bf16.mxu0 0
    %5064 = vmatpush1.bf16.msra.mxu0 %v5048
    %5065 = vmatprep.subr.bf16.mxu0 0
    %5066 = vmatpush1.bf16.msra.mxu0 %v5047
    %5067 = vmatprep.subr.bf16.mxu0 0
    %5068 = vmatpush1.bf16.msra.mxu0 %v5046
    %5069 = vmatprep.subr.bf16.mxu0 0
    %5070 = vmatpush1.bf16.msra.mxu0 %v5045
    %5071 = vmatprep.subr.bf16.mxu0 0
    %5072 = vmatpush1.bf16.msra.mxu0 %v5044
    %5073 = vmatprep.subr.bf16.mxu0 0
    %5074 = vmatpush1.bf16.msra.mxu0 %v5043
    %5075 = vmatprep.subr.bf16.mxu0 0
    %5076 = vmatpush2.bf16.msra.mxu0 0
    %5077 = vmatprep.subr.bf16.mxu0 0
    %5078 = vmatpush2.bf16.msra.mxu0 0
    %5079 = vmatprep.subr.bf16.mxu0 0
    %5080 = vmatpush2.bf16.msra.mxu0 0
    %5081 = vmatprep.subr.bf16.mxu0 0
    %5082 = vmatpush2.bf16.msra.mxu0 0
    %5083 = vmatprep.subr.bf16.mxu0 0
    %5084 = vmatpush2.bf16.msra.mxu0 0
    %5085 = vmatprep.subr.bf16.mxu0 0
    %5086 = vmatpush2.bf16.msra.mxu0 0
    %5087 = vmatprep.subr.bf16.mxu0 0
    %5088 = vmatpush2.bf16.msra.mxu0 0
    %5089 = vmatprep.subr.bf16.mxu0 0
    %5090 = vmatpush2.bf16.msra.mxu0 0
    %5091 = vmatprep.mubr.bf16.mxu0 0
    %5092 = vmatmul.mubr.bf16.gmra.mxu0 %v3693
    %v5093 = vpop.f32.mrf.mxu0
    %v5094 = vadd.f32 0.0, %v5093
    %v5095 = vpop.f32.mrf.mxu0
    %v5096 = vpop.f32.mrf.mxu0
    %v5097 = vpop.f32.mrf.mxu0
    %5098 = vdwg.mxu0
    %s5099 = scalar_lea.vmem %s5, 64
    %v5100 = vld [vmem:[%s5099] sm:$0xf]
    %v5101 = vld [vmem:[%s5099 + $0x4] sm:$0xf]
    %v5102 = vpack.c.bf16 %v5094, %v5094
    %v5105 = vunpack.c.l.b16 %v5100
    %v5106 = vunpack.c.l.b16 %v5101
    %v5107 = vpack.c.b16 %v5106, %v5105
    %v5109 = vsel %vm3915, %v5107, 0
    %v5112 = vsel %vm3919, %v5102, 0
    %5114 = vmatprep.subr.bf16.mxu0 0
    %5115 = vmatpush1.bf16.msra.mxu0 0
    %5116 = vmatprep.subr.bf16.mxu0 0
    %5117 = vmatpush1.bf16.msra.mxu0 0
    %5118 = vmatprep.subr.bf16.mxu0 0
    %5119 = vmatpush1.bf16.msra.mxu0 0
    %5120 = vmatprep.subr.bf16.mxu0 0
    %5121 = vmatpush1.bf16.msra.mxu0 0
    %5122 = vmatprep.subr.bf16.mxu0 0
    %5123 = vmatpush1.bf16.msra.mxu0 0
    %5124 = vmatprep.subr.bf16.mxu0 0
    %5125 = vmatpush1.bf16.msra.mxu0 0
    %5126 = vmatprep.subr.bf16.mxu0 0
    %5127 = vmatpush1.bf16.msra.mxu0 0
    %5128 = vmatprep.subr.bf16.mxu0 0
    %5129 = vmatpush1.bf16.msra.mxu0 %v5112
    %5130 = vmatprep.subr.bf16.mxu0 0
    %5131 = vmatpush2.bf16.msra.mxu0 0
    %5132 = vmatprep.subr.bf16.mxu0 0
    %5133 = vmatpush2.bf16.msra.mxu0 0
    %5134 = vmatprep.subr.bf16.mxu0 0
    %5135 = vmatpush2.bf16.msra.mxu0 0
    %5136 = vmatprep.subr.bf16.mxu0 0
    %5137 = vmatpush2.bf16.msra.mxu0 0
    %5138 = vmatprep.subr.bf16.mxu0 0
    %5139 = vmatpush2.bf16.msra.mxu0 0
    %5140 = vmatprep.subr.bf16.mxu0 0
    %5141 = vmatpush2.bf16.msra.mxu0 0
    %5142 = vmatprep.subr.bf16.mxu0 0
    %5143 = vmatpush2.bf16.msra.mxu0 0
    %5144 = vmatprep.subr.bf16.mxu0 0
    %5145 = vmatpush2.bf16.msra.mxu0 0
    %5146 = vmatprep.mubr.bf16.mxu0 0
    %5147 = vmatmul.mubr.bf16.gmra.mxu0 %v5109
    %v5148 = vpop.f32.mrf.mxu0
    %v5149 = vadd.f32 0.0, %v5148
    %v5150 = vpop.f32.mrf.mxu0
    %v5151 = vpop.f32.mrf.mxu0
    %v5152 = vadd.f32 0.0, %v5151
    %v5153 = vpop.f32.mrf.mxu0
    %5154 = vdwg.mxu0
    %v5155 = vadd.f32 %v4992, %v5149
    %v5156 = vadd.f32 %v4993, %v5152
    %v5157 = vld [vmem:[%s7] sm:$0xff]
    %v5158 = vld [vmem:[%s7 + $0x8] sm:$0xff]
    %5160 = vset.pattern.permute.xlu0 0
    %5161 = vperm.xlu0 %5160, %v5157
    %v5162 = vpop.permute.xlu0 %5161
    %5165 = vset.pattern.permute.xlu0 0
    %5166 = vperm.xlu0 %5165, %v5158
    %v5167 = vpop.permute.xlu0 %5166
    %v5169 = vmul.f32 %v5155, %v5162
    %v5170 = vmul.f32 %v5156, %v5167
    %v5171 = vld [vmem:[%s8] sm:$0xff]
    %v5172 = vld [vmem:[%s8 + $0x8] sm:$0xff]
    %5174 = vset.pattern.permute.xlu0 0
    %5175 = vperm.xlu0 %5174, %v5171
    %v5176 = vpop.permute.xlu0 %5175
    %5179 = vset.pattern.permute.xlu0 0
    %5180 = vperm.xlu0 %5179, %v5172
    %v5181 = vpop.permute.xlu0 %5180
    %v5183 = vadd.f32 %v5169, %v5176
    %v5184 = vadd.f32 %v5170, %v5181
    %vm5185 = vcmp.ge.f32.partialorder %v5183, 0.0
    %vm5186 = vcmp.ge.f32.partialorder %v5184, 0.0
    %v5187 = vmul.f32 %v5183, 0.2
    %v5188 = vmul.f32 %v5184, 0.2
    %v5189 = vsel %vm5185, %v5183, %v5187
    %v5190 = vsel %vm5186, %v5184, %v5188
    %v5191 = vpack.c.bf16 %v5190, %v5189
    %v5192 = vld [vmem:[%s10] sm:$0xf]
    %v5193 = vld [vmem:[%s10 + $0x4] sm:$0xf]
    %v5194 = vld [vmem:[%s10 + $0x8] sm:$0xf]
    %v5195 = vld [vmem:[%s10 + $0xc] sm:$0xf]
    %v5200 = vunpack.c.l.b16 %v5192
    %v5201 = vunpack.c.l.b16 %v5193
    %v5202 = vunpack.c.l.b16 %v5194
    %v5203 = vunpack.c.l.b16 %v5195
    %v5204 = vpack.c.b16 %v5201, %v5200
    %v5205 = vpack.c.b16 %v5203, %v5202
    %vm5208 = vcmask 261120
    %v5210 = vsel %vm5208, %v5191, 0
    %5212 = vmatprep.subr.bf16.mxu0 0
    %5213 = vmatpush1.bf16.msra.mxu0 0
    %5214 = vmatprep.subr.bf16.mxu0 0
    %5215 = vmatpush1.bf16.msra.mxu0 0
    %5216 = vmatprep.subr.bf16.mxu0 0
    %5217 = vmatpush1.bf16.msra.mxu0 0
    %5218 = vmatprep.subr.bf16.mxu0 0
    %5219 = vmatpush1.bf16.msra.mxu0 0
    %5220 = vmatprep.subr.bf16.mxu0 0
    %5221 = vmatpush1.bf16.msra.mxu0 0
    %5222 = vmatprep.subr.bf16.mxu0 0
    %5223 = vmatpush1.bf16.msra.mxu0 0
    %5224 = vmatprep.subr.bf16.mxu0 0
    %5225 = vmatpush1.bf16.msra.mxu0 %v5205
    %5226 = vmatprep.subr.bf16.mxu0 0
    %5227 = vmatpush1.bf16.msra.mxu0 %v5204
    %5228 = vmatprep.subr.bf16.mxu0 0
    %5229 = vmatpush2.bf16.msra.mxu0 0
    %5230 = vmatprep.subr.bf16.mxu0 0
    %5231 = vmatpush2.bf16.msra.mxu0 0
    %5232 = vmatprep.subr.bf16.mxu0 0
    %5233 = vmatpush2.bf16.msra.mxu0 0
    %5234 = vmatprep.subr.bf16.mxu0 0
    %5235 = vmatpush2.bf16.msra.mxu0 0
    %5236 = vmatprep.subr.bf16.mxu0 0
    %5237 = vmatpush2.bf16.msra.mxu0 0
    %5238 = vmatprep.subr.bf16.mxu0 0
    %5239 = vmatpush2.bf16.msra.mxu0 0
    %5240 = vmatprep.subr.bf16.mxu0 0
    %5241 = vmatpush2.bf16.msra.mxu0 0
    %5242 = vmatprep.subr.bf16.mxu0 0
    %5243 = vmatpush2.bf16.msra.mxu0 0
    %5244 = vmatprep.mubr.bf16.mxu0 0
    %5245 = vmatmul.mubr.bf16.gmra.mxu0 %v5210
    %v5246 = vpop.f32.mrf.mxu0
    %v5247 = vadd.f32 0.0, %v5246
    %v5248 = vpop.f32.mrf.mxu0
    %v5249 = vpop.f32.mrf.mxu0
    %v5250 = vadd.f32 0.0, %v5249
    %v5251 = vpop.f32.mrf.mxu0
    %5252 = vdwg.mxu0
    %v5253 = vld [vmem:[%s9] sm:$0xf]
    %v5254 = vld [vmem:[%s9 + $0x4] sm:$0xf]
    %v5255 = vld [vmem:[%s9 + $0x8] sm:$0xf]
    %v5256 = vld [vmem:[%s9 + $0xc] sm:$0xf]
    %v5257 = vpack.c.bf16 %v5250, %v5247
    %s5258 = scalar_lea.vmem %s10, 16
    %v5259 = vld [vmem:[%s5258] sm:$0xf]
    %v5260 = vld [vmem:[%s5258 + $0x4] sm:$0xf]
    %v5261 = vld [vmem:[%s5258 + $0x8] sm:$0xf]
    %v5262 = vld [vmem:[%s5258 + $0xc] sm:$0xf]
    %v5267 = vunpack.c.l.b16 %v5259
    %v5268 = vunpack.c.l.b16 %v5260
    %v5269 = vunpack.c.l.b16 %v5261
    %v5270 = vunpack.c.l.b16 %v5262
    %v5271 = vpack.c.b16 %v5268, %v5267
    %v5272 = vpack.c.b16 %v5270, %v5269
    %5275 = vmatprep.subr.bf16.mxu0 0
    %5276 = vmatpush1.bf16.msra.mxu0 0
    %5277 = vmatprep.subr.bf16.mxu0 0
    %5278 = vmatpush1.bf16.msra.mxu0 0
    %5279 = vmatprep.subr.bf16.mxu0 0
    %5280 = vmatpush1.bf16.msra.mxu0 0
    %5281 = vmatprep.subr.bf16.mxu0 0
    %5282 = vmatpush1.bf16.msra.mxu0 0
    %5283 = vmatprep.subr.bf16.mxu0 0
    %5284 = vmatpush1.bf16.msra.mxu0 0
    %5285 = vmatprep.subr.bf16.mxu0 0
    %5286 = vmatpush1.bf16.msra.mxu0 0
    %5287 = vmatprep.subr.bf16.mxu0 0
    %5288 = vmatpush1.bf16.msra.mxu0 %v5272
    %5289 = vmatprep.subr.bf16.mxu0 0
    %5290 = vmatpush1.bf16.msra.mxu0 %v5271
    %5291 = vmatprep.subr.bf16.mxu0 0
    %5292 = vmatpush2.bf16.msra.mxu0 0
    %5293 = vmatprep.subr.bf16.mxu0 0
    %5294 = vmatpush2.bf16.msra.mxu0 0
    %5295 = vmatprep.subr.bf16.mxu0 0
    %5296 = vmatpush2.bf16.msra.mxu0 0
    %5297 = vmatprep.subr.bf16.mxu0 0
    %5298 = vmatpush2.bf16.msra.mxu0 0
    %5299 = vmatprep.subr.bf16.mxu0 0
    %5300 = vmatpush2.bf16.msra.mxu0 0
    %5301 = vmatprep.subr.bf16.mxu0 0
    %5302 = vmatpush2.bf16.msra.mxu0 0
    %5303 = vmatprep.subr.bf16.mxu0 0
    %5304 = vmatpush2.bf16.msra.mxu0 0
    %5305 = vmatprep.subr.bf16.mxu0 0
    %5306 = vmatpush2.bf16.msra.mxu0 0
    %5307 = vmatprep.mubr.bf16.mxu0 0
    %5308 = vmatmul.mubr.bf16.gmra.mxu0 %v5210
    %v5309 = vpop.f32.mrf.mxu0
    %v5310 = vadd.f32 0.0, %v5309
    %v5311 = vpop.f32.mrf.mxu0
    %v5312 = vpop.f32.mrf.mxu0
    %v5313 = vadd.f32 0.0, %v5312
    %v5314 = vpop.f32.mrf.mxu0
    %5315 = vdwg.mxu0
    %s5316 = scalar_lea.vmem %s9, 16
    %v5317 = vld [vmem:[%s5316] sm:$0xf]
    %v5318 = vld [vmem:[%s5316 + $0x4] sm:$0xf]
    %v5319 = vld [vmem:[%s5316 + $0x8] sm:$0xf]
    %v5320 = vld [vmem:[%s5316 + $0xc] sm:$0xf]
    %v5321 = vpack.c.bf16 %v5313, %v5310
    %v5326 = vunpack.c.l.b16 %v5317
    %v5327 = vunpack.c.l.b16 %v5318
    %v5328 = vunpack.c.l.b16 %v5319
    %v5329 = vunpack.c.l.b16 %v5320
    %v5330 = vpack.c.b16 %v5327, %v5326
    %v5331 = vpack.c.b16 %v5329, %v5328
    %vm5332 = vcmask 130048
    %v5334 = vsel %vm5332, %v5330, 0
    %v5337 = vsel %vm5332, %v5331, 0
    %5339 = vmatprep.subr.bf16.mxu0 0
    %5340 = vmatpush1.bf16.msra.mxu0 0
    %5341 = vmatprep.subr.bf16.mxu0 0
    %5342 = vmatpush1.bf16.msra.mxu0 0
    %5343 = vmatprep.subr.bf16.mxu0 0
    %5344 = vmatpush1.bf16.msra.mxu0 0
    %5345 = vmatprep.subr.bf16.mxu0 0
    %5346 = vmatpush1.bf16.msra.mxu0 0
    %5347 = vmatprep.subr.bf16.mxu0 0
    %5348 = vmatpush1.bf16.msra.mxu0 0
    %5349 = vmatprep.subr.bf16.mxu0 0
    %5350 = vmatpush1.bf16.msra.mxu0 0
    %5351 = vmatprep.subr.bf16.mxu0 0
    %5352 = vmatpush1.bf16.msra.mxu0 0
    %5353 = vmatprep.subr.bf16.mxu0 0
    %5354 = vmatpush1.bf16.msra.mxu0 %v5321
    %5355 = vmatprep.subr.bf16.mxu0 0
    %5356 = vmatpush2.bf16.msra.mxu0 0
    %5357 = vmatprep.subr.bf16.mxu0 0
    %5358 = vmatpush2.bf16.msra.mxu0 0
    %5359 = vmatprep.subr.bf16.mxu0 0
    %5360 = vmatpush2.bf16.msra.mxu0 0
    %5361 = vmatprep.subr.bf16.mxu0 0
    %5362 = vmatpush2.bf16.msra.mxu0 0
    %5363 = vmatprep.subr.bf16.mxu0 0
    %5364 = vmatpush2.bf16.msra.mxu0 0
    %5365 = vmatprep.subr.bf16.mxu0 0
    %5366 = vmatpush2.bf16.msra.mxu0 0
    %5367 = vmatprep.subr.bf16.mxu0 0
    %5368 = vmatpush2.bf16.msra.mxu0 0
    %5369 = vmatprep.subr.bf16.mxu0 0
    %5370 = vmatpush2.bf16.msra.mxu0 0
    %5371 = vmatprep.mubr.bf16.mxu0 0
    %5372 = vmatmul.mubr.bf16.gmra.mxu0 %v5334
    %v5373 = vpop.f32.mrf.mxu0
    %v5374 = vadd.f32 0.0, %v5373
    %v5375 = vpop.f32.mrf.mxu0
    %v5376 = vpop.f32.mrf.mxu0
    %v5377 = vadd.f32 0.0, %v5376
    %v5378 = vpop.f32.mrf.mxu0
    %5379 = vmatprep.mubr.bf16.mxu0 0
    %5380 = vmatmul.mubr.bf16.gmra.mxu0 %v5337
    %v5381 = vpop.f32.mrf.mxu0
    %v5382 = vadd.f32 0.0, %v5381
    %v5383 = vpop.f32.mrf.mxu0
    %v5384 = vpop.f32.mrf.mxu0
    %v5385 = vadd.f32 0.0, %v5384
    %v5386 = vpop.f32.mrf.mxu0
    %5387 = vdwg.mxu0
    %v5392 = vunpack.c.l.b16 %v5253
    %v5393 = vunpack.c.l.b16 %v5254
    %v5394 = vunpack.c.l.b16 %v5255
    %v5395 = vunpack.c.l.b16 %v5256
    %v5396 = vpack.c.b16 %v5393, %v5392
    %v5397 = vpack.c.b16 %v5395, %v5394
    %v5399 = vsel %vm5332, %v5396, 0
    %v5402 = vsel %vm5332, %v5397, 0
    %5404 = vmatprep.subr.bf16.mxu0 0
    %5405 = vmatpush1.bf16.msra.mxu0 0
    %5406 = vmatprep.subr.bf16.mxu0 0
    %5407 = vmatpush1.bf16.msra.mxu0 0
    %5408 = vmatprep.subr.bf16.mxu0 0
    %5409 = vmatpush1.bf16.msra.mxu0 0
    %5410 = vmatprep.subr.bf16.mxu0 0
    %5411 = vmatpush1.bf16.msra.mxu0 0
    %5412 = vmatprep.subr.bf16.mxu0 0
    %5413 = vmatpush1.bf16.msra.mxu0 0
    %5414 = vmatprep.subr.bf16.mxu0 0
    %5415 = vmatpush1.bf16.msra.mxu0 0
    %5416 = vmatprep.subr.bf16.mxu0 0
    %5417 = vmatpush1.bf16.msra.mxu0 0
    %5418 = vmatprep.subr.bf16.mxu0 0
    %5419 = vmatpush1.bf16.msra.mxu0 %v5257
    %5420 = vmatprep.subr.bf16.mxu0 0
    %5421 = vmatpush2.bf16.msra.mxu0 0
    %5422 = vmatprep.subr.bf16.mxu0 0
    %5423 = vmatpush2.bf16.msra.mxu0 0
    %5424 = vmatprep.subr.bf16.mxu0 0
    %5425 = vmatpush2.bf16.msra.mxu0 0
    %5426 = vmatprep.subr.bf16.mxu0 0
    %5427 = vmatpush2.bf16.msra.mxu0 0
    %5428 = vmatprep.subr.bf16.mxu0 0
    %5429 = vmatpush2.bf16.msra.mxu0 0
    %5430 = vmatprep.subr.bf16.mxu0 0
    %5431 = vmatpush2.bf16.msra.mxu0 0
    %5432 = vmatprep.subr.bf16.mxu0 0
    %5433 = vmatpush2.bf16.msra.mxu0 0
    %5434 = vmatprep.subr.bf16.mxu0 0
    %5435 = vmatpush2.bf16.msra.mxu0 0
    %5436 = vmatprep.mubr.bf16.mxu0 0
    %5437 = vmatmul.mubr.bf16.gmra.mxu0 %v5399
    %v5438 = vpop.f32.mrf.mxu0
    %v5439 = vadd.f32 %v5374, %v5438
    %v5440 = vpop.f32.mrf.mxu0
    %v5441 = vpop.f32.mrf.mxu0
    %v5442 = vadd.f32 %v5377, %v5441
    %v5443 = vpop.f32.mrf.mxu0
    %5444 = vmatprep.mubr.bf16.mxu0 0
    %5445 = vmatmul.mubr.bf16.gmra.mxu0 %v5402
    %v5446 = vpop.f32.mrf.mxu0
    %v5447 = vadd.f32 %v5382, %v5446
    %v5448 = vpop.f32.mrf.mxu0
    %v5449 = vpop.f32.mrf.mxu0
    %v5450 = vadd.f32 %v5385, %v5449
    %v5451 = vpop.f32.mrf.mxu0
    %5452 = vdwg.mxu0
    %s5453 = scalar_lea.vmem %s10, 32
    %v5454 = vld [vmem:[%s5453] sm:$0xf]
    %v5455 = vld [vmem:[%s5453 + $0x4] sm:$0xf]
    %v5456 = vld [vmem:[%s5453 + $0x8] sm:$0xf]
    %v5457 = vld [vmem:[%s5453 + $0xc] sm:$0xf]
    %v5462 = vunpack.c.l.b16 %v5454
    %v5463 = vunpack.c.l.b16 %v5455
    %v5464 = vunpack.c.l.b16 %v5456
    %v5465 = vunpack.c.l.b16 %v5457
    %v5466 = vpack.c.b16 %v5463, %v5462
    %v5467 = vpack.c.b16 %v5465, %v5464
    %5470 = vmatprep.subr.bf16.mxu0 0
    %5471 = vmatpush1.bf16.msra.mxu0 0
    %5472 = vmatprep.subr.bf16.mxu0 0
    %5473 = vmatpush1.bf16.msra.mxu0 0
    %5474 = vmatprep.subr.bf16.mxu0 0
    %5475 = vmatpush1.bf16.msra.mxu0 0
    %5476 = vmatprep.subr.bf16.mxu0 0
    %5477 = vmatpush1.bf16.msra.mxu0 0
    %5478 = vmatprep.subr.bf16.mxu0 0
    %5479 = vmatpush1.bf16.msra.mxu0 0
    %5480 = vmatprep.subr.bf16.mxu0 0
    %5481 = vmatpush1.bf16.msra.mxu0 0
    %5482 = vmatprep.subr.bf16.mxu0 0
    %5483 = vmatpush1.bf16.msra.mxu0 %v5467
    %5484 = vmatprep.subr.bf16.mxu0 0
    %5485 = vmatpush1.bf16.msra.mxu0 %v5466
    %5486 = vmatprep.subr.bf16.mxu0 0
    %5487 = vmatpush2.bf16.msra.mxu0 0
    %5488 = vmatprep.subr.bf16.mxu0 0
    %5489 = vmatpush2.bf16.msra.mxu0 0
    %5490 = vmatprep.subr.bf16.mxu0 0
    %5491 = vmatpush2.bf16.msra.mxu0 0
    %5492 = vmatprep.subr.bf16.mxu0 0
    %5493 = vmatpush2.bf16.msra.mxu0 0
    %5494 = vmatprep.subr.bf16.mxu0 0
    %5495 = vmatpush2.bf16.msra.mxu0 0
    %5496 = vmatprep.subr.bf16.mxu0 0
    %5497 = vmatpush2.bf16.msra.mxu0 0
    %5498 = vmatprep.subr.bf16.mxu0 0
    %5499 = vmatpush2.bf16.msra.mxu0 0
    %5500 = vmatprep.subr.bf16.mxu0 0
    %5501 = vmatpush2.bf16.msra.mxu0 0
    %5502 = vmatprep.mubr.bf16.mxu0 0
    %5503 = vmatmul.mubr.bf16.gmra.mxu0 %v5210
    %v5504 = vpop.f32.mrf.mxu0
    %v5505 = vadd.f32 0.0, %v5504
    %v5506 = vpop.f32.mrf.mxu0
    %v5507 = vpop.f32.mrf.mxu0
    %v5508 = vadd.f32 0.0, %v5507
    %v5509 = vpop.f32.mrf.mxu0
    %5510 = vdwg.mxu0
    %s5511 = scalar_lea.vmem %s9, 32
    %v5512 = vld [vmem:[%s5511] sm:$0xf]
    %v5513 = vld [vmem:[%s5511 + $0x4] sm:$0xf]
    %v5514 = vld [vmem:[%s5511 + $0x8] sm:$0xf]
    %v5515 = vld [vmem:[%s5511 + $0xc] sm:$0xf]
    %v5516 = vpack.c.bf16 %v5508, %v5505
    %v5521 = vunpack.c.l.b16 %v5512
    %v5522 = vunpack.c.l.b16 %v5513
    %v5523 = vunpack.c.l.b16 %v5514
    %v5524 = vunpack.c.l.b16 %v5515
    %v5525 = vpack.c.b16 %v5522, %v5521
    %v5526 = vpack.c.b16 %v5524, %v5523
    %v5528 = vsel %vm5332, %v5525, 0
    %v5531 = vsel %vm5332, %v5526, 0
    %5533 = vmatprep.subr.bf16.mxu0 0
    %5534 = vmatpush1.bf16.msra.mxu0 0
    %5535 = vmatprep.subr.bf16.mxu0 0
    %5536 = vmatpush1.bf16.msra.mxu0 0
    %5537 = vmatprep.subr.bf16.mxu0 0
    %5538 = vmatpush1.bf16.msra.mxu0 0
    %5539 = vmatprep.subr.bf16.mxu0 0
    %5540 = vmatpush1.bf16.msra.mxu0 0
    %5541 = vmatprep.subr.bf16.mxu0 0
    %5542 = vmatpush1.bf16.msra.mxu0 0
    %5543 = vmatprep.subr.bf16.mxu0 0
    %5544 = vmatpush1.bf16.msra.mxu0 0
    %5545 = vmatprep.subr.bf16.mxu0 0
    %5546 = vmatpush1.bf16.msra.mxu0 0
    %5547 = vmatprep.subr.bf16.mxu0 0
    %5548 = vmatpush1.bf16.msra.mxu0 %v5516
    %5549 = vmatprep.subr.bf16.mxu0 0
    %5550 = vmatpush2.bf16.msra.mxu0 0
    %5551 = vmatprep.subr.bf16.mxu0 0
    %5552 = vmatpush2.bf16.msra.mxu0 0
    %5553 = vmatprep.subr.bf16.mxu0 0
    %5554 = vmatpush2.bf16.msra.mxu0 0
    %5555 = vmatprep.subr.bf16.mxu0 0
    %5556 = vmatpush2.bf16.msra.mxu0 0
    %5557 = vmatprep.subr.bf16.mxu0 0
    %5558 = vmatpush2.bf16.msra.mxu0 0
    %5559 = vmatprep.subr.bf16.mxu0 0
    %5560 = vmatpush2.bf16.msra.mxu0 0
    %5561 = vmatprep.subr.bf16.mxu0 0
    %5562 = vmatpush2.bf16.msra.mxu0 0
    %5563 = vmatprep.subr.bf16.mxu0 0
    %5564 = vmatpush2.bf16.msra.mxu0 0
    %5565 = vmatprep.mubr.bf16.mxu0 0
    %5566 = vmatmul.mubr.bf16.gmra.mxu0 %v5528
    %v5567 = vpop.f32.mrf.mxu0
    %v5568 = vadd.f32 0.0, %v5567
    %v5569 = vpop.f32.mrf.mxu0
    %v5570 = vpop.f32.mrf.mxu0
    %v5571 = vadd.f32 0.0, %v5570
    %v5572 = vpop.f32.mrf.mxu0
    %5573 = vmatprep.mubr.bf16.mxu0 0
    %5574 = vmatmul.mubr.bf16.gmra.mxu0 %v5531
    %v5575 = vpop.f32.mrf.mxu0
    %v5576 = vadd.f32 0.0, %v5575
    %v5577 = vpop.f32.mrf.mxu0
    %v5578 = vpop.f32.mrf.mxu0
    %v5579 = vadd.f32 0.0, %v5578
    %v5580 = vpop.f32.mrf.mxu0
    %5581 = vdwg.mxu0
    %v5582 = vadd.f32 %v5439, %v5568
    %v5583 = vadd.f32 %v5442, %v5571
    %v5584 = vadd.f32 %v5447, %v5576
    %v5585 = vadd.f32 %v5450, %v5579
    %s5586 = scalar_lea.vmem %s10, 48
    %v5587 = vld [vmem:[%s5586] sm:$0xf]
    %v5588 = vld [vmem:[%s5586 + $0x4] sm:$0xf]
    %v5589 = vld [vmem:[%s5586 + $0x8] sm:$0xf]
    %v5590 = vld [vmem:[%s5586 + $0xc] sm:$0xf]
    %v5595 = vunpack.c.l.b16 %v5587
    %v5596 = vunpack.c.l.b16 %v5588
    %v5597 = vunpack.c.l.b16 %v5589
    %v5598 = vunpack.c.l.b16 %v5590
    %v5599 = vpack.c.b16 %v5596, %v5595
    %v5600 = vpack.c.b16 %v5598, %v5597
    %5603 = vmatprep.subr.bf16.mxu0 0
    %5604 = vmatpush1.bf16.msra.mxu0 0
    %5605 = vmatprep.subr.bf16.mxu0 0
    %5606 = vmatpush1.bf16.msra.mxu0 0
    %5607 = vmatprep.subr.bf16.mxu0 0
    %5608 = vmatpush1.bf16.msra.mxu0 0
    %5609 = vmatprep.subr.bf16.mxu0 0
    %5610 = vmatpush1.bf16.msra.mxu0 0
    %5611 = vmatprep.subr.bf16.mxu0 0
    %5612 = vmatpush1.bf16.msra.mxu0 0
    %5613 = vmatprep.subr.bf16.mxu0 0
    %5614 = vmatpush1.bf16.msra.mxu0 0
    %5615 = vmatprep.subr.bf16.mxu0 0
    %5616 = vmatpush1.bf16.msra.mxu0 %v5600
    %5617 = vmatprep.subr.bf16.mxu0 0
    %5618 = vmatpush1.bf16.msra.mxu0 %v5599
    %5619 = vmatprep.subr.bf16.mxu0 0
    %5620 = vmatpush2.bf16.msra.mxu0 0
    %5621 = vmatprep.subr.bf16.mxu0 0
    %5622 = vmatpush2.bf16.msra.mxu0 0
    %5623 = vmatprep.subr.bf16.mxu0 0
    %5624 = vmatpush2.bf16.msra.mxu0 0
    %5625 = vmatprep.subr.bf16.mxu0 0
    %5626 = vmatpush2.bf16.msra.mxu0 0
    %5627 = vmatprep.subr.bf16.mxu0 0
    %5628 = vmatpush2.bf16.msra.mxu0 0
    %5629 = vmatprep.subr.bf16.mxu0 0
    %5630 = vmatpush2.bf16.msra.mxu0 0
    %5631 = vmatprep.subr.bf16.mxu0 0
    %5632 = vmatpush2.bf16.msra.mxu0 0
    %5633 = vmatprep.subr.bf16.mxu0 0
    %5634 = vmatpush2.bf16.msra.mxu0 0
    %5635 = vmatprep.mubr.bf16.mxu0 0
    %5636 = vmatmul.mubr.bf16.gmra.mxu0 %v5210
    %v5637 = vpop.f32.mrf.mxu0
    %v5638 = vadd.f32 0.0, %v5637
    %v5639 = vpop.f32.mrf.mxu0
    %v5640 = vpop.f32.mrf.mxu0
    %v5641 = vadd.f32 0.0, %v5640
    %v5642 = vpop.f32.mrf.mxu0
    %5643 = vdwg.mxu0
    %s5644 = scalar_lea.vmem %s9, 48
    %v5645 = vld [vmem:[%s5644] sm:$0xf]
    %v5646 = vld [vmem:[%s5644 + $0x4] sm:$0xf]
    %v5647 = vld [vmem:[%s5644 + $0x8] sm:$0xf]
    %v5648 = vld [vmem:[%s5644 + $0xc] sm:$0xf]
    %v5649 = vpack.c.bf16 %v5641, %v5638
    %v5654 = vunpack.c.l.b16 %v5645
    %v5655 = vunpack.c.l.b16 %v5646
    %v5656 = vunpack.c.l.b16 %v5647
    %v5657 = vunpack.c.l.b16 %v5648
    %v5658 = vpack.c.b16 %v5655, %v5654
    %v5659 = vpack.c.b16 %v5657, %v5656
    %v5661 = vsel %vm5332, %v5658, 0
    %v5664 = vsel %vm5332, %v5659, 0
    %5666 = vmatprep.subr.bf16.mxu0 0
    %5667 = vmatpush1.bf16.msra.mxu0 0
    %5668 = vmatprep.subr.bf16.mxu0 0
    %5669 = vmatpush1.bf16.msra.mxu0 0
    %5670 = vmatprep.subr.bf16.mxu0 0
    %5671 = vmatpush1.bf16.msra.mxu0 0
    %5672 = vmatprep.subr.bf16.mxu0 0
    %5673 = vmatpush1.bf16.msra.mxu0 0
    %5674 = vmatprep.subr.bf16.mxu0 0
    %5675 = vmatpush1.bf16.msra.mxu0 0
    %5676 = vmatprep.subr.bf16.mxu0 0
    %5677 = vmatpush1.bf16.msra.mxu0 0
    %5678 = vmatprep.subr.bf16.mxu0 0
    %5679 = vmatpush1.bf16.msra.mxu0 0
    %5680 = vmatprep.subr.bf16.mxu0 0
    %5681 = vmatpush1.bf16.msra.mxu0 %v5649
    %5682 = vmatprep.subr.bf16.mxu0 0
    %5683 = vmatpush2.bf16.msra.mxu0 0
    %5684 = vmatprep.subr.bf16.mxu0 0
    %5685 = vmatpush2.bf16.msra.mxu0 0
    %5686 = vmatprep.subr.bf16.mxu0 0
    %5687 = vmatpush2.bf16.msra.mxu0 0
    %5688 = vmatprep.subr.bf16.mxu0 0
    %5689 = vmatpush2.bf16.msra.mxu0 0
    %5690 = vmatprep.subr.bf16.mxu0 0
    %5691 = vmatpush2.bf16.msra.mxu0 0
    %5692 = vmatprep.subr.bf16.mxu0 0
    %5693 = vmatpush2.bf16.msra.mxu0 0
    %5694 = vmatprep.subr.bf16.mxu0 0
    %5695 = vmatpush2.bf16.msra.mxu0 0
    %5696 = vmatprep.subr.bf16.mxu0 0
    %5697 = vmatpush2.bf16.msra.mxu0 0
    %5698 = vmatprep.mubr.bf16.mxu0 0
    %5699 = vmatmul.mubr.bf16.gmra.mxu0 %v5661
    %v5700 = vpop.f32.mrf.mxu0
    %v5701 = vadd.f32 0.0, %v5700
    %v5702 = vpop.f32.mrf.mxu0
    %v5703 = vpop.f32.mrf.mxu0
    %v5704 = vadd.f32 0.0, %v5703
    %v5705 = vpop.f32.mrf.mxu0
    %5706 = vmatprep.mubr.bf16.mxu0 0
    %5707 = vmatmul.mubr.bf16.gmra.mxu0 %v5664
    %v5708 = vpop.f32.mrf.mxu0
    %v5709 = vadd.f32 0.0, %v5708
    %v5710 = vpop.f32.mrf.mxu0
    %v5711 = vpop.f32.mrf.mxu0
    %v5712 = vadd.f32 0.0, %v5711
    %v5713 = vpop.f32.mrf.mxu0
    %5714 = vdwg.mxu0
    %v5715 = vadd.f32 %v5582, %v5701
    %v5716 = vadd.f32 %v5583, %v5704
    %v5717 = vadd.f32 %v5584, %v5709
    %v5718 = vadd.f32 %v5585, %v5712
    %s5719 = scalar_lea.vmem %s10, 64
    %v5720 = vld [vmem:[%s5719] sm:$0xf]
    %v5721 = vld [vmem:[%s5719 + $0x4] sm:$0xf]
    %v5722 = vld [vmem:[%s5719 + $0x8] sm:$0xf]
    %v5723 = vld [vmem:[%s5719 + $0xc] sm:$0xf]
    %v5728 = vunpack.c.l.b16 %v5720
    %v5729 = vunpack.c.l.b16 %v5721
    %v5730 = vunpack.c.l.b16 %v5722
    %v5731 = vunpack.c.l.b16 %v5723
    %v5732 = vpack.c.b16 %v5729, %v5728
    %v5733 = vpack.c.b16 %v5731, %v5730
    %5736 = vmatprep.subr.bf16.mxu0 0
    %5737 = vmatpush1.bf16.msra.mxu0 0
    %5738 = vmatprep.subr.bf16.mxu0 0
    %5739 = vmatpush1.bf16.msra.mxu0 0
    %5740 = vmatprep.subr.bf16.mxu0 0
    %5741 = vmatpush1.bf16.msra.mxu0 0
    %5742 = vmatprep.subr.bf16.mxu0 0
    %5743 = vmatpush1.bf16.msra.mxu0 0
    %5744 = vmatprep.subr.bf16.mxu0 0
    %5745 = vmatpush1.bf16.msra.mxu0 0
    %5746 = vmatprep.subr.bf16.mxu0 0
    %5747 = vmatpush1.bf16.msra.mxu0 0
    %5748 = vmatprep.subr.bf16.mxu0 0
    %5749 = vmatpush1.bf16.msra.mxu0 %v5733
    %5750 = vmatprep.subr.bf16.mxu0 0
    %5751 = vmatpush1.bf16.msra.mxu0 %v5732
    %5752 = vmatprep.subr.bf16.mxu0 0
    %5753 = vmatpush2.bf16.msra.mxu0 0
    %5754 = vmatprep.subr.bf16.mxu0 0
    %5755 = vmatpush2.bf16.msra.mxu0 0
    %5756 = vmatprep.subr.bf16.mxu0 0
    %5757 = vmatpush2.bf16.msra.mxu0 0
    %5758 = vmatprep.subr.bf16.mxu0 0
    %5759 = vmatpush2.bf16.msra.mxu0 0
    %5760 = vmatprep.subr.bf16.mxu0 0
    %5761 = vmatpush2.bf16.msra.mxu0 0
    %5762 = vmatprep.subr.bf16.mxu0 0
    %5763 = vmatpush2.bf16.msra.mxu0 0
    %5764 = vmatprep.subr.bf16.mxu0 0
    %5765 = vmatpush2.bf16.msra.mxu0 0
    %5766 = vmatprep.subr.bf16.mxu0 0
    %5767 = vmatpush2.bf16.msra.mxu0 0
    %5768 = vmatprep.mubr.bf16.mxu0 0
    %5769 = vmatmul.mubr.bf16.gmra.mxu0 %v5210
    %v5770 = vpop.f32.mrf.mxu0
    %v5771 = vadd.f32 0.0, %v5770
    %v5772 = vpop.f32.mrf.mxu0
    %v5773 = vpop.f32.mrf.mxu0
    %v5774 = vadd.f32 0.0, %v5773
    %v5775 = vpop.f32.mrf.mxu0
    %5776 = vdwg.mxu0
    %s5777 = scalar_lea.vmem %s9, 64
    %v5778 = vld [vmem:[%s5777] sm:$0xf]
    %v5779 = vld [vmem:[%s5777 + $0x4] sm:$0xf]
    %v5780 = vld [vmem:[%s5777 + $0x8] sm:$0xf]
    %v5781 = vld [vmem:[%s5777 + $0xc] sm:$0xf]
    %v5782 = vpack.c.bf16 %v5774, %v5771
    %v5787 = vunpack.c.l.b16 %v5778
    %v5788 = vunpack.c.l.b16 %v5779
    %v5789 = vunpack.c.l.b16 %v5780
    %v5790 = vunpack.c.l.b16 %v5781
    %v5791 = vpack.c.b16 %v5788, %v5787
    %v5792 = vpack.c.b16 %v5790, %v5789
    %v5794 = vsel %vm5332, %v5791, 0
    %v5797 = vsel %vm5332, %v5792, 0
    %5799 = vmatprep.subr.bf16.mxu0 0
    %5800 = vmatpush1.bf16.msra.mxu0 0
    %5801 = vmatprep.subr.bf16.mxu0 0
    %5802 = vmatpush1.bf16.msra.mxu0 0
    %5803 = vmatprep.subr.bf16.mxu0 0
    %5804 = vmatpush1.bf16.msra.mxu0 0
    %5805 = vmatprep.subr.bf16.mxu0 0
    %5806 = vmatpush1.bf16.msra.mxu0 0
    %5807 = vmatprep.subr.bf16.mxu0 0
    %5808 = vmatpush1.bf16.msra.mxu0 0
    %5809 = vmatprep.subr.bf16.mxu0 0
    %5810 = vmatpush1.bf16.msra.mxu0 0
    %5811 = vmatprep.subr.bf16.mxu0 0
    %5812 = vmatpush1.bf16.msra.mxu0 0
    %5813 = vmatprep.subr.bf16.mxu0 0
    %5814 = vmatpush1.bf16.msra.mxu0 %v5782
    %5815 = vmatprep.subr.bf16.mxu0 0
    %5816 = vmatpush2.bf16.msra.mxu0 0
    %5817 = vmatprep.subr.bf16.mxu0 0
    %5818 = vmatpush2.bf16.msra.mxu0 0
    %5819 = vmatprep.subr.bf16.mxu0 0
    %5820 = vmatpush2.bf16.msra.mxu0 0
    %5821 = vmatprep.subr.bf16.mxu0 0
    %5822 = vmatpush2.bf16.msra.mxu0 0
    %5823 = vmatprep.subr.bf16.mxu0 0
    %5824 = vmatpush2.bf16.msra.mxu0 0
    %5825 = vmatprep.subr.bf16.mxu0 0
    %5826 = vmatpush2.bf16.msra.mxu0 0
    %5827 = vmatprep.subr.bf16.mxu0 0
    %5828 = vmatpush2.bf16.msra.mxu0 0
    %5829 = vmatprep.subr.bf16.mxu0 0
    %5830 = vmatpush2.bf16.msra.mxu0 0
    %5831 = vmatprep.mubr.bf16.mxu0 0
    %5832 = vmatmul.mubr.bf16.gmra.mxu0 %v5794
    %v5833 = vpop.f32.mrf.mxu0
    %v5834 = vadd.f32 0.0, %v5833
    %v5835 = vpop.f32.mrf.mxu0
    %v5836 = vpop.f32.mrf.mxu0
    %v5837 = vadd.f32 0.0, %v5836
    %v5838 = vpop.f32.mrf.mxu0
    %5839 = vmatprep.mubr.bf16.mxu0 0
    %5840 = vmatmul.mubr.bf16.gmra.mxu0 %v5797
    %v5841 = vpop.f32.mrf.mxu0
    %v5842 = vadd.f32 0.0, %v5841
    %v5843 = vpop.f32.mrf.mxu0
    %v5844 = vpop.f32.mrf.mxu0
    %v5845 = vadd.f32 0.0, %v5844
    %v5846 = vpop.f32.mrf.mxu0
    %5847 = vdwg.mxu0
    %v5848 = vadd.f32 %v5715, %v5834
    %v5849 = vadd.f32 %v5716, %v5837
    %v5850 = vadd.f32 %v5717, %v5842
    %v5851 = vadd.f32 %v5718, %v5845
    %s5852 = scalar_lea.vmem %s10, 80
    %v5853 = vld [vmem:[%s5852] sm:$0xf]
    %v5854 = vld [vmem:[%s5852 + $0x4] sm:$0xf]
    %v5855 = vld [vmem:[%s5852 + $0x8] sm:$0xf]
    %v5856 = vld [vmem:[%s5852 + $0xc] sm:$0xf]
    %v5861 = vunpack.c.l.b16 %v5853
    %v5862 = vunpack.c.l.b16 %v5854
    %v5863 = vunpack.c.l.b16 %v5855
    %v5864 = vunpack.c.l.b16 %v5856
    %v5865 = vpack.c.b16 %v5862, %v5861
    %v5866 = vpack.c.b16 %v5864, %v5863
    %5869 = vmatprep.subr.bf16.mxu0 0
    %5870 = vmatpush1.bf16.msra.mxu0 0
    %5871 = vmatprep.subr.bf16.mxu0 0
    %5872 = vmatpush1.bf16.msra.mxu0 0
    %5873 = vmatprep.subr.bf16.mxu0 0
    %5874 = vmatpush1.bf16.msra.mxu0 0
    %5875 = vmatprep.subr.bf16.mxu0 0
    %5876 = vmatpush1.bf16.msra.mxu0 0
    %5877 = vmatprep.subr.bf16.mxu0 0
    %5878 = vmatpush1.bf16.msra.mxu0 0
    %5879 = vmatprep.subr.bf16.mxu0 0
    %5880 = vmatpush1.bf16.msra.mxu0 0
    %5881 = vmatprep.subr.bf16.mxu0 0
    %5882 = vmatpush1.bf16.msra.mxu0 %v5866
    %5883 = vmatprep.subr.bf16.mxu0 0
    %5884 = vmatpush1.bf16.msra.mxu0 %v5865
    %5885 = vmatprep.subr.bf16.mxu0 0
    %5886 = vmatpush2.bf16.msra.mxu0 0
    %5887 = vmatprep.subr.bf16.mxu0 0
    %5888 = vmatpush2.bf16.msra.mxu0 0
    %5889 = vmatprep.subr.bf16.mxu0 0
    %5890 = vmatpush2.bf16.msra.mxu0 0
    %5891 = vmatprep.subr.bf16.mxu0 0
    %5892 = vmatpush2.bf16.msra.mxu0 0
    %5893 = vmatprep.subr.bf16.mxu0 0
    %5894 = vmatpush2.bf16.msra.mxu0 0
    %5895 = vmatprep.subr.bf16.mxu0 0
    %5896 = vmatpush2.bf16.msra.mxu0 0
    %5897 = vmatprep.subr.bf16.mxu0 0
    %5898 = vmatpush2.bf16.msra.mxu0 0
    %5899 = vmatprep.subr.bf16.mxu0 0
    %5900 = vmatpush2.bf16.msra.mxu0 0
    %5901 = vmatprep.mubr.bf16.mxu0 0
    %5902 = vmatmul.mubr.bf16.gmra.mxu0 %v5210
    %v5903 = vpop.f32.mrf.mxu0
    %v5904 = vadd.f32 0.0, %v5903
    %v5905 = vpop.f32.mrf.mxu0
    %v5906 = vpop.f32.mrf.mxu0
    %v5907 = vadd.f32 0.0, %v5906
    %v5908 = vpop.f32.mrf.mxu0
    %5909 = vdwg.mxu0
    %s5910 = scalar_lea.vmem %s9, 80
    %v5911 = vld [vmem:[%s5910] sm:$0xf]
    %v5912 = vld [vmem:[%s5910 + $0x4] sm:$0xf]
    %v5913 = vld [vmem:[%s5910 + $0x8] sm:$0xf]
    %v5914 = vld [vmem:[%s5910 + $0xc] sm:$0xf]
    %v5915 = vpack.c.bf16 %v5907, %v5904
    %v5920 = vunpack.c.l.b16 %v5911
    %v5921 = vunpack.c.l.b16 %v5912
    %v5922 = vunpack.c.l.b16 %v5913
    %v5923 = vunpack.c.l.b16 %v5914
    %v5924 = vpack.c.b16 %v5921, %v5920
    %v5925 = vpack.c.b16 %v5923, %v5922
    %v5927 = vsel %vm5332, %v5924, 0
    %v5930 = vsel %vm5332, %v5925, 0
    %5932 = vmatprep.subr.bf16.mxu0 0
    %5933 = vmatpush1.bf16.msra.mxu0 0
    %5934 = vmatprep.subr.bf16.mxu0 0
    %5935 = vmatpush1.bf16.msra.mxu0 0
    %5936 = vmatprep.subr.bf16.mxu0 0
    %5937 = vmatpush1.bf16.msra.mxu0 0
    %5938 = vmatprep.subr.bf16.mxu0 0
    %5939 = vmatpush1.bf16.msra.mxu0 0
    %5940 = vmatprep.subr.bf16.mxu0 0
    %5941 = vmatpush1.bf16.msra.mxu0 0
    %5942 = vmatprep.subr.bf16.mxu0 0
    %5943 = vmatpush1.bf16.msra.mxu0 0
    %5944 = vmatprep.subr.bf16.mxu0 0
    %5945 = vmatpush1.bf16.msra.mxu0 0
    %5946 = vmatprep.subr.bf16.mxu0 0
    %5947 = vmatpush1.bf16.msra.mxu0 %v5915
    %5948 = vmatprep.subr.bf16.mxu0 0
    %5949 = vmatpush2.bf16.msra.mxu0 0
    %5950 = vmatprep.subr.bf16.mxu0 0
    %5951 = vmatpush2.bf16.msra.mxu0 0
    %5952 = vmatprep.subr.bf16.mxu0 0
    %5953 = vmatpush2.bf16.msra.mxu0 0
    %5954 = vmatprep.subr.bf16.mxu0 0
    %5955 = vmatpush2.bf16.msra.mxu0 0
    %5956 = vmatprep.subr.bf16.mxu0 0
    %5957 = vmatpush2.bf16.msra.mxu0 0
    %5958 = vmatprep.subr.bf16.mxu0 0
    %5959 = vmatpush2.bf16.msra.mxu0 0
    %5960 = vmatprep.subr.bf16.mxu0 0
    %5961 = vmatpush2.bf16.msra.mxu0 0
    %5962 = vmatprep.subr.bf16.mxu0 0
    %5963 = vmatpush2.bf16.msra.mxu0 0
    %5964 = vmatprep.mubr.bf16.mxu0 0
    %5965 = vmatmul.mubr.bf16.gmra.mxu0 %v5927
    %v5966 = vpop.f32.mrf.mxu0
    %v5967 = vadd.f32 0.0, %v5966
    %v5968 = vpop.f32.mrf.mxu0
    %v5969 = vpop.f32.mrf.mxu0
    %v5970 = vadd.f32 0.0, %v5969
    %v5971 = vpop.f32.mrf.mxu0
    %5972 = vmatprep.mubr.bf16.mxu0 0
    %5973 = vmatmul.mubr.bf16.gmra.mxu0 %v5930
    %v5974 = vpop.f32.mrf.mxu0
    %v5975 = vadd.f32 0.0, %v5974
    %v5976 = vpop.f32.mrf.mxu0
    %v5977 = vpop.f32.mrf.mxu0
    %v5978 = vadd.f32 0.0, %v5977
    %v5979 = vpop.f32.mrf.mxu0
    %5980 = vdwg.mxu0
    %v5981 = vadd.f32 %v5848, %v5967
    %v5982 = vadd.f32 %v5849, %v5970
    %v5983 = vadd.f32 %v5850, %v5975
    %v5984 = vadd.f32 %v5851, %v5978
    %s5985 = scalar_lea.vmem %s10, 96
    %v5986 = vld [vmem:[%s5985] sm:$0xf]
    %v5987 = vld [vmem:[%s5985 + $0x4] sm:$0xf]
    %v5988 = vld [vmem:[%s5985 + $0x8] sm:$0xf]
    %v5989 = vld [vmem:[%s5985 + $0xc] sm:$0xf]
    %v5994 = vunpack.c.l.b16 %v5986
    %v5995 = vunpack.c.l.b16 %v5987
    %v5996 = vunpack.c.l.b16 %v5988
    %v5997 = vunpack.c.l.b16 %v5989
    %v5998 = vpack.c.b16 %v5995, %v5994
    %v5999 = vpack.c.b16 %v5997, %v5996
    %6002 = vmatprep.subr.bf16.mxu0 0
    %6003 = vmatpush1.bf16.msra.mxu0 0
    %6004 = vmatprep.subr.bf16.mxu0 0
    %6005 = vmatpush1.bf16.msra.mxu0 0
    %6006 = vmatprep.subr.bf16.mxu0 0
    %6007 = vmatpush1.bf16.msra.mxu0 0
    %6008 = vmatprep.subr.bf16.mxu0 0
    %6009 = vmatpush1.bf16.msra.mxu0 0
    %6010 = vmatprep.subr.bf16.mxu0 0
    %6011 = vmatpush1.bf16.msra.mxu0 0
    %6012 = vmatprep.subr.bf16.mxu0 0
    %6013 = vmatpush1.bf16.msra.mxu0 0
    %6014 = vmatprep.subr.bf16.mxu0 0
    %6015 = vmatpush1.bf16.msra.mxu0 %v5999
    %6016 = vmatprep.subr.bf16.mxu0 0
    %6017 = vmatpush1.bf16.msra.mxu0 %v5998
    %6018 = vmatprep.subr.bf16.mxu0 0
    %6019 = vmatpush2.bf16.msra.mxu0 0
    %6020 = vmatprep.subr.bf16.mxu0 0
    %6021 = vmatpush2.bf16.msra.mxu0 0
    %6022 = vmatprep.subr.bf16.mxu0 0
    %6023 = vmatpush2.bf16.msra.mxu0 0
    %6024 = vmatprep.subr.bf16.mxu0 0
    %6025 = vmatpush2.bf16.msra.mxu0 0
    %6026 = vmatprep.subr.bf16.mxu0 0
    %6027 = vmatpush2.bf16.msra.mxu0 0
    %6028 = vmatprep.subr.bf16.mxu0 0
    %6029 = vmatpush2.bf16.msra.mxu0 0
    %6030 = vmatprep.subr.bf16.mxu0 0
    %6031 = vmatpush2.bf16.msra.mxu0 0
    %6032 = vmatprep.subr.bf16.mxu0 0
    %6033 = vmatpush2.bf16.msra.mxu0 0
    %6034 = vmatprep.mubr.bf16.mxu0 0
    %6035 = vmatmul.mubr.bf16.gmra.mxu0 %v5210
    %v6036 = vpop.f32.mrf.mxu0
    %v6037 = vadd.f32 0.0, %v6036
    %v6038 = vpop.f32.mrf.mxu0
    %v6039 = vpop.f32.mrf.mxu0
    %v6040 = vadd.f32 0.0, %v6039
    %v6041 = vpop.f32.mrf.mxu0
    %6042 = vdwg.mxu0
    %s6043 = scalar_lea.vmem %s9, 96
    %v6044 = vld [vmem:[%s6043] sm:$0xf]
    %v6045 = vld [vmem:[%s6043 + $0x4] sm:$0xf]
    %v6046 = vld [vmem:[%s6043 + $0x8] sm:$0xf]
    %v6047 = vld [vmem:[%s6043 + $0xc] sm:$0xf]
    %v6048 = vpack.c.bf16 %v6040, %v6037
    %v6053 = vunpack.c.l.b16 %v6044
    %v6054 = vunpack.c.l.b16 %v6045
    %v6055 = vunpack.c.l.b16 %v6046
    %v6056 = vunpack.c.l.b16 %v6047
    %v6057 = vpack.c.b16 %v6054, %v6053
    %v6058 = vpack.c.b16 %v6056, %v6055
    %v6060 = vsel %vm5332, %v6057, 0
    %v6063 = vsel %vm5332, %v6058, 0
    %6065 = vmatprep.subr.bf16.mxu0 0
    %6066 = vmatpush1.bf16.msra.mxu0 0
    %6067 = vmatprep.subr.bf16.mxu0 0
    %6068 = vmatpush1.bf16.msra.mxu0 0
    %6069 = vmatprep.subr.bf16.mxu0 0
    %6070 = vmatpush1.bf16.msra.mxu0 0
    %6071 = vmatprep.subr.bf16.mxu0 0
    %6072 = vmatpush1.bf16.msra.mxu0 0
    %6073 = vmatprep.subr.bf16.mxu0 0
    %6074 = vmatpush1.bf16.msra.mxu0 0
    %6075 = vmatprep.subr.bf16.mxu0 0
    %6076 = vmatpush1.bf16.msra.mxu0 0
    %6077 = vmatprep.subr.bf16.mxu0 0
    %6078 = vmatpush1.bf16.msra.mxu0 0
    %6079 = vmatprep.subr.bf16.mxu0 0
    %6080 = vmatpush1.bf16.msra.mxu0 %v6048
    %6081 = vmatprep.subr.bf16.mxu0 0
    %6082 = vmatpush2.bf16.msra.mxu0 0
    %6083 = vmatprep.subr.bf16.mxu0 0
    %6084 = vmatpush2.bf16.msra.mxu0 0
    %6085 = vmatprep.subr.bf16.mxu0 0
    %6086 = vmatpush2.bf16.msra.mxu0 0
    %6087 = vmatprep.subr.bf16.mxu0 0
    %6088 = vmatpush2.bf16.msra.mxu0 0
    %6089 = vmatprep.subr.bf16.mxu0 0
    %6090 = vmatpush2.bf16.msra.mxu0 0
    %6091 = vmatprep.subr.bf16.mxu0 0
    %6092 = vmatpush2.bf16.msra.mxu0 0
    %6093 = vmatprep.subr.bf16.mxu0 0
    %6094 = vmatpush2.bf16.msra.mxu0 0
    %6095 = vmatprep.subr.bf16.mxu0 0
    %6096 = vmatpush2.bf16.msra.mxu0 0
    %6097 = vmatprep.mubr.bf16.mxu0 0
    %6098 = vmatmul.mubr.bf16.gmra.mxu0 %v6060
    %v6099 = vpop.f32.mrf.mxu0
    %v6100 = vadd.f32 0.0, %v6099
    %v6101 = vpop.f32.mrf.mxu0
    %v6102 = vpop.f32.mrf.mxu0
    %v6103 = vadd.f32 0.0, %v6102
    %v6104 = vpop.f32.mrf.mxu0
    %6105 = vmatprep.mubr.bf16.mxu0 0
    %6106 = vmatmul.mubr.bf16.gmra.mxu0 %v6063
    %v6107 = vpop.f32.mrf.mxu0
    %v6108 = vadd.f32 0.0, %v6107
    %v6109 = vpop.f32.mrf.mxu0
    %v6110 = vpop.f32.mrf.mxu0
    %v6111 = vadd.f32 0.0, %v6110
    %v6112 = vpop.f32.mrf.mxu0
    %6113 = vdwg.mxu0
    %v6114 = vadd.f32 %v5981, %v6100
    %v6115 = vadd.f32 %v5982, %v6103
    %v6116 = vadd.f32 %v5983, %v6108
    %v6117 = vadd.f32 %v5984, %v6111
    %s6118 = scalar_lea.vmem %s10, 112
    %v6119 = vld [vmem:[%s6118] sm:$0xf]
    %v6120 = vld [vmem:[%s6118 + $0x4] sm:$0xf]
    %v6121 = vld [vmem:[%s6118 + $0x8] sm:$0xf]
    %v6122 = vld [vmem:[%s6118 + $0xc] sm:$0xf]
    %v6127 = vunpack.c.l.b16 %v6119
    %v6128 = vunpack.c.l.b16 %v6120
    %v6129 = vunpack.c.l.b16 %v6121
    %v6130 = vunpack.c.l.b16 %v6122
    %v6131 = vpack.c.b16 %v6128, %v6127
    %v6132 = vpack.c.b16 %v6130, %v6129
    %6135 = vmatprep.subr.bf16.mxu0 0
    %6136 = vmatpush1.bf16.msra.mxu0 0
    %6137 = vmatprep.subr.bf16.mxu0 0
    %6138 = vmatpush1.bf16.msra.mxu0 0
    %6139 = vmatprep.subr.bf16.mxu0 0
    %6140 = vmatpush1.bf16.msra.mxu0 0
    %6141 = vmatprep.subr.bf16.mxu0 0
    %6142 = vmatpush1.bf16.msra.mxu0 0
    %6143 = vmatprep.subr.bf16.mxu0 0
    %6144 = vmatpush1.bf16.msra.mxu0 0
    %6145 = vmatprep.subr.bf16.mxu0 0
    %6146 = vmatpush1.bf16.msra.mxu0 0
    %6147 = vmatprep.subr.bf16.mxu0 0
    %6148 = vmatpush1.bf16.msra.mxu0 %v6132
    %6149 = vmatprep.subr.bf16.mxu0 0
    %6150 = vmatpush1.bf16.msra.mxu0 %v6131
    %6151 = vmatprep.subr.bf16.mxu0 0
    %6152 = vmatpush2.bf16.msra.mxu0 0
    %6153 = vmatprep.subr.bf16.mxu0 0
    %6154 = vmatpush2.bf16.msra.mxu0 0
    %6155 = vmatprep.subr.bf16.mxu0 0
    %6156 = vmatpush2.bf16.msra.mxu0 0
    %6157 = vmatprep.subr.bf16.mxu0 0
    %6158 = vmatpush2.bf16.msra.mxu0 0
    %6159 = vmatprep.subr.bf16.mxu0 0
    %6160 = vmatpush2.bf16.msra.mxu0 0
    %6161 = vmatprep.subr.bf16.mxu0 0
    %6162 = vmatpush2.bf16.msra.mxu0 0
    %6163 = vmatprep.subr.bf16.mxu0 0
    %6164 = vmatpush2.bf16.msra.mxu0 0
    %6165 = vmatprep.subr.bf16.mxu0 0
    %6166 = vmatpush2.bf16.msra.mxu0 0
    %6167 = vmatprep.mubr.bf16.mxu0 0
    %6168 = vmatmul.mubr.bf16.gmra.mxu0 %v5210
    %v6169 = vpop.f32.mrf.mxu0
    %v6170 = vadd.f32 0.0, %v6169
    %v6171 = vpop.f32.mrf.mxu0
    %v6172 = vpop.f32.mrf.mxu0
    %v6173 = vadd.f32 0.0, %v6172
    %v6174 = vpop.f32.mrf.mxu0
    %6175 = vdwg.mxu0
    %s6176 = scalar_lea.vmem %s9, 112
    %v6177 = vld [vmem:[%s6176] sm:$0xf]
    %v6178 = vld [vmem:[%s6176 + $0x4] sm:$0xf]
    %v6179 = vld [vmem:[%s6176 + $0x8] sm:$0xf]
    %v6180 = vld [vmem:[%s6176 + $0xc] sm:$0xf]
    %v6181 = vpack.c.bf16 %v6173, %v6170
    %v6186 = vunpack.c.l.b16 %v6177
    %v6187 = vunpack.c.l.b16 %v6178
    %v6188 = vunpack.c.l.b16 %v6179
    %v6189 = vunpack.c.l.b16 %v6180
    %v6190 = vpack.c.b16 %v6187, %v6186
    %v6191 = vpack.c.b16 %v6189, %v6188
    %v6193 = vsel %vm5332, %v6190, 0
    %v6196 = vsel %vm5332, %v6191, 0
    %6198 = vmatprep.subr.bf16.mxu0 0
    %6199 = vmatpush1.bf16.msra.mxu0 0
    %6200 = vmatprep.subr.bf16.mxu0 0
    %6201 = vmatpush1.bf16.msra.mxu0 0
    %6202 = vmatprep.subr.bf16.mxu0 0
    %6203 = vmatpush1.bf16.msra.mxu0 0
    %6204 = vmatprep.subr.bf16.mxu0 0
    %6205 = vmatpush1.bf16.msra.mxu0 0
    %6206 = vmatprep.subr.bf16.mxu0 0
    %6207 = vmatpush1.bf16.msra.mxu0 0
    %6208 = vmatprep.subr.bf16.mxu0 0
    %6209 = vmatpush1.bf16.msra.mxu0 0
    %6210 = vmatprep.subr.bf16.mxu0 0
    %6211 = vmatpush1.bf16.msra.mxu0 0
    %6212 = vmatprep.subr.bf16.mxu0 0
    %6213 = vmatpush1.bf16.msra.mxu0 %v6181
    %6214 = vmatprep.subr.bf16.mxu0 0
    %6215 = vmatpush2.bf16.msra.mxu0 0
    %6216 = vmatprep.subr.bf16.mxu0 0
    %6217 = vmatpush2.bf16.msra.mxu0 0
    %6218 = vmatprep.subr.bf16.mxu0 0
    %6219 = vmatpush2.bf16.msra.mxu0 0
    %6220 = vmatprep.subr.bf16.mxu0 0
    %6221 = vmatpush2.bf16.msra.mxu0 0
    %6222 = vmatprep.subr.bf16.mxu0 0
    %6223 = vmatpush2.bf16.msra.mxu0 0
    %6224 = vmatprep.subr.bf16.mxu0 0
    %6225 = vmatpush2.bf16.msra.mxu0 0
    %6226 = vmatprep.subr.bf16.mxu0 0
    %6227 = vmatpush2.bf16.msra.mxu0 0
    %6228 = vmatprep.subr.bf16.mxu0 0
    %6229 = vmatpush2.bf16.msra.mxu0 0
    %6230 = vmatprep.mubr.bf16.mxu0 0
    %6231 = vmatmul.mubr.bf16.gmra.mxu0 %v6193
    %v6232 = vpop.f32.mrf.mxu0
    %v6233 = vadd.f32 0.0, %v6232
    %v6234 = vpop.f32.mrf.mxu0
    %v6235 = vpop.f32.mrf.mxu0
    %v6236 = vadd.f32 0.0, %v6235
    %v6237 = vpop.f32.mrf.mxu0
    %6238 = vmatprep.mubr.bf16.mxu0 0
    %6239 = vmatmul.mubr.bf16.gmra.mxu0 %v6196
    %v6240 = vpop.f32.mrf.mxu0
    %v6241 = vadd.f32 0.0, %v6240
    %v6242 = vpop.f32.mrf.mxu0
    %v6243 = vpop.f32.mrf.mxu0
    %v6244 = vadd.f32 0.0, %v6243
    %v6245 = vpop.f32.mrf.mxu0
    %6246 = vdwg.mxu0
    %v6247 = vadd.f32 %v6114, %v6233
    %v6248 = vadd.f32 %v6115, %v6236
    %v6249 = vadd.f32 %v6116, %v6241
    %v6250 = vadd.f32 %v6117, %v6244
    %s6251 = scalar_lea.vmem %s10, 128
    %v6252 = vld [vmem:[%s6251] sm:$0xf]
    %v6253 = vld [vmem:[%s6251 + $0x4] sm:$0xf]
    %v6254 = vld [vmem:[%s6251 + $0x8] sm:$0xf]
    %v6255 = vld [vmem:[%s6251 + $0xc] sm:$0xf]
    %v6260 = vunpack.c.l.b16 %v6252
    %v6261 = vunpack.c.l.b16 %v6253
    %v6262 = vunpack.c.l.b16 %v6254
    %v6263 = vunpack.c.l.b16 %v6255
    %v6264 = vpack.c.b16 %v6261, %v6260
    %v6265 = vpack.c.b16 %v6263, %v6262
    %6268 = vmatprep.subr.bf16.mxu0 0
    %6269 = vmatpush1.bf16.msra.mxu0 0
    %6270 = vmatprep.subr.bf16.mxu0 0
    %6271 = vmatpush1.bf16.msra.mxu0 0
    %6272 = vmatprep.subr.bf16.mxu0 0
    %6273 = vmatpush1.bf16.msra.mxu0 0
    %6274 = vmatprep.subr.bf16.mxu0 0
    %6275 = vmatpush1.bf16.msra.mxu0 0
    %6276 = vmatprep.subr.bf16.mxu0 0
    %6277 = vmatpush1.bf16.msra.mxu0 0
    %6278 = vmatprep.subr.bf16.mxu0 0
    %6279 = vmatpush1.bf16.msra.mxu0 0
    %6280 = vmatprep.subr.bf16.mxu0 0
    %6281 = vmatpush1.bf16.msra.mxu0 %v6265
    %6282 = vmatprep.subr.bf16.mxu0 0
    %6283 = vmatpush1.bf16.msra.mxu0 %v6264
    %6284 = vmatprep.subr.bf16.mxu0 0
    %6285 = vmatpush2.bf16.msra.mxu0 0
    %6286 = vmatprep.subr.bf16.mxu0 0
    %6287 = vmatpush2.bf16.msra.mxu0 0
    %6288 = vmatprep.subr.bf16.mxu0 0
    %6289 = vmatpush2.bf16.msra.mxu0 0
    %6290 = vmatprep.subr.bf16.mxu0 0
    %6291 = vmatpush2.bf16.msra.mxu0 0
    %6292 = vmatprep.subr.bf16.mxu0 0
    %6293 = vmatpush2.bf16.msra.mxu0 0
    %6294 = vmatprep.subr.bf16.mxu0 0
    %6295 = vmatpush2.bf16.msra.mxu0 0
    %6296 = vmatprep.subr.bf16.mxu0 0
    %6297 = vmatpush2.bf16.msra.mxu0 0
    %6298 = vmatprep.subr.bf16.mxu0 0
    %6299 = vmatpush2.bf16.msra.mxu0 0
    %6300 = vmatprep.mubr.bf16.mxu0 0
    %6301 = vmatmul.mubr.bf16.gmra.mxu0 %v5210
    %v6302 = vpop.f32.mrf.mxu0
    %v6303 = vadd.f32 0.0, %v6302
    %v6304 = vpop.f32.mrf.mxu0
    %v6305 = vpop.f32.mrf.mxu0
    %v6306 = vadd.f32 0.0, %v6305
    %v6307 = vpop.f32.mrf.mxu0
    %6308 = vdwg.mxu0
    %s6309 = scalar_lea.vmem %s9, 128
    %v6310 = vld [vmem:[%s6309] sm:$0xf]
    %v6311 = vld [vmem:[%s6309 + $0x4] sm:$0xf]
    %v6312 = vld [vmem:[%s6309 + $0x8] sm:$0xf]
    %v6313 = vld [vmem:[%s6309 + $0xc] sm:$0xf]
    %v6314 = vpack.c.bf16 %v6306, %v6303
    %v6319 = vunpack.c.l.b16 %v6310
    %v6320 = vunpack.c.l.b16 %v6311
    %v6321 = vunpack.c.l.b16 %v6312
    %v6322 = vunpack.c.l.b16 %v6313
    %v6323 = vpack.c.b16 %v6320, %v6319
    %v6324 = vpack.c.b16 %v6322, %v6321
    %v6326 = vsel %vm5332, %v6323, 0
    %v6329 = vsel %vm5332, %v6324, 0
    %6331 = vmatprep.subr.bf16.mxu0 0
    %6332 = vmatpush1.bf16.msra.mxu0 0
    %6333 = vmatprep.subr.bf16.mxu0 0
    %6334 = vmatpush1.bf16.msra.mxu0 0
    %6335 = vmatprep.subr.bf16.mxu0 0
    %6336 = vmatpush1.bf16.msra.mxu0 0
    %6337 = vmatprep.subr.bf16.mxu0 0
    %6338 = vmatpush1.bf16.msra.mxu0 0
    %6339 = vmatprep.subr.bf16.mxu0 0
    %6340 = vmatpush1.bf16.msra.mxu0 0
    %6341 = vmatprep.subr.bf16.mxu0 0
    %6342 = vmatpush1.bf16.msra.mxu0 0
    %6343 = vmatprep.subr.bf16.mxu0 0
    %6344 = vmatpush1.bf16.msra.mxu0 0
    %6345 = vmatprep.subr.bf16.mxu0 0
    %6346 = vmatpush1.bf16.msra.mxu0 %v6314
    %6347 = vmatprep.subr.bf16.mxu0 0
    %6348 = vmatpush2.bf16.msra.mxu0 0
    %6349 = vmatprep.subr.bf16.mxu0 0
    %6350 = vmatpush2.bf16.msra.mxu0 0
    %6351 = vmatprep.subr.bf16.mxu0 0
    %6352 = vmatpush2.bf16.msra.mxu0 0
    %6353 = vmatprep.subr.bf16.mxu0 0
    %6354 = vmatpush2.bf16.msra.mxu0 0
    %6355 = vmatprep.subr.bf16.mxu0 0
    %6356 = vmatpush2.bf16.msra.mxu0 0
    %6357 = vmatprep.subr.bf16.mxu0 0
    %6358 = vmatpush2.bf16.msra.mxu0 0
    %6359 = vmatprep.subr.bf16.mxu0 0
    %6360 = vmatpush2.bf16.msra.mxu0 0
    %6361 = vmatprep.subr.bf16.mxu0 0
    %6362 = vmatpush2.bf16.msra.mxu0 0
    %6363 = vmatprep.mubr.bf16.mxu0 0
    %6364 = vmatmul.mubr.bf16.gmra.mxu0 %v6326
    %v6365 = vpop.f32.mrf.mxu0
    %v6366 = vadd.f32 0.0, %v6365
    %v6367 = vpop.f32.mrf.mxu0
    %v6368 = vpop.f32.mrf.mxu0
    %v6369 = vadd.f32 0.0, %v6368
    %v6370 = vpop.f32.mrf.mxu0
    %6371 = vmatprep.mubr.bf16.mxu0 0
    %6372 = vmatmul.mubr.bf16.gmra.mxu0 %v6329
    %v6373 = vpop.f32.mrf.mxu0
    %v6374 = vadd.f32 0.0, %v6373
    %v6375 = vpop.f32.mrf.mxu0
    %v6376 = vpop.f32.mrf.mxu0
    %v6377 = vadd.f32 0.0, %v6376
    %v6378 = vpop.f32.mrf.mxu0
    %6379 = vdwg.mxu0
    %v6380 = vadd.f32 %v6247, %v6366
    %v6381 = vadd.f32 %v6248, %v6369
    %v6382 = vadd.f32 %v6249, %v6374
    %v6383 = vadd.f32 %v6250, %v6377
    %v6384 = vld [vmem:[%s11] sm:$0xff]
    %v6385 = vld [vmem:[%s11 + $0x8] sm:$0xff]
    %v6386 = vld [vmem:[%s11 + $0x10] sm:$0xff]
    %v6387 = vld [vmem:[%s11 + $0x18] sm:$0xff]
    %6389 = vset.pattern.permute.xlu0 0
    %6390 = vperm.xlu0 %6389, %v6384
    %v6391 = vpop.permute.xlu0 %6390
    %6394 = vset.pattern.permute.xlu0 0
    %6395 = vperm.xlu0 %6394, %v6385
    %v6396 = vpop.permute.xlu0 %6395
    %6399 = vset.pattern.permute.xlu0 0
    %6400 = vperm.xlu0 %6399, %v6386
    %v6401 = vpop.permute.xlu0 %6400
    %6404 = vset.pattern.permute.xlu0 0
    %6405 = vperm.xlu0 %6404, %v6387
    %v6406 = vpop.permute.xlu0 %6405
    %v6408 = vmul.f32 %v6380, %v6391
    %v6409 = vmul.f32 %v6381, %v6396
    %v6410 = vmul.f32 %v6382, %v6401
    %v6411 = vmul.f32 %v6383, %v6406
    %v6412 = vld [vmem:[%s12] sm:$0xff]
    %v6413 = vld [vmem:[%s12 + $0x8] sm:$0xff]
    %v6414 = vld [vmem:[%s12 + $0x10] sm:$0xff]
    %v6415 = vld [vmem:[%s12 + $0x18] sm:$0xff]
    %6417 = vset.pattern.permute.xlu0 0
    %6418 = vperm.xlu0 %6417, %v6412
    %v6419 = vpop.permute.xlu0 %6418
    %6422 = vset.pattern.permute.xlu0 0
    %6423 = vperm.xlu0 %6422, %v6413
    %v6424 = vpop.permute.xlu0 %6423
    %6427 = vset.pattern.permute.xlu0 0
    %6428 = vperm.xlu0 %6427, %v6414
    %v6429 = vpop.permute.xlu0 %6428
    %6432 = vset.pattern.permute.xlu0 0
    %6433 = vperm.xlu0 %6432, %v6415
    %v6434 = vpop.permute.xlu0 %6433
    %v6436 = vadd.f32 %v6408, %v6419
    %v6437 = vadd.f32 %v6409, %v6424
    %v6438 = vadd.f32 %v6410, %v6429
    %v6439 = vadd.f32 %v6411, %v6434
    %vm6440 = vcmp.ge.f32.partialorder %v6436, 0.0
    %vm6441 = vcmp.ge.f32.partialorder %v6437, 0.0
    %vm6442 = vcmp.ge.f32.partialorder %v6438, 0.0
    %vm6443 = vcmp.ge.f32.partialorder %v6439, 0.0
    %v6444 = vmul.f32 %v6436, 0.2
    %v6445 = vmul.f32 %v6437, 0.2
    %v6446 = vmul.f32 %v6438, 0.2
    %v6447 = vmul.f32 %v6439, 0.2
    %v6448 = vsel %vm6440, %v6436, %v6444
    %v6449 = vsel %vm6441, %v6437, %v6445
    %v6450 = vsel %vm6442, %v6438, %v6446
    %v6451 = vsel %vm6443, %v6439, %v6447
    %v6452 = vld [vmem:[#allocation7] sm:$0xff]
    %v6453 = vld [vmem:[#allocation7 + $0x8] sm:$0xff]
    %v6454 = vld [vmem:[#allocation7 + $0x10] sm:$0xff]
    %v6455 = vld [vmem:[#allocation7 + $0x18] sm:$0xff]
    %v6457 = vsel %vm5208, %v6452, 0
    %6459 = vmatprep.subr.mxu0 0.0
    %6460 = vmatpush1.msra.mxu0 0.0
    %6461 = vmatprep.subr.mxu0 0.0
    %6462 = vmatpush1.msra.mxu0 0.0
    %6463 = vmatprep.subr.mxu0 0.0
    %6464 = vmatpush1.msra.mxu0 0.0
    %6465 = vmatprep.subr.mxu0 0.0
    %6466 = vmatpush1.msra.mxu0 0.0
    %6467 = vmatprep.subr.mxu0 0.0
    %6468 = vmatpush1.msra.mxu0 0.0
    %6469 = vmatprep.subr.mxu0 0.0
    %6470 = vmatpush1.msra.mxu0 0.0
    %6471 = vmatprep.subr.mxu0 0.0
    %6472 = vmatpush1.msra.mxu0 0.0
    %6473 = vmatprep.subr.mxu0 0.0
    %6474 = vmatpush1.msra.mxu0 0.0
    %6475 = vmatprep.subr.mxu0 0.0
    %6476 = vmatpush1.msra.mxu0 0.0
    %6477 = vmatprep.subr.mxu0 0.0
    %6478 = vmatpush1.msra.mxu0 0.0
    %6479 = vmatprep.subr.mxu0 0.0
    %6480 = vmatpush1.msra.mxu0 0.0
    %6481 = vmatprep.subr.mxu0 0.0
    %6482 = vmatpush1.msra.mxu0 0.0
    %6483 = vmatprep.subr.mxu0 0.0
    %6484 = vmatpush1.msra.mxu0 %v6451
    %6485 = vmatprep.subr.mxu0 0.0
    %6486 = vmatpush1.msra.mxu0 %v6450
    %6487 = vmatprep.subr.mxu0 0.0
    %6488 = vmatpush1.msra.mxu0 %v6449
    %6489 = vmatprep.subr.mxu0 0.0
    %6490 = vmatpush1.msra.mxu0 %v6448
    %6491 = vmatprep.subr.mxu0 0.0
    %6492 = vmatpush2.msra.mxu0 0.0
    %6493 = vmatprep.subr.mxu0 0.0
    %6494 = vmatpush2.msra.mxu0 0.0
    %6495 = vmatprep.subr.mxu0 0.0
    %6496 = vmatpush2.msra.mxu0 0.0
    %6497 = vmatprep.subr.mxu0 0.0
    %6498 = vmatpush2.msra.mxu0 0.0
    %6499 = vmatprep.subr.mxu0 0.0
    %6500 = vmatpush2.msra.mxu0 0.0
    %6501 = vmatprep.subr.mxu0 0.0
    %6502 = vmatpush2.msra.mxu0 0.0
    %6503 = vmatprep.subr.mxu0 0.0
    %6504 = vmatpush2.msra.mxu0 0.0
    %6505 = vmatprep.subr.mxu0 0.0
    %6506 = vmatpush2.msra.mxu0 0.0
    %6507 = vmatprep.subr.mxu0 0.0
    %6508 = vmatpush2.msra.mxu0 0.0
    %6509 = vmatprep.subr.mxu0 0.0
    %6510 = vmatpush2.msra.mxu0 0.0
    %6511 = vmatprep.subr.mxu0 0.0
    %6512 = vmatpush2.msra.mxu0 0.0
    %6513 = vmatprep.subr.mxu0 0.0
    %6514 = vmatpush2.msra.mxu0 0.0
    %6515 = vmatprep.subr.mxu0 0.0
    %6516 = vmatpush2.msra.mxu0 0.0
    %6517 = vmatprep.subr.mxu0 0.0
    %6518 = vmatpush2.msra.mxu0 0.0
    %6519 = vmatprep.subr.mxu0 0.0
    %6520 = vmatpush2.msra.mxu0 0.0
    %6521 = vmatprep.subr.mxu0 0.0
    %6522 = vmatpush2.msra.mxu0 0.0
    %6523 = vmatprep.mubr.f32.mxu0 0.0
    %6524 = vmatmul.mubr.f32.gmra.mxu0 %v6457
    %v6525 = vpop.f32.mrf.mxu0
    %v6526 = vadd.f32 0.0, %v6525
    %v6527 = vpop.f32.mrf.mxu0
    %6528 = vdwg.mxu0
    %v6530 = vsel %vm5208, %v6453, 0
    %6532 = vmatprep.subr.mxu0 0.0
    %6533 = vmatpush1.msra.mxu0 0.0
    %6534 = vmatprep.subr.mxu0 0.0
    %6535 = vmatpush1.msra.mxu0 0.0
    %6536 = vmatprep.subr.mxu0 0.0
    %6537 = vmatpush1.msra.mxu0 0.0
    %6538 = vmatprep.subr.mxu0 0.0
    %6539 = vmatpush1.msra.mxu0 0.0
    %6540 = vmatprep.subr.mxu0 0.0
    %6541 = vmatpush1.msra.mxu0 0.0
    %6542 = vmatprep.subr.mxu0 0.0
    %6543 = vmatpush1.msra.mxu0 0.0
    %6544 = vmatprep.subr.mxu0 0.0
    %6545 = vmatpush1.msra.mxu0 0.0
    %6546 = vmatprep.subr.mxu0 0.0
    %6547 = vmatpush1.msra.mxu0 0.0
    %6548 = vmatprep.subr.mxu0 0.0
    %6549 = vmatpush1.msra.mxu0 0.0
    %6550 = vmatprep.subr.mxu0 0.0
    %6551 = vmatpush1.msra.mxu0 0.0
    %6552 = vmatprep.subr.mxu0 0.0
    %6553 = vmatpush1.msra.mxu0 0.0
    %6554 = vmatprep.subr.mxu0 0.0
    %6555 = vmatpush1.msra.mxu0 0.0
    %6556 = vmatprep.subr.mxu0 0.0
    %6557 = vmatpush1.msra.mxu0 %v6451
    %6558 = vmatprep.subr.mxu0 0.0
    %6559 = vmatpush1.msra.mxu0 %v6450
    %6560 = vmatprep.subr.mxu0 0.0
    %6561 = vmatpush1.msra.mxu0 %v6449
    %6562 = vmatprep.subr.mxu0 0.0
    %6563 = vmatpush1.msra.mxu0 %v6448
    %6564 = vmatprep.subr.mxu0 0.0
    %6565 = vmatpush2.msra.mxu0 0.0
    %6566 = vmatprep.subr.mxu0 0.0
    %6567 = vmatpush2.msra.mxu0 0.0
    %6568 = vmatprep.subr.mxu0 0.0
    %6569 = vmatpush2.msra.mxu0 0.0
    %6570 = vmatprep.subr.mxu0 0.0
    %6571 = vmatpush2.msra.mxu0 0.0
    %6572 = vmatprep.subr.mxu0 0.0
    %6573 = vmatpush2.msra.mxu0 0.0
    %6574 = vmatprep.subr.mxu0 0.0
    %6575 = vmatpush2.msra.mxu0 0.0
    %6576 = vmatprep.subr.mxu0 0.0
    %6577 = vmatpush2.msra.mxu0 0.0
    %6578 = vmatprep.subr.mxu0 0.0
    %6579 = vmatpush2.msra.mxu0 0.0
    %6580 = vmatprep.subr.mxu0 0.0
    %6581 = vmatpush2.msra.mxu0 0.0
    %6582 = vmatprep.subr.mxu0 0.0
    %6583 = vmatpush2.msra.mxu0 0.0
    %6584 = vmatprep.subr.mxu0 0.0
    %6585 = vmatpush2.msra.mxu0 0.0
    %6586 = vmatprep.subr.mxu0 0.0
    %6587 = vmatpush2.msra.mxu0 0.0
    %6588 = vmatprep.subr.mxu0 0.0
    %6589 = vmatpush2.msra.mxu0 0.0
    %6590 = vmatprep.subr.mxu0 0.0
    %6591 = vmatpush2.msra.mxu0 0.0
    %6592 = vmatprep.subr.mxu0 0.0
    %6593 = vmatpush2.msra.mxu0 0.0
    %6594 = vmatprep.subr.mxu0 0.0
    %6595 = vmatpush2.msra.mxu0 0.0
    %6596 = vmatprep.mubr.f32.mxu0 0.0
    %6597 = vmatmul.mubr.f32.gmra.mxu0 %v6530
    %v6598 = vpop.f32.mrf.mxu0
    %v6599 = vadd.f32 0.0, %v6598
    %v6600 = vpop.f32.mrf.mxu0
    %6601 = vdwg.mxu0
    %v6603 = vsel %vm5208, %v6454, 0
    %6605 = vmatprep.subr.mxu0 0.0
    %6606 = vmatpush1.msra.mxu0 0.0
    %6607 = vmatprep.subr.mxu0 0.0
    %6608 = vmatpush1.msra.mxu0 0.0
    %6609 = vmatprep.subr.mxu0 0.0
    %6610 = vmatpush1.msra.mxu0 0.0
    %6611 = vmatprep.subr.mxu0 0.0
    %6612 = vmatpush1.msra.mxu0 0.0
    %6613 = vmatprep.subr.mxu0 0.0
    %6614 = vmatpush1.msra.mxu0 0.0
    %6615 = vmatprep.subr.mxu0 0.0
    %6616 = vmatpush1.msra.mxu0 0.0
    %6617 = vmatprep.subr.mxu0 0.0
    %6618 = vmatpush1.msra.mxu0 0.0
    %6619 = vmatprep.subr.mxu0 0.0
    %6620 = vmatpush1.msra.mxu0 0.0
    %6621 = vmatprep.subr.mxu0 0.0
    %6622 = vmatpush1.msra.mxu0 0.0
    %6623 = vmatprep.subr.mxu0 0.0
    %6624 = vmatpush1.msra.mxu0 0.0
    %6625 = vmatprep.subr.mxu0 0.0
    %6626 = vmatpush1.msra.mxu0 0.0
    %6627 = vmatprep.subr.mxu0 0.0
    %6628 = vmatpush1.msra.mxu0 0.0
    %6629 = vmatprep.subr.mxu0 0.0
    %6630 = vmatpush1.msra.mxu0 %v6451
    %6631 = vmatprep.subr.mxu0 0.0
    %6632 = vmatpush1.msra.mxu0 %v6450
    %6633 = vmatprep.subr.mxu0 0.0
    %6634 = vmatpush1.msra.mxu0 %v6449
    %6635 = vmatprep.subr.mxu0 0.0
    %6636 = vmatpush1.msra.mxu0 %v6448
    %6637 = vmatprep.subr.mxu0 0.0
    %6638 = vmatpush2.msra.mxu0 0.0
    %6639 = vmatprep.subr.mxu0 0.0
    %6640 = vmatpush2.msra.mxu0 0.0
    %6641 = vmatprep.subr.mxu0 0.0
    %6642 = vmatpush2.msra.mxu0 0.0
    %6643 = vmatprep.subr.mxu0 0.0
    %6644 = vmatpush2.msra.mxu0 0.0
    %6645 = vmatprep.subr.mxu0 0.0
    %6646 = vmatpush2.msra.mxu0 0.0
    %6647 = vmatprep.subr.mxu0 0.0
    %6648 = vmatpush2.msra.mxu0 0.0
    %6649 = vmatprep.subr.mxu0 0.0
    %6650 = vmatpush2.msra.mxu0 0.0
    %6651 = vmatprep.subr.mxu0 0.0
    %6652 = vmatpush2.msra.mxu0 0.0
    %6653 = vmatprep.subr.mxu0 0.0
    %6654 = vmatpush2.msra.mxu0 0.0
    %6655 = vmatprep.subr.mxu0 0.0
    %6656 = vmatpush2.msra.mxu0 0.0
    %6657 = vmatprep.subr.mxu0 0.0
    %6658 = vmatpush2.msra.mxu0 0.0
    %6659 = vmatprep.subr.mxu0 0.0
    %6660 = vmatpush2.msra.mxu0 0.0
    %6661 = vmatprep.subr.mxu0 0.0
    %6662 = vmatpush2.msra.mxu0 0.0
    %6663 = vmatprep.subr.mxu0 0.0
    %6664 = vmatpush2.msra.mxu0 0.0
    %6665 = vmatprep.subr.mxu0 0.0
    %6666 = vmatpush2.msra.mxu0 0.0
    %6667 = vmatprep.subr.mxu0 0.0
    %6668 = vmatpush2.msra.mxu0 0.0
    %6669 = vmatprep.mubr.f32.mxu0 0.0
    %6670 = vmatmul.mubr.f32.gmra.mxu0 %v6603
    %v6671 = vpop.f32.mrf.mxu0
    %v6672 = vadd.f32 0.0, %v6671
    %v6673 = vpop.f32.mrf.mxu0
    %6674 = vdwg.mxu0
    %v6676 = vsel %vm5208, %v6455, 0
    %6678 = vmatprep.subr.mxu0 0.0
    %6679 = vmatpush1.msra.mxu0 0.0
    %6680 = vmatprep.subr.mxu0 0.0
    %6681 = vmatpush1.msra.mxu0 0.0
    %6682 = vmatprep.subr.mxu0 0.0
    %6683 = vmatpush1.msra.mxu0 0.0
    %6684 = vmatprep.subr.mxu0 0.0
    %6685 = vmatpush1.msra.mxu0 0.0
    %6686 = vmatprep.subr.mxu0 0.0
    %6687 = vmatpush1.msra.mxu0 0.0
    %6688 = vmatprep.subr.mxu0 0.0
    %6689 = vmatpush1.msra.mxu0 0.0
    %6690 = vmatprep.subr.mxu0 0.0
    %6691 = vmatpush1.msra.mxu0 0.0
    %6692 = vmatprep.subr.mxu0 0.0
    %6693 = vmatpush1.msra.mxu0 0.0
    %6694 = vmatprep.subr.mxu0 0.0
    %6695 = vmatpush1.msra.mxu0 0.0
    %6696 = vmatprep.subr.mxu0 0.0
    %6697 = vmatpush1.msra.mxu0 0.0
    %6698 = vmatprep.subr.mxu0 0.0
    %6699 = vmatpush1.msra.mxu0 0.0
    %6700 = vmatprep.subr.mxu0 0.0
    %6701 = vmatpush1.msra.mxu0 0.0
    %6702 = vmatprep.subr.mxu0 0.0
    %6703 = vmatpush1.msra.mxu0 %v6451
    %6704 = vmatprep.subr.mxu0 0.0
    %6705 = vmatpush1.msra.mxu0 %v6450
    %6706 = vmatprep.subr.mxu0 0.0
    %6707 = vmatpush1.msra.mxu0 %v6449
    %6708 = vmatprep.subr.mxu0 0.0
    %6709 = vmatpush1.msra.mxu0 %v6448
    %6710 = vmatprep.subr.mxu0 0.0
    %6711 = vmatpush2.msra.mxu0 0.0
    %6712 = vmatprep.subr.mxu0 0.0
    %6713 = vmatpush2.msra.mxu0 0.0
    %6714 = vmatprep.subr.mxu0 0.0
    %6715 = vmatpush2.msra.mxu0 0.0
    %6716 = vmatprep.subr.mxu0 0.0
    %6717 = vmatpush2.msra.mxu0 0.0
    %6718 = vmatprep.subr.mxu0 0.0
    %6719 = vmatpush2.msra.mxu0 0.0
    %6720 = vmatprep.subr.mxu0 0.0
    %6721 = vmatpush2.msra.mxu0 0.0
    %6722 = vmatprep.subr.mxu0 0.0
    %6723 = vmatpush2.msra.mxu0 0.0
    %6724 = vmatprep.subr.mxu0 0.0
    %6725 = vmatpush2.msra.mxu0 0.0
    %6726 = vmatprep.subr.mxu0 0.0
    %6727 = vmatpush2.msra.mxu0 0.0
    %6728 = vmatprep.subr.mxu0 0.0
    %6729 = vmatpush2.msra.mxu0 0.0
    %6730 = vmatprep.subr.mxu0 0.0
    %6731 = vmatpush2.msra.mxu0 0.0
    %6732 = vmatprep.subr.mxu0 0.0
    %6733 = vmatpush2.msra.mxu0 0.0
    %6734 = vmatprep.subr.mxu0 0.0
    %6735 = vmatpush2.msra.mxu0 0.0
    %6736 = vmatprep.subr.mxu0 0.0
    %6737 = vmatpush2.msra.mxu0 0.0
    %6738 = vmatprep.subr.mxu0 0.0
    %6739 = vmatpush2.msra.mxu0 0.0
    %6740 = vmatprep.subr.mxu0 0.0
    %6741 = vmatpush2.msra.mxu0 0.0
    %6742 = vmatprep.mubr.f32.mxu0 0.0
    %6743 = vmatmul.mubr.f32.gmra.mxu0 %v6676
    %v6744 = vpop.f32.mrf.mxu0
    %v6745 = vadd.f32 0.0, %v6744
    %v6746 = vpop.f32.mrf.mxu0
    %6747 = vdwg.mxu0
    %v6748 = vld [vmem:[#allocation9] sm:$0xff]
    %v6749 = vld [vmem:[#allocation9 + $0x8] sm:$0xff]
    %v6750 = vld [vmem:[#allocation9 + $0x10] sm:$0xff]
    %v6751 = vld [vmem:[#allocation9 + $0x18] sm:$0xff]
    %v6753 = vsel %vm5208, %v6748, 0
    %6755 = vmatprep.subr.mxu0 0.0
    %6756 = vmatpush1.msra.mxu0 0.0
    %6757 = vmatprep.subr.mxu0 0.0
    %6758 = vmatpush1.msra.mxu0 0.0
    %6759 = vmatprep.subr.mxu0 0.0
    %6760 = vmatpush1.msra.mxu0 0.0
    %6761 = vmatprep.subr.mxu0 0.0
    %6762 = vmatpush1.msra.mxu0 0.0
    %6763 = vmatprep.subr.mxu0 0.0
    %6764 = vmatpush1.msra.mxu0 0.0
    %6765 = vmatprep.subr.mxu0 0.0
    %6766 = vmatpush1.msra.mxu0 0.0
    %6767 = vmatprep.subr.mxu0 0.0
    %6768 = vmatpush1.msra.mxu0 0.0
    %6769 = vmatprep.subr.mxu0 0.0
    %6770 = vmatpush1.msra.mxu0 0.0
    %6771 = vmatprep.subr.mxu0 0.0
    %6772 = vmatpush1.msra.mxu0 0.0
    %6773 = vmatprep.subr.mxu0 0.0
    %6774 = vmatpush1.msra.mxu0 0.0
    %6775 = vmatprep.subr.mxu0 0.0
    %6776 = vmatpush1.msra.mxu0 0.0
    %6777 = vmatprep.subr.mxu0 0.0
    %6778 = vmatpush1.msra.mxu0 0.0
    %6779 = vmatprep.subr.mxu0 0.0
    %6780 = vmatpush1.msra.mxu0 %v6451
    %6781 = vmatprep.subr.mxu0 0.0
    %6782 = vmatpush1.msra.mxu0 %v6450
    %6783 = vmatprep.subr.mxu0 0.0
    %6784 = vmatpush1.msra.mxu0 %v6449
    %6785 = vmatprep.subr.mxu0 0.0
    %6786 = vmatpush1.msra.mxu0 %v6448
    %6787 = vmatprep.subr.mxu0 0.0
    %6788 = vmatpush2.msra.mxu0 0.0
    %6789 = vmatprep.subr.mxu0 0.0
    %6790 = vmatpush2.msra.mxu0 0.0
    %6791 = vmatprep.subr.mxu0 0.0
    %6792 = vmatpush2.msra.mxu0 0.0
    %6793 = vmatprep.subr.mxu0 0.0
    %6794 = vmatpush2.msra.mxu0 0.0
    %6795 = vmatprep.subr.mxu0 0.0
    %6796 = vmatpush2.msra.mxu0 0.0
    %6797 = vmatprep.subr.mxu0 0.0
    %6798 = vmatpush2.msra.mxu0 0.0
    %6799 = vmatprep.subr.mxu0 0.0
    %6800 = vmatpush2.msra.mxu0 0.0
    %6801 = vmatprep.subr.mxu0 0.0
    %6802 = vmatpush2.msra.mxu0 0.0
    %6803 = vmatprep.subr.mxu0 0.0
    %6804 = vmatpush2.msra.mxu0 0.0
    %6805 = vmatprep.subr.mxu0 0.0
    %6806 = vmatpush2.msra.mxu0 0.0
    %6807 = vmatprep.subr.mxu0 0.0
    %6808 = vmatpush2.msra.mxu0 0.0
    %6809 = vmatprep.subr.mxu0 0.0
    %6810 = vmatpush2.msra.mxu0 0.0
    %6811 = vmatprep.subr.mxu0 0.0
    %6812 = vmatpush2.msra.mxu0 0.0
    %6813 = vmatprep.subr.mxu0 0.0
    %6814 = vmatpush2.msra.mxu0 0.0
    %6815 = vmatprep.subr.mxu0 0.0
    %6816 = vmatpush2.msra.mxu0 0.0
    %6817 = vmatprep.subr.mxu0 0.0
    %6818 = vmatpush2.msra.mxu0 0.0
    %6819 = vmatprep.mubr.f32.mxu0 0.0
    %6820 = vmatmul.mubr.f32.gmra.mxu0 %v6753
    %v6821 = vpop.f32.mrf.mxu0
    %v6822 = vadd.f32 0.0, %v6821
    %v6823 = vpop.f32.mrf.mxu0
    %6824 = vdwg.mxu0
    %v6826 = vsel %vm5208, %v6749, 0
    %6828 = vmatprep.subr.mxu0 0.0
    %6829 = vmatpush1.msra.mxu0 0.0
    %6830 = vmatprep.subr.mxu0 0.0
    %6831 = vmatpush1.msra.mxu0 0.0
    %6832 = vmatprep.subr.mxu0 0.0
    %6833 = vmatpush1.msra.mxu0 0.0
    %6834 = vmatprep.subr.mxu0 0.0
    %6835 = vmatpush1.msra.mxu0 0.0
    %6836 = vmatprep.subr.mxu0 0.0
    %6837 = vmatpush1.msra.mxu0 0.0
    %6838 = vmatprep.subr.mxu0 0.0
    %6839 = vmatpush1.msra.mxu0 0.0
    %6840 = vmatprep.subr.mxu0 0.0
    %6841 = vmatpush1.msra.mxu0 0.0
    %6842 = vmatprep.subr.mxu0 0.0
    %6843 = vmatpush1.msra.mxu0 0.0
    %6844 = vmatprep.subr.mxu0 0.0
    %6845 = vmatpush1.msra.mxu0 0.0
    %6846 = vmatprep.subr.mxu0 0.0
    %6847 = vmatpush1.msra.mxu0 0.0
    %6848 = vmatprep.subr.mxu0 0.0
    %6849 = vmatpush1.msra.mxu0 0.0
    %6850 = vmatprep.subr.mxu0 0.0
    %6851 = vmatpush1.msra.mxu0 0.0
    %6852 = vmatprep.subr.mxu0 0.0
    %6853 = vmatpush1.msra.mxu0 %v6451
    %6854 = vmatprep.subr.mxu0 0.0
    %6855 = vmatpush1.msra.mxu0 %v6450
    %6856 = vmatprep.subr.mxu0 0.0
    %6857 = vmatpush1.msra.mxu0 %v6449
    %6858 = vmatprep.subr.mxu0 0.0
    %6859 = vmatpush1.msra.mxu0 %v6448
    %6860 = vmatprep.subr.mxu0 0.0
    %6861 = vmatpush2.msra.mxu0 0.0
    %6862 = vmatprep.subr.mxu0 0.0
    %6863 = vmatpush2.msra.mxu0 0.0
    %6864 = vmatprep.subr.mxu0 0.0
    %6865 = vmatpush2.msra.mxu0 0.0
    %6866 = vmatprep.subr.mxu0 0.0
    %6867 = vmatpush2.msra.mxu0 0.0
    %6868 = vmatprep.subr.mxu0 0.0
    %6869 = vmatpush2.msra.mxu0 0.0
    %6870 = vmatprep.subr.mxu0 0.0
    %6871 = vmatpush2.msra.mxu0 0.0
    %6872 = vmatprep.subr.mxu0 0.0
    %6873 = vmatpush2.msra.mxu0 0.0
    %6874 = vmatprep.subr.mxu0 0.0
    %6875 = vmatpush2.msra.mxu0 0.0
    %6876 = vmatprep.subr.mxu0 0.0
    %6877 = vmatpush2.msra.mxu0 0.0
    %6878 = vmatprep.subr.mxu0 0.0
    %6879 = vmatpush2.msra.mxu0 0.0
    %6880 = vmatprep.subr.mxu0 0.0
    %6881 = vmatpush2.msra.mxu0 0.0
    %6882 = vmatprep.subr.mxu0 0.0
    %6883 = vmatpush2.msra.mxu0 0.0
    %6884 = vmatprep.subr.mxu0 0.0
    %6885 = vmatpush2.msra.mxu0 0.0
    %6886 = vmatprep.subr.mxu0 0.0
    %6887 = vmatpush2.msra.mxu0 0.0
    %6888 = vmatprep.subr.mxu0 0.0
    %6889 = vmatpush2.msra.mxu0 0.0
    %6890 = vmatprep.subr.mxu0 0.0
    %6891 = vmatpush2.msra.mxu0 0.0
    %6892 = vmatprep.mubr.f32.mxu0 0.0
    %6893 = vmatmul.mubr.f32.gmra.mxu0 %v6826
    %v6894 = vpop.f32.mrf.mxu0
    %v6895 = vadd.f32 0.0, %v6894
    %v6896 = vpop.f32.mrf.mxu0
    %6897 = vdwg.mxu0
    %v6899 = vsel %vm5208, %v6750, 0
    %6901 = vmatprep.subr.mxu0 0.0
    %6902 = vmatpush1.msra.mxu0 0.0
    %6903 = vmatprep.subr.mxu0 0.0
    %6904 = vmatpush1.msra.mxu0 0.0
    %6905 = vmatprep.subr.mxu0 0.0
    %6906 = vmatpush1.msra.mxu0 0.0
    %6907 = vmatprep.subr.mxu0 0.0
    %6908 = vmatpush1.msra.mxu0 0.0
    %6909 = vmatprep.subr.mxu0 0.0
    %6910 = vmatpush1.msra.mxu0 0.0
    %6911 = vmatprep.subr.mxu0 0.0
    %6912 = vmatpush1.msra.mxu0 0.0
    %6913 = vmatprep.subr.mxu0 0.0
    %6914 = vmatpush1.msra.mxu0 0.0
    %6915 = vmatprep.subr.mxu0 0.0
    %6916 = vmatpush1.msra.mxu0 0.0
    %6917 = vmatprep.subr.mxu0 0.0
    %6918 = vmatpush1.msra.mxu0 0.0
    %6919 = vmatprep.subr.mxu0 0.0
    %6920 = vmatpush1.msra.mxu0 0.0
    %6921 = vmatprep.subr.mxu0 0.0
    %6922 = vmatpush1.msra.mxu0 0.0
    %6923 = vmatprep.subr.mxu0 0.0
    %6924 = vmatpush1.msra.mxu0 0.0
    %6925 = vmatprep.subr.mxu0 0.0
    %6926 = vmatpush1.msra.mxu0 %v6451
    %6927 = vmatprep.subr.mxu0 0.0
    %6928 = vmatpush1.msra.mxu0 %v6450
    %6929 = vmatprep.subr.mxu0 0.0
    %6930 = vmatpush1.msra.mxu0 %v6449
    %6931 = vmatprep.subr.mxu0 0.0
    %6932 = vmatpush1.msra.mxu0 %v6448
    %6933 = vmatprep.subr.mxu0 0.0
    %6934 = vmatpush2.msra.mxu0 0.0
    %6935 = vmatprep.subr.mxu0 0.0
    %6936 = vmatpush2.msra.mxu0 0.0
    %6937 = vmatprep.subr.mxu0 0.0
    %6938 = vmatpush2.msra.mxu0 0.0
    %6939 = vmatprep.subr.mxu0 0.0
    %6940 = vmatpush2.msra.mxu0 0.0
    %6941 = vmatprep.subr.mxu0 0.0
    %6942 = vmatpush2.msra.mxu0 0.0
    %6943 = vmatprep.subr.mxu0 0.0
    %6944 = vmatpush2.msra.mxu0 0.0
    %6945 = vmatprep.subr.mxu0 0.0
    %6946 = vmatpush2.msra.mxu0 0.0
    %6947 = vmatprep.subr.mxu0 0.0
    %6948 = vmatpush2.msra.mxu0 0.0
    %6949 = vmatprep.subr.mxu0 0.0
    %6950 = vmatpush2.msra.mxu0 0.0
    %6951 = vmatprep.subr.mxu0 0.0
    %6952 = vmatpush2.msra.mxu0 0.0
    %6953 = vmatprep.subr.mxu0 0.0
    %6954 = vmatpush2.msra.mxu0 0.0
    %6955 = vmatprep.subr.mxu0 0.0
    %6956 = vmatpush2.msra.mxu0 0.0
    %6957 = vmatprep.subr.mxu0 0.0
    %6958 = vmatpush2.msra.mxu0 0.0
    %6959 = vmatprep.subr.mxu0 0.0
    %6960 = vmatpush2.msra.mxu0 0.0
    %6961 = vmatprep.subr.mxu0 0.0
    %6962 = vmatpush2.msra.mxu0 0.0
    %6963 = vmatprep.subr.mxu0 0.0
    %6964 = vmatpush2.msra.mxu0 0.0
    %6965 = vmatprep.mubr.f32.mxu0 0.0
    %6966 = vmatmul.mubr.f32.gmra.mxu0 %v6899
    %v6967 = vpop.f32.mrf.mxu0
    %v6968 = vadd.f32 0.0, %v6967
    %v6969 = vpop.f32.mrf.mxu0
    %6970 = vdwg.mxu0
    %v6972 = vsel %vm5208, %v6751, 0
    %6974 = vmatprep.subr.mxu0 0.0
    %6975 = vmatpush1.msra.mxu0 0.0
    %6976 = vmatprep.subr.mxu0 0.0
    %6977 = vmatpush1.msra.mxu0 0.0
    %6978 = vmatprep.subr.mxu0 0.0
    %6979 = vmatpush1.msra.mxu0 0.0
    %6980 = vmatprep.subr.mxu0 0.0
    %6981 = vmatpush1.msra.mxu0 0.0
    %6982 = vmatprep.subr.mxu0 0.0
    %6983 = vmatpush1.msra.mxu0 0.0
    %6984 = vmatprep.subr.mxu0 0.0
    %6985 = vmatpush1.msra.mxu0 0.0
    %6986 = vmatprep.subr.mxu0 0.0
    %6987 = vmatpush1.msra.mxu0 0.0
    %6988 = vmatprep.subr.mxu0 0.0
    %6989 = vmatpush1.msra.mxu0 0.0
    %6990 = vmatprep.subr.mxu0 0.0
    %6991 = vmatpush1.msra.mxu0 0.0
    %6992 = vmatprep.subr.mxu0 0.0
    %6993 = vmatpush1.msra.mxu0 0.0
    %6994 = vmatprep.subr.mxu0 0.0
    %6995 = vmatpush1.msra.mxu0 0.0
    %6996 = vmatprep.subr.mxu0 0.0
    %6997 = vmatpush1.msra.mxu0 0.0
    %6998 = vmatprep.subr.mxu0 0.0
    %6999 = vmatpush1.msra.mxu0 %v6451
    %7000 = vmatprep.subr.mxu0 0.0
    %7001 = vmatpush1.msra.mxu0 %v6450
    %7002 = vmatprep.subr.mxu0 0.0
    %7003 = vmatpush1.msra.mxu0 %v6449
    %7004 = vmatprep.subr.mxu0 0.0
    %7005 = vmatpush1.msra.mxu0 %v6448
    %7006 = vmatprep.subr.mxu0 0.0
    %7007 = vmatpush2.msra.mxu0 0.0
    %7008 = vmatprep.subr.mxu0 0.0
    %7009 = vmatpush2.msra.mxu0 0.0
    %7010 = vmatprep.subr.mxu0 0.0
    %7011 = vmatpush2.msra.mxu0 0.0
    %7012 = vmatprep.subr.mxu0 0.0
    %7013 = vmatpush2.msra.mxu0 0.0
    %7014 = vmatprep.subr.mxu0 0.0
    %7015 = vmatpush2.msra.mxu0 0.0
    %7016 = vmatprep.subr.mxu0 0.0
    %7017 = vmatpush2.msra.mxu0 0.0
    %7018 = vmatprep.subr.mxu0 0.0
    %7019 = vmatpush2.msra.mxu0 0.0
    %7020 = vmatprep.subr.mxu0 0.0
    %7021 = vmatpush2.msra.mxu0 0.0
    %7022 = vmatprep.subr.mxu0 0.0
    %7023 = vmatpush2.msra.mxu0 0.0
    %7024 = vmatprep.subr.mxu0 0.0
    %7025 = vmatpush2.msra.mxu0 0.0
    %7026 = vmatprep.subr.mxu0 0.0
    %7027 = vmatpush2.msra.mxu0 0.0
    %7028 = vmatprep.subr.mxu0 0.0
    %7029 = vmatpush2.msra.mxu0 0.0
    %7030 = vmatprep.subr.mxu0 0.0
    %7031 = vmatpush2.msra.mxu0 0.0
    %7032 = vmatprep.subr.mxu0 0.0
    %7033 = vmatpush2.msra.mxu0 0.0
    %7034 = vmatprep.subr.mxu0 0.0
    %7035 = vmatpush2.msra.mxu0 0.0
    %7036 = vmatprep.subr.mxu0 0.0
    %7037 = vmatpush2.msra.mxu0 0.0
    %7038 = vmatprep.mubr.f32.mxu0 0.0
    %7039 = vmatmul.mubr.f32.gmra.mxu0 %v6972
    %v7040 = vpop.f32.mrf.mxu0
    %v7041 = vadd.f32 0.0, %v7040
    %v7042 = vpop.f32.mrf.mxu0
    %7043 = vdwg.mxu0
    %v7044 = vld [vmem:[#allocation10] sm:$0xff]
    %v7045 = vld [vmem:[#allocation10 + $0x8] sm:$0xff]
    %v7046 = vld [vmem:[#allocation10 + $0x10] sm:$0xff]
    %v7047 = vld [vmem:[#allocation10 + $0x18] sm:$0xff]
    %v7049 = vsel %vm5208, %v7044, 0
    %7051 = vmatprep.subr.mxu0 0.0
    %7052 = vmatpush1.msra.mxu0 0.0
    %7053 = vmatprep.subr.mxu0 0.0
    %7054 = vmatpush1.msra.mxu0 0.0
    %7055 = vmatprep.subr.mxu0 0.0
    %7056 = vmatpush1.msra.mxu0 0.0
    %7057 = vmatprep.subr.mxu0 0.0
    %7058 = vmatpush1.msra.mxu0 0.0
    %7059 = vmatprep.subr.mxu0 0.0
    %7060 = vmatpush1.msra.mxu0 0.0
    %7061 = vmatprep.subr.mxu0 0.0
    %7062 = vmatpush1.msra.mxu0 0.0
    %7063 = vmatprep.subr.mxu0 0.0
    %7064 = vmatpush1.msra.mxu0 0.0
    %7065 = vmatprep.subr.mxu0 0.0
    %7066 = vmatpush1.msra.mxu0 0.0
    %7067 = vmatprep.subr.mxu0 0.0
    %7068 = vmatpush1.msra.mxu0 0.0
    %7069 = vmatprep.subr.mxu0 0.0
    %7070 = vmatpush1.msra.mxu0 0.0
    %7071 = vmatprep.subr.mxu0 0.0
    %7072 = vmatpush1.msra.mxu0 0.0
    %7073 = vmatprep.subr.mxu0 0.0
    %7074 = vmatpush1.msra.mxu0 0.0
    %7075 = vmatprep.subr.mxu0 0.0
    %7076 = vmatpush1.msra.mxu0 %v6451
    %7077 = vmatprep.subr.mxu0 0.0
    %7078 = vmatpush1.msra.mxu0 %v6450
    %7079 = vmatprep.subr.mxu0 0.0
    %7080 = vmatpush1.msra.mxu0 %v6449
    %7081 = vmatprep.subr.mxu0 0.0
    %7082 = vmatpush1.msra.mxu0 %v6448
    %7083 = vmatprep.subr.mxu0 0.0
    %7084 = vmatpush2.msra.mxu0 0.0
    %7085 = vmatprep.subr.mxu0 0.0
    %7086 = vmatpush2.msra.mxu0 0.0
    %7087 = vmatprep.subr.mxu0 0.0
    %7088 = vmatpush2.msra.mxu0 0.0
    %7089 = vmatprep.subr.mxu0 0.0
    %7090 = vmatpush2.msra.mxu0 0.0
    %7091 = vmatprep.subr.mxu0 0.0
    %7092 = vmatpush2.msra.mxu0 0.0
    %7093 = vmatprep.subr.mxu0 0.0
    %7094 = vmatpush2.msra.mxu0 0.0
    %7095 = vmatprep.subr.mxu0 0.0
    %7096 = vmatpush2.msra.mxu0 0.0
    %7097 = vmatprep.subr.mxu0 0.0
    %7098 = vmatpush2.msra.mxu0 0.0
    %7099 = vmatprep.subr.mxu0 0.0
    %7100 = vmatpush2.msra.mxu0 0.0
    %7101 = vmatprep.subr.mxu0 0.0
    %7102 = vmatpush2.msra.mxu0 0.0
    %7103 = vmatprep.subr.mxu0 0.0
    %7104 = vmatpush2.msra.mxu0 0.0
    %7105 = vmatprep.subr.mxu0 0.0
    %7106 = vmatpush2.msra.mxu0 0.0
    %7107 = vmatprep.subr.mxu0 0.0
    %7108 = vmatpush2.msra.mxu0 0.0
    %7109 = vmatprep.subr.mxu0 0.0
    %7110 = vmatpush2.msra.mxu0 0.0
    %7111 = vmatprep.subr.mxu0 0.0
    %7112 = vmatpush2.msra.mxu0 0.0
    %7113 = vmatprep.subr.mxu0 0.0
    %7114 = vmatpush2.msra.mxu0 0.0
    %7115 = vmatprep.mubr.f32.mxu0 0.0
    %7116 = vmatmul.mubr.f32.gmra.mxu0 %v7049
    %v7117 = vpop.f32.mrf.mxu0
    %v7118 = vadd.f32 0.0, %v7117
    %v7119 = vpop.f32.mrf.mxu0
    %7120 = vdwg.mxu0
    %v7122 = vsel %vm5208, %v7045, 0
    %7124 = vmatprep.subr.mxu0 0.0
    %7125 = vmatpush1.msra.mxu0 0.0
    %7126 = vmatprep.subr.mxu0 0.0
    %7127 = vmatpush1.msra.mxu0 0.0
    %7128 = vmatprep.subr.mxu0 0.0
    %7129 = vmatpush1.msra.mxu0 0.0
    %7130 = vmatprep.subr.mxu0 0.0
    %7131 = vmatpush1.msra.mxu0 0.0
    %7132 = vmatprep.subr.mxu0 0.0
    %7133 = vmatpush1.msra.mxu0 0.0
    %7134 = vmatprep.subr.mxu0 0.0
    %7135 = vmatpush1.msra.mxu0 0.0
    %7136 = vmatprep.subr.mxu0 0.0
    %7137 = vmatpush1.msra.mxu0 0.0
    %7138 = vmatprep.subr.mxu0 0.0
    %7139 = vmatpush1.msra.mxu0 0.0
    %7140 = vmatprep.subr.mxu0 0.0
    %7141 = vmatpush1.msra.mxu0 0.0
    %7142 = vmatprep.subr.mxu0 0.0
    %7143 = vmatpush1.msra.mxu0 0.0
    %7144 = vmatprep.subr.mxu0 0.0
    %7145 = vmatpush1.msra.mxu0 0.0
    %7146 = vmatprep.subr.mxu0 0.0
    %7147 = vmatpush1.msra.mxu0 0.0
    %7148 = vmatprep.subr.mxu0 0.0
    %7149 = vmatpush1.msra.mxu0 %v6451
    %7150 = vmatprep.subr.mxu0 0.0
    %7151 = vmatpush1.msra.mxu0 %v6450
    %7152 = vmatprep.subr.mxu0 0.0
    %7153 = vmatpush1.msra.mxu0 %v6449
    %7154 = vmatprep.subr.mxu0 0.0
    %7155 = vmatpush1.msra.mxu0 %v6448
    %7156 = vmatprep.subr.mxu0 0.0
    %7157 = vmatpush2.msra.mxu0 0.0
    %7158 = vmatprep.subr.mxu0 0.0
    %7159 = vmatpush2.msra.mxu0 0.0
    %7160 = vmatprep.subr.mxu0 0.0
    %7161 = vmatpush2.msra.mxu0 0.0
    %7162 = vmatprep.subr.mxu0 0.0
    %7163 = vmatpush2.msra.mxu0 0.0
    %7164 = vmatprep.subr.mxu0 0.0
    %7165 = vmatpush2.msra.mxu0 0.0
    %7166 = vmatprep.subr.mxu0 0.0
    %7167 = vmatpush2.msra.mxu0 0.0
    %7168 = vmatprep.subr.mxu0 0.0
    %7169 = vmatpush2.msra.mxu0 0.0
    %7170 = vmatprep.subr.mxu0 0.0
    %7171 = vmatpush2.msra.mxu0 0.0
    %7172 = vmatprep.subr.mxu0 0.0
    %7173 = vmatpush2.msra.mxu0 0.0
    %7174 = vmatprep.subr.mxu0 0.0
    %7175 = vmatpush2.msra.mxu0 0.0
    %7176 = vmatprep.subr.mxu0 0.0
    %7177 = vmatpush2.msra.mxu0 0.0
    %7178 = vmatprep.subr.mxu0 0.0
    %7179 = vmatpush2.msra.mxu0 0.0
    %7180 = vmatprep.subr.mxu0 0.0
    %7181 = vmatpush2.msra.mxu0 0.0
    %7182 = vmatprep.subr.mxu0 0.0
    %7183 = vmatpush2.msra.mxu0 0.0
    %7184 = vmatprep.subr.mxu0 0.0
    %7185 = vmatpush2.msra.mxu0 0.0
    %7186 = vmatprep.subr.mxu0 0.0
    %7187 = vmatpush2.msra.mxu0 0.0
    %7188 = vmatprep.mubr.f32.mxu0 0.0
    %7189 = vmatmul.mubr.f32.gmra.mxu0 %v7122
    %v7190 = vpop.f32.mrf.mxu0
    %v7191 = vadd.f32 0.0, %v7190
    %v7192 = vpop.f32.mrf.mxu0
    %7193 = vdwg.mxu0
    %v7195 = vsel %vm5208, %v7046, 0
    %7197 = vmatprep.subr.mxu0 0.0
    %7198 = vmatpush1.msra.mxu0 0.0
    %7199 = vmatprep.subr.mxu0 0.0
    %7200 = vmatpush1.msra.mxu0 0.0
    %7201 = vmatprep.subr.mxu0 0.0
    %7202 = vmatpush1.msra.mxu0 0.0
    %7203 = vmatprep.subr.mxu0 0.0
    %7204 = vmatpush1.msra.mxu0 0.0
    %7205 = vmatprep.subr.mxu0 0.0
    %7206 = vmatpush1.msra.mxu0 0.0
    %7207 = vmatprep.subr.mxu0 0.0
    %7208 = vmatpush1.msra.mxu0 0.0
    %7209 = vmatprep.subr.mxu0 0.0
    %7210 = vmatpush1.msra.mxu0 0.0
    %7211 = vmatprep.subr.mxu0 0.0
    %7212 = vmatpush1.msra.mxu0 0.0
    %7213 = vmatprep.subr.mxu0 0.0
    %7214 = vmatpush1.msra.mxu0 0.0
    %7215 = vmatprep.subr.mxu0 0.0
    %7216 = vmatpush1.msra.mxu0 0.0
    %7217 = vmatprep.subr.mxu0 0.0
    %7218 = vmatpush1.msra.mxu0 0.0
    %7219 = vmatprep.subr.mxu0 0.0
    %7220 = vmatpush1.msra.mxu0 0.0
    %7221 = vmatprep.subr.mxu0 0.0
    %7222 = vmatpush1.msra.mxu0 %v6451
    %7223 = vmatprep.subr.mxu0 0.0
    %7224 = vmatpush1.msra.mxu0 %v6450
    %7225 = vmatprep.subr.mxu0 0.0
    %7226 = vmatpush1.msra.mxu0 %v6449
    %7227 = vmatprep.subr.mxu0 0.0
    %7228 = vmatpush1.msra.mxu0 %v6448
    %7229 = vmatprep.subr.mxu0 0.0
    %7230 = vmatpush2.msra.mxu0 0.0
    %7231 = vmatprep.subr.mxu0 0.0
    %7232 = vmatpush2.msra.mxu0 0.0
    %7233 = vmatprep.subr.mxu0 0.0
    %7234 = vmatpush2.msra.mxu0 0.0
    %7235 = vmatprep.subr.mxu0 0.0
    %7236 = vmatpush2.msra.mxu0 0.0
    %7237 = vmatprep.subr.mxu0 0.0
    %7238 = vmatpush2.msra.mxu0 0.0
    %7239 = vmatprep.subr.mxu0 0.0
    %7240 = vmatpush2.msra.mxu0 0.0
    %7241 = vmatprep.subr.mxu0 0.0
    %7242 = vmatpush2.msra.mxu0 0.0
    %7243 = vmatprep.subr.mxu0 0.0
    %7244 = vmatpush2.msra.mxu0 0.0
    %7245 = vmatprep.subr.mxu0 0.0
    %7246 = vmatpush2.msra.mxu0 0.0
    %7247 = vmatprep.subr.mxu0 0.0
    %7248 = vmatpush2.msra.mxu0 0.0
    %7249 = vmatprep.subr.mxu0 0.0
    %7250 = vmatpush2.msra.mxu0 0.0
    %7251 = vmatprep.subr.mxu0 0.0
    %7252 = vmatpush2.msra.mxu0 0.0
    %7253 = vmatprep.subr.mxu0 0.0
    %7254 = vmatpush2.msra.mxu0 0.0
    %7255 = vmatprep.subr.mxu0 0.0
    %7256 = vmatpush2.msra.mxu0 0.0
    %7257 = vmatprep.subr.mxu0 0.0
    %7258 = vmatpush2.msra.mxu0 0.0
    %7259 = vmatprep.subr.mxu0 0.0
    %7260 = vmatpush2.msra.mxu0 0.0
    %7261 = vmatprep.mubr.f32.mxu0 0.0
    %7262 = vmatmul.mubr.f32.gmra.mxu0 %v7195
    %v7263 = vpop.f32.mrf.mxu0
    %v7264 = vadd.f32 0.0, %v7263
    %v7265 = vpop.f32.mrf.mxu0
    %7266 = vdwg.mxu0
    %v7268 = vsel %vm5208, %v7047, 0
    %7270 = vmatprep.subr.mxu0 0.0
    %7271 = vmatpush1.msra.mxu0 0.0
    %7272 = vmatprep.subr.mxu0 0.0
    %7273 = vmatpush1.msra.mxu0 0.0
    %7274 = vmatprep.subr.mxu0 0.0
    %7275 = vmatpush1.msra.mxu0 0.0
    %7276 = vmatprep.subr.mxu0 0.0
    %7277 = vmatpush1.msra.mxu0 0.0
    %7278 = vmatprep.subr.mxu0 0.0
    %7279 = vmatpush1.msra.mxu0 0.0
    %7280 = vmatprep.subr.mxu0 0.0
    %7281 = vmatpush1.msra.mxu0 0.0
    %7282 = vmatprep.subr.mxu0 0.0
    %7283 = vmatpush1.msra.mxu0 0.0
    %7284 = vmatprep.subr.mxu0 0.0
    %7285 = vmatpush1.msra.mxu0 0.0
    %7286 = vmatprep.subr.mxu0 0.0
    %7287 = vmatpush1.msra.mxu0 0.0
    %7288 = vmatprep.subr.mxu0 0.0
    %7289 = vmatpush1.msra.mxu0 0.0
    %7290 = vmatprep.subr.mxu0 0.0
    %7291 = vmatpush1.msra.mxu0 0.0
    %7292 = vmatprep.subr.mxu0 0.0
    %7293 = vmatpush1.msra.mxu0 0.0
    %7294 = vmatprep.subr.mxu0 0.0
    %7295 = vmatpush1.msra.mxu0 %v6451
    %7296 = vmatprep.subr.mxu0 0.0
    %7297 = vmatpush1.msra.mxu0 %v6450
    %7298 = vmatprep.subr.mxu0 0.0
    %7299 = vmatpush1.msra.mxu0 %v6449
    %7300 = vmatprep.subr.mxu0 0.0
    %7301 = vmatpush1.msra.mxu0 %v6448
    %7302 = vmatprep.subr.mxu0 0.0
    %7303 = vmatpush2.msra.mxu0 0.0
    %7304 = vmatprep.subr.mxu0 0.0
    %7305 = vmatpush2.msra.mxu0 0.0
    %7306 = vmatprep.subr.mxu0 0.0
    %7307 = vmatpush2.msra.mxu0 0.0
    %7308 = vmatprep.subr.mxu0 0.0
    %7309 = vmatpush2.msra.mxu0 0.0
    %7310 = vmatprep.subr.mxu0 0.0
    %7311 = vmatpush2.msra.mxu0 0.0
    %7312 = vmatprep.subr.mxu0 0.0
    %7313 = vmatpush2.msra.mxu0 0.0
    %7314 = vmatprep.subr.mxu0 0.0
    %7315 = vmatpush2.msra.mxu0 0.0
    %7316 = vmatprep.subr.mxu0 0.0
    %7317 = vmatpush2.msra.mxu0 0.0
    %7318 = vmatprep.subr.mxu0 0.0
    %7319 = vmatpush2.msra.mxu0 0.0
    %7320 = vmatprep.subr.mxu0 0.0
    %7321 = vmatpush2.msra.mxu0 0.0
    %7322 = vmatprep.subr.mxu0 0.0
    %7323 = vmatpush2.msra.mxu0 0.0
    %7324 = vmatprep.subr.mxu0 0.0
    %7325 = vmatpush2.msra.mxu0 0.0
    %7326 = vmatprep.subr.mxu0 0.0
    %7327 = vmatpush2.msra.mxu0 0.0
    %7328 = vmatprep.subr.mxu0 0.0
    %7329 = vmatpush2.msra.mxu0 0.0
    %7330 = vmatprep.subr.mxu0 0.0
    %7331 = vmatpush2.msra.mxu0 0.0
    %7332 = vmatprep.subr.mxu0 0.0
    %7333 = vmatpush2.msra.mxu0 0.0
    %7334 = vmatprep.mubr.f32.mxu0 0.0
    %7335 = vmatmul.mubr.f32.gmra.mxu0 %v7268
    %v7336 = vpop.f32.mrf.mxu0
    %v7337 = vadd.f32 0.0, %v7336
    %v7338 = vpop.f32.mrf.mxu0
    %7339 = vdwg.mxu0
    %7340 = vxpose.xlu0.b32.start [1/16] %v6526, 128
    %7341 = vxpose.xlu0.b32.cont [2/16] 0.0, 128
    %7342 = vxpose.xlu0.b32.cont [3/16] 0.0, 128
    %7343 = vxpose.xlu0.b32.cont [4/16] 0.0, 128
    %7344 = vxpose.xlu0.b32.cont [5/16] 0.0, 128
    %7345 = vxpose.xlu0.b32.cont [6/16] 0.0, 128
    %7346 = vxpose.xlu0.b32.cont [7/16] 0.0, 128
    %7347 = vxpose.xlu0.b32.cont [8/16] 0.0, 128
    %7348 = vxpose.xlu0.b32.cont [9/16] 0.0, 128
    %7349 = vxpose.xlu0.b32.cont [10/16] 0.0, 128
    %7350 = vxpose.xlu0.b32.cont [11/16] 0.0, 128
    %7351 = vxpose.xlu0.b32.cont [12/16] 0.0, 128
    %7352 = vxpose.xlu0.b32.cont [13/16] 0.0, 128
    %7353 = vxpose.xlu0.b32.cont [14/16] 0.0, 128
    %7354 = vxpose.xlu0.b32.cont [15/16] 0.0, 128
    %7355 = vxpose.xlu0.b32.end [16/16] 0.0, 128
    %v7356 = vpop.trf.xlu0
    %v7357 = vpop.trf.xlu0
    %v7358 = vpop.trf.xlu0
    %v7359 = vpop.trf.xlu0
    %v7360 = vpop.trf.xlu0
    %v7361 = vpop.trf.xlu0
    %v7362 = vpop.trf.xlu0
    %v7363 = vpop.trf.xlu0
    %v7364 = vpop.trf.xlu0
    %v7365 = vpop.trf.xlu0
    %v7366 = vpop.trf.xlu0
    %v7367 = vpop.trf.xlu0
    %v7368 = vpop.trf.xlu0
    %v7369 = vpop.trf.xlu0
    %v7370 = vpop.trf.xlu0
    %v7371 = vpop.trf.xlu0
    %v7373 = vsel %vm3915, %v7356, 0
    %7375 = vmatprep.subr.mxu0 0.0
    %7376 = vmatpush1.msra.mxu0 0.0
    %7377 = vmatprep.subr.mxu0 0.0
    %7378 = vmatpush1.msra.mxu0 0.0
    %7379 = vmatprep.subr.mxu0 0.0
    %7380 = vmatpush1.msra.mxu0 0.0
    %7381 = vmatprep.subr.mxu0 0.0
    %7382 = vmatpush1.msra.mxu0 0.0
    %7383 = vmatprep.subr.mxu0 0.0
    %7384 = vmatpush1.msra.mxu0 0.0
    %7385 = vmatprep.subr.mxu0 0.0
    %7386 = vmatpush1.msra.mxu0 0.0
    %7387 = vmatprep.subr.mxu0 0.0
    %7388 = vmatpush1.msra.mxu0 0.0
    %7389 = vmatprep.subr.mxu0 0.0
    %7390 = vmatpush1.msra.mxu0 0.0
    %7391 = vmatprep.subr.mxu0 0.0
    %7392 = vmatpush1.msra.mxu0 0.0
    %7393 = vmatprep.subr.mxu0 0.0
    %7394 = vmatpush1.msra.mxu0 0.0
    %7395 = vmatprep.subr.mxu0 0.0
    %7396 = vmatpush1.msra.mxu0 0.0
    %7397 = vmatprep.subr.mxu0 0.0
    %7398 = vmatpush1.msra.mxu0 0.0
    %7399 = vmatprep.subr.mxu0 0.0
    %7400 = vmatpush1.msra.mxu0 0.0
    %7401 = vmatprep.subr.mxu0 0.0
    %7402 = vmatpush1.msra.mxu0 0.0
    %7403 = vmatprep.subr.mxu0 0.0
    %7404 = vmatpush1.msra.mxu0 0.0
    %7405 = vmatprep.subr.mxu0 0.0
    %7406 = vmatpush1.msra.mxu0 %v6822
    %7407 = vmatprep.subr.mxu0 0.0
    %7408 = vmatpush2.msra.mxu0 0.0
    %7409 = vmatprep.subr.mxu0 0.0
    %7410 = vmatpush2.msra.mxu0 0.0
    %7411 = vmatprep.subr.mxu0 0.0
    %7412 = vmatpush2.msra.mxu0 0.0
    %7413 = vmatprep.subr.mxu0 0.0
    %7414 = vmatpush2.msra.mxu0 0.0
    %7415 = vmatprep.subr.mxu0 0.0
    %7416 = vmatpush2.msra.mxu0 0.0
    %7417 = vmatprep.subr.mxu0 0.0
    %7418 = vmatpush2.msra.mxu0 0.0
    %7419 = vmatprep.subr.mxu0 0.0
    %7420 = vmatpush2.msra.mxu0 0.0
    %7421 = vmatprep.subr.mxu0 0.0
    %7422 = vmatpush2.msra.mxu0 0.0
    %7423 = vmatprep.subr.mxu0 0.0
    %7424 = vmatpush2.msra.mxu0 0.0
    %7425 = vmatprep.subr.mxu0 0.0
    %7426 = vmatpush2.msra.mxu0 0.0
    %7427 = vmatprep.subr.mxu0 0.0
    %7428 = vmatpush2.msra.mxu0 0.0
    %7429 = vmatprep.subr.mxu0 0.0
    %7430 = vmatpush2.msra.mxu0 0.0
    %7431 = vmatprep.subr.mxu0 0.0
    %7432 = vmatpush2.msra.mxu0 0.0
    %7433 = vmatprep.subr.mxu0 0.0
    %7434 = vmatpush2.msra.mxu0 0.0
    %7435 = vmatprep.subr.mxu0 0.0
    %7436 = vmatpush2.msra.mxu0 0.0
    %7437 = vmatprep.subr.mxu0 0.0
    %7438 = vmatpush2.msra.mxu0 0.0
    %7439 = vmatprep.mubr.f32.mxu0 0.0
    %7440 = vmatmul.mubr.f32.gmra.mxu0 %v7373
    %v7441 = vpop.f32.mrf.mxu0
    %v7442 = vadd.f32 0.0, %v7441
    %v7443 = vpop.f32.mrf.mxu0
    %7444 = vdwg.mxu0
    %7445 = vxpose.xlu0.b32.start [1/16] %v6599, 128
    %7446 = vxpose.xlu0.b32.cont [2/16] 0.0, 128
    %7447 = vxpose.xlu0.b32.cont [3/16] 0.0, 128
    %7448 = vxpose.xlu0.b32.cont [4/16] 0.0, 128
    %7449 = vxpose.xlu0.b32.cont [5/16] 0.0, 128
    %7450 = vxpose.xlu0.b32.cont [6/16] 0.0, 128
    %7451 = vxpose.xlu0.b32.cont [7/16] 0.0, 128
    %7452 = vxpose.xlu0.b32.cont [8/16] 0.0, 128
    %7453 = vxpose.xlu0.b32.cont [9/16] 0.0, 128
    %7454 = vxpose.xlu0.b32.cont [10/16] 0.0, 128
    %7455 = vxpose.xlu0.b32.cont [11/16] 0.0, 128
    %7456 = vxpose.xlu0.b32.cont [12/16] 0.0, 128
    %7457 = vxpose.xlu0.b32.cont [13/16] 0.0, 128
    %7458 = vxpose.xlu0.b32.cont [14/16] 0.0, 128
    %7459 = vxpose.xlu0.b32.cont [15/16] 0.0, 128
    %7460 = vxpose.xlu0.b32.end [16/16] 0.0, 128
    %v7461 = vpop.trf.xlu0
    %v7462 = vpop.trf.xlu0
    %v7463 = vpop.trf.xlu0
    %v7464 = vpop.trf.xlu0
    %v7465 = vpop.trf.xlu0
    %v7466 = vpop.trf.xlu0
    %v7467 = vpop.trf.xlu0
    %v7468 = vpop.trf.xlu0
    %v7469 = vpop.trf.xlu0
    %v7470 = vpop.trf.xlu0
    %v7471 = vpop.trf.xlu0
    %v7472 = vpop.trf.xlu0
    %v7473 = vpop.trf.xlu0
    %v7474 = vpop.trf.xlu0
    %v7475 = vpop.trf.xlu0
    %v7476 = vpop.trf.xlu0
    %v7478 = vsel %vm3915, %v7461, 0
    %7480 = vmatprep.subr.mxu0 0.0
    %7481 = vmatpush1.msra.mxu0 0.0
    %7482 = vmatprep.subr.mxu0 0.0
    %7483 = vmatpush1.msra.mxu0 0.0
    %7484 = vmatprep.subr.mxu0 0.0
    %7485 = vmatpush1.msra.mxu0 0.0
    %7486 = vmatprep.subr.mxu0 0.0
    %7487 = vmatpush1.msra.mxu0 0.0
    %7488 = vmatprep.subr.mxu0 0.0
    %7489 = vmatpush1.msra.mxu0 0.0
    %7490 = vmatprep.subr.mxu0 0.0
    %7491 = vmatpush1.msra.mxu0 0.0
    %7492 = vmatprep.subr.mxu0 0.0
    %7493 = vmatpush1.msra.mxu0 0.0
    %7494 = vmatprep.subr.mxu0 0.0
    %7495 = vmatpush1.msra.mxu0 0.0
    %7496 = vmatprep.subr.mxu0 0.0
    %7497 = vmatpush1.msra.mxu0 0.0
    %7498 = vmatprep.subr.mxu0 0.0
    %7499 = vmatpush1.msra.mxu0 0.0
    %7500 = vmatprep.subr.mxu0 0.0
    %7501 = vmatpush1.msra.mxu0 0.0
    %7502 = vmatprep.subr.mxu0 0.0
    %7503 = vmatpush1.msra.mxu0 0.0
    %7504 = vmatprep.subr.mxu0 0.0
    %7505 = vmatpush1.msra.mxu0 0.0
    %7506 = vmatprep.subr.mxu0 0.0
    %7507 = vmatpush1.msra.mxu0 0.0
    %7508 = vmatprep.subr.mxu0 0.0
    %7509 = vmatpush1.msra.mxu0 0.0
    %7510 = vmatprep.subr.mxu0 0.0
    %7511 = vmatpush1.msra.mxu0 %v6895
    %7512 = vmatprep.subr.mxu0 0.0
    %7513 = vmatpush2.msra.mxu0 0.0
    %7514 = vmatprep.subr.mxu0 0.0
    %7515 = vmatpush2.msra.mxu0 0.0
    %7516 = vmatprep.subr.mxu0 0.0
    %7517 = vmatpush2.msra.mxu0 0.0
    %7518 = vmatprep.subr.mxu0 0.0
    %7519 = vmatpush2.msra.mxu0 0.0
    %7520 = vmatprep.subr.mxu0 0.0
    %7521 = vmatpush2.msra.mxu0 0.0
    %7522 = vmatprep.subr.mxu0 0.0
    %7523 = vmatpush2.msra.mxu0 0.0
    %7524 = vmatprep.subr.mxu0 0.0
    %7525 = vmatpush2.msra.mxu0 0.0
    %7526 = vmatprep.subr.mxu0 0.0
    %7527 = vmatpush2.msra.mxu0 0.0
    %7528 = vmatprep.subr.mxu0 0.0
    %7529 = vmatpush2.msra.mxu0 0.0
    %7530 = vmatprep.subr.mxu0 0.0
    %7531 = vmatpush2.msra.mxu0 0.0
    %7532 = vmatprep.subr.mxu0 0.0
    %7533 = vmatpush2.msra.mxu0 0.0
    %7534 = vmatprep.subr.mxu0 0.0
    %7535 = vmatpush2.msra.mxu0 0.0
    %7536 = vmatprep.subr.mxu0 0.0
    %7537 = vmatpush2.msra.mxu0 0.0
    %7538 = vmatprep.subr.mxu0 0.0
    %7539 = vmatpush2.msra.mxu0 0.0
    %7540 = vmatprep.subr.mxu0 0.0
    %7541 = vmatpush2.msra.mxu0 0.0
    %7542 = vmatprep.subr.mxu0 0.0
    %7543 = vmatpush2.msra.mxu0 0.0
    %7544 = vmatprep.mubr.f32.mxu0 0.0
    %7545 = vmatmul.mubr.f32.gmra.mxu0 %v7478
    %v7546 = vpop.f32.mrf.mxu0
    %v7547 = vadd.f32 0.0, %v7546
    %v7548 = vpop.f32.mrf.mxu0
    %7549 = vdwg.mxu0
    %7550 = vxpose.xlu0.b32.start [1/16] %v6672, 128
    %7551 = vxpose.xlu0.b32.cont [2/16] 0.0, 128
    %7552 = vxpose.xlu0.b32.cont [3/16] 0.0, 128
    %7553 = vxpose.xlu0.b32.cont [4/16] 0.0, 128
    %7554 = vxpose.xlu0.b32.cont [5/16] 0.0, 128
    %7555 = vxpose.xlu0.b32.cont [6/16] 0.0, 128
    %7556 = vxpose.xlu0.b32.cont [7/16] 0.0, 128
    %7557 = vxpose.xlu0.b32.cont [8/16] 0.0, 128
    %7558 = vxpose.xlu0.b32.cont [9/16] 0.0, 128
    %7559 = vxpose.xlu0.b32.cont [10/16] 0.0, 128
    %7560 = vxpose.xlu0.b32.cont [11/16] 0.0, 128
    %7561 = vxpose.xlu0.b32.cont [12/16] 0.0, 128
    %7562 = vxpose.xlu0.b32.cont [13/16] 0.0, 128
    %7563 = vxpose.xlu0.b32.cont [14/16] 0.0, 128
    %7564 = vxpose.xlu0.b32.cont [15/16] 0.0, 128
    %7565 = vxpose.xlu0.b32.end [16/16] 0.0, 128
    %v7566 = vpop.trf.xlu0
    %v7567 = vpop.trf.xlu0
    %v7568 = vpop.trf.xlu0
    %v7569 = vpop.trf.xlu0
    %v7570 = vpop.trf.xlu0
    %v7571 = vpop.trf.xlu0
    %v7572 = vpop.trf.xlu0
    %v7573 = vpop.trf.xlu0
    %v7574 = vpop.trf.xlu0
    %v7575 = vpop.trf.xlu0
    %v7576 = vpop.trf.xlu0
    %v7577 = vpop.trf.xlu0
    %v7578 = vpop.trf.xlu0
    %v7579 = vpop.trf.xlu0
    %v7580 = vpop.trf.xlu0
    %v7581 = vpop.trf.xlu0
    %v7583 = vsel %vm3915, %v7566, 0
    %7585 = vmatprep.subr.mxu0 0.0
    %7586 = vmatpush1.msra.mxu0 0.0
    %7587 = vmatprep.subr.mxu0 0.0
    %7588 = vmatpush1.msra.mxu0 0.0
    %7589 = vmatprep.subr.mxu0 0.0
    %7590 = vmatpush1.msra.mxu0 0.0
    %7591 = vmatprep.subr.mxu0 0.0
    %7592 = vmatpush1.msra.mxu0 0.0
    %7593 = vmatprep.subr.mxu0 0.0
    %7594 = vmatpush1.msra.mxu0 0.0
    %7595 = vmatprep.subr.mxu0 0.0
    %7596 = vmatpush1.msra.mxu0 0.0
    %7597 = vmatprep.subr.mxu0 0.0
    %7598 = vmatpush1.msra.mxu0 0.0
    %7599 = vmatprep.subr.mxu0 0.0
    %7600 = vmatpush1.msra.mxu0 0.0
    %7601 = vmatprep.subr.mxu0 0.0
    %7602 = vmatpush1.msra.mxu0 0.0
    %7603 = vmatprep.subr.mxu0 0.0
    %7604 = vmatpush1.msra.mxu0 0.0
    %7605 = vmatprep.subr.mxu0 0.0
    %7606 = vmatpush1.msra.mxu0 0.0
    %7607 = vmatprep.subr.mxu0 0.0
    %7608 = vmatpush1.msra.mxu0 0.0
    %7609 = vmatprep.subr.mxu0 0.0
    %7610 = vmatpush1.msra.mxu0 0.0
    %7611 = vmatprep.subr.mxu0 0.0
    %7612 = vmatpush1.msra.mxu0 0.0
    %7613 = vmatprep.subr.mxu0 0.0
    %7614 = vmatpush1.msra.mxu0 0.0
    %7615 = vmatprep.subr.mxu0 0.0
    %7616 = vmatpush1.msra.mxu0 %v6968
    %7617 = vmatprep.subr.mxu0 0.0
    %7618 = vmatpush2.msra.mxu0 0.0
    %7619 = vmatprep.subr.mxu0 0.0
    %7620 = vmatpush2.msra.mxu0 0.0
    %7621 = vmatprep.subr.mxu0 0.0
    %7622 = vmatpush2.msra.mxu0 0.0
    %7623 = vmatprep.subr.mxu0 0.0
    %7624 = vmatpush2.msra.mxu0 0.0
    %7625 = vmatprep.subr.mxu0 0.0
    %7626 = vmatpush2.msra.mxu0 0.0
    %7627 = vmatprep.subr.mxu0 0.0
    %7628 = vmatpush2.msra.mxu0 0.0
    %7629 = vmatprep.subr.mxu0 0.0
    %7630 = vmatpush2.msra.mxu0 0.0
    %7631 = vmatprep.subr.mxu0 0.0
    %7632 = vmatpush2.msra.mxu0 0.0
    %7633 = vmatprep.subr.mxu0 0.0
    %7634 = vmatpush2.msra.mxu0 0.0
    %7635 = vmatprep.subr.mxu0 0.0
    %7636 = vmatpush2.msra.mxu0 0.0
    %7637 = vmatprep.subr.mxu0 0.0
    %7638 = vmatpush2.msra.mxu0 0.0
    %7639 = vmatprep.subr.mxu0 0.0
    %7640 = vmatpush2.msra.mxu0 0.0
    %7641 = vmatprep.subr.mxu0 0.0
    %7642 = vmatpush2.msra.mxu0 0.0
    %7643 = vmatprep.subr.mxu0 0.0
    %7644 = vmatpush2.msra.mxu0 0.0
    %7645 = vmatprep.subr.mxu0 0.0
    %7646 = vmatpush2.msra.mxu0 0.0
    %7647 = vmatprep.subr.mxu0 0.0
    %7648 = vmatpush2.msra.mxu0 0.0
    %7649 = vmatprep.mubr.f32.mxu0 0.0
    %7650 = vmatmul.mubr.f32.gmra.mxu0 %v7583
    %v7651 = vpop.f32.mrf.mxu0
    %v7652 = vadd.f32 0.0, %v7651
    %v7653 = vpop.f32.mrf.mxu0
    %7654 = vdwg.mxu0
    %7655 = vxpose.xlu0.b32.start [1/16] %v6745, 128
    %7656 = vxpose.xlu0.b32.cont [2/16] 0.0, 128
    %7657 = vxpose.xlu0.b32.cont [3/16] 0.0, 128
    %7658 = vxpose.xlu0.b32.cont [4/16] 0.0, 128
    %7659 = vxpose.xlu0.b32.cont [5/16] 0.0, 128
    %7660 = vxpose.xlu0.b32.cont [6/16] 0.0, 128
    %7661 = vxpose.xlu0.b32.cont [7/16] 0.0, 128
    %7662 = vxpose.xlu0.b32.cont [8/16] 0.0, 128
    %7663 = vxpose.xlu0.b32.cont [9/16] 0.0, 128
    %7664 = vxpose.xlu0.b32.cont [10/16] 0.0, 128
    %7665 = vxpose.xlu0.b32.cont [11/16] 0.0, 128
    %7666 = vxpose.xlu0.b32.cont [12/16] 0.0, 128
    %7667 = vxpose.xlu0.b32.cont [13/16] 0.0, 128
    %7668 = vxpose.xlu0.b32.cont [14/16] 0.0, 128
    %7669 = vxpose.xlu0.b32.cont [15/16] 0.0, 128
    %7670 = vxpose.xlu0.b32.end [16/16] 0.0, 128
    %v7671 = vpop.trf.xlu0
    %v7672 = vpop.trf.xlu0
    %v7673 = vpop.trf.xlu0
    %v7674 = vpop.trf.xlu0
    %v7675 = vpop.trf.xlu0
    %v7676 = vpop.trf.xlu0
    %v7677 = vpop.trf.xlu0
    %v7678 = vpop.trf.xlu0
    %v7679 = vpop.trf.xlu0
    %v7680 = vpop.trf.xlu0
    %v7681 = vpop.trf.xlu0
    %v7682 = vpop.trf.xlu0
    %v7683 = vpop.trf.xlu0
    %v7684 = vpop.trf.xlu0
    %v7685 = vpop.trf.xlu0
    %v7686 = vpop.trf.xlu0
    %v7688 = vsel %vm3915, %v7671, 0
    %7690 = vmatprep.subr.mxu0 0.0
    %7691 = vmatpush1.msra.mxu0 0.0
    %7692 = vmatprep.subr.mxu0 0.0
    %7693 = vmatpush1.msra.mxu0 0.0
    %7694 = vmatprep.subr.mxu0 0.0
    %7695 = vmatpush1.msra.mxu0 0.0
    %7696 = vmatprep.subr.mxu0 0.0
    %7697 = vmatpush1.msra.mxu0 0.0
    %7698 = vmatprep.subr.mxu0 0.0
    %7699 = vmatpush1.msra.mxu0 0.0
    %7700 = vmatprep.subr.mxu0 0.0
    %7701 = vmatpush1.msra.mxu0 0.0
    %7702 = vmatprep.subr.mxu0 0.0
    %7703 = vmatpush1.msra.mxu0 0.0
    %7704 = vmatprep.subr.mxu0 0.0
    %7705 = vmatpush1.msra.mxu0 0.0
    %7706 = vmatprep.subr.mxu0 0.0
    %7707 = vmatpush1.msra.mxu0 0.0
    %7708 = vmatprep.subr.mxu0 0.0
    %7709 = vmatpush1.msra.mxu0 0.0
    %7710 = vmatprep.subr.mxu0 0.0
    %7711 = vmatpush1.msra.mxu0 0.0
    %7712 = vmatprep.subr.mxu0 0.0
    %7713 = vmatpush1.msra.mxu0 0.0
    %7714 = vmatprep.subr.mxu0 0.0
    %7715 = vmatpush1.msra.mxu0 0.0
    %7716 = vmatprep.subr.mxu0 0.0
    %7717 = vmatpush1.msra.mxu0 0.0
    %7718 = vmatprep.subr.mxu0 0.0
    %7719 = vmatpush1.msra.mxu0 0.0
    %7720 = vmatprep.subr.mxu0 0.0
    %7721 = vmatpush1.msra.mxu0 %v7041
    %7722 = vmatprep.subr.mxu0 0.0
    %7723 = vmatpush2.msra.mxu0 0.0
    %7724 = vmatprep.subr.mxu0 0.0
    %7725 = vmatpush2.msra.mxu0 0.0
    %7726 = vmatprep.subr.mxu0 0.0
    %7727 = vmatpush2.msra.mxu0 0.0
    %7728 = vmatprep.subr.mxu0 0.0
    %7729 = vmatpush2.msra.mxu0 0.0
    %7730 = vmatprep.subr.mxu0 0.0
    %7731 = vmatpush2.msra.mxu0 0.0
    %7732 = vmatprep.subr.mxu0 0.0
    %7733 = vmatpush2.msra.mxu0 0.0
    %7734 = vmatprep.subr.mxu0 0.0
    %7735 = vmatpush2.msra.mxu0 0.0
    %7736 = vmatprep.subr.mxu0 0.0
    %7737 = vmatpush2.msra.mxu0 0.0
    %7738 = vmatprep.subr.mxu0 0.0
    %7739 = vmatpush2.msra.mxu0 0.0
    %7740 = vmatprep.subr.mxu0 0.0
    %7741 = vmatpush2.msra.mxu0 0.0
    %7742 = vmatprep.subr.mxu0 0.0
    %7743 = vmatpush2.msra.mxu0 0.0
    %7744 = vmatprep.subr.mxu0 0.0
    %7745 = vmatpush2.msra.mxu0 0.0
    %7746 = vmatprep.subr.mxu0 0.0
    %7747 = vmatpush2.msra.mxu0 0.0
    %7748 = vmatprep.subr.mxu0 0.0
    %7749 = vmatpush2.msra.mxu0 0.0
    %7750 = vmatprep.subr.mxu0 0.0
    %7751 = vmatpush2.msra.mxu0 0.0
    %7752 = vmatprep.subr.mxu0 0.0
    %7753 = vmatpush2.msra.mxu0 0.0
    %7754 = vmatprep.mubr.f32.mxu0 0.0
    %7755 = vmatmul.mubr.f32.gmra.mxu0 %v7688
    %v7756 = vpop.f32.mrf.mxu0
    %v7757 = vadd.f32 0.0, %v7756
    %v7758 = vpop.f32.mrf.mxu0
    %7759 = vdwg.mxu0
    %v7760 = vmul.f32 %v7442, 0.35355338
    %v7761 = vmul.f32 %v7547, 0.35355338
    %v7762 = vmul.f32 %v7652, 0.35355338
    %v7763 = vmul.f32 %v7757, 0.35355338
    %v7764 = vld [vmem:[#allocation12] sm:$0xff]
    %v7765 = vadd.f32 %v7760, %v7764
    %v7766 = vadd.f32 %v7761, %v7764
    %v7767 = vadd.f32 %v7762, %v7764
    %v7768 = vadd.f32 %v7763, %v7764
    %v7769 = vsel %vm3915, %v7765, -inf
    %7770 = vmax.xlane.f32.xlu0 %v7769
    %v7771 = vpop.xlane.xlu0 %7770
    %v7772 = vsel %vm3915, %v7766, -inf
    %7773 = vmax.xlane.f32.xlu0 %v7772
    %v7774 = vpop.xlane.xlu0 %7773
    %v7775 = vsel %vm3915, %v7767, -inf
    %7776 = vmax.xlane.f32.xlu0 %v7775
    %v7777 = vpop.xlane.xlu0 %7776
    %v7778 = vsel %vm3915, %v7768, -inf
    %7779 = vmax.xlane.f32.xlu0 %v7778
    %v7780 = vpop.xlane.xlu0 %7779
    %v7781 = vsub.f32 %v7765, %v7771
    %v7782 = vsub.f32 %v7766, %v7774
    %v7783 = vsub.f32 %v7767, %v7777
    %v7784 = vsub.f32 %v7768, %v7780
    %v7785 = vmul.f32 %v7781, 1.442695
    %v7786 = vpow.pop %v7785
    %v7787 = vmul.f32 %v7782, 1.442695
    %v7788 = vpow.pop %v7787
    %v7789 = vmul.f32 %v7783, 1.442695
    %v7790 = vpow.pop %v7789
    %v7791 = vmul.f32 %v7784, 1.442695
    %v7792 = vpow.pop %v7791
    %v7793 = vsel %vm3915, %v7786, 0.0
    %7794 = vadd.xlane.f32.xlu0 %v7793
    %v7795 = vpop.xlane.xlu0 %7794
    %v7796 = vsel %vm3915, %v7788, 0.0
    %7797 = vadd.xlane.f32.xlu0 %v7796
    %v7798 = vpop.xlane.xlu0 %7797
    %v7799 = vsel %vm3915, %v7790, 0.0
    %7800 = vadd.xlane.f32.xlu0 %v7799
    %v7801 = vpop.xlane.xlu0 %7800
    %v7802 = vsel %vm3915, %v7792, 0.0
    %7803 = vadd.xlane.f32.xlu0 %v7802
    %v7804 = vpop.xlane.xlu0 %7803
    %v7805 = vrcp.pop %v7795
    %v7806 = vmul.f32 %v7786, %v7805
    %v7807 = vrcp.pop %v7798
    %v7808 = vmul.f32 %v7788, %v7807
    %v7809 = vrcp.pop %v7801
    %v7810 = vmul.f32 %v7790, %v7809
    %v7811 = vrcp.pop %v7804
    %v7812 = vmul.f32 %v7792, %v7811
    %v7814 = vsel %vm3915, %v7118, 0
    %v7817 = vsel %vm3915, %v7806, 0
    %7819 = vmatprep.subr.mxu0 0.0
    %7820 = vmatpush1.xpose.msra.mxu0 0.0
    %7821 = vmatprep.subr.mxu0 0.0
    %7822 = vmatpush1.xpose.msra.mxu0 0.0
    %7823 = vmatprep.subr.mxu0 0.0
    %7824 = vmatpush1.xpose.msra.mxu0 0.0
    %7825 = vmatprep.subr.mxu0 0.0
    %7826 = vmatpush1.xpose.msra.mxu0 0.0
    %7827 = vmatprep.subr.mxu0 0.0
    %7828 = vmatpush1.xpose.msra.mxu0 0.0
    %7829 = vmatprep.subr.mxu0 0.0
    %7830 = vmatpush1.xpose.msra.mxu0 0.0
    %7831 = vmatprep.subr.mxu0 0.0
    %7832 = vmatpush1.xpose.msra.mxu0 0.0
    %7833 = vmatprep.subr.mxu0 0.0
    %7834 = vmatpush1.xpose.msra.mxu0 0.0
    %7835 = vmatprep.subr.mxu0 0.0
    %7836 = vmatpush1.xpose.msra.mxu0 0.0
    %7837 = vmatprep.subr.mxu0 0.0
    %7838 = vmatpush1.xpose.msra.mxu0 0.0
    %7839 = vmatprep.subr.mxu0 0.0
    %7840 = vmatpush1.xpose.msra.mxu0 0.0
    %7841 = vmatprep.subr.mxu0 0.0
    %7842 = vmatpush1.xpose.msra.mxu0 0.0
    %7843 = vmatprep.subr.mxu0 0.0
    %7844 = vmatpush1.xpose.msra.mxu0 0.0
    %7845 = vmatprep.subr.mxu0 0.0
    %7846 = vmatpush1.xpose.msra.mxu0 0.0
    %7847 = vmatprep.subr.mxu0 0.0
    %7848 = vmatpush1.xpose.msra.mxu0 0.0
    %7849 = vmatprep.subr.mxu0 0.0
    %7850 = vmatpush1.xpose.msra.mxu0 %v7817
    %7851 = vmatprep.subr.mxu0 0.0
    %7852 = vmatpush2.xpose.msra.mxu0 0.0
    %7853 = vmatprep.subr.mxu0 0.0
    %7854 = vmatpush2.xpose.msra.mxu0 0.0
    %7855 = vmatprep.subr.mxu0 0.0
    %7856 = vmatpush2.xpose.msra.mxu0 0.0
    %7857 = vmatprep.subr.mxu0 0.0
    %7858 = vmatpush2.xpose.msra.mxu0 0.0
    %7859 = vmatprep.subr.mxu0 0.0
    %7860 = vmatpush2.xpose.msra.mxu0 0.0
    %7861 = vmatprep.subr.mxu0 0.0
    %7862 = vmatpush2.xpose.msra.mxu0 0.0
    %7863 = vmatprep.subr.mxu0 0.0
    %7864 = vmatpush2.xpose.msra.mxu0 0.0
    %7865 = vmatprep.subr.mxu0 0.0
    %7866 = vmatpush2.xpose.msra.mxu0 0.0
    %7867 = vmatprep.subr.mxu0 0.0
    %7868 = vmatpush2.xpose.msra.mxu0 0.0
    %7869 = vmatprep.subr.mxu0 0.0
    %7870 = vmatpush2.xpose.msra.mxu0 0.0
    %7871 = vmatprep.subr.mxu0 0.0
    %7872 = vmatpush2.xpose.msra.mxu0 0.0
    %7873 = vmatprep.subr.mxu0 0.0
    %7874 = vmatpush2.xpose.msra.mxu0 0.0
    %7875 = vmatprep.subr.mxu0 0.0
    %7876 = vmatpush2.xpose.msra.mxu0 0.0
    %7877 = vmatprep.subr.mxu0 0.0
    %7878 = vmatpush2.xpose.msra.mxu0 0.0
    %7879 = vmatprep.subr.mxu0 0.0
    %7880 = vmatpush2.xpose.msra.mxu0 0.0
    %7881 = vmatprep.subr.mxu0 0.0
    %7882 = vmatpush2.xpose.msra.mxu0 0.0
    %7883 = vmatprep.mubr.f32.mxu0 0.0
    %7884 = vmatmul.mubr.f32.gmra.mxu0 %v7814
    %v7885 = vpop.f32.mrf.mxu0
    %v7886 = vadd.f32 0.0, %v7885
    %v7887 = vpop.f32.mrf.mxu0
    %7888 = vdwg.mxu0
    %v7890 = vsel %vm3915, %v7191, 0
    %v7893 = vsel %vm3915, %v7808, 0
    %7895 = vmatprep.subr.mxu0 0.0
    %7896 = vmatpush1.xpose.msra.mxu0 0.0
    %7897 = vmatprep.subr.mxu0 0.0
    %7898 = vmatpush1.xpose.msra.mxu0 0.0
    %7899 = vmatprep.subr.mxu0 0.0
    %7900 = vmatpush1.xpose.msra.mxu0 0.0
    %7901 = vmatprep.subr.mxu0 0.0
    %7902 = vmatpush1.xpose.msra.mxu0 0.0
    %7903 = vmatprep.subr.mxu0 0.0
    %7904 = vmatpush1.xpose.msra.mxu0 0.0
    %7905 = vmatprep.subr.mxu0 0.0
    %7906 = vmatpush1.xpose.msra.mxu0 0.0
    %7907 = vmatprep.subr.mxu0 0.0
    %7908 = vmatpush1.xpose.msra.mxu0 0.0
    %7909 = vmatprep.subr.mxu0 0.0
    %7910 = vmatpush1.xpose.msra.mxu0 0.0
    %7911 = vmatprep.subr.mxu0 0.0
    %7912 = vmatpush1.xpose.msra.mxu0 0.0
    %7913 = vmatprep.subr.mxu0 0.0
    %7914 = vmatpush1.xpose.msra.mxu0 0.0
    %7915 = vmatprep.subr.mxu0 0.0
    %7916 = vmatpush1.xpose.msra.mxu0 0.0
    %7917 = vmatprep.subr.mxu0 0.0
    %7918 = vmatpush1.xpose.msra.mxu0 0.0
    %7919 = vmatprep.subr.mxu0 0.0
    %7920 = vmatpush1.xpose.msra.mxu0 0.0
    %7921 = vmatprep.subr.mxu0 0.0
    %7922 = vmatpush1.xpose.msra.mxu0 0.0
    %7923 = vmatprep.subr.mxu0 0.0
    %7924 = vmatpush1.xpose.msra.mxu0 0.0
    %7925 = vmatprep.subr.mxu0 0.0
    %7926 = vmatpush1.xpose.msra.mxu0 %v7893
    %7927 = vmatprep.subr.mxu0 0.0
    %7928 = vmatpush2.xpose.msra.mxu0 0.0
    %7929 = vmatprep.subr.mxu0 0.0
    %7930 = vmatpush2.xpose.msra.mxu0 0.0
    %7931 = vmatprep.subr.mxu0 0.0
    %7932 = vmatpush2.xpose.msra.mxu0 0.0
    %7933 = vmatprep.subr.mxu0 0.0
    %7934 = vmatpush2.xpose.msra.mxu0 0.0
    %7935 = vmatprep.subr.mxu0 0.0
    %7936 = vmatpush2.xpose.msra.mxu0 0.0
    %7937 = vmatprep.subr.mxu0 0.0
    %7938 = vmatpush2.xpose.msra.mxu0 0.0
    %7939 = vmatprep.subr.mxu0 0.0
    %7940 = vmatpush2.xpose.msra.mxu0 0.0
    %7941 = vmatprep.subr.mxu0 0.0
    %7942 = vmatpush2.xpose.msra.mxu0 0.0
    %7943 = vmatprep.subr.mxu0 0.0
    %7944 = vmatpush2.xpose.msra.mxu0 0.0
    %7945 = vmatprep.subr.mxu0 0.0
    %7946 = vmatpush2.xpose.msra.mxu0 0.0
    %7947 = vmatprep.subr.mxu0 0.0
    %7948 = vmatpush2.xpose.msra.mxu0 0.0
    %7949 = vmatprep.subr.mxu0 0.0
    %7950 = vmatpush2.xpose.msra.mxu0 0.0
    %7951 = vmatprep.subr.mxu0 0.0
    %7952 = vmatpush2.xpose.msra.mxu0 0.0
    %7953 = vmatprep.subr.mxu0 0.0
    %7954 = vmatpush2.xpose.msra.mxu0 0.0
    %7955 = vmatprep.subr.mxu0 0.0
    %7956 = vmatpush2.xpose.msra.mxu0 0.0
    %7957 = vmatprep.subr.mxu0 0.0
    %7958 = vmatpush2.xpose.msra.mxu0 0.0
    %7959 = vmatprep.mubr.f32.mxu0 0.0
    %7960 = vmatmul.mubr.f32.gmra.mxu0 %v7890
    %v7961 = vpop.f32.mrf.mxu0
    %v7962 = vadd.f32 0.0, %v7961
    %v7963 = vpop.f32.mrf.mxu0
    %7964 = vdwg.mxu0
    %v7966 = vsel %vm3915, %v7264, 0
    %v7969 = vsel %vm3915, %v7810, 0
    %7971 = vmatprep.subr.mxu0 0.0
    %7972 = vmatpush1.xpose.msra.mxu0 0.0
    %7973 = vmatprep.subr.mxu0 0.0
    %7974 = vmatpush1.xpose.msra.mxu0 0.0
    %7975 = vmatprep.subr.mxu0 0.0
    %7976 = vmatpush1.xpose.msra.mxu0 0.0
    %7977 = vmatprep.subr.mxu0 0.0
    %7978 = vmatpush1.xpose.msra.mxu0 0.0
    %7979 = vmatprep.subr.mxu0 0.0
    %7980 = vmatpush1.xpose.msra.mxu0 0.0
    %7981 = vmatprep.subr.mxu0 0.0
    %7982 = vmatpush1.xpose.msra.mxu0 0.0
    %7983 = vmatprep.subr.mxu0 0.0
    %7984 = vmatpush1.xpose.msra.mxu0 0.0
    %7985 = vmatprep.subr.mxu0 0.0
    %7986 = vmatpush1.xpose.msra.mxu0 0.0
    %7987 = vmatprep.subr.mxu0 0.0
    %7988 = vmatpush1.xpose.msra.mxu0 0.0
    %7989 = vmatprep.subr.mxu0 0.0
    %7990 = vmatpush1.xpose.msra.mxu0 0.0
    %7991 = vmatprep.subr.mxu0 0.0
    %7992 = vmatpush1.xpose.msra.mxu0 0.0
    %7993 = vmatprep.subr.mxu0 0.0
    %7994 = vmatpush1.xpose.msra.mxu0 0.0
    %7995 = vmatprep.subr.mxu0 0.0
    %7996 = vmatpush1.xpose.msra.mxu0 0.0
    %7997 = vmatprep.subr.mxu0 0.0
    %7998 = vmatpush1.xpose.msra.mxu0 0.0
    %7999 = vmatprep.subr.mxu0 0.0
    %8000 = vmatpush1.xpose.msra.mxu0 0.0
    %8001 = vmatprep.subr.mxu0 0.0
    %8002 = vmatpush1.xpose.msra.mxu0 %v7969
    %8003 = vmatprep.subr.mxu0 0.0
    %8004 = vmatpush2.xpose.msra.mxu0 0.0
    %8005 = vmatprep.subr.mxu0 0.0
    %8006 = vmatpush2.xpose.msra.mxu0 0.0
    %8007 = vmatprep.subr.mxu0 0.0
    %8008 = vmatpush2.xpose.msra.mxu0 0.0
    %8009 = vmatprep.subr.mxu0 0.0
    %8010 = vmatpush2.xpose.msra.mxu0 0.0
    %8011 = vmatprep.subr.mxu0 0.0
    %8012 = vmatpush2.xpose.msra.mxu0 0.0
    %8013 = vmatprep.subr.mxu0 0.0
    %8014 = vmatpush2.xpose.msra.mxu0 0.0
    %8015 = vmatprep.subr.mxu0 0.0
    %8016 = vmatpush2.xpose.msra.mxu0 0.0
    %8017 = vmatprep.subr.mxu0 0.0
    %8018 = vmatpush2.xpose.msra.mxu0 0.0
    %8019 = vmatprep.subr.mxu0 0.0
    %8020 = vmatpush2.xpose.msra.mxu0 0.0
    %8021 = vmatprep.subr.mxu0 0.0
    %8022 = vmatpush2.xpose.msra.mxu0 0.0
    %8023 = vmatprep.subr.mxu0 0.0
    %8024 = vmatpush2.xpose.msra.mxu0 0.0
    %8025 = vmatprep.subr.mxu0 0.0
    %8026 = vmatpush2.xpose.msra.mxu0 0.0
    %8027 = vmatprep.subr.mxu0 0.0
    %8028 = vmatpush2.xpose.msra.mxu0 0.0
    %8029 = vmatprep.subr.mxu0 0.0
    %8030 = vmatpush2.xpose.msra.mxu0 0.0
    %8031 = vmatprep.subr.mxu0 0.0
    %8032 = vmatpush2.xpose.msra.mxu0 0.0
    %8033 = vmatprep.subr.mxu0 0.0
    %8034 = vmatpush2.xpose.msra.mxu0 0.0
    %8035 = vmatprep.mubr.f32.mxu0 0.0
    %8036 = vmatmul.mubr.f32.gmra.mxu0 %v7966
    %v8037 = vpop.f32.mrf.mxu0
    %v8038 = vadd.f32 0.0, %v8037
    %v8039 = vpop.f32.mrf.mxu0
    %8040 = vdwg.mxu0
    %v8042 = vsel %vm3915, %v7337, 0
    %v8045 = vsel %vm3915, %v7812, 0
    %8047 = vmatprep.subr.mxu0 0.0
    %8048 = vmatpush1.xpose.msra.mxu0 0.0
    %8049 = vmatprep.subr.mxu0 0.0
    %8050 = vmatpush1.xpose.msra.mxu0 0.0
    %8051 = vmatprep.subr.mxu0 0.0
    %8052 = vmatpush1.xpose.msra.mxu0 0.0
    %8053 = vmatprep.subr.mxu0 0.0
    %8054 = vmatpush1.xpose.msra.mxu0 0.0
    %8055 = vmatprep.subr.mxu0 0.0
    %8056 = vmatpush1.xpose.msra.mxu0 0.0
    %8057 = vmatprep.subr.mxu0 0.0
    %8058 = vmatpush1.xpose.msra.mxu0 0.0
    %8059 = vmatprep.subr.mxu0 0.0
    %8060 = vmatpush1.xpose.msra.mxu0 0.0
    %8061 = vmatprep.subr.mxu0 0.0
    %8062 = vmatpush1.xpose.msra.mxu0 0.0
    %8063 = vmatprep.subr.mxu0 0.0
    %8064 = vmatpush1.xpose.msra.mxu0 0.0
    %8065 = vmatprep.subr.mxu0 0.0
    %8066 = vmatpush1.xpose.msra.mxu0 0.0
    %8067 = vmatprep.subr.mxu0 0.0
    %8068 = vmatpush1.xpose.msra.mxu0 0.0
    %8069 = vmatprep.subr.mxu0 0.0
    %8070 = vmatpush1.xpose.msra.mxu0 0.0
    %8071 = vmatprep.subr.mxu0 0.0
    %8072 = vmatpush1.xpose.msra.mxu0 0.0
    %8073 = vmatprep.subr.mxu0 0.0
    %8074 = vmatpush1.xpose.msra.mxu0 0.0
    %8075 = vmatprep.subr.mxu0 0.0
    %8076 = vmatpush1.xpose.msra.mxu0 0.0
    %8077 = vmatprep.subr.mxu0 0.0
    %8078 = vmatpush1.xpose.msra.mxu0 %v8045
    %8079 = vmatprep.subr.mxu0 0.0
    %8080 = vmatpush2.xpose.msra.mxu0 0.0
    %8081 = vmatprep.subr.mxu0 0.0
    %8082 = vmatpush2.xpose.msra.mxu0 0.0
    %8083 = vmatprep.subr.mxu0 0.0
    %8084 = vmatpush2.xpose.msra.mxu0 0.0
    %8085 = vmatprep.subr.mxu0 0.0
    %8086 = vmatpush2.xpose.msra.mxu0 0.0
    %8087 = vmatprep.subr.mxu0 0.0
    %8088 = vmatpush2.xpose.msra.mxu0 0.0
    %8089 = vmatprep.subr.mxu0 0.0
    %8090 = vmatpush2.xpose.msra.mxu0 0.0
    %8091 = vmatprep.subr.mxu0 0.0
    %8092 = vmatpush2.xpose.msra.mxu0 0.0
    %8093 = vmatprep.subr.mxu0 0.0
    %8094 = vmatpush2.xpose.msra.mxu0 0.0
    %8095 = vmatprep.subr.mxu0 0.0
    %8096 = vmatpush2.xpose.msra.mxu0 0.0
    %8097 = vmatprep.subr.mxu0 0.0
    %8098 = vmatpush2.xpose.msra.mxu0 0.0
    %8099 = vmatprep.subr.mxu0 0.0
    %8100 = vmatpush2.xpose.msra.mxu0 0.0
    %8101 = vmatprep.subr.mxu0 0.0
    %8102 = vmatpush2.xpose.msra.mxu0 0.0
    %8103 = vmatprep.subr.mxu0 0.0
    %8104 = vmatpush2.xpose.msra.mxu0 0.0
    %8105 = vmatprep.subr.mxu0 0.0
    %8106 = vmatpush2.xpose.msra.mxu0 0.0
    %8107 = vmatprep.subr.mxu0 0.0
    %8108 = vmatpush2.xpose.msra.mxu0 0.0
    %8109 = vmatprep.subr.mxu0 0.0
    %8110 = vmatpush2.xpose.msra.mxu0 0.0
    %8111 = vmatprep.mubr.f32.mxu0 0.0
    %8112 = vmatmul.mubr.f32.gmra.mxu0 %v8042
    %v8113 = vpop.f32.mrf.mxu0
    %v8114 = vadd.f32 0.0, %v8113
    %v8115 = vpop.f32.mrf.mxu0
    %8116 = vdwg.mxu0
    %v8117 = vld [vmem:[%s16] sm:$0xff]
    %v8118 = vld [vmem:[%s16 + $0x8] sm:$0xff]
    %v8119 = vld [vmem:[%s16 + $0x10] sm:$0xff]
    %v8120 = vld [vmem:[%s16 + $0x18] sm:$0xff]
    %v8121 = vld [vmem:[%s16 + $0x20] sm:$0xff]
    %v8122 = vld [vmem:[%s16 + $0x28] sm:$0xff]
    %v8123 = vld [vmem:[%s16 + $0x30] sm:$0xff]
    %v8124 = vld [vmem:[%s16 + $0x38] sm:$0xff]
    %v8125 = vld [vmem:[%s16 + $0x40] sm:$0xff]
    %v8126 = vld [vmem:[%s16 + $0x48] sm:$0xff]
    %v8127 = vld [vmem:[%s16 + $0x50] sm:$0xff]
    %v8128 = vld [vmem:[%s16 + $0x58] sm:$0xff]
    %v8129 = vld [vmem:[%s16 + $0x60] sm:$0xff]
    %v8130 = vld [vmem:[%s16 + $0x68] sm:$0xff]
    %v8131 = vld [vmem:[%s16 + $0x70] sm:$0xff]
    %v8132 = vld [vmem:[%s16 + $0x78] sm:$0xff]
    %v8134 = vsel %vm3915, %v8117, 0
    %v8137 = vsel %vm3915, %v8118, 0
    %v8140 = vsel %vm3915, %v8119, 0
    %v8143 = vsel %vm3915, %v8120, 0
    %8145 = vmatprep.subr.mxu0 0.0
    %8146 = vmatpush1.msra.mxu0 0.0
    %8147 = vmatprep.subr.mxu0 0.0
    %8148 = vmatpush1.msra.mxu0 0.0
    %8149 = vmatprep.subr.mxu0 0.0
    %8150 = vmatpush1.msra.mxu0 0.0
    %8151 = vmatprep.subr.mxu0 0.0
    %8152 = vmatpush1.msra.mxu0 0.0
    %8153 = vmatprep.subr.mxu0 0.0
    %8154 = vmatpush1.msra.mxu0 0.0
    %8155 = vmatprep.subr.mxu0 0.0
    %8156 = vmatpush1.msra.mxu0 0.0
    %8157 = vmatprep.subr.mxu0 0.0
    %8158 = vmatpush1.msra.mxu0 0.0
    %8159 = vmatprep.subr.mxu0 0.0
    %8160 = vmatpush1.msra.mxu0 0.0
    %8161 = vmatprep.subr.mxu0 0.0
    %8162 = vmatpush1.msra.mxu0 0.0
    %8163 = vmatprep.subr.mxu0 0.0
    %8164 = vmatpush1.msra.mxu0 0.0
    %8165 = vmatprep.subr.mxu0 0.0
    %8166 = vmatpush1.msra.mxu0 0.0
    %8167 = vmatprep.subr.mxu0 0.0
    %8168 = vmatpush1.msra.mxu0 0.0
    %8169 = vmatprep.subr.mxu0 0.0
    %8170 = vmatpush1.msra.mxu0 0.0
    %8171 = vmatprep.subr.mxu0 0.0
    %8172 = vmatpush1.msra.mxu0 0.0
    %8173 = vmatprep.subr.mxu0 0.0
    %8174 = vmatpush1.msra.mxu0 0.0
    %8175 = vmatprep.subr.mxu0 0.0
    %8176 = vmatpush1.msra.mxu0 %v7886
    %8177 = vmatprep.subr.mxu0 0.0
    %8178 = vmatpush2.msra.mxu0 0.0
    %8179 = vmatprep.subr.mxu0 0.0
    %8180 = vmatpush2.msra.mxu0 0.0
    %8181 = vmatprep.subr.mxu0 0.0
    %8182 = vmatpush2.msra.mxu0 0.0
    %8183 = vmatprep.subr.mxu0 0.0
    %8184 = vmatpush2.msra.mxu0 0.0
    %8185 = vmatprep.subr.mxu0 0.0
    %8186 = vmatpush2.msra.mxu0 0.0
    %8187 = vmatprep.subr.mxu0 0.0
    %8188 = vmatpush2.msra.mxu0 0.0
    %8189 = vmatprep.subr.mxu0 0.0
    %8190 = vmatpush2.msra.mxu0 0.0
    %8191 = vmatprep.subr.mxu0 0.0
    %8192 = vmatpush2.msra.mxu0 0.0
    %8193 = vmatprep.subr.mxu0 0.0
    %8194 = vmatpush2.msra.mxu0 0.0
    %8195 = vmatprep.subr.mxu0 0.0
    %8196 = vmatpush2.msra.mxu0 0.0
    %8197 = vmatprep.subr.mxu0 0.0
    %8198 = vmatpush2.msra.mxu0 0.0
    %8199 = vmatprep.subr.mxu0 0.0
    %8200 = vmatpush2.msra.mxu0 0.0
    %8201 = vmatprep.subr.mxu0 0.0
    %8202 = vmatpush2.msra.mxu0 0.0
    %8203 = vmatprep.subr.mxu0 0.0
    %8204 = vmatpush2.msra.mxu0 0.0
    %8205 = vmatprep.subr.mxu0 0.0
    %8206 = vmatpush2.msra.mxu0 0.0
    %8207 = vmatprep.subr.mxu0 0.0
    %8208 = vmatpush2.msra.mxu0 0.0
    %8209 = vmatprep.mubr.f32.mxu0 0.0
    %8210 = vmatmul.mubr.f32.gmra.mxu0 %v8134
    %v8211 = vpop.f32.mrf.mxu0
    %v8212 = vadd.f32 0.0, %v8211
    %v8213 = vpop.f32.mrf.mxu0
    %8214 = vmatprep.mubr.f32.mxu0 0.0
    %8215 = vmatmul.mubr.f32.gmra.mxu0 %v8137
    %v8216 = vpop.f32.mrf.mxu0
    %v8217 = vadd.f32 0.0, %v8216
    %v8218 = vpop.f32.mrf.mxu0
    %8219 = vmatprep.mubr.f32.mxu0 0.0
    %8220 = vmatmul.mubr.f32.gmra.mxu0 %v8140
    %v8221 = vpop.f32.mrf.mxu0
    %v8222 = vadd.f32 0.0, %v8221
    %v8223 = vpop.f32.mrf.mxu0
    %8224 = vmatprep.mubr.f32.mxu0 0.0
    %8225 = vmatmul.mubr.f32.gmra.mxu0 %v8143
    %v8226 = vpop.f32.mrf.mxu0
    %v8227 = vadd.f32 0.0, %v8226
    %v8228 = vpop.f32.mrf.mxu0
    %8229 = vdwg.mxu0
    %v8231 = vsel %vm3915, %v8121, 0
    %v8234 = vsel %vm3915, %v8122, 0
    %v8237 = vsel %vm3915, %v8123, 0
    %v8240 = vsel %vm3915, %v8124, 0
    %8242 = vmatprep.subr.mxu0 0.0
    %8243 = vmatpush1.msra.mxu0 0.0
    %8244 = vmatprep.subr.mxu0 0.0
    %8245 = vmatpush1.msra.mxu0 0.0
    %8246 = vmatprep.subr.mxu0 0.0
    %8247 = vmatpush1.msra.mxu0 0.0
    %8248 = vmatprep.subr.mxu0 0.0
    %8249 = vmatpush1.msra.mxu0 0.0
    %8250 = vmatprep.subr.mxu0 0.0
    %8251 = vmatpush1.msra.mxu0 0.0
    %8252 = vmatprep.subr.mxu0 0.0
    %8253 = vmatpush1.msra.mxu0 0.0
    %8254 = vmatprep.subr.mxu0 0.0
    %8255 = vmatpush1.msra.mxu0 0.0
    %8256 = vmatprep.subr.mxu0 0.0
    %8257 = vmatpush1.msra.mxu0 0.0
    %8258 = vmatprep.subr.mxu0 0.0
    %8259 = vmatpush1.msra.mxu0 0.0
    %8260 = vmatprep.subr.mxu0 0.0
    %8261 = vmatpush1.msra.mxu0 0.0
    %8262 = vmatprep.subr.mxu0 0.0
    %8263 = vmatpush1.msra.mxu0 0.0
    %8264 = vmatprep.subr.mxu0 0.0
    %8265 = vmatpush1.msra.mxu0 0.0
    %8266 = vmatprep.subr.mxu0 0.0
    %8267 = vmatpush1.msra.mxu0 0.0
    %8268 = vmatprep.subr.mxu0 0.0
    %8269 = vmatpush1.msra.mxu0 0.0
    %8270 = vmatprep.subr.mxu0 0.0
    %8271 = vmatpush1.msra.mxu0 0.0
    %8272 = vmatprep.subr.mxu0 0.0
    %8273 = vmatpush1.msra.mxu0 %v7962
    %8274 = vmatprep.subr.mxu0 0.0
    %8275 = vmatpush2.msra.mxu0 0.0
    %8276 = vmatprep.subr.mxu0 0.0
    %8277 = vmatpush2.msra.mxu0 0.0
    %8278 = vmatprep.subr.mxu0 0.0
    %8279 = vmatpush2.msra.mxu0 0.0
    %8280 = vmatprep.subr.mxu0 0.0
    %8281 = vmatpush2.msra.mxu0 0.0
    %8282 = vmatprep.subr.mxu0 0.0
    %8283 = vmatpush2.msra.mxu0 0.0
    %8284 = vmatprep.subr.mxu0 0.0
    %8285 = vmatpush2.msra.mxu0 0.0
    %8286 = vmatprep.subr.mxu0 0.0
    %8287 = vmatpush2.msra.mxu0 0.0
    %8288 = vmatprep.subr.mxu0 0.0
    %8289 = vmatpush2.msra.mxu0 0.0
    %8290 = vmatprep.subr.mxu0 0.0
    %8291 = vmatpush2.msra.mxu0 0.0
    %8292 = vmatprep.subr.mxu0 0.0
    %8293 = vmatpush2.msra.mxu0 0.0
    %8294 = vmatprep.subr.mxu0 0.0
    %8295 = vmatpush2.msra.mxu0 0.0
    %8296 = vmatprep.subr.mxu0 0.0
    %8297 = vmatpush2.msra.mxu0 0.0
    %8298 = vmatprep.subr.mxu0 0.0
    %8299 = vmatpush2.msra.mxu0 0.0
    %8300 = vmatprep.subr.mxu0 0.0
    %8301 = vmatpush2.msra.mxu0 0.0
    %8302 = vmatprep.subr.mxu0 0.0
    %8303 = vmatpush2.msra.mxu0 0.0
    %8304 = vmatprep.subr.mxu0 0.0
    %8305 = vmatpush2.msra.mxu0 0.0
    %8306 = vmatprep.mubr.f32.mxu0 0.0
    %8307 = vmatmul.mubr.f32.gmra.mxu0 %v8231
    %v8308 = vpop.f32.mrf.mxu0
    %v8309 = vadd.f32 0.0, %v8308
    %v8310 = vpop.f32.mrf.mxu0
    %8311 = vmatprep.mubr.f32.mxu0 0.0
    %8312 = vmatmul.mubr.f32.gmra.mxu0 %v8234
    %v8313 = vpop.f32.mrf.mxu0
    %v8314 = vadd.f32 0.0, %v8313
    %v8315 = vpop.f32.mrf.mxu0
    %8316 = vmatprep.mubr.f32.mxu0 0.0
    %8317 = vmatmul.mubr.f32.gmra.mxu0 %v8237
    %v8318 = vpop.f32.mrf.mxu0
    %v8319 = vadd.f32 0.0, %v8318
    %v8320 = vpop.f32.mrf.mxu0
    %8321 = vmatprep.mubr.f32.mxu0 0.0
    %8322 = vmatmul.mubr.f32.gmra.mxu0 %v8240
    %v8323 = vpop.f32.mrf.mxu0
    %v8324 = vadd.f32 0.0, %v8323
    %v8325 = vpop.f32.mrf.mxu0
    %8326 = vdwg.mxu0
    %v8328 = vsel %vm3915, %v8125, 0
    %v8331 = vsel %vm3915, %v8126, 0
    %v8334 = vsel %vm3915, %v8127, 0
    %v8337 = vsel %vm3915, %v8128, 0
    %8339 = vmatprep.subr.mxu0 0.0
    %8340 = vmatpush1.msra.mxu0 0.0
    %8341 = vmatprep.subr.mxu0 0.0
    %8342 = vmatpush1.msra.mxu0 0.0
    %8343 = vmatprep.subr.mxu0 0.0
    %8344 = vmatpush1.msra.mxu0 0.0
    %8345 = vmatprep.subr.mxu0 0.0
    %8346 = vmatpush1.msra.mxu0 0.0
    %8347 = vmatprep.subr.mxu0 0.0
    %8348 = vmatpush1.msra.mxu0 0.0
    %8349 = vmatprep.subr.mxu0 0.0
    %8350 = vmatpush1.msra.mxu0 0.0
    %8351 = vmatprep.subr.mxu0 0.0
    %8352 = vmatpush1.msra.mxu0 0.0
    %8353 = vmatprep.subr.mxu0 0.0
    %8354 = vmatpush1.msra.mxu0 0.0
    %8355 = vmatprep.subr.mxu0 0.0
    %8356 = vmatpush1.msra.mxu0 0.0
    %8357 = vmatprep.subr.mxu0 0.0
    %8358 = vmatpush1.msra.mxu0 0.0
    %8359 = vmatprep.subr.mxu0 0.0
    %8360 = vmatpush1.msra.mxu0 0.0
    %8361 = vmatprep.subr.mxu0 0.0
    %8362 = vmatpush1.msra.mxu0 0.0
    %8363 = vmatprep.subr.mxu0 0.0
    %8364 = vmatpush1.msra.mxu0 0.0
    %8365 = vmatprep.subr.mxu0 0.0
    %8366 = vmatpush1.msra.mxu0 0.0
    %8367 = vmatprep.subr.mxu0 0.0
    %8368 = vmatpush1.msra.mxu0 0.0
    %8369 = vmatprep.subr.mxu0 0.0
    %8370 = vmatpush1.msra.mxu0 %v8038
    %8371 = vmatprep.subr.mxu0 0.0
    %8372 = vmatpush2.msra.mxu0 0.0
    %8373 = vmatprep.subr.mxu0 0.0
    %8374 = vmatpush2.msra.mxu0 0.0
    %8375 = vmatprep.subr.mxu0 0.0
    %8376 = vmatpush2.msra.mxu0 0.0
    %8377 = vmatprep.subr.mxu0 0.0
    %8378 = vmatpush2.msra.mxu0 0.0
    %8379 = vmatprep.subr.mxu0 0.0
    %8380 = vmatpush2.msra.mxu0 0.0
    %8381 = vmatprep.subr.mxu0 0.0
    %8382 = vmatpush2.msra.mxu0 0.0
    %8383 = vmatprep.subr.mxu0 0.0
    %8384 = vmatpush2.msra.mxu0 0.0
    %8385 = vmatprep.subr.mxu0 0.0
    %8386 = vmatpush2.msra.mxu0 0.0
    %8387 = vmatprep.subr.mxu0 0.0
    %8388 = vmatpush2.msra.mxu0 0.0
    %8389 = vmatprep.subr.mxu0 0.0
    %8390 = vmatpush2.msra.mxu0 0.0
    %8391 = vmatprep.subr.mxu0 0.0
    %8392 = vmatpush2.msra.mxu0 0.0
    %8393 = vmatprep.subr.mxu0 0.0
    %8394 = vmatpush2.msra.mxu0 0.0
    %8395 = vmatprep.subr.mxu0 0.0
    %8396 = vmatpush2.msra.mxu0 0.0
    %8397 = vmatprep.subr.mxu0 0.0
    %8398 = vmatpush2.msra.mxu0 0.0
    %8399 = vmatprep.subr.mxu0 0.0
    %8400 = vmatpush2.msra.mxu0 0.0
    %8401 = vmatprep.subr.mxu0 0.0
    %8402 = vmatpush2.msra.mxu0 0.0
    %8403 = vmatprep.mubr.f32.mxu0 0.0
    %8404 = vmatmul.mubr.f32.gmra.mxu0 %v8328
    %v8405 = vpop.f32.mrf.mxu0
    %v8406 = vadd.f32 0.0, %v8405
    %v8407 = vpop.f32.mrf.mxu0
    %8408 = vmatprep.mubr.f32.mxu0 0.0
    %8409 = vmatmul.mubr.f32.gmra.mxu0 %v8331
    %v8410 = vpop.f32.mrf.mxu0
    %v8411 = vadd.f32 0.0, %v8410
    %v8412 = vpop.f32.mrf.mxu0
    %8413 = vmatprep.mubr.f32.mxu0 0.0
    %8414 = vmatmul.mubr.f32.gmra.mxu0 %v8334
    %v8415 = vpop.f32.mrf.mxu0
    %v8416 = vadd.f32 0.0, %v8415
    %v8417 = vpop.f32.mrf.mxu0
    %8418 = vmatprep.mubr.f32.mxu0 0.0
    %8419 = vmatmul.mubr.f32.gmra.mxu0 %v8337
    %v8420 = vpop.f32.mrf.mxu0
    %v8421 = vadd.f32 0.0, %v8420
    %v8422 = vpop.f32.mrf.mxu0
    %8423 = vdwg.mxu0
    %v8425 = vsel %vm3915, %v8129, 0
    %v8428 = vsel %vm3915, %v8130, 0
    %v8431 = vsel %vm3915, %v8131, 0
    %v8434 = vsel %vm3915, %v8132, 0
    %8436 = vmatprep.subr.mxu0 0.0
    %8437 = vmatpush1.msra.mxu0 0.0
    %8438 = vmatprep.subr.mxu0 0.0
    %8439 = vmatpush1.msra.mxu0 0.0
    %8440 = vmatprep.subr.mxu0 0.0
    %8441 = vmatpush1.msra.mxu0 0.0
    %8442 = vmatprep.subr.mxu0 0.0
    %8443 = vmatpush1.msra.mxu0 0.0
    %8444 = vmatprep.subr.mxu0 0.0
    %8445 = vmatpush1.msra.mxu0 0.0
    %8446 = vmatprep.subr.mxu0 0.0
    %8447 = vmatpush1.msra.mxu0 0.0
    %8448 = vmatprep.subr.mxu0 0.0
    %8449 = vmatpush1.msra.mxu0 0.0
    %8450 = vmatprep.subr.mxu0 0.0
    %8451 = vmatpush1.msra.mxu0 0.0
    %8452 = vmatprep.subr.mxu0 0.0
    %8453 = vmatpush1.msra.mxu0 0.0
    %8454 = vmatprep.subr.mxu0 0.0
    %8455 = vmatpush1.msra.mxu0 0.0
    %8456 = vmatprep.subr.mxu0 0.0
    %8457 = vmatpush1.msra.mxu0 0.0
    %8458 = vmatprep.subr.mxu0 0.0
    %8459 = vmatpush1.msra.mxu0 0.0
    %8460 = vmatprep.subr.mxu0 0.0
    %8461 = vmatpush1.msra.mxu0 0.0
    %8462 = vmatprep.subr.mxu0 0.0
    %8463 = vmatpush1.msra.mxu0 0.0
    %8464 = vmatprep.subr.mxu0 0.0
    %8465 = vmatpush1.msra.mxu0 0.0
    %8466 = vmatprep.subr.mxu0 0.0
    %8467 = vmatpush1.msra.mxu0 %v8114
    %8468 = vmatprep.subr.mxu0 0.0
    %8469 = vmatpush2.msra.mxu0 0.0
    %8470 = vmatprep.subr.mxu0 0.0
    %8471 = vmatpush2.msra.mxu0 0.0
    %8472 = vmatprep.subr.mxu0 0.0
    %8473 = vmatpush2.msra.mxu0 0.0
    %8474 = vmatprep.subr.mxu0 0.0
    %8475 = vmatpush2.msra.mxu0 0.0
    %8476 = vmatprep.subr.mxu0 0.0
    %8477 = vmatpush2.msra.mxu0 0.0
    %8478 = vmatprep.subr.mxu0 0.0
    %8479 = vmatpush2.msra.mxu0 0.0
    %8480 = vmatprep.subr.mxu0 0.0
    %8481 = vmatpush2.msra.mxu0 0.0
    %8482 = vmatprep.subr.mxu0 0.0
    %8483 = vmatpush2.msra.mxu0 0.0
    %8484 = vmatprep.subr.mxu0 0.0
    %8485 = vmatpush2.msra.mxu0 0.0
    %8486 = vmatprep.subr.mxu0 0.0
    %8487 = vmatpush2.msra.mxu0 0.0
    %8488 = vmatprep.subr.mxu0 0.0
    %8489 = vmatpush2.msra.mxu0 0.0
    %8490 = vmatprep.subr.mxu0 0.0
    %8491 = vmatpush2.msra.mxu0 0.0
    %8492 = vmatprep.subr.mxu0 0.0
    %8493 = vmatpush2.msra.mxu0 0.0
    %8494 = vmatprep.subr.mxu0 0.0
    %8495 = vmatpush2.msra.mxu0 0.0
    %8496 = vmatprep.subr.mxu0 0.0
    %8497 = vmatpush2.msra.mxu0 0.0
    %8498 = vmatprep.subr.mxu0 0.0
    %8499 = vmatpush2.msra.mxu0 0.0
    %8500 = vmatprep.mubr.f32.mxu0 0.0
    %8501 = vmatmul.mubr.f32.gmra.mxu0 %v8425
    %v8502 = vpop.f32.mrf.mxu0
    %v8503 = vadd.f32 0.0, %v8502
    %v8504 = vpop.f32.mrf.mxu0
    %8505 = vmatprep.mubr.f32.mxu0 0.0
    %8506 = vmatmul.mubr.f32.gmra.mxu0 %v8428
    %v8507 = vpop.f32.mrf.mxu0
    %v8508 = vadd.f32 0.0, %v8507
    %v8509 = vpop.f32.mrf.mxu0
    %8510 = vmatprep.mubr.f32.mxu0 0.0
    %8511 = vmatmul.mubr.f32.gmra.mxu0 %v8431
    %v8512 = vpop.f32.mrf.mxu0
    %v8513 = vadd.f32 0.0, %v8512
    %v8514 = vpop.f32.mrf.mxu0
    %8515 = vmatprep.mubr.f32.mxu0 0.0
    %8516 = vmatmul.mubr.f32.gmra.mxu0 %v8434
    %v8517 = vpop.f32.mrf.mxu0
    %v8518 = vadd.f32 0.0, %v8517
    %v8519 = vpop.f32.mrf.mxu0
    %8520 = vdwg.mxu0
    %v8521 = vsel %vm3915, %v8212, 0.0
    %v8522 = vsel %vm3915, %v8309, 0.0
    %v8523 = vadd.f32 %v8521, %v8522
    %v8524 = vsel %vm3915, %v8406, 0.0
    %v8525 = vadd.f32 %v8523, %v8524
    %v8526 = vsel %vm3915, %v8503, 0.0
    %v8527 = vadd.f32 %v8525, %v8526
    %v8528 = vsel %vm3915, %v8217, 0.0
    %v8529 = vsel %vm3915, %v8314, 0.0
    %v8530 = vadd.f32 %v8528, %v8529
    %v8531 = vsel %vm3915, %v8411, 0.0
    %v8532 = vadd.f32 %v8530, %v8531
    %v8533 = vsel %vm3915, %v8508, 0.0
    %v8534 = vadd.f32 %v8532, %v8533
    %v8535 = vsel %vm3915, %v8222, 0.0
    %v8536 = vsel %vm3915, %v8319, 0.0
    %v8537 = vadd.f32 %v8535, %v8536
    %v8538 = vsel %vm3915, %v8416, 0.0
    %v8539 = vadd.f32 %v8537, %v8538
    %v8540 = vsel %vm3915, %v8513, 0.0
    %v8541 = vadd.f32 %v8539, %v8540
    %v8542 = vsel %vm3915, %v8227, 0.0
    %v8543 = vsel %vm3915, %v8324, 0.0
    %v8544 = vadd.f32 %v8542, %v8543
    %v8545 = vsel %vm3915, %v8421, 0.0
    %v8546 = vadd.f32 %v8544, %v8545
    %v8547 = vsel %vm3915, %v8518, 0.0
    %v8548 = vadd.f32 %v8546, %v8547
    %v8549 = vpack.c.bf16 %v8534, %v8527
    %v8550 = vpack.c.bf16 %v8548, %v8541
    %v8551 = vld [vmem:[%s19] sm:$0xf]
    %v8553 = vsel %vm3915, %v8549, 0
    %v8556 = vsel %vm3915, %v8550, 0
    %v8559 = vsel %vm3919, %v8551, 0
    %8561 = vmatprep.subr.bf16.mxu0 0
    %8562 = vmatpush1.bf16.msra.mxu0 0
    %8563 = vmatprep.subr.bf16.mxu0 0
    %8564 = vmatpush1.bf16.msra.mxu0 0
    %8565 = vmatprep.subr.bf16.mxu0 0
    %8566 = vmatpush1.bf16.msra.mxu0 0
    %8567 = vmatprep.subr.bf16.mxu0 0
    %8568 = vmatpush1.bf16.msra.mxu0 0
    %8569 = vmatprep.subr.bf16.mxu0 0
    %8570 = vmatpush1.bf16.msra.mxu0 0
    %8571 = vmatprep.subr.bf16.mxu0 0
    %8572 = vmatpush1.bf16.msra.mxu0 0
    %8573 = vmatprep.subr.bf16.mxu0 0
    %8574 = vmatpush1.bf16.msra.mxu0 0
    %8575 = vmatprep.subr.bf16.mxu0 0
    %8576 = vmatpush1.bf16.msra.mxu0 %v8559
    %8577 = vmatprep.subr.bf16.mxu0 0
    %8578 = vmatpush2.bf16.msra.mxu0 0
    %8579 = vmatprep.subr.bf16.mxu0 0
    %8580 = vmatpush2.bf16.msra.mxu0 0
    %8581 = vmatprep.subr.bf16.mxu0 0
    %8582 = vmatpush2.bf16.msra.mxu0 0
    %8583 = vmatprep.subr.bf16.mxu0 0
    %8584 = vmatpush2.bf16.msra.mxu0 0
    %8585 = vmatprep.subr.bf16.mxu0 0
    %8586 = vmatpush2.bf16.msra.mxu0 0
    %8587 = vmatprep.subr.bf16.mxu0 0
    %8588 = vmatpush2.bf16.msra.mxu0 0
    %8589 = vmatprep.subr.bf16.mxu0 0
    %8590 = vmatpush2.bf16.msra.mxu0 0
    %8591 = vmatprep.subr.bf16.mxu0 0
    %8592 = vmatpush2.bf16.msra.mxu0 0
    %8593 = vmatprep.mubr.bf16.mxu0 0
    %8594 = vmatmul.mubr.bf16.gmra.mxu0 %v8553
    %v8595 = vpop.f32.mrf.mxu0
    %v8596 = vadd.f32 0.0, %v8595
    %v8597 = vpop.f32.mrf.mxu0
    %v8598 = vpop.f32.mrf.mxu0
    %v8599 = vadd.f32 0.0, %v8598
    %v8600 = vpop.f32.mrf.mxu0
    %8601 = vmatprep.mubr.bf16.mxu0 0
    %8602 = vmatmul.mubr.bf16.gmra.mxu0 %v8556
    %v8603 = vpop.f32.mrf.mxu0
    %v8604 = vadd.f32 0.0, %v8603
    %v8605 = vpop.f32.mrf.mxu0
    %v8606 = vpop.f32.mrf.mxu0
    %v8607 = vadd.f32 0.0, %v8606
    %v8608 = vpop.f32.mrf.mxu0
    %8609 = vdwg.mxu0
    %v8610 = vld [vmem:[#allocation13] sm:$0xf]
    %v8611 = vpack.c.bf16 %v8599, %v8596
    %v8612 = vpack.c.bf16 %v8607, %v8604
    %s8613 = scalar_lea.vmem %s19, 4
    %v8614 = vld [vmem:[%s8613] sm:$0xf]
    %v8616 = vsel %vm3919, %v8614, 0
    %8618 = vmatprep.subr.bf16.mxu0 0
    %8619 = vmatpush1.bf16.msra.mxu0 0
    %8620 = vmatprep.subr.bf16.mxu0 0
    %8621 = vmatpush1.bf16.msra.mxu0 0
    %8622 = vmatprep.subr.bf16.mxu0 0
    %8623 = vmatpush1.bf16.msra.mxu0 0
    %8624 = vmatprep.subr.bf16.mxu0 0
    %8625 = vmatpush1.bf16.msra.mxu0 0
    %8626 = vmatprep.subr.bf16.mxu0 0
    %8627 = vmatpush1.bf16.msra.mxu0 0
    %8628 = vmatprep.subr.bf16.mxu0 0
    %8629 = vmatpush1.bf16.msra.mxu0 0
    %8630 = vmatprep.subr.bf16.mxu0 0
    %8631 = vmatpush1.bf16.msra.mxu0 0
    %8632 = vmatprep.subr.bf16.mxu0 0
    %8633 = vmatpush1.bf16.msra.mxu0 %v8616
    %8634 = vmatprep.subr.bf16.mxu0 0
    %8635 = vmatpush2.bf16.msra.mxu0 0
    %8636 = vmatprep.subr.bf16.mxu0 0
    %8637 = vmatpush2.bf16.msra.mxu0 0
    %8638 = vmatprep.subr.bf16.mxu0 0
    %8639 = vmatpush2.bf16.msra.mxu0 0
    %8640 = vmatprep.subr.bf16.mxu0 0
    %8641 = vmatpush2.bf16.msra.mxu0 0
    %8642 = vmatprep.subr.bf16.mxu0 0
    %8643 = vmatpush2.bf16.msra.mxu0 0
    %8644 = vmatprep.subr.bf16.mxu0 0
    %8645 = vmatpush2.bf16.msra.mxu0 0
    %8646 = vmatprep.subr.bf16.mxu0 0
    %8647 = vmatpush2.bf16.msra.mxu0 0
    %8648 = vmatprep.subr.bf16.mxu0 0
    %8649 = vmatpush2.bf16.msra.mxu0 0
    %8650 = vmatprep.mubr.bf16.mxu0 0
    %8651 = vmatmul.mubr.bf16.gmra.mxu0 %v8553
    %v8652 = vpop.f32.mrf.mxu0
    %v8653 = vadd.f32 0.0, %v8652
    %v8654 = vpop.f32.mrf.mxu0
    %v8655 = vpop.f32.mrf.mxu0
    %v8656 = vadd.f32 0.0, %v8655
    %v8657 = vpop.f32.mrf.mxu0
    %8658 = vmatprep.mubr.bf16.mxu0 0
    %8659 = vmatmul.mubr.bf16.gmra.mxu0 %v8556
    %v8660 = vpop.f32.mrf.mxu0
    %v8661 = vadd.f32 0.0, %v8660
    %v8662 = vpop.f32.mrf.mxu0
    %v8663 = vpop.f32.mrf.mxu0
    %v8664 = vadd.f32 0.0, %v8663
    %v8665 = vpop.f32.mrf.mxu0
    %8666 = vdwg.mxu0
    %s8667 = scalar_lea.vmem [#allocation13], 4
    %v8668 = vld [vmem:[%s8667] sm:$0xf]
    %v8669 = vpack.c.bf16 %v8656, %v8653
    %v8670 = vpack.c.bf16 %v8664, %v8661
    %v8672 = vsel %vm5208, %v8668, 0
    %8674 = vmatprep.subr.bf16.mxu0 0
    %8675 = vmatpush1.bf16.msra.mxu0 0
    %8676 = vmatprep.subr.bf16.mxu0 0
    %8677 = vmatpush1.bf16.msra.mxu0 0
    %8678 = vmatprep.subr.bf16.mxu0 0
    %8679 = vmatpush1.bf16.msra.mxu0 0
    %8680 = vmatprep.subr.bf16.mxu0 0
    %8681 = vmatpush1.bf16.msra.mxu0 0
    %8682 = vmatprep.subr.bf16.mxu0 0
    %8683 = vmatpush1.bf16.msra.mxu0 0
    %8684 = vmatprep.subr.bf16.mxu0 0
    %8685 = vmatpush1.bf16.msra.mxu0 0
    %8686 = vmatprep.subr.bf16.mxu0 0
    %8687 = vmatpush1.bf16.msra.mxu0 %v8670
    %8688 = vmatprep.subr.bf16.mxu0 0
    %8689 = vmatpush1.bf16.msra.mxu0 %v8669
    %8690 = vmatprep.subr.bf16.mxu0 0
    %8691 = vmatpush2.bf16.msra.mxu0 0
    %8692 = vmatprep.subr.bf16.mxu0 0
    %8693 = vmatpush2.bf16.msra.mxu0 0
    %8694 = vmatprep.subr.bf16.mxu0 0
    %8695 = vmatpush2.bf16.msra.mxu0 0
    %8696 = vmatprep.subr.bf16.mxu0 0
    %8697 = vmatpush2.bf16.msra.mxu0 0
    %8698 = vmatprep.subr.bf16.mxu0 0
    %8699 = vmatpush2.bf16.msra.mxu0 0
    %8700 = vmatprep.subr.bf16.mxu0 0
    %8701 = vmatpush2.bf16.msra.mxu0 0
    %8702 = vmatprep.subr.bf16.mxu0 0
    %8703 = vmatpush2.bf16.msra.mxu0 0
    %8704 = vmatprep.subr.bf16.mxu0 0
    %8705 = vmatpush2.bf16.msra.mxu0 0
    %8706 = vmatprep.mubr.bf16.mxu0 0
    %8707 = vmatmul.mubr.bf16.gmra.mxu0 %v8672
    %v8708 = vpop.f32.mrf.mxu0
    %v8709 = vadd.f32 0.0, %v8708
    %v8710 = vpop.f32.mrf.mxu0
    %v8711 = vpop.f32.mrf.mxu0
    %v8712 = vpop.f32.mrf.mxu0
    %8713 = vdwg.mxu0
    %v8715 = vsel %vm5208, %v8610, 0
    %8717 = vmatprep.subr.bf16.mxu0 0
    %8718 = vmatpush1.bf16.msra.mxu0 0
    %8719 = vmatprep.subr.bf16.mxu0 0
    %8720 = vmatpush1.bf16.msra.mxu0 0
    %8721 = vmatprep.subr.bf16.mxu0 0
    %8722 = vmatpush1.bf16.msra.mxu0 0
    %8723 = vmatprep.subr.bf16.mxu0 0
    %8724 = vmatpush1.bf16.msra.mxu0 0
    %8725 = vmatprep.subr.bf16.mxu0 0
    %8726 = vmatpush1.bf16.msra.mxu0 0
    %8727 = vmatprep.subr.bf16.mxu0 0
    %8728 = vmatpush1.bf16.msra.mxu0 0
    %8729 = vmatprep.subr.bf16.mxu0 0
    %8730 = vmatpush1.bf16.msra.mxu0 %v8612
    %8731 = vmatprep.subr.bf16.mxu0 0
    %8732 = vmatpush1.bf16.msra.mxu0 %v8611
    %8733 = vmatprep.subr.bf16.mxu0 0
    %8734 = vmatpush2.bf16.msra.mxu0 0
    %8735 = vmatprep.subr.bf16.mxu0 0
    %8736 = vmatpush2.bf16.msra.mxu0 0
    %8737 = vmatprep.subr.bf16.mxu0 0
    %8738 = vmatpush2.bf16.msra.mxu0 0
    %8739 = vmatprep.subr.bf16.mxu0 0
    %8740 = vmatpush2.bf16.msra.mxu0 0
    %8741 = vmatprep.subr.bf16.mxu0 0
    %8742 = vmatpush2.bf16.msra.mxu0 0
    %8743 = vmatprep.subr.bf16.mxu0 0
    %8744 = vmatpush2.bf16.msra.mxu0 0
    %8745 = vmatprep.subr.bf16.mxu0 0
    %8746 = vmatpush2.bf16.msra.mxu0 0
    %8747 = vmatprep.subr.bf16.mxu0 0
    %8748 = vmatpush2.bf16.msra.mxu0 0
    %8749 = vmatprep.mubr.bf16.mxu0 0
    %8750 = vmatmul.mubr.bf16.gmra.mxu0 %v8715
    %v8751 = vpop.f32.mrf.mxu0
    %v8752 = vadd.f32 %v8709, %v8751
    %v8753 = vpop.f32.mrf.mxu0
    %v8754 = vpop.f32.mrf.mxu0
    %v8755 = vpop.f32.mrf.mxu0
    %8756 = vdwg.mxu0
    %s8757 = scalar_lea.vmem %s19, 8
    %v8758 = vld [vmem:[%s8757] sm:$0xf]
    %v8760 = vsel %vm3919, %v8758, 0
    %8762 = vmatprep.subr.bf16.mxu0 0
    %8763 = vmatpush1.bf16.msra.mxu0 0
    %8764 = vmatprep.subr.bf16.mxu0 0
    %8765 = vmatpush1.bf16.msra.mxu0 0
    %8766 = vmatprep.subr.bf16.mxu0 0
    %8767 = vmatpush1.bf16.msra.mxu0 0
    %8768 = vmatprep.subr.bf16.mxu0 0
    %8769 = vmatpush1.bf16.msra.mxu0 0
    %8770 = vmatprep.subr.bf16.mxu0 0
    %8771 = vmatpush1.bf16.msra.mxu0 0
    %8772 = vmatprep.subr.bf16.mxu0 0
    %8773 = vmatpush1.bf16.msra.mxu0 0
    %8774 = vmatprep.subr.bf16.mxu0 0
    %8775 = vmatpush1.bf16.msra.mxu0 0
    %8776 = vmatprep.subr.bf16.mxu0 0
    %8777 = vmatpush1.bf16.msra.mxu0 %v8760
    %8778 = vmatprep.subr.bf16.mxu0 0
    %8779 = vmatpush2.bf16.msra.mxu0 0
    %8780 = vmatprep.subr.bf16.mxu0 0
    %8781 = vmatpush2.bf16.msra.mxu0 0
    %8782 = vmatprep.subr.bf16.mxu0 0
    %8783 = vmatpush2.bf16.msra.mxu0 0
    %8784 = vmatprep.subr.bf16.mxu0 0
    %8785 = vmatpush2.bf16.msra.mxu0 0
    %8786 = vmatprep.subr.bf16.mxu0 0
    %8787 = vmatpush2.bf16.msra.mxu0 0
    %8788 = vmatprep.subr.bf16.mxu0 0
    %8789 = vmatpush2.bf16.msra.mxu0 0
    %8790 = vmatprep.subr.bf16.mxu0 0
    %8791 = vmatpush2.bf16.msra.mxu0 0
    %8792 = vmatprep.subr.bf16.mxu0 0
    %8793 = vmatpush2.bf16.msra.mxu0 0
    %8794 = vmatprep.mubr.bf16.mxu0 0
    %8795 = vmatmul.mubr.bf16.gmra.mxu0 %v8553
    %v8796 = vpop.f32.mrf.mxu0
    %v8797 = vadd.f32 0.0, %v8796
    %v8798 = vpop.f32.mrf.mxu0
    %v8799 = vpop.f32.mrf.mxu0
    %v8800 = vadd.f32 0.0, %v8799
    %v8801 = vpop.f32.mrf.mxu0
    %8802 = vmatprep.mubr.bf16.mxu0 0
    %8803 = vmatmul.mubr.bf16.gmra.mxu0 %v8556
    %v8804 = vpop.f32.mrf.mxu0
    %v8805 = vadd.f32 0.0, %v8804
    %v8806 = vpop.f32.mrf.mxu0
    %v8807 = vpop.f32.mrf.mxu0
    %v8808 = vadd.f32 0.0, %v8807
    %v8809 = vpop.f32.mrf.mxu0
    %8810 = vdwg.mxu0
    %s8811 = scalar_lea.vmem [#allocation13], 8
    %v8812 = vld [vmem:[%s8811] sm:$0xf]
    %v8813 = vpack.c.bf16 %v8800, %v8797
    %v8814 = vpack.c.bf16 %v8808, %v8805
    %v8816 = vsel %vm5208, %v8812, 0
    %8818 = vmatprep.subr.bf16.mxu0 0
    %8819 = vmatpush1.bf16.msra.mxu0 0
    %8820 = vmatprep.subr.bf16.mxu0 0
    %8821 = vmatpush1.bf16.msra.mxu0 0
    %8822 = vmatprep.subr.bf16.mxu0 0
    %8823 = vmatpush1.bf16.msra.mxu0 0
    %8824 = vmatprep.subr.bf16.mxu0 0
    %8825 = vmatpush1.bf16.msra.mxu0 0
    %8826 = vmatprep.subr.bf16.mxu0 0
    %8827 = vmatpush1.bf16.msra.mxu0 0
    %8828 = vmatprep.subr.bf16.mxu0 0
    %8829 = vmatpush1.bf16.msra.mxu0 0
    %8830 = vmatprep.subr.bf16.mxu0 0
    %8831 = vmatpush1.bf16.msra.mxu0 %v8814
    %8832 = vmatprep.subr.bf16.mxu0 0
    %8833 = vmatpush1.bf16.msra.mxu0 %v8813
    %8834 = vmatprep.subr.bf16.mxu0 0
    %8835 = vmatpush2.bf16.msra.mxu0 0
    %8836 = vmatprep.subr.bf16.mxu0 0
    %8837 = vmatpush2.bf16.msra.mxu0 0
    %8838 = vmatprep.subr.bf16.mxu0 0
    %8839 = vmatpush2.bf16.msra.mxu0 0
    %8840 = vmatprep.subr.bf16.mxu0 0
    %8841 = vmatpush2.bf16.msra.mxu0 0
    %8842 = vmatprep.subr.bf16.mxu0 0
    %8843 = vmatpush2.bf16.msra.mxu0 0
    %8844 = vmatprep.subr.bf16.mxu0 0
    %8845 = vmatpush2.bf16.msra.mxu0 0
    %8846 = vmatprep.subr.bf16.mxu0 0
    %8847 = vmatpush2.bf16.msra.mxu0 0
    %8848 = vmatprep.subr.bf16.mxu0 0
    %8849 = vmatpush2.bf16.msra.mxu0 0
    %8850 = vmatprep.mubr.bf16.mxu0 0
    %8851 = vmatmul.mubr.bf16.gmra.mxu0 %v8816
    %v8852 = vpop.f32.mrf.mxu0
    %v8853 = vadd.f32 0.0, %v8852
    %v8854 = vpop.f32.mrf.mxu0
    %v8855 = vpop.f32.mrf.mxu0
    %v8856 = vpop.f32.mrf.mxu0
    %8857 = vdwg.mxu0
    %v8858 = vadd.f32 %v8752, %v8853
    %s8859 = scalar_lea.vmem %s19, 12
    %v8860 = vld [vmem:[%s8859] sm:$0xf]
    %v8862 = vsel %vm3919, %v8860, 0
    %8864 = vmatprep.subr.bf16.mxu0 0
    %8865 = vmatpush1.bf16.msra.mxu0 0
    %8866 = vmatprep.subr.bf16.mxu0 0
    %8867 = vmatpush1.bf16.msra.mxu0 0
    %8868 = vmatprep.subr.bf16.mxu0 0
    %8869 = vmatpush1.bf16.msra.mxu0 0
    %8870 = vmatprep.subr.bf16.mxu0 0
    %8871 = vmatpush1.bf16.msra.mxu0 0
    %8872 = vmatprep.subr.bf16.mxu0 0
    %8873 = vmatpush1.bf16.msra.mxu0 0
    %8874 = vmatprep.subr.bf16.mxu0 0
    %8875 = vmatpush1.bf16.msra.mxu0 0
    %8876 = vmatprep.subr.bf16.mxu0 0
    %8877 = vmatpush1.bf16.msra.mxu0 0
    %8878 = vmatprep.subr.bf16.mxu0 0
    %8879 = vmatpush1.bf16.msra.mxu0 %v8862
    %8880 = vmatprep.subr.bf16.mxu0 0
    %8881 = vmatpush2.bf16.msra.mxu0 0
    %8882 = vmatprep.subr.bf16.mxu0 0
    %8883 = vmatpush2.bf16.msra.mxu0 0
    %8884 = vmatprep.subr.bf16.mxu0 0
    %8885 = vmatpush2.bf16.msra.mxu0 0
    %8886 = vmatprep.subr.bf16.mxu0 0
    %8887 = vmatpush2.bf16.msra.mxu0 0
    %8888 = vmatprep.subr.bf16.mxu0 0
    %8889 = vmatpush2.bf16.msra.mxu0 0
    %8890 = vmatprep.subr.bf16.mxu0 0
    %8891 = vmatpush2.bf16.msra.mxu0 0
    %8892 = vmatprep.subr.bf16.mxu0 0
    %8893 = vmatpush2.bf16.msra.mxu0 0
    %8894 = vmatprep.subr.bf16.mxu0 0
    %8895 = vmatpush2.bf16.msra.mxu0 0
    %8896 = vmatprep.mubr.bf16.mxu0 0
    %8897 = vmatmul.mubr.bf16.gmra.mxu0 %v8553
    %v8898 = vpop.f32.mrf.mxu0
    %v8899 = vadd.f32 0.0, %v8898
    %v8900 = vpop.f32.mrf.mxu0
    %v8901 = vpop.f32.mrf.mxu0
    %v8902 = vadd.f32 0.0, %v8901
    %v8903 = vpop.f32.mrf.mxu0
    %8904 = vmatprep.mubr.bf16.mxu0 0
    %8905 = vmatmul.mubr.bf16.gmra.mxu0 %v8556
    %v8906 = vpop.f32.mrf.mxu0
    %v8907 = vadd.f32 0.0, %v8906
    %v8908 = vpop.f32.mrf.mxu0
    %v8909 = vpop.f32.mrf.mxu0
    %v8910 = vadd.f32 0.0, %v8909
    %v8911 = vpop.f32.mrf.mxu0
    %8912 = vdwg.mxu0
    %s8913 = scalar_lea.vmem [#allocation13], 12
    %v8914 = vld [vmem:[%s8913] sm:$0xf]
    %v8915 = vpack.c.bf16 %v8902, %v8899
    %v8916 = vpack.c.bf16 %v8910, %v8907
    %v8918 = vsel %vm5208, %v8914, 0
    %8920 = vmatprep.subr.bf16.mxu0 0
    %8921 = vmatpush1.bf16.msra.mxu0 0
    %8922 = vmatprep.subr.bf16.mxu0 0
    %8923 = vmatpush1.bf16.msra.mxu0 0
    %8924 = vmatprep.subr.bf16.mxu0 0
    %8925 = vmatpush1.bf16.msra.mxu0 0
    %8926 = vmatprep.subr.bf16.mxu0 0
    %8927 = vmatpush1.bf16.msra.mxu0 0
    %8928 = vmatprep.subr.bf16.mxu0 0
    %8929 = vmatpush1.bf16.msra.mxu0 0
    %8930 = vmatprep.subr.bf16.mxu0 0
    %8931 = vmatpush1.bf16.msra.mxu0 0
    %8932 = vmatprep.subr.bf16.mxu0 0
    %8933 = vmatpush1.bf16.msra.mxu0 %v8916
    %8934 = vmatprep.subr.bf16.mxu0 0
    %8935 = vmatpush1.bf16.msra.mxu0 %v8915
    %8936 = vmatprep.subr.bf16.mxu0 0
    %8937 = vmatpush2.bf16.msra.mxu0 0
    %8938 = vmatprep.subr.bf16.mxu0 0
    %8939 = vmatpush2.bf16.msra.mxu0 0
    %8940 = vmatprep.subr.bf16.mxu0 0
    %8941 = vmatpush2.bf16.msra.mxu0 0
    %8942 = vmatprep.subr.bf16.mxu0 0
    %8943 = vmatpush2.bf16.msra.mxu0 0
    %8944 = vmatprep.subr.bf16.mxu0 0
    %8945 = vmatpush2.bf16.msra.mxu0 0
    %8946 = vmatprep.subr.bf16.mxu0 0
    %8947 = vmatpush2.bf16.msra.mxu0 0
    %8948 = vmatprep.subr.bf16.mxu0 0
    %8949 = vmatpush2.bf16.msra.mxu0 0
    %8950 = vmatprep.subr.bf16.mxu0 0
    %8951 = vmatpush2.bf16.msra.mxu0 0
    %8952 = vmatprep.mubr.bf16.mxu0 0
    %8953 = vmatmul.mubr.bf16.gmra.mxu0 %v8918
    %v8954 = vpop.f32.mrf.mxu0
    %v8955 = vadd.f32 0.0, %v8954
    %v8956 = vpop.f32.mrf.mxu0
    %v8957 = vpop.f32.mrf.mxu0
    %v8958 = vpop.f32.mrf.mxu0
    %8959 = vdwg.mxu0
    %v8960 = vadd.f32 %v8858, %v8955
    %s8961 = scalar_lea.vmem %s19, 16
    %v8962 = vld [vmem:[%s8961] sm:$0xf]
    %v8964 = vsel %vm3919, %v8962, 0
    %8966 = vmatprep.subr.bf16.mxu0 0
    %8967 = vmatpush1.bf16.msra.mxu0 0
    %8968 = vmatprep.subr.bf16.mxu0 0
    %8969 = vmatpush1.bf16.msra.mxu0 0
    %8970 = vmatprep.subr.bf16.mxu0 0
    %8971 = vmatpush1.bf16.msra.mxu0 0
    %8972 = vmatprep.subr.bf16.mxu0 0
    %8973 = vmatpush1.bf16.msra.mxu0 0
    %8974 = vmatprep.subr.bf16.mxu0 0
    %8975 = vmatpush1.bf16.msra.mxu0 0
    %8976 = vmatprep.subr.bf16.mxu0 0
    %8977 = vmatpush1.bf16.msra.mxu0 0
    %8978 = vmatprep.subr.bf16.mxu0 0
    %8979 = vmatpush1.bf16.msra.mxu0 0
    %8980 = vmatprep.subr.bf16.mxu0 0
    %8981 = vmatpush1.bf16.msra.mxu0 %v8964
    %8982 = vmatprep.subr.bf16.mxu0 0
    %8983 = vmatpush2.bf16.msra.mxu0 0
    %8984 = vmatprep.subr.bf16.mxu0 0
    %8985 = vmatpush2.bf16.msra.mxu0 0
    %8986 = vmatprep.subr.bf16.mxu0 0
    %8987 = vmatpush2.bf16.msra.mxu0 0
    %8988 = vmatprep.subr.bf16.mxu0 0
    %8989 = vmatpush2.bf16.msra.mxu0 0
    %8990 = vmatprep.subr.bf16.mxu0 0
    %8991 = vmatpush2.bf16.msra.mxu0 0
    %8992 = vmatprep.subr.bf16.mxu0 0
    %8993 = vmatpush2.bf16.msra.mxu0 0
    %8994 = vmatprep.subr.bf16.mxu0 0
    %8995 = vmatpush2.bf16.msra.mxu0 0
    %8996 = vmatprep.subr.bf16.mxu0 0
    %8997 = vmatpush2.bf16.msra.mxu0 0
    %8998 = vmatprep.mubr.bf16.mxu0 0
    %8999 = vmatmul.mubr.bf16.gmra.mxu0 %v8553
    %v9000 = vpop.f32.mrf.mxu0
    %v9001 = vadd.f32 0.0, %v9000
    %v9002 = vpop.f32.mrf.mxu0
    %v9003 = vpop.f32.mrf.mxu0
    %v9004 = vadd.f32 0.0, %v9003
    %v9005 = vpop.f32.mrf.mxu0
    %9006 = vmatprep.mubr.bf16.mxu0 0
    %9007 = vmatmul.mubr.bf16.gmra.mxu0 %v8556
    %v9008 = vpop.f32.mrf.mxu0
    %v9009 = vadd.f32 0.0, %v9008
    %v9010 = vpop.f32.mrf.mxu0
    %v9011 = vpop.f32.mrf.mxu0
    %v9012 = vadd.f32 0.0, %v9011
    %v9013 = vpop.f32.mrf.mxu0
    %9014 = vdwg.mxu0
    %s9015 = scalar_lea.vmem [#allocation13], 16
    %v9016 = vld [vmem:[%s9015] sm:$0xf]
    %v9017 = vpack.c.bf16 %v9004, %v9001
    %v9018 = vpack.c.bf16 %v9012, %v9009
    %v9020 = vsel %vm5208, %v9016, 0
    %9022 = vmatprep.subr.bf16.mxu0 0
    %9023 = vmatpush1.bf16.msra.mxu0 0
    %9024 = vmatprep.subr.bf16.mxu0 0
    %9025 = vmatpush1.bf16.msra.mxu0 0
    %9026 = vmatprep.subr.bf16.mxu0 0
    %9027 = vmatpush1.bf16.msra.mxu0 0
    %9028 = vmatprep.subr.bf16.mxu0 0
    %9029 = vmatpush1.bf16.msra.mxu0 0
    %9030 = vmatprep.subr.bf16.mxu0 0
    %9031 = vmatpush1.bf16.msra.mxu0 0
    %9032 = vmatprep.subr.bf16.mxu0 0
    %9033 = vmatpush1.bf16.msra.mxu0 0
    %9034 = vmatprep.subr.bf16.mxu0 0
    %9035 = vmatpush1.bf16.msra.mxu0 %v9018
    %9036 = vmatprep.subr.bf16.mxu0 0
    %9037 = vmatpush1.bf16.msra.mxu0 %v9017
    %9038 = vmatprep.subr.bf16.mxu0 0
    %9039 = vmatpush2.bf16.msra.mxu0 0
    %9040 = vmatprep.subr.bf16.mxu0 0
    %9041 = vmatpush2.bf16.msra.mxu0 0
    %9042 = vmatprep.subr.bf16.mxu0 0
    %9043 = vmatpush2.bf16.msra.mxu0 0
    %9044 = vmatprep.subr.bf16.mxu0 0
    %9045 = vmatpush2.bf16.msra.mxu0 0
    %9046 = vmatprep.subr.bf16.mxu0 0
    %9047 = vmatpush2.bf16.msra.mxu0 0
    %9048 = vmatprep.subr.bf16.mxu0 0
    %9049 = vmatpush2.bf16.msra.mxu0 0
    %9050 = vmatprep.subr.bf16.mxu0 0
    %9051 = vmatpush2.bf16.msra.mxu0 0
    %9052 = vmatprep.subr.bf16.mxu0 0
    %9053 = vmatpush2.bf16.msra.mxu0 0
    %9054 = vmatprep.mubr.bf16.mxu0 0
    %9055 = vmatmul.mubr.bf16.gmra.mxu0 %v9020
    %v9056 = vpop.f32.mrf.mxu0
    %v9057 = vadd.f32 0.0, %v9056
    %v9058 = vpop.f32.mrf.mxu0
    %v9059 = vpop.f32.mrf.mxu0
    %v9060 = vpop.f32.mrf.mxu0
    %9061 = vdwg.mxu0
    %v9062 = vadd.f32 %v8960, %v9057
    %s9063 = scalar_lea.vmem %s19, 20
    %v9064 = vld [vmem:[%s9063] sm:$0xf]
    %v9066 = vsel %vm3919, %v9064, 0
    %9068 = vmatprep.subr.bf16.mxu0 0
    %9069 = vmatpush1.bf16.msra.mxu0 0
    %9070 = vmatprep.subr.bf16.mxu0 0
    %9071 = vmatpush1.bf16.msra.mxu0 0
    %9072 = vmatprep.subr.bf16.mxu0 0
    %9073 = vmatpush1.bf16.msra.mxu0 0
    %9074 = vmatprep.subr.bf16.mxu0 0
    %9075 = vmatpush1.bf16.msra.mxu0 0
    %9076 = vmatprep.subr.bf16.mxu0 0
    %9077 = vmatpush1.bf16.msra.mxu0 0
    %9078 = vmatprep.subr.bf16.mxu0 0
    %9079 = vmatpush1.bf16.msra.mxu0 0
    %9080 = vmatprep.subr.bf16.mxu0 0
    %9081 = vmatpush1.bf16.msra.mxu0 0
    %9082 = vmatprep.subr.bf16.mxu0 0
    %9083 = vmatpush1.bf16.msra.mxu0 %v9066
    %9084 = vmatprep.subr.bf16.mxu0 0
    %9085 = vmatpush2.bf16.msra.mxu0 0
    %9086 = vmatprep.subr.bf16.mxu0 0
    %9087 = vmatpush2.bf16.msra.mxu0 0
    %9088 = vmatprep.subr.bf16.mxu0 0
    %9089 = vmatpush2.bf16.msra.mxu0 0
    %9090 = vmatprep.subr.bf16.mxu0 0
    %9091 = vmatpush2.bf16.msra.mxu0 0
    %9092 = vmatprep.subr.bf16.mxu0 0
    %9093 = vmatpush2.bf16.msra.mxu0 0
    %9094 = vmatprep.subr.bf16.mxu0 0
    %9095 = vmatpush2.bf16.msra.mxu0 0
    %9096 = vmatprep.subr.bf16.mxu0 0
    %9097 = vmatpush2.bf16.msra.mxu0 0
    %9098 = vmatprep.subr.bf16.mxu0 0
    %9099 = vmatpush2.bf16.msra.mxu0 0
    %9100 = vmatprep.mubr.bf16.mxu0 0
    %9101 = vmatmul.mubr.bf16.gmra.mxu0 %v8553
    %v9102 = vpop.f32.mrf.mxu0
    %v9103 = vadd.f32 0.0, %v9102
    %v9104 = vpop.f32.mrf.mxu0
    %v9105 = vpop.f32.mrf.mxu0
    %v9106 = vadd.f32 0.0, %v9105
    %v9107 = vpop.f32.mrf.mxu0
    %9108 = vmatprep.mubr.bf16.mxu0 0
    %9109 = vmatmul.mubr.bf16.gmra.mxu0 %v8556
    %v9110 = vpop.f32.mrf.mxu0
    %v9111 = vadd.f32 0.0, %v9110
    %v9112 = vpop.f32.mrf.mxu0
    %v9113 = vpop.f32.mrf.mxu0
    %v9114 = vadd.f32 0.0, %v9113
    %v9115 = vpop.f32.mrf.mxu0
    %9116 = vdwg.mxu0
    %s9117 = scalar_lea.vmem [#allocation13], 20
    %v9118 = vld [vmem:[%s9117] sm:$0xf]
    %v9119 = vpack.c.bf16 %v9106, %v9103
    %v9120 = vpack.c.bf16 %v9114, %v9111
    %v9122 = vsel %vm5208, %v9118, 0
    %9124 = vmatprep.subr.bf16.mxu0 0
    %9125 = vmatpush1.bf16.msra.mxu0 0
    %9126 = vmatprep.subr.bf16.mxu0 0
    %9127 = vmatpush1.bf16.msra.mxu0 0
    %9128 = vmatprep.subr.bf16.mxu0 0
    %9129 = vmatpush1.bf16.msra.mxu0 0
    %9130 = vmatprep.subr.bf16.mxu0 0
    %9131 = vmatpush1.bf16.msra.mxu0 0
    %9132 = vmatprep.subr.bf16.mxu0 0
    %9133 = vmatpush1.bf16.msra.mxu0 0
    %9134 = vmatprep.subr.bf16.mxu0 0
    %9135 = vmatpush1.bf16.msra.mxu0 0
    %9136 = vmatprep.subr.bf16.mxu0 0
    %9137 = vmatpush1.bf16.msra.mxu0 %v9120
    %9138 = vmatprep.subr.bf16.mxu0 0
    %9139 = vmatpush1.bf16.msra.mxu0 %v9119
    %9140 = vmatprep.subr.bf16.mxu0 0
    %9141 = vmatpush2.bf16.msra.mxu0 0
    %9142 = vmatprep.subr.bf16.mxu0 0
    %9143 = vmatpush2.bf16.msra.mxu0 0
    %9144 = vmatprep.subr.bf16.mxu0 0
    %9145 = vmatpush2.bf16.msra.mxu0 0
    %9146 = vmatprep.subr.bf16.mxu0 0
    %9147 = vmatpush2.bf16.msra.mxu0 0
    %9148 = vmatprep.subr.bf16.mxu0 0
    %9149 = vmatpush2.bf16.msra.mxu0 0
    %9150 = vmatprep.subr.bf16.mxu0 0
    %9151 = vmatpush2.bf16.msra.mxu0 0
    %9152 = vmatprep.subr.bf16.mxu0 0
    %9153 = vmatpush2.bf16.msra.mxu0 0
    %9154 = vmatprep.subr.bf16.mxu0 0
    %9155 = vmatpush2.bf16.msra.mxu0 0
    %9156 = vmatprep.mubr.bf16.mxu0 0
    %9157 = vmatmul.mubr.bf16.gmra.mxu0 %v9122
    %v9158 = vpop.f32.mrf.mxu0
    %v9159 = vadd.f32 0.0, %v9158
    %v9160 = vpop.f32.mrf.mxu0
    %v9161 = vpop.f32.mrf.mxu0
    %v9162 = vpop.f32.mrf.mxu0
    %9163 = vdwg.mxu0
    %v9164 = vadd.f32 %v9062, %v9159
    %s9165 = scalar_lea.vmem %s19, 24
    %v9166 = vld [vmem:[%s9165] sm:$0xf]
    %v9168 = vsel %vm3919, %v9166, 0
    %9170 = vmatprep.subr.bf16.mxu0 0
    %9171 = vmatpush1.bf16.msra.mxu0 0
    %9172 = vmatprep.subr.bf16.mxu0 0
    %9173 = vmatpush1.bf16.msra.mxu0 0
    %9174 = vmatprep.subr.bf16.mxu0 0
    %9175 = vmatpush1.bf16.msra.mxu0 0
    %9176 = vmatprep.subr.bf16.mxu0 0
    %9177 = vmatpush1.bf16.msra.mxu0 0
    %9178 = vmatprep.subr.bf16.mxu0 0
    %9179 = vmatpush1.bf16.msra.mxu0 0
    %9180 = vmatprep.subr.bf16.mxu0 0
    %9181 = vmatpush1.bf16.msra.mxu0 0
    %9182 = vmatprep.subr.bf16.mxu0 0
    %9183 = vmatpush1.bf16.msra.mxu0 0
    %9184 = vmatprep.subr.bf16.mxu0 0
    %9185 = vmatpush1.bf16.msra.mxu0 %v9168
    %9186 = vmatprep.subr.bf16.mxu0 0
    %9187 = vmatpush2.bf16.msra.mxu0 0
    %9188 = vmatprep.subr.bf16.mxu0 0
    %9189 = vmatpush2.bf16.msra.mxu0 0
    %9190 = vmatprep.subr.bf16.mxu0 0
    %9191 = vmatpush2.bf16.msra.mxu0 0
    %9192 = vmatprep.subr.bf16.mxu0 0
    %9193 = vmatpush2.bf16.msra.mxu0 0
    %9194 = vmatprep.subr.bf16.mxu0 0
    %9195 = vmatpush2.bf16.msra.mxu0 0
    %9196 = vmatprep.subr.bf16.mxu0 0
    %9197 = vmatpush2.bf16.msra.mxu0 0
    %9198 = vmatprep.subr.bf16.mxu0 0
    %9199 = vmatpush2.bf16.msra.mxu0 0
    %9200 = vmatprep.subr.bf16.mxu0 0
    %9201 = vmatpush2.bf16.msra.mxu0 0
    %9202 = vmatprep.mubr.bf16.mxu0 0
    %9203 = vmatmul.mubr.bf16.gmra.mxu0 %v8553
    %v9204 = vpop.f32.mrf.mxu0
    %v9205 = vadd.f32 0.0, %v9204
    %v9206 = vpop.f32.mrf.mxu0
    %v9207 = vpop.f32.mrf.mxu0
    %v9208 = vadd.f32 0.0, %v9207
    %v9209 = vpop.f32.mrf.mxu0
    %9210 = vmatprep.mubr.bf16.mxu0 0
    %9211 = vmatmul.mubr.bf16.gmra.mxu0 %v8556
    %v9212 = vpop.f32.mrf.mxu0
    %v9213 = vadd.f32 0.0, %v9212
    %v9214 = vpop.f32.mrf.mxu0
    %v9215 = vpop.f32.mrf.mxu0
    %v9216 = vadd.f32 0.0, %v9215
    %v9217 = vpop.f32.mrf.mxu0
    %9218 = vdwg.mxu0
    %s9219 = scalar_lea.vmem [#allocation13], 24
    %v9220 = vld [vmem:[%s9219] sm:$0xf]
    %v9221 = vpack.c.bf16 %v9208, %v9205
    %v9222 = vpack.c.bf16 %v9216, %v9213
    %v9224 = vsel %vm5208, %v9220, 0
    %9226 = vmatprep.subr.bf16.mxu0 0
    %9227 = vmatpush1.bf16.msra.mxu0 0
    %9228 = vmatprep.subr.bf16.mxu0 0
    %9229 = vmatpush1.bf16.msra.mxu0 0
    %9230 = vmatprep.subr.bf16.mxu0 0
    %9231 = vmatpush1.bf16.msra.mxu0 0
    %9232 = vmatprep.subr.bf16.mxu0 0
    %9233 = vmatpush1.bf16.msra.mxu0 0
    %9234 = vmatprep.subr.bf16.mxu0 0
    %9235 = vmatpush1.bf16.msra.mxu0 0
    %9236 = vmatprep.subr.bf16.mxu0 0
    %9237 = vmatpush1.bf16.msra.mxu0 0
    %9238 = vmatprep.subr.bf16.mxu0 0
    %9239 = vmatpush1.bf16.msra.mxu0 %v9222
    %9240 = vmatprep.subr.bf16.mxu0 0
    %9241 = vmatpush1.bf16.msra.mxu0 %v9221
    %9242 = vmatprep.subr.bf16.mxu0 0
    %9243 = vmatpush2.bf16.msra.mxu0 0
    %9244 = vmatprep.subr.bf16.mxu0 0
    %9245 = vmatpush2.bf16.msra.mxu0 0
    %9246 = vmatprep.subr.bf16.mxu0 0
    %9247 = vmatpush2.bf16.msra.mxu0 0
    %9248 = vmatprep.subr.bf16.mxu0 0
    %9249 = vmatpush2.bf16.msra.mxu0 0
    %9250 = vmatprep.subr.bf16.mxu0 0
    %9251 = vmatpush2.bf16.msra.mxu0 0
    %9252 = vmatprep.subr.bf16.mxu0 0
    %9253 = vmatpush2.bf16.msra.mxu0 0
    %9254 = vmatprep.subr.bf16.mxu0 0
    %9255 = vmatpush2.bf16.msra.mxu0 0
    %9256 = vmatprep.subr.bf16.mxu0 0
    %9257 = vmatpush2.bf16.msra.mxu0 0
    %9258 = vmatprep.mubr.bf16.mxu0 0
    %9259 = vmatmul.mubr.bf16.gmra.mxu0 %v9224
    %v9260 = vpop.f32.mrf.mxu0
    %v9261 = vadd.f32 0.0, %v9260
    %v9262 = vpop.f32.mrf.mxu0
    %v9263 = vpop.f32.mrf.mxu0
    %v9264 = vpop.f32.mrf.mxu0
    %9265 = vdwg.mxu0
    %v9266 = vadd.f32 %v9164, %v9261
    %s9267 = scalar_lea.vmem %s19, 28
    %v9268 = vld [vmem:[%s9267] sm:$0xf]
    %v9270 = vsel %vm3919, %v9268, 0
    %9272 = vmatprep.subr.bf16.mxu0 0
    %9273 = vmatpush1.bf16.msra.mxu0 0
    %9274 = vmatprep.subr.bf16.mxu0 0
    %9275 = vmatpush1.bf16.msra.mxu0 0
    %9276 = vmatprep.subr.bf16.mxu0 0
    %9277 = vmatpush1.bf16.msra.mxu0 0
    %9278 = vmatprep.subr.bf16.mxu0 0
    %9279 = vmatpush1.bf16.msra.mxu0 0
    %9280 = vmatprep.subr.bf16.mxu0 0
    %9281 = vmatpush1.bf16.msra.mxu0 0
    %9282 = vmatprep.subr.bf16.mxu0 0
    %9283 = vmatpush1.bf16.msra.mxu0 0
    %9284 = vmatprep.subr.bf16.mxu0 0
    %9285 = vmatpush1.bf16.msra.mxu0 0
    %9286 = vmatprep.subr.bf16.mxu0 0
    %9287 = vmatpush1.bf16.msra.mxu0 %v9270
    %9288 = vmatprep.subr.bf16.mxu0 0
    %9289 = vmatpush2.bf16.msra.mxu0 0
    %9290 = vmatprep.subr.bf16.mxu0 0
    %9291 = vmatpush2.bf16.msra.mxu0 0
    %9292 = vmatprep.subr.bf16.mxu0 0
    %9293 = vmatpush2.bf16.msra.mxu0 0
    %9294 = vmatprep.subr.bf16.mxu0 0
    %9295 = vmatpush2.bf16.msra.mxu0 0
    %9296 = vmatprep.subr.bf16.mxu0 0
    %9297 = vmatpush2.bf16.msra.mxu0 0
    %9298 = vmatprep.subr.bf16.mxu0 0
    %9299 = vmatpush2.bf16.msra.mxu0 0
    %9300 = vmatprep.subr.bf16.mxu0 0
    %9301 = vmatpush2.bf16.msra.mxu0 0
    %9302 = vmatprep.subr.bf16.mxu0 0
    %9303 = vmatpush2.bf16.msra.mxu0 0
    %9304 = vmatprep.mubr.bf16.mxu0 0
    %9305 = vmatmul.mubr.bf16.gmra.mxu0 %v8553
    %v9306 = vpop.f32.mrf.mxu0
    %v9307 = vadd.f32 0.0, %v9306
    %v9308 = vpop.f32.mrf.mxu0
    %v9309 = vpop.f32.mrf.mxu0
    %v9310 = vadd.f32 0.0, %v9309
    %v9311 = vpop.f32.mrf.mxu0
    %9312 = vmatprep.mubr.bf16.mxu0 0
    %9313 = vmatmul.mubr.bf16.gmra.mxu0 %v8556
    %v9314 = vpop.f32.mrf.mxu0
    %v9315 = vadd.f32 0.0, %v9314
    %v9316 = vpop.f32.mrf.mxu0
    %v9317 = vpop.f32.mrf.mxu0
    %v9318 = vadd.f32 0.0, %v9317
    %v9319 = vpop.f32.mrf.mxu0
    %9320 = vdwg.mxu0
    %s9321 = scalar_lea.vmem [#allocation13], 28
    %v9322 = vld [vmem:[%s9321] sm:$0xf]
    %v9323 = vpack.c.bf16 %v9310, %v9307
    %v9324 = vpack.c.bf16 %v9318, %v9315
    %v9326 = vsel %vm5208, %v9322, 0
    %9328 = vmatprep.subr.bf16.mxu0 0
    %9329 = vmatpush1.bf16.msra.mxu0 0
    %9330 = vmatprep.subr.bf16.mxu0 0
    %9331 = vmatpush1.bf16.msra.mxu0 0
    %9332 = vmatprep.subr.bf16.mxu0 0
    %9333 = vmatpush1.bf16.msra.mxu0 0
    %9334 = vmatprep.subr.bf16.mxu0 0
    %9335 = vmatpush1.bf16.msra.mxu0 0
    %9336 = vmatprep.subr.bf16.mxu0 0
    %9337 = vmatpush1.bf16.msra.mxu0 0
    %9338 = vmatprep.subr.bf16.mxu0 0
    %9339 = vmatpush1.bf16.msra.mxu0 0
    %9340 = vmatprep.subr.bf16.mxu0 0
    %9341 = vmatpush1.bf16.msra.mxu0 %v9324
    %9342 = vmatprep.subr.bf16.mxu0 0
    %9343 = vmatpush1.bf16.msra.mxu0 %v9323
    %9344 = vmatprep.subr.bf16.mxu0 0
    %9345 = vmatpush2.bf16.msra.mxu0 0
    %9346 = vmatprep.subr.bf16.mxu0 0
    %9347 = vmatpush2.bf16.msra.mxu0 0
    %9348 = vmatprep.subr.bf16.mxu0 0
    %9349 = vmatpush2.bf16.msra.mxu0 0
    %9350 = vmatprep.subr.bf16.mxu0 0
    %9351 = vmatpush2.bf16.msra.mxu0 0
    %9352 = vmatprep.subr.bf16.mxu0 0
    %9353 = vmatpush2.bf16.msra.mxu0 0
    %9354 = vmatprep.subr.bf16.mxu0 0
    %9355 = vmatpush2.bf16.msra.mxu0 0
    %9356 = vmatprep.subr.bf16.mxu0 0
    %9357 = vmatpush2.bf16.msra.mxu0 0
    %9358 = vmatprep.subr.bf16.mxu0 0
    %9359 = vmatpush2.bf16.msra.mxu0 0
    %9360 = vmatprep.mubr.bf16.mxu0 0
    %9361 = vmatmul.mubr.bf16.gmra.mxu0 %v9326
    %v9362 = vpop.f32.mrf.mxu0
    %v9363 = vadd.f32 0.0, %v9362
    %v9364 = vpop.f32.mrf.mxu0
    %v9365 = vpop.f32.mrf.mxu0
    %v9366 = vpop.f32.mrf.mxu0
    %9367 = vdwg.mxu0
    %v9368 = vadd.f32 %v9266, %v9363
    %s9369 = scalar_lea.vmem %s19, 32
    %v9370 = vld [vmem:[%s9369] sm:$0xf]
    %v9372 = vsel %vm3919, %v9370, 0
    %9374 = vmatprep.subr.bf16.mxu0 0
    %9375 = vmatpush1.bf16.msra.mxu0 0
    %9376 = vmatprep.subr.bf16.mxu0 0
    %9377 = vmatpush1.bf16.msra.mxu0 0
    %9378 = vmatprep.subr.bf16.mxu0 0
    %9379 = vmatpush1.bf16.msra.mxu0 0
    %9380 = vmatprep.subr.bf16.mxu0 0
    %9381 = vmatpush1.bf16.msra.mxu0 0
    %9382 = vmatprep.subr.bf16.mxu0 0
    %9383 = vmatpush1.bf16.msra.mxu0 0
    %9384 = vmatprep.subr.bf16.mxu0 0
    %9385 = vmatpush1.bf16.msra.mxu0 0
    %9386 = vmatprep.subr.bf16.mxu0 0
    %9387 = vmatpush1.bf16.msra.mxu0 0
    %9388 = vmatprep.subr.bf16.mxu0 0
    %9389 = vmatpush1.bf16.msra.mxu0 %v9372
    %9390 = vmatprep.subr.bf16.mxu0 0
    %9391 = vmatpush2.bf16.msra.mxu0 0
    %9392 = vmatprep.subr.bf16.mxu0 0
    %9393 = vmatpush2.bf16.msra.mxu0 0
    %9394 = vmatprep.subr.bf16.mxu0 0
    %9395 = vmatpush2.bf16.msra.mxu0 0
    %9396 = vmatprep.subr.bf16.mxu0 0
    %9397 = vmatpush2.bf16.msra.mxu0 0
    %9398 = vmatprep.subr.bf16.mxu0 0
    %9399 = vmatpush2.bf16.msra.mxu0 0
    %9400 = vmatprep.subr.bf16.mxu0 0
    %9401 = vmatpush2.bf16.msra.mxu0 0
    %9402 = vmatprep.subr.bf16.mxu0 0
    %9403 = vmatpush2.bf16.msra.mxu0 0
    %9404 = vmatprep.subr.bf16.mxu0 0
    %9405 = vmatpush2.bf16.msra.mxu0 0
    %9406 = vmatprep.mubr.bf16.mxu0 0
    %9407 = vmatmul.mubr.bf16.gmra.mxu0 %v8553
    %v9408 = vpop.f32.mrf.mxu0
    %v9409 = vadd.f32 0.0, %v9408
    %v9410 = vpop.f32.mrf.mxu0
    %v9411 = vpop.f32.mrf.mxu0
    %v9412 = vadd.f32 0.0, %v9411
    %v9413 = vpop.f32.mrf.mxu0
    %9414 = vmatprep.mubr.bf16.mxu0 0
    %9415 = vmatmul.mubr.bf16.gmra.mxu0 %v8556
    %v9416 = vpop.f32.mrf.mxu0
    %v9417 = vadd.f32 0.0, %v9416
    %v9418 = vpop.f32.mrf.mxu0
    %v9419 = vpop.f32.mrf.mxu0
    %v9420 = vadd.f32 0.0, %v9419
    %v9421 = vpop.f32.mrf.mxu0
    %9422 = vdwg.mxu0
    %s9423 = scalar_lea.vmem [#allocation13], 32
    %v9424 = vld [vmem:[%s9423] sm:$0xf]
    %v9425 = vpack.c.bf16 %v9412, %v9409
    %v9426 = vpack.c.bf16 %v9420, %v9417
    %v9428 = vsel %vm5208, %v9424, 0
    %9430 = vmatprep.subr.bf16.mxu0 0
    %9431 = vmatpush1.bf16.msra.mxu0 0
    %9432 = vmatprep.subr.bf16.mxu0 0
    %9433 = vmatpush1.bf16.msra.mxu0 0
    %9434 = vmatprep.subr.bf16.mxu0 0
    %9435 = vmatpush1.bf16.msra.mxu0 0
    %9436 = vmatprep.subr.bf16.mxu0 0
    %9437 = vmatpush1.bf16.msra.mxu0 0
    %9438 = vmatprep.subr.bf16.mxu0 0
    %9439 = vmatpush1.bf16.msra.mxu0 0
    %9440 = vmatprep.subr.bf16.mxu0 0
    %9441 = vmatpush1.bf16.msra.mxu0 0
    %9442 = vmatprep.subr.bf16.mxu0 0
    %9443 = vmatpush1.bf16.msra.mxu0 %v9426
    %9444 = vmatprep.subr.bf16.mxu0 0
    %9445 = vmatpush1.bf16.msra.mxu0 %v9425
    %9446 = vmatprep.subr.bf16.mxu0 0
    %9447 = vmatpush2.bf16.msra.mxu0 0
    %9448 = vmatprep.subr.bf16.mxu0 0
    %9449 = vmatpush2.bf16.msra.mxu0 0
    %9450 = vmatprep.subr.bf16.mxu0 0
    %9451 = vmatpush2.bf16.msra.mxu0 0
    %9452 = vmatprep.subr.bf16.mxu0 0
    %9453 = vmatpush2.bf16.msra.mxu0 0
    %9454 = vmatprep.subr.bf16.mxu0 0
    %9455 = vmatpush2.bf16.msra.mxu0 0
    %9456 = vmatprep.subr.bf16.mxu0 0
    %9457 = vmatpush2.bf16.msra.mxu0 0
    %9458 = vmatprep.subr.bf16.mxu0 0
    %9459 = vmatpush2.bf16.msra.mxu0 0
    %9460 = vmatprep.subr.bf16.mxu0 0
    %9461 = vmatpush2.bf16.msra.mxu0 0
    %9462 = vmatprep.mubr.bf16.mxu0 0
    %9463 = vmatmul.mubr.bf16.gmra.mxu0 %v9428
    %v9464 = vpop.f32.mrf.mxu0
    %v9465 = vadd.f32 0.0, %v9464
    %v9466 = vpop.f32.mrf.mxu0
    %v9467 = vpop.f32.mrf.mxu0
    %v9468 = vpop.f32.mrf.mxu0
    %9469 = vdwg.mxu0
    %v9470 = vadd.f32 %v9368, %v9465
    %v9471 = vld [vmem:[%s20] sm:$0xff]
    %9473 = vset.pattern.permute.xlu0 0
    %9474 = vperm.xlu0 %9473, %v9471
    %v9475 = vpop.permute.xlu0 %9474
    %v9477 = vmul.f32 %v9470, %v9475
    %v9478 = vld [vmem:[%s21] sm:$0xff]
    %9480 = vset.pattern.permute.xlu0 0
    %9481 = vperm.xlu0 %9480, %v9478
    %v9482 = vpop.permute.xlu0 %9481
    %v9484 = vadd.f32 %v9477, %v9482
    %vm9485 = vcmp.ge.f32.partialorder %v9484, 0.0
    %v9486 = vmul.f32 %v9484, 0.2
    %v9487 = vsel %vm9485, %v9484, %v9486
    %v9488 = vpack.c.bf16 %v9487, %v9487
    %v9489 = vld [vmem:[%s23] sm:$0x1]
    %vm9490 = vcmask 15360
    %v9492 = vsel %vm9490, %v9488, 0
    %v9495 = vsel %vm874, %v9489, 0
    %9497 = vmatprep.subr.bf16.mxu0 0
    %9498 = vmatpush1.bf16.msra.mxu0 0
    %9499 = vmatprep.subr.bf16.mxu0 0
    %9500 = vmatpush1.bf16.msra.mxu0 0
    %9501 = vmatprep.subr.bf16.mxu0 0
    %9502 = vmatpush1.bf16.msra.mxu0 0
    %9503 = vmatprep.subr.bf16.mxu0 0
    %9504 = vmatpush1.bf16.msra.mxu0 0
    %9505 = vmatprep.subr.bf16.mxu0 0
    %9506 = vmatpush1.bf16.msra.mxu0 0
    %9507 = vmatprep.subr.bf16.mxu0 0
    %9508 = vmatpush1.bf16.msra.mxu0 0
    %9509 = vmatprep.subr.bf16.mxu0 0
    %9510 = vmatpush1.bf16.msra.mxu0 0
    %9511 = vmatprep.subr.bf16.mxu0 0
    %9512 = vmatpush1.bf16.msra.mxu0 %v9495
    %9513 = vmatprep.subr.bf16.mxu0 0
    %9514 = vmatpush2.bf16.msra.mxu0 0
    %9515 = vmatprep.subr.bf16.mxu0 0
    %9516 = vmatpush2.bf16.msra.mxu0 0
    %9517 = vmatprep.subr.bf16.mxu0 0
    %9518 = vmatpush2.bf16.msra.mxu0 0
    %9519 = vmatprep.subr.bf16.mxu0 0
    %9520 = vmatpush2.bf16.msra.mxu0 0
    %9521 = vmatprep.subr.bf16.mxu0 0
    %9522 = vmatpush2.bf16.msra.mxu0 0
    %9523 = vmatprep.subr.bf16.mxu0 0
    %9524 = vmatpush2.bf16.msra.mxu0 0
    %9525 = vmatprep.subr.bf16.mxu0 0
    %9526 = vmatpush2.bf16.msra.mxu0 0
    %9527 = vmatprep.subr.bf16.mxu0 0
    %9528 = vmatpush2.bf16.msra.mxu0 0
    %9529 = vmatprep.mubr.bf16.mxu0 0
    %9530 = vmatmul.mubr.bf16.gmra.mxu0 %v9492
    %v9531 = vpop.f32.mrf.mxu0
    %v9532 = vadd.f32 0.0, %v9531
    %v9533 = vpop.f32.mrf.mxu0
    %v9534 = vpop.f32.mrf.mxu0
    %v9535 = vpop.f32.mrf.mxu0
    %9536 = vdwg.mxu0
    %v9537 = vld [vmem:[%s22] sm:$0x1]
    %v9538 = vpack.c.bf16 %v9532, %v9532
    %s9539 = scalar_lea.vmem %s23, 1
    %v9540 = vld [vmem:[%s9539] sm:$0x1]
    %v9542 = vsel %vm874, %v9540, 0
    %9544 = vmatprep.subr.bf16.mxu0 0
    %9545 = vmatpush1.bf16.msra.mxu0 0
    %9546 = vmatprep.subr.bf16.mxu0 0
    %9547 = vmatpush1.bf16.msra.mxu0 0
    %9548 = vmatprep.subr.bf16.mxu0 0
    %9549 = vmatpush1.bf16.msra.mxu0 0
    %9550 = vmatprep.subr.bf16.mxu0 0
    %9551 = vmatpush1.bf16.msra.mxu0 0
    %9552 = vmatprep.subr.bf16.mxu0 0
    %9553 = vmatpush1.bf16.msra.mxu0 0
    %9554 = vmatprep.subr.bf16.mxu0 0
    %9555 = vmatpush1.bf16.msra.mxu0 0
    %9556 = vmatprep.subr.bf16.mxu0 0
    %9557 = vmatpush1.bf16.msra.mxu0 0
    %9558 = vmatprep.subr.bf16.mxu0 0
    %9559 = vmatpush1.bf16.msra.mxu0 %v9542
    %9560 = vmatprep.subr.bf16.mxu0 0
    %9561 = vmatpush2.bf16.msra.mxu0 0
    %9562 = vmatprep.subr.bf16.mxu0 0
    %9563 = vmatpush2.bf16.msra.mxu0 0
    %9564 = vmatprep.subr.bf16.mxu0 0
    %9565 = vmatpush2.bf16.msra.mxu0 0
    %9566 = vmatprep.subr.bf16.mxu0 0
    %9567 = vmatpush2.bf16.msra.mxu0 0
    %9568 = vmatprep.subr.bf16.mxu0 0
    %9569 = vmatpush2.bf16.msra.mxu0 0
    %9570 = vmatprep.subr.bf16.mxu0 0
    %9571 = vmatpush2.bf16.msra.mxu0 0
    %9572 = vmatprep.subr.bf16.mxu0 0
    %9573 = vmatpush2.bf16.msra.mxu0 0
    %9574 = vmatprep.subr.bf16.mxu0 0
    %9575 = vmatpush2.bf16.msra.mxu0 0
    %9576 = vmatprep.mubr.bf16.mxu0 0
    %9577 = vmatmul.mubr.bf16.gmra.mxu0 %v9492
    %v9578 = vpop.f32.mrf.mxu0
    %v9579 = vadd.f32 0.0, %v9578
    %v9580 = vpop.f32.mrf.mxu0
    %v9581 = vpop.f32.mrf.mxu0
    %v9582 = vpop.f32.mrf.mxu0
    %9583 = vdwg.mxu0
    %s9584 = scalar_lea.vmem %s22, 1
    %v9585 = vld [vmem:[%s9584] sm:$0x1]
    %v9586 = vpack.c.bf16 %v9579, %v9579
    %v9588 = vsel %vm3915, %v9585, 0
    %v9591 = vsel %vm3919, %v9586, 0
    %9593 = vmatprep.subr.bf16.mxu0 0
    %9594 = vmatpush1.bf16.msra.mxu0 0
    %9595 = vmatprep.subr.bf16.mxu0 0
    %9596 = vmatpush1.bf16.msra.mxu0 0
    %9597 = vmatprep.subr.bf16.mxu0 0
    %9598 = vmatpush1.bf16.msra.mxu0 0
    %9599 = vmatprep.subr.bf16.mxu0 0
    %9600 = vmatpush1.bf16.msra.mxu0 0
    %9601 = vmatprep.subr.bf16.mxu0 0
    %9602 = vmatpush1.bf16.msra.mxu0 0
    %9603 = vmatprep.subr.bf16.mxu0 0
    %9604 = vmatpush1.bf16.msra.mxu0 0
    %9605 = vmatprep.subr.bf16.mxu0 0
    %9606 = vmatpush1.bf16.msra.mxu0 0
    %9607 = vmatprep.subr.bf16.mxu0 0
    %9608 = vmatpush1.bf16.msra.mxu0 %v9591
    %9609 = vmatprep.subr.bf16.mxu0 0
    %9610 = vmatpush2.bf16.msra.mxu0 0
    %9611 = vmatprep.subr.bf16.mxu0 0
    %9612 = vmatpush2.bf16.msra.mxu0 0
    %9613 = vmatprep.subr.bf16.mxu0 0
    %9614 = vmatpush2.bf16.msra.mxu0 0
    %9615 = vmatprep.subr.bf16.mxu0 0
    %9616 = vmatpush2.bf16.msra.mxu0 0
    %9617 = vmatprep.subr.bf16.mxu0 0
    %9618 = vmatpush2.bf16.msra.mxu0 0
    %9619 = vmatprep.subr.bf16.mxu0 0
    %9620 = vmatpush2.bf16.msra.mxu0 0
    %9621 = vmatprep.subr.bf16.mxu0 0
    %9622 = vmatpush2.bf16.msra.mxu0 0
    %9623 = vmatprep.subr.bf16.mxu0 0
    %9624 = vmatpush2.bf16.msra.mxu0 0
    %9625 = vmatprep.mubr.bf16.mxu0 0
    %9626 = vmatmul.mubr.bf16.gmra.mxu0 %v9588
    %v9627 = vpop.f32.mrf.mxu0
    %v9628 = vadd.f32 0.0, %v9627
    %v9629 = vpop.f32.mrf.mxu0
    %v9630 = vpop.f32.mrf.mxu0
    %v9631 = vpop.f32.mrf.mxu0
    %9632 = vdwg.mxu0
    %v9634 = vsel %vm3915, %v9537, 0
    %v9637 = vsel %vm3919, %v9538, 0
    %9639 = vmatprep.subr.bf16.mxu0 0
    %9640 = vmatpush1.bf16.msra.mxu0 0
    %9641 = vmatprep.subr.bf16.mxu0 0
    %9642 = vmatpush1.bf16.msra.mxu0 0
    %9643 = vmatprep.subr.bf16.mxu0 0
    %9644 = vmatpush1.bf16.msra.mxu0 0
    %9645 = vmatprep.subr.bf16.mxu0 0
    %9646 = vmatpush1.bf16.msra.mxu0 0
    %9647 = vmatprep.subr.bf16.mxu0 0
    %9648 = vmatpush1.bf16.msra.mxu0 0
    %9649 = vmatprep.subr.bf16.mxu0 0
    %9650 = vmatpush1.bf16.msra.mxu0 0
    %9651 = vmatprep.subr.bf16.mxu0 0
    %9652 = vmatpush1.bf16.msra.mxu0 0
    %9653 = vmatprep.subr.bf16.mxu0 0
    %9654 = vmatpush1.bf16.msra.mxu0 %v9637
    %9655 = vmatprep.subr.bf16.mxu0 0
    %9656 = vmatpush2.bf16.msra.mxu0 0
    %9657 = vmatprep.subr.bf16.mxu0 0
    %9658 = vmatpush2.bf16.msra.mxu0 0
    %9659 = vmatprep.subr.bf16.mxu0 0
    %9660 = vmatpush2.bf16.msra.mxu0 0
    %9661 = vmatprep.subr.bf16.mxu0 0
    %9662 = vmatpush2.bf16.msra.mxu0 0
    %9663 = vmatprep.subr.bf16.mxu0 0
    %9664 = vmatpush2.bf16.msra.mxu0 0
    %9665 = vmatprep.subr.bf16.mxu0 0
    %9666 = vmatpush2.bf16.msra.mxu0 0
    %9667 = vmatprep.subr.bf16.mxu0 0
    %9668 = vmatpush2.bf16.msra.mxu0 0
    %9669 = vmatprep.subr.bf16.mxu0 0
    %9670 = vmatpush2.bf16.msra.mxu0 0
    %9671 = vmatprep.mubr.bf16.mxu0 0
    %9672 = vmatmul.mubr.bf16.gmra.mxu0 %v9634
    %v9673 = vpop.f32.mrf.mxu0
    %v9674 = vadd.f32 %v9628, %v9673
    %v9675 = vpop.f32.mrf.mxu0
    %v9676 = vpop.f32.mrf.mxu0
    %v9677 = vpop.f32.mrf.mxu0
    %9678 = vdwg.mxu0
    %s9679 = scalar_lea.vmem %s23, 2
    %v9680 = vld [vmem:[%s9679] sm:$0x1]
    %v9682 = vsel %vm874, %v9680, 0
    %9684 = vmatprep.subr.bf16.mxu0 0
    %9685 = vmatpush1.bf16.msra.mxu0 0
    %9686 = vmatprep.subr.bf16.mxu0 0
    %9687 = vmatpush1.bf16.msra.mxu0 0
    %9688 = vmatprep.subr.bf16.mxu0 0
    %9689 = vmatpush1.bf16.msra.mxu0 0
    %9690 = vmatprep.subr.bf16.mxu0 0
    %9691 = vmatpush1.bf16.msra.mxu0 0
    %9692 = vmatprep.subr.bf16.mxu0 0
    %9693 = vmatpush1.bf16.msra.mxu0 0
    %9694 = vmatprep.subr.bf16.mxu0 0
    %9695 = vmatpush1.bf16.msra.mxu0 0
    %9696 = vmatprep.subr.bf16.mxu0 0
    %9697 = vmatpush1.bf16.msra.mxu0 0
    %9698 = vmatprep.subr.bf16.mxu0 0
    %9699 = vmatpush1.bf16.msra.mxu0 %v9682
    %9700 = vmatprep.subr.bf16.mxu0 0
    %9701 = vmatpush2.bf16.msra.mxu0 0
    %9702 = vmatprep.subr.bf16.mxu0 0
    %9703 = vmatpush2.bf16.msra.mxu0 0
    %9704 = vmatprep.subr.bf16.mxu0 0
    %9705 = vmatpush2.bf16.msra.mxu0 0
    %9706 = vmatprep.subr.bf16.mxu0 0
    %9707 = vmatpush2.bf16.msra.mxu0 0
    %9708 = vmatprep.subr.bf16.mxu0 0
    %9709 = vmatpush2.bf16.msra.mxu0 0
    %9710 = vmatprep.subr.bf16.mxu0 0
    %9711 = vmatpush2.bf16.msra.mxu0 0
    %9712 = vmatprep.subr.bf16.mxu0 0
    %9713 = vmatpush2.bf16.msra.mxu0 0
    %9714 = vmatprep.subr.bf16.mxu0 0
    %9715 = vmatpush2.bf16.msra.mxu0 0
    %9716 = vmatprep.mubr.bf16.mxu0 0
    %9717 = vmatmul.mubr.bf16.gmra.mxu0 %v9492
    %v9718 = vpop.f32.mrf.mxu0
    %v9719 = vadd.f32 0.0, %v9718
    %v9720 = vpop.f32.mrf.mxu0
    %v9721 = vpop.f32.mrf.mxu0
    %v9722 = vpop.f32.mrf.mxu0
    %9723 = vdwg.mxu0
    %s9724 = scalar_lea.vmem %s22, 2
    %v9725 = vld [vmem:[%s9724] sm:$0x1]
    %v9726 = vpack.c.bf16 %v9719, %v9719
    %v9728 = vsel %vm3915, %v9725, 0
    %v9731 = vsel %vm3919, %v9726, 0
    %9733 = vmatprep.subr.bf16.mxu0 0
    %9734 = vmatpush1.bf16.msra.mxu0 0
    %9735 = vmatprep.subr.bf16.mxu0 0
    %9736 = vmatpush1.bf16.msra.mxu0 0
    %9737 = vmatprep.subr.bf16.mxu0 0
    %9738 = vmatpush1.bf16.msra.mxu0 0
    %9739 = vmatprep.subr.bf16.mxu0 0
    %9740 = vmatpush1.bf16.msra.mxu0 0
    %9741 = vmatprep.subr.bf16.mxu0 0
    %9742 = vmatpush1.bf16.msra.mxu0 0
    %9743 = vmatprep.subr.bf16.mxu0 0
    %9744 = vmatpush1.bf16.msra.mxu0 0
    %9745 = vmatprep.subr.bf16.mxu0 0
    %9746 = vmatpush1.bf16.msra.mxu0 0
    %9747 = vmatprep.subr.bf16.mxu0 0
    %9748 = vmatpush1.bf16.msra.mxu0 %v9731
    %9749 = vmatprep.subr.bf16.mxu0 0
    %9750 = vmatpush2.bf16.msra.mxu0 0
    %9751 = vmatprep.subr.bf16.mxu0 0
    %9752 = vmatpush2.bf16.msra.mxu0 0
    %9753 = vmatprep.subr.bf16.mxu0 0
    %9754 = vmatpush2.bf16.msra.mxu0 0
    %9755 = vmatprep.subr.bf16.mxu0 0
    %9756 = vmatpush2.bf16.msra.mxu0 0
    %9757 = vmatprep.subr.bf16.mxu0 0
    %9758 = vmatpush2.bf16.msra.mxu0 0
    %9759 = vmatprep.subr.bf16.mxu0 0
    %9760 = vmatpush2.bf16.msra.mxu0 0
    %9761 = vmatprep.subr.bf16.mxu0 0
    %9762 = vmatpush2.bf16.msra.mxu0 0
    %9763 = vmatprep.subr.bf16.mxu0 0
    %9764 = vmatpush2.bf16.msra.mxu0 0
    %9765 = vmatprep.mubr.bf16.mxu0 0
    %9766 = vmatmul.mubr.bf16.gmra.mxu0 %v9728
    %v9767 = vpop.f32.mrf.mxu0
    %v9768 = vadd.f32 0.0, %v9767
    %v9769 = vpop.f32.mrf.mxu0
    %v9770 = vpop.f32.mrf.mxu0
    %v9771 = vpop.f32.mrf.mxu0
    %9772 = vdwg.mxu0
    %v9773 = vadd.f32 %v9674, %v9768
    %s9774 = scalar_lea.vmem %s23, 3
    %v9775 = vld [vmem:[%s9774] sm:$0x1]
    %v9777 = vsel %vm874, %v9775, 0
    %9779 = vmatprep.subr.bf16.mxu0 0
    %9780 = vmatpush1.bf16.msra.mxu0 0
    %9781 = vmatprep.subr.bf16.mxu0 0
    %9782 = vmatpush1.bf16.msra.mxu0 0
    %9783 = vmatprep.subr.bf16.mxu0 0
    %9784 = vmatpush1.bf16.msra.mxu0 0
    %9785 = vmatprep.subr.bf16.mxu0 0
    %9786 = vmatpush1.bf16.msra.mxu0 0
    %9787 = vmatprep.subr.bf16.mxu0 0
    %9788 = vmatpush1.bf16.msra.mxu0 0
    %9789 = vmatprep.subr.bf16.mxu0 0
    %9790 = vmatpush1.bf16.msra.mxu0 0
    %9791 = vmatprep.subr.bf16.mxu0 0
    %9792 = vmatpush1.bf16.msra.mxu0 0
    %9793 = vmatprep.subr.bf16.mxu0 0
    %9794 = vmatpush1.bf16.msra.mxu0 %v9777
    %9795 = vmatprep.subr.bf16.mxu0 0
    %9796 = vmatpush2.bf16.msra.mxu0 0
    %9797 = vmatprep.subr.bf16.mxu0 0
    %9798 = vmatpush2.bf16.msra.mxu0 0
    %9799 = vmatprep.subr.bf16.mxu0 0
    %9800 = vmatpush2.bf16.msra.mxu0 0
    %9801 = vmatprep.subr.bf16.mxu0 0
    %9802 = vmatpush2.bf16.msra.mxu0 0
    %9803 = vmatprep.subr.bf16.mxu0 0
    %9804 = vmatpush2.bf16.msra.mxu0 0
    %9805 = vmatprep.subr.bf16.mxu0 0
    %9806 = vmatpush2.bf16.msra.mxu0 0
    %9807 = vmatprep.subr.bf16.mxu0 0
    %9808 = vmatpush2.bf16.msra.mxu0 0
    %9809 = vmatprep.subr.bf16.mxu0 0
    %9810 = vmatpush2.bf16.msra.mxu0 0
    %9811 = vmatprep.mubr.bf16.mxu0 0
    %9812 = vmatmul.mubr.bf16.gmra.mxu0 %v9492
    %v9813 = vpop.f32.mrf.mxu0
    %v9814 = vadd.f32 0.0, %v9813
    %v9815 = vpop.f32.mrf.mxu0
    %v9816 = vpop.f32.mrf.mxu0
    %v9817 = vpop.f32.mrf.mxu0
    %9818 = vdwg.mxu0
    %s9819 = scalar_lea.vmem %s22, 3
    %v9820 = vld [vmem:[%s9819] sm:$0x1]
    %v9821 = vpack.c.bf16 %v9814, %v9814
    %v9823 = vsel %vm3915, %v9820, 0
    %v9826 = vsel %vm3919, %v9821, 0
    %9828 = vmatprep.subr.bf16.mxu0 0
    %9829 = vmatpush1.bf16.msra.mxu0 0
    %9830 = vmatprep.subr.bf16.mxu0 0
    %9831 = vmatpush1.bf16.msra.mxu0 0
    %9832 = vmatprep.subr.bf16.mxu0 0
    %9833 = vmatpush1.bf16.msra.mxu0 0
    %9834 = vmatprep.subr.bf16.mxu0 0
    %9835 = vmatpush1.bf16.msra.mxu0 0
    %9836 = vmatprep.subr.bf16.mxu0 0
    %9837 = vmatpush1.bf16.msra.mxu0 0
    %9838 = vmatprep.subr.bf16.mxu0 0
    %9839 = vmatpush1.bf16.msra.mxu0 0
    %9840 = vmatprep.subr.bf16.mxu0 0
    %9841 = vmatpush1.bf16.msra.mxu0 0
    %9842 = vmatprep.subr.bf16.mxu0 0
    %9843 = vmatpush1.bf16.msra.mxu0 %v9826
    %9844 = vmatprep.subr.bf16.mxu0 0
    %9845 = vmatpush2.bf16.msra.mxu0 0
    %9846 = vmatprep.subr.bf16.mxu0 0
    %9847 = vmatpush2.bf16.msra.mxu0 0
    %9848 = vmatprep.subr.bf16.mxu0 0
    %9849 = vmatpush2.bf16.msra.mxu0 0
    %9850 = vmatprep.subr.bf16.mxu0 0
    %9851 = vmatpush2.bf16.msra.mxu0 0
    %9852 = vmatprep.subr.bf16.mxu0 0
    %9853 = vmatpush2.bf16.msra.mxu0 0
    %9854 = vmatprep.subr.bf16.mxu0 0
    %9855 = vmatpush2.bf16.msra.mxu0 0
    %9856 = vmatprep.subr.bf16.mxu0 0
    %9857 = vmatpush2.bf16.msra.mxu0 0
    %9858 = vmatprep.subr.bf16.mxu0 0
    %9859 = vmatpush2.bf16.msra.mxu0 0
    %9860 = vmatprep.mubr.bf16.mxu0 0
    %9861 = vmatmul.mubr.bf16.gmra.mxu0 %v9823
    %v9862 = vpop.f32.mrf.mxu0
    %v9863 = vadd.f32 0.0, %v9862
    %v9864 = vpop.f32.mrf.mxu0
    %v9865 = vpop.f32.mrf.mxu0
    %v9866 = vpop.f32.mrf.mxu0
    %9867 = vdwg.mxu0
    %v9868 = vadd.f32 %v9773, %v9863
    %s9869 = scalar_lea.vmem %s23, 4
    %v9870 = vld [vmem:[%s9869] sm:$0x1]
    %v9872 = vsel %vm874, %v9870, 0
    %9874 = vmatprep.subr.bf16.mxu0 0
    %9875 = vmatpush1.bf16.msra.mxu0 0
    %9876 = vmatprep.subr.bf16.mxu0 0
    %9877 = vmatpush1.bf16.msra.mxu0 0
    %9878 = vmatprep.subr.bf16.mxu0 0
    %9879 = vmatpush1.bf16.msra.mxu0 0
    %9880 = vmatprep.subr.bf16.mxu0 0
    %9881 = vmatpush1.bf16.msra.mxu0 0
    %9882 = vmatprep.subr.bf16.mxu0 0
    %9883 = vmatpush1.bf16.msra.mxu0 0
    %9884 = vmatprep.subr.bf16.mxu0 0
    %9885 = vmatpush1.bf16.msra.mxu0 0
    %9886 = vmatprep.subr.bf16.mxu0 0
    %9887 = vmatpush1.bf16.msra.mxu0 0
    %9888 = vmatprep.subr.bf16.mxu0 0
    %9889 = vmatpush1.bf16.msra.mxu0 %v9872
    %9890 = vmatprep.subr.bf16.mxu0 0
    %9891 = vmatpush2.bf16.msra.mxu0 0
    %9892 = vmatprep.subr.bf16.mxu0 0
    %9893 = vmatpush2.bf16.msra.mxu0 0
    %9894 = vmatprep.subr.bf16.mxu0 0
    %9895 = vmatpush2.bf16.msra.mxu0 0
    %9896 = vmatprep.subr.bf16.mxu0 0
    %9897 = vmatpush2.bf16.msra.mxu0 0
    %9898 = vmatprep.subr.bf16.mxu0 0
    %9899 = vmatpush2.bf16.msra.mxu0 0
    %9900 = vmatprep.subr.bf16.mxu0 0
    %9901 = vmatpush2.bf16.msra.mxu0 0
    %9902 = vmatprep.subr.bf16.mxu0 0
    %9903 = vmatpush2.bf16.msra.mxu0 0
    %9904 = vmatprep.subr.bf16.mxu0 0
    %9905 = vmatpush2.bf16.msra.mxu0 0
    %9906 = vmatprep.mubr.bf16.mxu0 0
    %9907 = vmatmul.mubr.bf16.gmra.mxu0 %v9492
    %v9908 = vpop.f32.mrf.mxu0
    %v9909 = vadd.f32 0.0, %v9908
    %v9910 = vpop.f32.mrf.mxu0
    %v9911 = vpop.f32.mrf.mxu0
    %v9912 = vpop.f32.mrf.mxu0
    %9913 = vdwg.mxu0
    %s9914 = scalar_lea.vmem %s22, 4
    %v9915 = vld [vmem:[%s9914] sm:$0x1]
    %v9916 = vpack.c.bf16 %v9909, %v9909
    %v9918 = vsel %vm3915, %v9915, 0
    %v9921 = vsel %vm3919, %v9916, 0
    %9923 = vmatprep.subr.bf16.mxu0 0
    %9924 = vmatpush1.bf16.msra.mxu0 0
    %9925 = vmatprep.subr.bf16.mxu0 0
    %9926 = vmatpush1.bf16.msra.mxu0 0
    %9927 = vmatprep.subr.bf16.mxu0 0
    %9928 = vmatpush1.bf16.msra.mxu0 0
    %9929 = vmatprep.subr.bf16.mxu0 0
    %9930 = vmatpush1.bf16.msra.mxu0 0
    %9931 = vmatprep.subr.bf16.mxu0 0
    %9932 = vmatpush1.bf16.msra.mxu0 0
    %9933 = vmatprep.subr.bf16.mxu0 0
    %9934 = vmatpush1.bf16.msra.mxu0 0
    %9935 = vmatprep.subr.bf16.mxu0 0
    %9936 = vmatpush1.bf16.msra.mxu0 0
    %9937 = vmatprep.subr.bf16.mxu0 0
    %9938 = vmatpush1.bf16.msra.mxu0 %v9921
    %9939 = vmatprep.subr.bf16.mxu0 0
    %9940 = vmatpush2.bf16.msra.mxu0 0
    %9941 = vmatprep.subr.bf16.mxu0 0
    %9942 = vmatpush2.bf16.msra.mxu0 0
    %9943 = vmatprep.subr.bf16.mxu0 0
    %9944 = vmatpush2.bf16.msra.mxu0 0
    %9945 = vmatprep.subr.bf16.mxu0 0
    %9946 = vmatpush2.bf16.msra.mxu0 0
    %9947 = vmatprep.subr.bf16.mxu0 0
    %9948 = vmatpush2.bf16.msra.mxu0 0
    %9949 = vmatprep.subr.bf16.mxu0 0
    %9950 = vmatpush2.bf16.msra.mxu0 0
    %9951 = vmatprep.subr.bf16.mxu0 0
    %9952 = vmatpush2.bf16.msra.mxu0 0
    %9953 = vmatprep.subr.bf16.mxu0 0
    %9954 = vmatpush2.bf16.msra.mxu0 0
    %9955 = vmatprep.mubr.bf16.mxu0 0
    %9956 = vmatmul.mubr.bf16.gmra.mxu0 %v9918
    %v9957 = vpop.f32.mrf.mxu0
    %v9958 = vadd.f32 0.0, %v9957
    %v9959 = vpop.f32.mrf.mxu0
    %v9960 = vpop.f32.mrf.mxu0
    %v9961 = vpop.f32.mrf.mxu0
    %9962 = vdwg.mxu0
    %v9963 = vadd.f32 %v9868, %v9958
    %s9964 = scalar_lea.vmem %s23, 5
    %v9965 = vld [vmem:[%s9964] sm:$0x1]
    %v9967 = vsel %vm874, %v9965, 0
    %9969 = vmatprep.subr.bf16.mxu0 0
    %9970 = vmatpush1.bf16.msra.mxu0 0
    %9971 = vmatprep.subr.bf16.mxu0 0
    %9972 = vmatpush1.bf16.msra.mxu0 0
    %9973 = vmatprep.subr.bf16.mxu0 0
    %9974 = vmatpush1.bf16.msra.mxu0 0
    %9975 = vmatprep.subr.bf16.mxu0 0
    %9976 = vmatpush1.bf16.msra.mxu0 0
    %9977 = vmatprep.subr.bf16.mxu0 0
    %9978 = vmatpush1.bf16.msra.mxu0 0
    %9979 = vmatprep.subr.bf16.mxu0 0
    %9980 = vmatpush1.bf16.msra.mxu0 0
    %9981 = vmatprep.subr.bf16.mxu0 0
    %9982 = vmatpush1.bf16.msra.mxu0 0
    %9983 = vmatprep.subr.bf16.mxu0 0
    %9984 = vmatpush1.bf16.msra.mxu0 %v9967
    %9985 = vmatprep.subr.bf16.mxu0 0
    %9986 = vmatpush2.bf16.msra.mxu0 0
    %9987 = vmatprep.subr.bf16.mxu0 0
    %9988 = vmatpush2.bf16.msra.mxu0 0
    %9989 = vmatprep.subr.bf16.mxu0 0
    %9990 = vmatpush2.bf16.msra.mxu0 0
    %9991 = vmatprep.subr.bf16.mxu0 0
    %9992 = vmatpush2.bf16.msra.mxu0 0
    %9993 = vmatprep.subr.bf16.mxu0 0
    %9994 = vmatpush2.bf16.msra.mxu0 0
    %9995 = vmatprep.subr.bf16.mxu0 0
    %9996 = vmatpush2.bf16.msra.mxu0 0
    %9997 = vmatprep.subr.bf16.mxu0 0
    %9998 = vmatpush2.bf16.msra.mxu0 0
    %9999 = vmatprep.subr.bf16.mxu0 0
    %10000 = vmatpush2.bf16.msra.mxu0 0
    %10001 = vmatprep.mubr.bf16.mxu0 0
    %10002 = vmatmul.mubr.bf16.gmra.mxu0 %v9492
    %v10003 = vpop.f32.mrf.mxu0
    %v10004 = vadd.f32 0.0, %v10003
    %v10005 = vpop.f32.mrf.mxu0
    %v10006 = vpop.f32.mrf.mxu0
    %v10007 = vpop.f32.mrf.mxu0
    %10008 = vdwg.mxu0
    %s10009 = scalar_lea.vmem %s22, 5
    %v10010 = vld [vmem:[%s10009] sm:$0x1]
    %v10011 = vpack.c.bf16 %v10004, %v10004
    %v10013 = vsel %vm3915, %v10010, 0
    %v10016 = vsel %vm3919, %v10011, 0
    %10018 = vmatprep.subr.bf16.mxu0 0
    %10019 = vmatpush1.bf16.msra.mxu0 0
    %10020 = vmatprep.subr.bf16.mxu0 0
    %10021 = vmatpush1.bf16.msra.mxu0 0
    %10022 = vmatprep.subr.bf16.mxu0 0
    %10023 = vmatpush1.bf16.msra.mxu0 0
    %10024 = vmatprep.subr.bf16.mxu0 0
    %10025 = vmatpush1.bf16.msra.mxu0 0
    %10026 = vmatprep.subr.bf16.mxu0 0
    %10027 = vmatpush1.bf16.msra.mxu0 0
    %10028 = vmatprep.subr.bf16.mxu0 0
    %10029 = vmatpush1.bf16.msra.mxu0 0
    %10030 = vmatprep.subr.bf16.mxu0 0
    %10031 = vmatpush1.bf16.msra.mxu0 0
    %10032 = vmatprep.subr.bf16.mxu0 0
    %10033 = vmatpush1.bf16.msra.mxu0 %v10016
    %10034 = vmatprep.subr.bf16.mxu0 0
    %10035 = vmatpush2.bf16.msra.mxu0 0
    %10036 = vmatprep.subr.bf16.mxu0 0
    %10037 = vmatpush2.bf16.msra.mxu0 0
    %10038 = vmatprep.subr.bf16.mxu0 0
    %10039 = vmatpush2.bf16.msra.mxu0 0
    %10040 = vmatprep.subr.bf16.mxu0 0
    %10041 = vmatpush2.bf16.msra.mxu0 0
    %10042 = vmatprep.subr.bf16.mxu0 0
    %10043 = vmatpush2.bf16.msra.mxu0 0
    %10044 = vmatprep.subr.bf16.mxu0 0
    %10045 = vmatpush2.bf16.msra.mxu0 0
    %10046 = vmatprep.subr.bf16.mxu0 0
    %10047 = vmatpush2.bf16.msra.mxu0 0
    %10048 = vmatprep.subr.bf16.mxu0 0
    %10049 = vmatpush2.bf16.msra.mxu0 0
    %10050 = vmatprep.mubr.bf16.mxu0 0
    %10051 = vmatmul.mubr.bf16.gmra.mxu0 %v10013
    %v10052 = vpop.f32.mrf.mxu0
    %v10053 = vadd.f32 0.0, %v10052
    %v10054 = vpop.f32.mrf.mxu0
    %v10055 = vpop.f32.mrf.mxu0
    %v10056 = vpop.f32.mrf.mxu0
    %10057 = vdwg.mxu0
    %v10058 = vadd.f32 %v9963, %v10053
    %s10059 = scalar_lea.vmem %s23, 6
    %v10060 = vld [vmem:[%s10059] sm:$0x1]
    %v10062 = vsel %vm874, %v10060, 0
    %10064 = vmatprep.subr.bf16.mxu0 0
    %10065 = vmatpush1.bf16.msra.mxu0 0
    %10066 = vmatprep.subr.bf16.mxu0 0
    %10067 = vmatpush1.bf16.msra.mxu0 0
    %10068 = vmatprep.subr.bf16.mxu0 0
    %10069 = vmatpush1.bf16.msra.mxu0 0
    %10070 = vmatprep.subr.bf16.mxu0 0
    %10071 = vmatpush1.bf16.msra.mxu0 0
    %10072 = vmatprep.subr.bf16.mxu0 0
    %10073 = vmatpush1.bf16.msra.mxu0 0
    %10074 = vmatprep.subr.bf16.mxu0 0
    %10075 = vmatpush1.bf16.msra.mxu0 0
    %10076 = vmatprep.subr.bf16.mxu0 0
    %10077 = vmatpush1.bf16.msra.mxu0 0
    %10078 = vmatprep.subr.bf16.mxu0 0
    %10079 = vmatpush1.bf16.msra.mxu0 %v10062
    %10080 = vmatprep.subr.bf16.mxu0 0
    %10081 = vmatpush2.bf16.msra.mxu0 0
    %10082 = vmatprep.subr.bf16.mxu0 0
    %10083 = vmatpush2.bf16.msra.mxu0 0
    %10084 = vmatprep.subr.bf16.mxu0 0
    %10085 = vmatpush2.bf16.msra.mxu0 0
    %10086 = vmatprep.subr.bf16.mxu0 0
    %10087 = vmatpush2.bf16.msra.mxu0 0
    %10088 = vmatprep.subr.bf16.mxu0 0
    %10089 = vmatpush2.bf16.msra.mxu0 0
    %10090 = vmatprep.subr.bf16.mxu0 0
    %10091 = vmatpush2.bf16.msra.mxu0 0
    %10092 = vmatprep.subr.bf16.mxu0 0
    %10093 = vmatpush2.bf16.msra.mxu0 0
    %10094 = vmatprep.subr.bf16.mxu0 0
    %10095 = vmatpush2.bf16.msra.mxu0 0
    %10096 = vmatprep.mubr.bf16.mxu0 0
    %10097 = vmatmul.mubr.bf16.gmra.mxu0 %v9492
    %v10098 = vpop.f32.mrf.mxu0
    %v10099 = vadd.f32 0.0, %v10098
    %v10100 = vpop.f32.mrf.mxu0
    %v10101 = vpop.f32.mrf.mxu0
    %v10102 = vpop.f32.mrf.mxu0
    %10103 = vdwg.mxu0
    %s10104 = scalar_lea.vmem %s22, 6
    %v10105 = vld [vmem:[%s10104] sm:$0x1]
    %v10106 = vpack.c.bf16 %v10099, %v10099
    %v10108 = vsel %vm3915, %v10105, 0
    %v10111 = vsel %vm3919, %v10106, 0
    %10113 = vmatprep.subr.bf16.mxu0 0
    %10114 = vmatpush1.bf16.msra.mxu0 0
    %10115 = vmatprep.subr.bf16.mxu0 0
    %10116 = vmatpush1.bf16.msra.mxu0 0
    %10117 = vmatprep.subr.bf16.mxu0 0
    %10118 = vmatpush1.bf16.msra.mxu0 0
    %10119 = vmatprep.subr.bf16.mxu0 0
    %10120 = vmatpush1.bf16.msra.mxu0 0
    %10121 = vmatprep.subr.bf16.mxu0 0
    %10122 = vmatpush1.bf16.msra.mxu0 0
    %10123 = vmatprep.subr.bf16.mxu0 0
    %10124 = vmatpush1.bf16.msra.mxu0 0
    %10125 = vmatprep.subr.bf16.mxu0 0
    %10126 = vmatpush1.bf16.msra.mxu0 0
    %10127 = vmatprep.subr.bf16.mxu0 0
    %10128 = vmatpush1.bf16.msra.mxu0 %v10111
    %10129 = vmatprep.subr.bf16.mxu0 0
    %10130 = vmatpush2.bf16.msra.mxu0 0
    %10131 = vmatprep.subr.bf16.mxu0 0
    %10132 = vmatpush2.bf16.msra.mxu0 0
    %10133 = vmatprep.subr.bf16.mxu0 0
    %10134 = vmatpush2.bf16.msra.mxu0 0
    %10135 = vmatprep.subr.bf16.mxu0 0
    %10136 = vmatpush2.bf16.msra.mxu0 0
    %10137 = vmatprep.subr.bf16.mxu0 0
    %10138 = vmatpush2.bf16.msra.mxu0 0
    %10139 = vmatprep.subr.bf16.mxu0 0
    %10140 = vmatpush2.bf16.msra.mxu0 0
    %10141 = vmatprep.subr.bf16.mxu0 0
    %10142 = vmatpush2.bf16.msra.mxu0 0
    %10143 = vmatprep.subr.bf16.mxu0 0
    %10144 = vmatpush2.bf16.msra.mxu0 0
    %10145 = vmatprep.mubr.bf16.mxu0 0
    %10146 = vmatmul.mubr.bf16.gmra.mxu0 %v10108
    %v10147 = vpop.f32.mrf.mxu0
    %v10148 = vadd.f32 0.0, %v10147
    %v10149 = vpop.f32.mrf.mxu0
    %v10150 = vpop.f32.mrf.mxu0
    %v10151 = vpop.f32.mrf.mxu0
    %10152 = vdwg.mxu0
    %v10153 = vadd.f32 %v10058, %v10148
    %s10154 = scalar_lea.vmem %s23, 7
    %v10155 = vld [vmem:[%s10154] sm:$0x1]
    %v10157 = vsel %vm874, %v10155, 0
    %10159 = vmatprep.subr.bf16.mxu0 0
    %10160 = vmatpush1.bf16.msra.mxu0 0
    %10161 = vmatprep.subr.bf16.mxu0 0
    %10162 = vmatpush1.bf16.msra.mxu0 0
    %10163 = vmatprep.subr.bf16.mxu0 0
    %10164 = vmatpush1.bf16.msra.mxu0 0
    %10165 = vmatprep.subr.bf16.mxu0 0
    %10166 = vmatpush1.bf16.msra.mxu0 0
    %10167 = vmatprep.subr.bf16.mxu0 0
    %10168 = vmatpush1.bf16.msra.mxu0 0
    %10169 = vmatprep.subr.bf16.mxu0 0
    %10170 = vmatpush1.bf16.msra.mxu0 0
    %10171 = vmatprep.subr.bf16.mxu0 0
    %10172 = vmatpush1.bf16.msra.mxu0 0
    %10173 = vmatprep.subr.bf16.mxu0 0
    %10174 = vmatpush1.bf16.msra.mxu0 %v10157
    %10175 = vmatprep.subr.bf16.mxu0 0
    %10176 = vmatpush2.bf16.msra.mxu0 0
    %10177 = vmatprep.subr.bf16.mxu0 0
    %10178 = vmatpush2.bf16.msra.mxu0 0
    %10179 = vmatprep.subr.bf16.mxu0 0
    %10180 = vmatpush2.bf16.msra.mxu0 0
    %10181 = vmatprep.subr.bf16.mxu0 0
    %10182 = vmatpush2.bf16.msra.mxu0 0
    %10183 = vmatprep.subr.bf16.mxu0 0
    %10184 = vmatpush2.bf16.msra.mxu0 0
    %10185 = vmatprep.subr.bf16.mxu0 0
    %10186 = vmatpush2.bf16.msra.mxu0 0
    %10187 = vmatprep.subr.bf16.mxu0 0
    %10188 = vmatpush2.bf16.msra.mxu0 0
    %10189 = vmatprep.subr.bf16.mxu0 0
    %10190 = vmatpush2.bf16.msra.mxu0 0
    %10191 = vmatprep.mubr.bf16.mxu0 0
    %10192 = vmatmul.mubr.bf16.gmra.mxu0 %v9492
    %v10193 = vpop.f32.mrf.mxu0
    %v10194 = vadd.f32 0.0, %v10193
    %v10195 = vpop.f32.mrf.mxu0
    %v10196 = vpop.f32.mrf.mxu0
    %v10197 = vpop.f32.mrf.mxu0
    %10198 = vdwg.mxu0
    %s10199 = scalar_lea.vmem %s22, 7
    %v10200 = vld [vmem:[%s10199] sm:$0x1]
    %v10201 = vpack.c.bf16 %v10194, %v10194
    %v10203 = vsel %vm3915, %v10200, 0
    %v10206 = vsel %vm3919, %v10201, 0
    %10208 = vmatprep.subr.bf16.mxu0 0
    %10209 = vmatpush1.bf16.msra.mxu0 0
    %10210 = vmatprep.subr.bf16.mxu0 0
    %10211 = vmatpush1.bf16.msra.mxu0 0
    %10212 = vmatprep.subr.bf16.mxu0 0
    %10213 = vmatpush1.bf16.msra.mxu0 0
    %10214 = vmatprep.subr.bf16.mxu0 0
    %10215 = vmatpush1.bf16.msra.mxu0 0
    %10216 = vmatprep.subr.bf16.mxu0 0
    %10217 = vmatpush1.bf16.msra.mxu0 0
    %10218 = vmatprep.subr.bf16.mxu0 0
    %10219 = vmatpush1.bf16.msra.mxu0 0
    %10220 = vmatprep.subr.bf16.mxu0 0
    %10221 = vmatpush1.bf16.msra.mxu0 0
    %10222 = vmatprep.subr.bf16.mxu0 0
    %10223 = vmatpush1.bf16.msra.mxu0 %v10206
    %10224 = vmatprep.subr.bf16.mxu0 0
    %10225 = vmatpush2.bf16.msra.mxu0 0
    %10226 = vmatprep.subr.bf16.mxu0 0
    %10227 = vmatpush2.bf16.msra.mxu0 0
    %10228 = vmatprep.subr.bf16.mxu0 0
    %10229 = vmatpush2.bf16.msra.mxu0 0
    %10230 = vmatprep.subr.bf16.mxu0 0
    %10231 = vmatpush2.bf16.msra.mxu0 0
    %10232 = vmatprep.subr.bf16.mxu0 0
    %10233 = vmatpush2.bf16.msra.mxu0 0
    %10234 = vmatprep.subr.bf16.mxu0 0
    %10235 = vmatpush2.bf16.msra.mxu0 0
    %10236 = vmatprep.subr.bf16.mxu0 0
    %10237 = vmatpush2.bf16.msra.mxu0 0
    %10238 = vmatprep.subr.bf16.mxu0 0
    %10239 = vmatpush2.bf16.msra.mxu0 0
    %10240 = vmatprep.mubr.bf16.mxu0 0
    %10241 = vmatmul.mubr.bf16.gmra.mxu0 %v10203
    %v10242 = vpop.f32.mrf.mxu0
    %v10243 = vadd.f32 0.0, %v10242
    %v10244 = vpop.f32.mrf.mxu0
    %v10245 = vpop.f32.mrf.mxu0
    %v10246 = vpop.f32.mrf.mxu0
    %10247 = vdwg.mxu0
    %v10248 = vadd.f32 %v10153, %v10243
    %s10249 = scalar_lea.vmem %s23, 8
    %v10250 = vld [vmem:[%s10249] sm:$0x1]
    %v10252 = vsel %vm874, %v10250, 0
    %10254 = vmatprep.subr.bf16.mxu0 0
    %10255 = vmatpush1.bf16.msra.mxu0 0
    %10256 = vmatprep.subr.bf16.mxu0 0
    %10257 = vmatpush1.bf16.msra.mxu0 0
    %10258 = vmatprep.subr.bf16.mxu0 0
    %10259 = vmatpush1.bf16.msra.mxu0 0
    %10260 = vmatprep.subr.bf16.mxu0 0
    %10261 = vmatpush1.bf16.msra.mxu0 0
    %10262 = vmatprep.subr.bf16.mxu0 0
    %10263 = vmatpush1.bf16.msra.mxu0 0
    %10264 = vmatprep.subr.bf16.mxu0 0
    %10265 = vmatpush1.bf16.msra.mxu0 0
    %10266 = vmatprep.subr.bf16.mxu0 0
    %10267 = vmatpush1.bf16.msra.mxu0 0
    %10268 = vmatprep.subr.bf16.mxu0 0
    %10269 = vmatpush1.bf16.msra.mxu0 %v10252
    %10270 = vmatprep.subr.bf16.mxu0 0
    %10271 = vmatpush2.bf16.msra.mxu0 0
    %10272 = vmatprep.subr.bf16.mxu0 0
    %10273 = vmatpush2.bf16.msra.mxu0 0
    %10274 = vmatprep.subr.bf16.mxu0 0
    %10275 = vmatpush2.bf16.msra.mxu0 0
    %10276 = vmatprep.subr.bf16.mxu0 0
    %10277 = vmatpush2.bf16.msra.mxu0 0
    %10278 = vmatprep.subr.bf16.mxu0 0
    %10279 = vmatpush2.bf16.msra.mxu0 0
    %10280 = vmatprep.subr.bf16.mxu0 0
    %10281 = vmatpush2.bf16.msra.mxu0 0
    %10282 = vmatprep.subr.bf16.mxu0 0
    %10283 = vmatpush2.bf16.msra.mxu0 0
    %10284 = vmatprep.subr.bf16.mxu0 0
    %10285 = vmatpush2.bf16.msra.mxu0 0
    %10286 = vmatprep.mubr.bf16.mxu0 0
    %10287 = vmatmul.mubr.bf16.gmra.mxu0 %v9492
    %v10288 = vpop.f32.mrf.mxu0
    %v10289 = vadd.f32 0.0, %v10288
    %v10290 = vpop.f32.mrf.mxu0
    %v10291 = vpop.f32.mrf.mxu0
    %v10292 = vpop.f32.mrf.mxu0
    %10293 = vdwg.mxu0
    %s10294 = scalar_lea.vmem %s22, 8
    %v10295 = vld [vmem:[%s10294] sm:$0x1]
    %v10296 = vpack.c.bf16 %v10289, %v10289
    %v10298 = vsel %vm3915, %v10295, 0
    %v10301 = vsel %vm3919, %v10296, 0
    %10303 = vmatprep.subr.bf16.mxu0 0
    %10304 = vmatpush1.bf16.msra.mxu0 0
    %10305 = vmatprep.subr.bf16.mxu0 0
    %10306 = vmatpush1.bf16.msra.mxu0 0
    %10307 = vmatprep.subr.bf16.mxu0 0
    %10308 = vmatpush1.bf16.msra.mxu0 0
    %10309 = vmatprep.subr.bf16.mxu0 0
    %10310 = vmatpush1.bf16.msra.mxu0 0
    %10311 = vmatprep.subr.bf16.mxu0 0
    %10312 = vmatpush1.bf16.msra.mxu0 0
    %10313 = vmatprep.subr.bf16.mxu0 0
    %10314 = vmatpush1.bf16.msra.mxu0 0
    %10315 = vmatprep.subr.bf16.mxu0 0
    %10316 = vmatpush1.bf16.msra.mxu0 0
    %10317 = vmatprep.subr.bf16.mxu0 0
    %10318 = vmatpush1.bf16.msra.mxu0 %v10301
    %10319 = vmatprep.subr.bf16.mxu0 0
    %10320 = vmatpush2.bf16.msra.mxu0 0
    %10321 = vmatprep.subr.bf16.mxu0 0
    %10322 = vmatpush2.bf16.msra.mxu0 0
    %10323 = vmatprep.subr.bf16.mxu0 0
    %10324 = vmatpush2.bf16.msra.mxu0 0
    %10325 = vmatprep.subr.bf16.mxu0 0
    %10326 = vmatpush2.bf16.msra.mxu0 0
    %10327 = vmatprep.subr.bf16.mxu0 0
    %10328 = vmatpush2.bf16.msra.mxu0 0
    %10329 = vmatprep.subr.bf16.mxu0 0
    %10330 = vmatpush2.bf16.msra.mxu0 0
    %10331 = vmatprep.subr.bf16.mxu0 0
    %10332 = vmatpush2.bf16.msra.mxu0 0
    %10333 = vmatprep.subr.bf16.mxu0 0
    %10334 = vmatpush2.bf16.msra.mxu0 0
    %10335 = vmatprep.mubr.bf16.mxu0 0
    %10336 = vmatmul.mubr.bf16.gmra.mxu0 %v10298
    %v10337 = vpop.f32.mrf.mxu0
    %v10338 = vadd.f32 0.0, %v10337
    %v10339 = vpop.f32.mrf.mxu0
    %v10340 = vpop.f32.mrf.mxu0
    %v10341 = vpop.f32.mrf.mxu0
    %10342 = vdwg.mxu0
    %v10343 = vadd.f32 %v10248, %v10338
    %v10344 = vld [vmem:[#allocation2] sm:$0x1]
    %10346 = vset.pattern.permute.xlu0 0
    %10347 = vperm.xlu0 %10346, %v10344
    %v10348 = vpop.permute.xlu0 %10347
    %v10350 = vlaneseq
    %v10351 = vshrl.u32 %v10350, 7
    %v10352 = vsub.s32 0, %v10351
    %v10353 = vrot.slane %v10348, %v10352
    %v10354 = vmul.f32 %v10343, %v10353
    %v10355 = vld [vmem:[#allocation3] sm:$0x1]
    %10357 = vset.pattern.permute.xlu0 0
    %10358 = vperm.xlu0 %10357, %v10355
    %v10359 = vpop.permute.xlu0 %10358
    %v10361 = vlaneseq
    %v10362 = vshrl.u32 %v10361, 7
    %v10363 = vsub.s32 0, %v10362
    %v10364 = vrot.slane %v10359, %v10363
    %v10365 = vadd.f32 %v10354, %v10364
    %v10366 = vxor.u32 %v10365, 2147483648
    %v10367 = vmul.f32 %v10366, 1.442695
    %v10368 = vpow.pop %v10367
    %v10369 = vadd.f32 %v10368, 1.0
    %v10370 = vrcp.pop %v10369
    %v10371 = vmul.f32 1.0, %v10370
    %vm10372 = vcmask 8192
    %10373 = vst.msk [vmem:[#allocation15] sm:$0x1] %vm10372, %v10371
    // Predicated region
    $region130: #{discriminator_attention.1} parent=1 // pred_check
      _
    $region131: #{discriminator_attention.1} parent=1 // pred_check_branch
      %10375 = sbr.rel (0) target = $region133
    $region132: #{discriminator_attention.1} parent=1 // pred_region
      %s10377 = ssub.s32 16, 16
      %10378 = vsyncadd [#allocation6], %s10377
      %s10380 = sshll.u32 [#allocation15], 4
      %s10381 = int_to_ptr.vmem [resolvable:$true] %s10380
      %10383 = dma.vmem_to_hbm [thread:$0]  %s10381, 16, %s26, [#allocation6]
    $region133: #{discriminator_attention.1} parent=1 // pred_fallthru
      _
    // Predicated region
    $region134: #{discriminator_attention.1} parent=1 // pred_check
      _
    $region135: #{discriminator_attention.1} parent=1 // pred_check_branch
      %10385 = sbr.rel (0) target = $region137
    $region136: #{discriminator_attention.1} parent=1 // pred_region
      %10386 = dma.done [#allocation6], 16
    $region137: #{discriminator_attention.1} parent=1 // pred_fallthru
      _
    %10387 = vsyncpa [#allocation5], 1
    %10388 = vsyncpa [#allocation8], 1
    %10389 = vsyncpa [#allocation11], 1
    %10390 = vsyncpa [#allocation14], 1
    %10391 = vsyncpa [#allocation6], 1

</llo_original>
